<compile_context>
chip_gen: v6e
topology: v6e:2x2x1
jax: 0.10.0
libtpu: 0.0.40
codegen_flags: <defaults>
</compile_context>

<pallas_src>
import jax
import jax.numpy as jnp
from jax.experimental import pallas as pl
from jax.experimental.pallas import tpu as pltpu

D = 8
W = 256
SKIPS = (4,)
IN_PTS = 3 + 3 * 2 * 10      # 63  (pts embedder, multires=10, include_input)
IN_VIEWS = 3 + 3 * 2 * 4     # 27  (dir embedder, multires=4, include_input)
IN_FEAT = 8
OUT_CH = 4
IN_PTS_PAD = 64              # pts embedding padded 63 -> 64 lanes
IN_VIEWS_PAD = 32            # view embedding padded 27 -> 32 lanes
TM_MAX = 1024                # row-tile cap; multiple of 256, VMEM-safe on v5e/v6e/v7x


def _embed(x, multires):
    # standard NeRF embedder: [x, sin(2^0 x), cos(2^0 x), ..., sin(2^{L-1} x), cos(2^{L-1} x)]
    outs = [x]
    for i in range(multires):
        f = 2.0 ** i
        outs.append(jnp.sin(x * f))
        outs.append(jnp.cos(x * f))
    return jnp.concatenate(outs, axis=-1)


def _choose_tm(n):
    """Pick the per-step row tile.

    Big enough to amortize the ~0.35us fixed per-step overhead and the
    per-layer MXU weight pushes, small enough to keep >= 2 grid steps on large
    inputs (so v7x's 2 TensorCores both get work) and not over-pad tiny calls.
    """
    half = -(-n // 2)
    tm = -(-half // 256) * 256
    return int(min(TM_MAX, max(256, tm)))


def _nerf_mlp_kernel(
    pts_ref, feat_ref, views_ref,      # (TM,64) / (TM,8) / (TM,32) bf16
    wh_ref,                            # (8,256,256) bf16: [w1..w4, w5h, w6, w7, wf]
    wp_ref,                            # (2,64,256)  bf16: [w0_pad, w5p_pad]
    wb_ref,                            # (8,256)     bf16: pts_bias weight
    wvh_ref,                           # (256,128)   bf16: view head (feature part)
    wvv_ref,                           # (32,128)    bf16: view head (viewdir part, padded)
    bm_ref,                            # (16,256) f32: row0=bb, 1..8=b0..b7, 9=bf, 10=[bv|0]
    whd_ref,                           # (8,256)  f32: row0=alpha w, rows1..3=rgb w (128 lanes)
    bhd_ref,                           # (1,4)    f32: [br0, br1, br2, ba]
    out_ref,                           # (TM,4)   f32
):
    f32 = jnp.float32
    bf16 = jnp.bfloat16

    pts = pts_ref[...]
    feats = feat_ref[...]
    views = views_ref[...]

    # multiplicative bias = pts_bias(input_feats)
    bias = jnp.dot(feats, wb_ref[...], preferred_element_type=f32) + bm_ref[0:1, :]

    # layer 0 acts on the (padded) pts embedding
    h = jnp.dot(pts, wp_ref[0], preferred_element_type=f32) + bm_ref[1:2, :]
    h = jnp.maximum(h * bias, 0.0)

    # layers 1..4
    for l in range(1, 5):
        h = jnp.dot(h.astype(bf16), wh_ref[l - 1], preferred_element_type=f32) + bm_ref[l + 1:l + 2, :]
        h = jnp.maximum(h * bias, 0.0)

    # layer 5 consumes cat([pts, h]); computed as h @ W_h + pts @ W_pts + b
    # (no lane concat, the big matmul stays at native K=256).
    h5 = (jnp.dot(h.astype(bf16), wh_ref[4], preferred_element_type=f32)
          + jnp.dot(pts, wp_ref[1], preferred_element_type=f32)
          + bm_ref[6:7, :])
    h = jnp.maximum(h5 * bias, 0.0)

    # layers 6, 7
    for l in range(6, 8):
        h = jnp.dot(h.astype(bf16), wh_ref[l - 1], preferred_element_type=f32) + bm_ref[l + 1:l + 2, :]
        h = jnp.maximum(h * bias, 0.0)

    # alpha head (W -> 1): VPU multiply + lane reduce in f32 (no N=1 MXU pass)
    alpha = jnp.sum(h * whd_ref[0:1, :], axis=-1, keepdims=True)          # (TM,1)

    # feature head (MXU), then view head with cat([feature, views]) as split matmuls
    feature = jnp.dot(h.astype(bf16), wh_ref[7], preferred_element_type=f32) + bm_ref[9:10, :]
    hv = (jnp.dot(feature.astype(bf16), wvh_ref[...], preferred_element_type=f32)
          + jnp.dot(views, wvv_ref[...], preferred_element_type=f32)
          + bm_ref[10:11, 0:W // 2])
    hv = jnp.maximum(hv, 0.0)                                             # (TM,128)

    # rgb head (128 -> 3): 3 VPU broadcast-multiplies + lane reductions (no N=3 MXU pass)
    r0 = jnp.sum(hv * whd_ref[1:2, 0:W // 2], axis=-1, keepdims=True)
    r1 = jnp.sum(hv * whd_ref[2:3, 0:W // 2], axis=-1, keepdims=True)
    r2 = jnp.sum(hv * whd_ref[3:4, 0:W // 2], axis=-1, keepdims=True)

    # single (TM,4) store: [rgb, alpha] + head biases
    out = jnp.concatenate([r0, r1, r2, alpha], axis=-1) + bhd_ref[...]
    out_ref[...] = out.astype(out_ref.dtype)


def init_params(key):
    """Deterministic init matching the torch module's shapes (f32, canonical layout).

    Kaiming-normal (fan_in, gain sqrt(2)) + zero bias for layers the module applies
    weights_init to; PyTorch-default uniform init for pts_bias.
    Weights are stored (in_features, out_features).
    """
    keys = jax.random.split(key, 16)
    it = iter(keys)

    def kaiming(k, fin, fout):
        return jax.random.normal(k, (fin, fout), jnp.float32) * jnp.sqrt(2.0 / fin)

    def default_linear(k, fin, fout):
        k1, k2 = jax.random.split(k)
        bound = 1.0 / jnp.sqrt(float(fin))
        w = jax.random.uniform(k1, (fin, fout), jnp.float32, -bound, bound)
        b = jax.random.uniform(k2, (1, fout), jnp.float32, -bound, bound)
        return w, b

    params = []
    # pts_bias: Linear(in_ch_feat=8, W) -- default torch init (no weights_init)
    wb, bb = default_linear(next(it), IN_FEAT, W)
    params += [wb, bb]
    # pts_linears: [Linear(63, W)] + 7 layers; layer 5 takes the skip concat (W + 63)
    in_dims = [IN_PTS] + [W if (i not in SKIPS) else W + IN_PTS for i in range(D - 1)]
    for fin in in_dims:
        params += [kaiming(next(it), fin, W), jnp.zeros((1, W), jnp.float32)]
    # alpha_linear: Linear(W, 1)
    params += [kaiming(next(it), W, 1), jnp.zeros((1, 1), jnp.float32)]
    # feature_linear: Linear(W, W)
    params += [kaiming(next(it), W, W), jnp.zeros((1, W), jnp.float32)]
    # view_linears[0]: Linear(W + in_ch_views, W // 2)   (rows: [feature(256), views(27)])
    params += [kaiming(next(it), W + IN_VIEWS, W // 2), jnp.zeros((1, W // 2), jnp.float32)]
    # rgb_linear: Linear(W // 2, 3)
    params += [kaiming(next(it), W // 2, 3), jnp.zeros((1, 3), jnp.float32)]
    return params


def _prep_params(params):
    """Pack / pad / cast the canonical params into the 8 kernel operands."""
    (wb, bb,
     w0, b0, w1, b1, w2, b2, w3, b3, w4, b4, w5, b5, w6, b6, w7, b7,
     wa, ba, wf, bff, wv, bv, wr, br) = params
    bf16 = jnp.bfloat16
    f32 = jnp.float32

    # skip layer (319,256): rows 0:63 act on pts (torch cat order [pts, h]), rows 63:319 on h
    w5p = w5[:IN_PTS]
    w5h = w5[IN_PTS:]
    # view layer (283,128): rows 0:256 act on feature (torch cat order [feature, views]), rest on views
    wvh = wv[:W]
    wvv = wv[W:]

    def pad_rows(w, rows):
        return jnp.pad(w, ((0, rows - w.shape[0]), (0, 0)))

    w_hidden = jnp.stack([w1, w2, w3, w4, w5h, w6, w7, wf]).astype(bf16)        # (8,256,256)
    w_pts = jnp.stack([pad_rows(w0, IN_PTS_PAD),
                       pad_rows(w5p, IN_PTS_PAD)]).astype(bf16)                 # (2,64,256)
    wb_b = wb.astype(bf16)                                                      # (8,256)
    wvh_b = wvh.astype(bf16)                                                    # (256,128)
    wvv_b = pad_rows(wvv, IN_VIEWS_PAD).astype(bf16)                            # (32,128)

    # packed f32 biases: row 0 = bb, rows 1..8 = b0..b7, row 9 = bf, row 10 = [bv | 0]
    b_main = jnp.zeros((16, W), f32)
    for i, r in enumerate([bb, b0, b1, b2, b3, b4, b5, b6, b7, bff]):
        b_main = b_main.at[i].set(r[0])
    b_main = b_main.at[10, :W // 2].set(bv[0])

    # head weights (f32, VPU/XLU reduce path): row 0 = alpha weight, rows 1..3 = rgb weight cols
    w_head = jnp.zeros((8, W), f32)
    w_head = w_head.at[0].set(wa[:, 0])
    w_head = w_head.at[1:4, :W // 2].set(wr.T)
    b_head = jnp.concatenate([br, ba], axis=-1).astype(f32)                     # (1,4) = [br, ba]

    return [w_hidden, w_pts, wb_b, wvh_b, wvv_b, b_main, w_head, b_head]


def nerf_forward(params, pts, viewdirs, alpha_feat):
    """pts: (R, S, 3); viewdirs: (R, 3) or (R, S, 3); alpha_feat: (R, S, 8) -> (R, S, 4)."""
    n_rays, n_samples, _ = pts.shape

    # --- embedders: f32 sin/cos in the wrapper, then bf16 for the MXU operands ---
    pts_e = _embed(pts.astype(jnp.float32), 10)                     # (R, S, 63)
    if viewdirs.ndim != 3:
        viewdirs = jnp.broadcast_to(viewdirs[:, None, :],
                                    (n_rays, n_samples, viewdirs.shape[-1]))
    vd_e = _embed(viewdirs.astype(jnp.float32), 4)                  # (R, S, 27)

    n = n_rays * n_samples
    tm = _choose_tm(n)
    n_pad = pl.cdiv(n, tm) * tm
    grid = (n_pad // tm,)

    def flat(a, c, c_pad):
        a = a.reshape(n, c).astype(jnp.bfloat16)
        return jnp.pad(a, ((0, n_pad - n), (0, c_pad - c)))

    pts_f = flat(pts_e, IN_PTS, IN_PTS_PAD)
    feat_f = flat(alpha_feat, IN_FEAT, IN_FEAT)
    views_f = flat(vd_e, IN_VIEWS, IN_VIEWS_PAD)

    kparams = _prep_params(params)

    def const_spec(shape):
        # resident operand: whole array as a single block, same block every step
        return pl.BlockSpec(shape, lambda i, _n=len(shape): (0,) * _n)

    in_specs = [
        pl.BlockSpec((tm, IN_PTS_PAD), lambda i: (i, 0)),
        pl.BlockSpec((tm, IN_FEAT), lambda i: (i, 0)),
        pl.BlockSpec((tm, IN_VIEWS_PAD), lambda i: (i, 0)),
    ] + [const_spec(p.shape) for p in kparams]

    # advisory cost estimate so XLA schedules neighbors around this compute-heavy call
    macs_per_row = (IN_FEAT * W + 2 * IN_PTS_PAD * W + 8 * W * W
                    + W * (W // 2) + IN_VIEWS_PAD * (W // 2) + W + 3 * (W // 2))
    bytes_accessed = int((pts_f.size + feat_f.size + views_f.size) * 2
                         + n_pad * OUT_CH * 4
                         + sum(p.size * p.dtype.itemsize for p in kparams))
    cost = pl.CostEstimate(flops=int(2 * macs_per_row * n_pad),
                           transcendentals=0,
                           bytes_accessed=bytes_accessed)

    out = pl.pallas_call(
        _nerf_mlp_kernel,
        out_shape=jax.ShapeDtypeStruct((n_pad, OUT_CH), jnp.float32),
        grid_spec=pltpu.PrefetchScalarGridSpec(
            num_scalar_prefetch=0,
            grid=grid,
            in_specs=in_specs,
            out_specs=pl.BlockSpec((tm, OUT_CH), lambda i: (i, 0)),
        ),
        compiler_params=pltpu.CompilerParams(
            dimension_semantics=("parallel",),
            vmem_limit_bytes=32 * 1024 * 1024,
        ),
        cost_estimate=cost,
    )(pts_f, feat_f, views_f, *kparams)

    return out[:n].reshape(n_rays, n_samples, OUT_CH)


if __name__ == "__main__":
    key = jax.random.PRNGKey(0)
    kp, kv, kf, kw = jax.random.split(key, 4)

    n_rays, n_samples = 2, 8
    pts = jax.random.normal(kp, (n_rays, n_samples, 3), jnp.float32)
    viewdirs = jax.random.normal(kv, (n_rays, 3), jnp.float32)
    viewdirs = viewdirs / jnp.linalg.norm(viewdirs, axis=-1, keepdims=True)
    alpha_feat = jax.random.normal(kf, (n_rays, n_samples, IN_FEAT), jnp.float32)

    params = init_params(kw)
    rgba = jax.jit(nerf_forward)(params, pts, viewdirs, alpha_feat)
    rgba = jax.block_until_ready(rgba)

    assert rgba.shape == (n_rays, n_samples, OUT_CH), rgba.shape
    assert rgba.dtype == jnp.float32
    assert bool(jnp.all(jnp.isfinite(rgba)))
    print("KERNEL_OK")
</pallas_src>

<mosaic_0001>
module attributes {stable_mosaic.version = 11 : i64} {
  func.func @_nerf_mlp_kernel(%arg0: i32, %arg1: memref<256x64xbf16, #tpu.memory_space<vmem>>, %arg2: memref<256x8xbf16, #tpu.memory_space<vmem>>, %arg3: memref<256x32xbf16, #tpu.memory_space<vmem>>, %arg4: memref<8x256x256xbf16, #tpu.memory_space<vmem>>, %arg5: memref<2x64x256xbf16, #tpu.memory_space<vmem>>, %arg6: memref<8x256xbf16, #tpu.memory_space<vmem>>, %arg7: memref<256x128xbf16, #tpu.memory_space<vmem>>, %arg8: memref<32x128xbf16, #tpu.memory_space<vmem>>, %arg9: memref<16x256xf32, #tpu.memory_space<vmem>>, %arg10: memref<8x256xf32, #tpu.memory_space<vmem>>, %arg11: memref<1x4xf32, #tpu.memory_space<vmem>>, %arg12: memref<256x4xf32, #tpu.memory_space<vmem>>) attributes {dimension_semantics = [#tpu.dimension_semantics<parallel>], iteration_bounds = array<i64: 1>, scalar_prefetch = 0 : i64, scratch_operands = 0 : i64, tpu.core_type = #tpu.core_type<tc>, window_params = [{transform_indices = @transform_0, window_bounds = array<i64: 256, 64>}, {transform_indices = @transform_1, window_bounds = array<i64: 256, 8>}, {transform_indices = @transform_2, window_bounds = array<i64: 256, 32>}, {pipeline_mode = #tpu.pipeline_mode<synchronous>, transform_indices = @transform_3, window_bounds = array<i64: 8, 256, 256>}, {pipeline_mode = #tpu.pipeline_mode<synchronous>, transform_indices = @transform_4, window_bounds = array<i64: 2, 64, 256>}, {pipeline_mode = #tpu.pipeline_mode<synchronous>, transform_indices = @transform_5, window_bounds = array<i64: 8, 256>}, {pipeline_mode = #tpu.pipeline_mode<synchronous>, transform_indices = @transform_6, window_bounds = array<i64: 256, 128>}, {pipeline_mode = #tpu.pipeline_mode<synchronous>, transform_indices = @transform_7, window_bounds = array<i64: 32, 128>}, {pipeline_mode = #tpu.pipeline_mode<synchronous>, transform_indices = @transform_8, window_bounds = array<i64: 16, 256>}, {pipeline_mode = #tpu.pipeline_mode<synchronous>, transform_indices = @transform_9, window_bounds = array<i64: 8, 256>}, {pipeline_mode = #tpu.pipeline_mode<synchronous>, transform_indices = @transform_10, window_bounds = array<i64: 1, 4>}, {transform_indices = @transform_11, window_bounds = array<i64: 256, 4>}]} {
    %c0 = arith.constant 0 : index
    %c0_0 = arith.constant 0 : index
    %0 = vector.load %arg1[%c0, %c0_0] : memref<256x64xbf16, #tpu.memory_space<vmem>>, vector<256x64xbf16>
    %c0_1 = arith.constant 0 : index
    %c0_2 = arith.constant 0 : index
    %1 = vector.load %arg2[%c0_1, %c0_2] : memref<256x8xbf16, #tpu.memory_space<vmem>>, vector<256x8xbf16>
    %c0_3 = arith.constant 0 : index
    %c0_4 = arith.constant 0 : index
    %2 = vector.load %arg3[%c0_3, %c0_4] : memref<256x32xbf16, #tpu.memory_space<vmem>>, vector<256x32xbf16>
    %c0_5 = arith.constant 0 : index
    %c0_6 = arith.constant 0 : index
    %3 = vector.load %arg6[%c0_5, %c0_6] : memref<8x256xbf16, #tpu.memory_space<vmem>>, vector<8x256xbf16>
    %cst = arith.constant dense<0.000000e+00> : vector<256x256xf32>
    %4 = tpu.matmul %1, %3, %cst {dimension_numbers = #tpu.dot_dimension_numbers<[1], [0], [0], [1], [0, 0, 1, 1], [], []>} : vector<256x8xbf16>, vector<8x256xbf16>, vector<256x256xf32> -> vector<256x256xf32>
    %c0_7 = arith.constant 0 : index
    %c0_8 = arith.constant 0 : index
    %5 = vector.load %arg9[%c0_7, %c0_8] : memref<16x256xf32, #tpu.memory_space<vmem>>, vector<1x256xf32>
    %6 = vector.broadcast %5 : vector<1x256xf32> to vector<256x256xf32>
    %7 = arith.addf %4, %6 : vector<256x256xf32>
    %c0_9 = arith.constant 0 : index
    %c0_10 = arith.constant 0 : index
    %c0_11 = arith.constant 0 : index
    %8 = vector.load %arg5[%c0_9, %c0_10, %c0_11] : memref<2x64x256xbf16, #tpu.memory_space<vmem>>, vector<1x64x256xbf16>
    %9 = vector.shape_cast %8 : vector<1x64x256xbf16> to vector<64x256xbf16>
    %cst_12 = arith.constant dense<0.000000e+00> : vector<256x256xf32>
    %10 = tpu.matmul %0, %9, %cst_12 {dimension_numbers = #tpu.dot_dimension_numbers<[1], [0], [0], [1], [0, 0, 1, 1], [], []>} : vector<256x64xbf16>, vector<64x256xbf16>, vector<256x256xf32> -> vector<256x256xf32>
    %c1 = arith.constant 1 : index
    %c0_13 = arith.constant 0 : index
    %11 = vector.load %arg9[%c1, %c0_13] : memref<16x256xf32, #tpu.memory_space<vmem>>, vector<1x256xf32>
    %12 = vector.broadcast %11 : vector<1x256xf32> to vector<256x256xf32>
    %13 = arith.addf %10, %12 : vector<256x256xf32>
    %14 = arith.mulf %13, %7 : vector<256x256xf32>
    %cst_14 = arith.constant 0.000000e+00 : f32
    %15 = vector.broadcast %cst_14 : f32 to vector<256x256xf32>
    %16 = arith.maximumf %14, %15 : vector<256x256xf32>
    %17 = arith.truncf %16 : vector<256x256xf32> to vector<256x256xbf16>
    %c0_15 = arith.constant 0 : index
    %c0_16 = arith.constant 0 : index
    %c0_17 = arith.constant 0 : index
    %18 = vector.load %arg4[%c0_15, %c0_16, %c0_17] : memref<8x256x256xbf16, #tpu.memory_space<vmem>>, vector<1x256x256xbf16>
    %19 = vector.shape_cast %18 : vector<1x256x256xbf16> to vector<256x256xbf16>
    %cst_18 = arith.constant dense<0.000000e+00> : vector<256x256xf32>
    %20 = tpu.matmul %17, %19, %cst_18 {dimension_numbers = #tpu.dot_dimension_numbers<[1], [0], [0], [1], [0, 0, 1, 1], [], []>} : vector<256x256xbf16>, vector<256x256xbf16>, vector<256x256xf32> -> vector<256x256xf32>
    %c2 = arith.constant 2 : index
    %c0_19 = arith.constant 0 : index
    %21 = vector.load %arg9[%c2, %c0_19] : memref<16x256xf32, #tpu.memory_space<vmem>>, vector<1x256xf32>
    %22 = vector.broadcast %21 : vector<1x256xf32> to vector<256x256xf32>
    %23 = arith.addf %20, %22 : vector<256x256xf32>
    %24 = arith.mulf %23, %7 : vector<256x256xf32>
    %cst_20 = arith.constant 0.000000e+00 : f32
    %25 = vector.broadcast %cst_20 : f32 to vector<256x256xf32>
    %26 = arith.maximumf %24, %25 : vector<256x256xf32>
    %27 = arith.truncf %26 : vector<256x256xf32> to vector<256x256xbf16>
    %c1_21 = arith.constant 1 : index
    %c0_22 = arith.constant 0 : index
    %c0_23 = arith.constant 0 : index
    %28 = vector.load %arg4[%c1_21, %c0_22, %c0_23] : memref<8x256x256xbf16, #tpu.memory_space<vmem>>, vector<1x256x256xbf16>
    %29 = vector.shape_cast %28 : vector<1x256x256xbf16> to vector<256x256xbf16>
    %cst_24 = arith.constant dense<0.000000e+00> : vector<256x256xf32>
    %30 = tpu.matmul %27, %29, %cst_24 {dimension_numbers = #tpu.dot_dimension_numbers<[1], [0], [0], [1], [0, 0, 1, 1], [], []>} : vector<256x256xbf16>, vector<256x256xbf16>, vector<256x256xf32> -> vector<256x256xf32>
    %c3 = arith.constant 3 : index
    %c0_25 = arith.constant 0 : index
    %31 = vector.load %arg9[%c3, %c0_25] : memref<16x256xf32, #tpu.memory_space<vmem>>, vector<1x256xf32>
    %32 = vector.broadcast %31 : vector<1x256xf32> to vector<256x256xf32>
    %33 = arith.addf %30, %32 : vector<256x256xf32>
    %34 = arith.mulf %33, %7 : vector<256x256xf32>
    %cst_26 = arith.constant 0.000000e+00 : f32
    %35 = vector.broadcast %cst_26 : f32 to vector<256x256xf32>
    %36 = arith.maximumf %34, %35 : vector<256x256xf32>
    %37 = arith.truncf %36 : vector<256x256xf32> to vector<256x256xbf16>
    %c2_27 = arith.constant 2 : index
    %c0_28 = arith.constant 0 : index
    %c0_29 = arith.constant 0 : index
    %38 = vector.load %arg4[%c2_27, %c0_28, %c0_29] : memref<8x256x256xbf16, #tpu.memory_space<vmem>>, vector<1x256x256xbf16>
    %39 = vector.shape_cast %38 : vector<1x256x256xbf16> to vector<256x256xbf16>
    %cst_30 = arith.constant dense<0.000000e+00> : vector<256x256xf32>
    %40 = tpu.matmul %37, %39, %cst_30 {dimension_numbers = #tpu.dot_dimension_numbers<[1], [0], [0], [1], [0, 0, 1, 1], [], []>} : vector<256x256xbf16>, vector<256x256xbf16>, vector<256x256xf32> -> vector<256x256xf32>
    %c4 = arith.constant 4 : index
    %c0_31 = arith.constant 0 : index
    %41 = vector.load %arg9[%c4, %c0_31] : memref<16x256xf32, #tpu.memory_space<vmem>>, vector<1x256xf32>
    %42 = vector.broadcast %41 : vector<1x256xf32> to vector<256x256xf32>
    %43 = arith.addf %40, %42 : vector<256x256xf32>
    %44 = arith.mulf %43, %7 : vector<256x256xf32>
    %cst_32 = arith.constant 0.000000e+00 : f32
    %45 = vector.broadcast %cst_32 : f32 to vector<256x256xf32>
    %46 = arith.maximumf %44, %45 : vector<256x256xf32>
    %47 = arith.truncf %46 : vector<256x256xf32> to vector<256x256xbf16>
    %c3_33 = arith.constant 3 : index
    %c0_34 = arith.constant 0 : index
    %c0_35 = arith.constant 0 : index
    %48 = vector.load %arg4[%c3_33, %c0_34, %c0_35] : memref<8x256x256xbf16, #tpu.memory_space<vmem>>, vector<1x256x256xbf16>
    %49 = vector.shape_cast %48 : vector<1x256x256xbf16> to vector<256x256xbf16>
    %cst_36 = arith.constant dense<0.000000e+00> : vector<256x256xf32>
    %50 = tpu.matmul %47, %49, %cst_36 {dimension_numbers = #tpu.dot_dimension_numbers<[1], [0], [0], [1], [0, 0, 1, 1], [], []>} : vector<256x256xbf16>, vector<256x256xbf16>, vector<256x256xf32> -> vector<256x256xf32>
    %c5 = arith.constant 5 : index
    %c0_37 = arith.constant 0 : index
    %51 = vector.load %arg9[%c5, %c0_37] : memref<16x256xf32, #tpu.memory_space<vmem>>, vector<1x256xf32>
    %52 = vector.broadcast %51 : vector<1x256xf32> to vector<256x256xf32>
    %53 = arith.addf %50, %52 : vector<256x256xf32>
    %54 = arith.mulf %53, %7 : vector<256x256xf32>
    %cst_38 = arith.constant 0.000000e+00 : f32
    %55 = vector.broadcast %cst_38 : f32 to vector<256x256xf32>
    %56 = arith.maximumf %54, %55 : vector<256x256xf32>
    %57 = arith.truncf %56 : vector<256x256xf32> to vector<256x256xbf16>
    %c4_39 = arith.constant 4 : index
    %c0_40 = arith.constant 0 : index
    %c0_41 = arith.constant 0 : index
    %58 = vector.load %arg4[%c4_39, %c0_40, %c0_41] : memref<8x256x256xbf16, #tpu.memory_space<vmem>>, vector<1x256x256xbf16>
    %59 = vector.shape_cast %58 : vector<1x256x256xbf16> to vector<256x256xbf16>
    %cst_42 = arith.constant dense<0.000000e+00> : vector<256x256xf32>
    %60 = tpu.matmul %57, %59, %cst_42 {dimension_numbers = #tpu.dot_dimension_numbers<[1], [0], [0], [1], [0, 0, 1, 1], [], []>} : vector<256x256xbf16>, vector<256x256xbf16>, vector<256x256xf32> -> vector<256x256xf32>
    %c1_43 = arith.constant 1 : index
    %c0_44 = arith.constant 0 : index
    %c0_45 = arith.constant 0 : index
    %61 = vector.load %arg5[%c1_43, %c0_44, %c0_45] : memref<2x64x256xbf16, #tpu.memory_space<vmem>>, vector<1x64x256xbf16>
    %62 = vector.shape_cast %61 : vector<1x64x256xbf16> to vector<64x256xbf16>
    %cst_46 = arith.constant dense<0.000000e+00> : vector<256x256xf32>
    %63 = tpu.matmul %0, %62, %cst_46 {dimension_numbers = #tpu.dot_dimension_numbers<[1], [0], [0], [1], [0, 0, 1, 1], [], []>} : vector<256x64xbf16>, vector<64x256xbf16>, vector<256x256xf32> -> vector<256x256xf32>
    %64 = arith.addf %60, %63 : vector<256x256xf32>
    %c6 = arith.constant 6 : index
    %c0_47 = arith.constant 0 : index
    %65 = vector.load %arg9[%c6, %c0_47] : memref<16x256xf32, #tpu.memory_space<vmem>>, vector<1x256xf32>
    %66 = vector.broadcast %65 : vector<1x256xf32> to vector<256x256xf32>
    %67 = arith.addf %64, %66 : vector<256x256xf32>
    %68 = arith.mulf %67, %7 : vector<256x256xf32>
    %cst_48 = arith.constant 0.000000e+00 : f32
    %69 = vector.broadcast %cst_48 : f32 to vector<256x256xf32>
    %70 = arith.maximumf %68, %69 : vector<256x256xf32>
    %71 = arith.truncf %70 : vector<256x256xf32> to vector<256x256xbf16>
    %c5_49 = arith.constant 5 : index
    %c0_50 = arith.constant 0 : index
    %c0_51 = arith.constant 0 : index
    %72 = vector.load %arg4[%c5_49, %c0_50, %c0_51] : memref<8x256x256xbf16, #tpu.memory_space<vmem>>, vector<1x256x256xbf16>
    %73 = vector.shape_cast %72 : vector<1x256x256xbf16> to vector<256x256xbf16>
    %cst_52 = arith.constant dense<0.000000e+00> : vector<256x256xf32>
    %74 = tpu.matmul %71, %73, %cst_52 {dimension_numbers = #tpu.dot_dimension_numbers<[1], [0], [0], [1], [0, 0, 1, 1], [], []>} : vector<256x256xbf16>, vector<256x256xbf16>, vector<256x256xf32> -> vector<256x256xf32>
    %c7 = arith.constant 7 : index
    %c0_53 = arith.constant 0 : index
    %75 = vector.load %arg9[%c7, %c0_53] : memref<16x256xf32, #tpu.memory_space<vmem>>, vector<1x256xf32>
    %76 = vector.broadcast %75 : vector<1x256xf32> to vector<256x256xf32>
    %77 = arith.addf %74, %76 : vector<256x256xf32>
    %78 = arith.mulf %77, %7 : vector<256x256xf32>
    %cst_54 = arith.constant 0.000000e+00 : f32
    %79 = vector.broadcast %cst_54 : f32 to vector<256x256xf32>
    %80 = arith.maximumf %78, %79 : vector<256x256xf32>
    %81 = arith.truncf %80 : vector<256x256xf32> to vector<256x256xbf16>
    %c6_55 = arith.constant 6 : index
    %c0_56 = arith.constant 0 : index
    %c0_57 = arith.constant 0 : index
    %82 = vector.load %arg4[%c6_55, %c0_56, %c0_57] : memref<8x256x256xbf16, #tpu.memory_space<vmem>>, vector<1x256x256xbf16>
    %83 = vector.shape_cast %82 : vector<1x256x256xbf16> to vector<256x256xbf16>
    %cst_58 = arith.constant dense<0.000000e+00> : vector<256x256xf32>
    %84 = tpu.matmul %81, %83, %cst_58 {dimension_numbers = #tpu.dot_dimension_numbers<[1], [0], [0], [1], [0, 0, 1, 1], [], []>} : vector<256x256xbf16>, vector<256x256xbf16>, vector<256x256xf32> -> vector<256x256xf32>
    %c8 = arith.constant 8 : index
    %c0_59 = arith.constant 0 : index
    %85 = vector.load %arg9[%c8, %c0_59] : memref<16x256xf32, #tpu.memory_space<vmem>>, vector<1x256xf32>
    %86 = vector.broadcast %85 : vector<1x256xf32> to vector<256x256xf32>
    %87 = arith.addf %84, %86 : vector<256x256xf32>
    %88 = arith.mulf %87, %7 : vector<256x256xf32>
    %cst_60 = arith.constant 0.000000e+00 : f32
    %89 = vector.broadcast %cst_60 : f32 to vector<256x256xf32>
    %90 = arith.maximumf %88, %89 : vector<256x256xf32>
    %c0_61 = arith.constant 0 : index
    %c0_62 = arith.constant 0 : index
    %91 = vector.load %arg10[%c0_61, %c0_62] : memref<8x256xf32, #tpu.memory_space<vmem>>, vector<1x256xf32>
    %92 = vector.broadcast %91 : vector<1x256xf32> to vector<256x256xf32>
    %93 = arith.mulf %90, %92 : vector<256x256xf32>
    %cst_63 = arith.constant dense<0.000000e+00> : vector<256xf32>
    %94 = vector.multi_reduction <add>, %93, %cst_63 [1] : vector<256x256xf32> to vector<256xf32>
    %95 = vector.shape_cast %94 : vector<256xf32> to vector<256x1xf32>
    %96 = arith.truncf %90 : vector<256x256xf32> to vector<256x256xbf16>
    %c7_64 = arith.constant 7 : index
    %c0_65 = arith.constant 0 : index
    %c0_66 = arith.constant 0 : index
    %97 = vector.load %arg4[%c7_64, %c0_65, %c0_66] : memref<8x256x256xbf16, #tpu.memory_space<vmem>>, vector<1x256x256xbf16>
    %98 = vector.shape_cast %97 : vector<1x256x256xbf16> to vector<256x256xbf16>
    %cst_67 = arith.constant dense<0.000000e+00> : vector<256x256xf32>
    %99 = tpu.matmul %96, %98, %cst_67 {dimension_numbers = #tpu.dot_dimension_numbers<[1], [0], [0], [1], [0, 0, 1, 1], [], []>} : vector<256x256xbf16>, vector<256x256xbf16>, vector<256x256xf32> -> vector<256x256xf32>
    %c9 = arith.constant 9 : index
    %c0_68 = arith.constant 0 : index
    %100 = vector.load %arg9[%c9, %c0_68] : memref<16x256xf32, #tpu.memory_space<vmem>>, vector<1x256xf32>
    %101 = vector.broadcast %100 : vector<1x256xf32> to vector<256x256xf32>
    %102 = arith.addf %99, %101 : vector<256x256xf32>
    %103 = arith.truncf %102 : vector<256x256xf32> to vector<256x256xbf16>
    %c0_69 = arith.constant 0 : index
    %c0_70 = arith.constant 0 : index
    %104 = vector.load %arg7[%c0_69, %c0_70] : memref<256x128xbf16, #tpu.memory_space<vmem>>, vector<256x128xbf16>
    %cst_71 = arith.constant dense<0.000000e+00> : vector<256x128xf32>
    %105 = tpu.matmul %103, %104, %cst_71 {dimension_numbers = #tpu.dot_dimension_numbers<[1], [0], [0], [1], [0, 0, 1, 1], [], []>} : vector<256x256xbf16>, vector<256x128xbf16>, vector<256x128xf32> -> vector<256x128xf32>
    %c0_72 = arith.constant 0 : index
    %c0_73 = arith.constant 0 : index
    %106 = vector.load %arg8[%c0_72, %c0_73] : memref<32x128xbf16, #tpu.memory_space<vmem>>, vector<32x128xbf16>
    %cst_74 = arith.constant dense<0.000000e+00> : vector<256x128xf32>
    %107 = tpu.matmul %2, %106, %cst_74 {dimension_numbers = #tpu.dot_dimension_numbers<[1], [0], [0], [1], [0, 0, 1, 1], [], []>} : vector<256x32xbf16>, vector<32x128xbf16>, vector<256x128xf32> -> vector<256x128xf32>
    %108 = arith.addf %105, %107 : vector<256x128xf32>
    %c10 = arith.constant 10 : index
    %c0_75 = arith.constant 0 : index
    %109 = vector.load %arg9[%c10, %c0_75] : memref<16x256xf32, #tpu.memory_space<vmem>>, vector<1x128xf32>
    %110 = vector.broadcast %109 : vector<1x128xf32> to vector<256x128xf32>
    %111 = arith.addf %108, %110 : vector<256x128xf32>
    %cst_76 = arith.constant 0.000000e+00 : f32
    %112 = vector.broadcast %cst_76 : f32 to vector<256x128xf32>
    %113 = arith.maximumf %111, %112 : vector<256x128xf32>
    %c1_77 = arith.constant 1 : index
    %c0_78 = arith.constant 0 : index
    %114 = vector.load %arg10[%c1_77, %c0_78] : memref<8x256xf32, #tpu.memory_space<vmem>>, vector<1x128xf32>
    %115 = vector.broadcast %114 : vector<1x128xf32> to vector<256x128xf32>
    %116 = arith.mulf %113, %115 : vector<256x128xf32>
    %cst_79 = arith.constant dense<0.000000e+00> : vector<256xf32>
    %117 = vector.multi_reduction <add>, %116, %cst_79 [1] : vector<256x128xf32> to vector<256xf32>
    %118 = vector.shape_cast %117 : vector<256xf32> to vector<256x1xf32>
    %c2_80 = arith.constant 2 : index
    %c0_81 = arith.constant 0 : index
    %119 = vector.load %arg10[%c2_80, %c0_81] : memref<8x256xf32, #tpu.memory_space<vmem>>, vector<1x128xf32>
    %120 = vector.broadcast %119 : vector<1x128xf32> to vector<256x128xf32>
    %121 = arith.mulf %113, %120 : vector<256x128xf32>
    %cst_82 = arith.constant dense<0.000000e+00> : vector<256xf32>
    %122 = vector.multi_reduction <add>, %121, %cst_82 [1] : vector<256x128xf32> to vector<256xf32>
    %123 = vector.shape_cast %122 : vector<256xf32> to vector<256x1xf32>
    %c3_83 = arith.constant 3 : index
    %c0_84 = arith.constant 0 : index
    %124 = vector.load %arg10[%c3_83, %c0_84] : memref<8x256xf32, #tpu.memory_space<vmem>>, vector<1x128xf32>
    %125 = vector.broadcast %124 : vector<1x128xf32> to vector<256x128xf32>
    %126 = arith.mulf %113, %125 : vector<256x128xf32>
    %cst_85 = arith.constant dense<0.000000e+00> : vector<256xf32>
    %127 = vector.multi_reduction <add>, %126, %cst_85 [1] : vector<256x128xf32> to vector<256xf32>
    %128 = vector.shape_cast %127 : vector<256xf32> to vector<256x1xf32>
    %129 = tpu.concatenate %118, %123, %128, %95 in 1 : vector<256x1xf32>, vector<256x1xf32>, vector<256x1xf32>, vector<256x1xf32> -> vector<256x4xf32>
    %c0_86 = arith.constant 0 : index
    %c0_87 = arith.constant 0 : index
    %130 = vector.load %arg11[%c0_86, %c0_87] : memref<1x4xf32, #tpu.memory_space<vmem>>, vector<1x4xf32>
    %131 = vector.broadcast %130 : vector<1x4xf32> to vector<256x4xf32>
    %132 = arith.addf %129, %131 : vector<256x4xf32>
    %c0_88 = arith.constant 0 : index
    %c0_89 = arith.constant 0 : index
    %133 = vector.load %arg12[%c0_88, %c0_89] : memref<256x4xf32, #tpu.memory_space<vmem>>, vector<256x4xf32>
    tpu.vector_store %arg12[%c0_88, %c0_89], %132 {strides = array<i32>} : memref<256x4xf32, #tpu.memory_space<vmem>>, vector<256x4xf32>,
    return
  }
  func.func @transform_0(%arg0: i32) -> (i32, i32) {
    %c0_i32 = arith.constant 0 : i32
    %c0_i32_0 = arith.constant 0 : i32
    return %arg0, %c0_i32 : i32, i32
  }
  func.func @transform_1(%arg0: i32) -> (i32, i32) {
    %c0_i32 = arith.constant 0 : i32
    %c0_i32_0 = arith.constant 0 : i32
    return %arg0, %c0_i32 : i32, i32
  }
  func.func @transform_2(%arg0: i32) -> (i32, i32) {
    %c0_i32 = arith.constant 0 : i32
    %c0_i32_0 = arith.constant 0 : i32
    return %arg0, %c0_i32 : i32, i32
  }
  func.func @transform_3(%arg0: i32) -> (i32, i32, i32) {
    %c0_i32 = arith.constant 0 : i32
    %c0_i32_0 = arith.constant 0 : i32
    %c0_i32_1 = arith.constant 0 : i32
    %c0_i32_2 = arith.constant 0 : i32
    return %c0_i32, %c0_i32_0, %c0_i32_1 : i32, i32, i32
  }
  func.func @transform_4(%arg0: i32) -> (i32, i32, i32) {
    %c0_i32 = arith.constant 0 : i32
    %c0_i32_0 = arith.constant 0 : i32
    %c0_i32_1 = arith.constant 0 : i32
    %c0_i32_2 = arith.constant 0 : i32
    return %c0_i32, %c0_i32_0, %c0_i32_1 : i32, i32, i32
  }
  func.func @transform_5(%arg0: i32) -> (i32, i32) {
    %c0_i32 = arith.constant 0 : i32
    %c0_i32_0 = arith.constant 0 : i32
    %c0_i32_1 = arith.constant 0 : i32
    return %c0_i32, %c0_i32_0 : i32, i32
  }
  func.func @transform_6(%arg0: i32) -> (i32, i32) {
    %c0_i32 = arith.constant 0 : i32
    %c0_i32_0 = arith.constant 0 : i32
    %c0_i32_1 = arith.constant 0 : i32
    return %c0_i32, %c0_i32_0 : i32, i32
  }
  func.func @transform_7(%arg0: i32) -> (i32, i32) {
    %c0_i32 = arith.constant 0 : i32
    %c0_i32_0 = arith.constant 0 : i32
    %c0_i32_1 = arith.constant 0 : i32
    return %c0_i32, %c0_i32_0 : i32, i32
  }
  func.func @transform_8(%arg0: i32) -> (i32, i32) {
    %c0_i32 = arith.constant 0 : i32
    %c0_i32_0 = arith.constant 0 : i32
    %c0_i32_1 = arith.constant 0 : i32
    return %c0_i32, %c0_i32_0 : i32, i32
  }
  func.func @transform_9(%arg0: i32) -> (i32, i32) {
    %c0_i32 = arith.constant 0 : i32
    %c0_i32_0 = arith.constant 0 : i32
    %c0_i32_1 = arith.constant 0 : i32
    return %c0_i32, %c0_i32_0 : i32, i32
  }
  func.func @transform_10(%arg0: i32) -> (i32, i32) {
    %c0_i32 = arith.constant 0 : i32
    %c0_i32_0 = arith.constant 0 : i32
    %c0_i32_1 = arith.constant 0 : i32
    return %c0_i32, %c0_i32_0 : i32, i32
  }
  func.func @transform_11(%arg0: i32) -> (i32, i32) {
    %c0_i32 = arith.constant 0 : i32
    %c0_i32_0 = arith.constant 0 : i32
    return %arg0, %c0_i32 : i32, i32
  }
}

</mosaic_0001>

<llo_original>
// kernel: nerf_forward.1
$region0: #{nerf_forward.1}
  #allocation0 [shape = 'u32[]', space=smem, size = 0x4, offset = 0x4, fixed_abs, tag = 'smem constant byte address 0x4 - core index']
  #allocation1 [shape = 'u32[144,128]{1,0:T(1,128)}', space=vmem, size = 0x12000, scoped, tag = 'internal scratch']
  %s0 = inlined_call_operand.vmem [shape: bf16[256,64], index: 0, kind: input, shape index: {}]
  %s1 = inlined_call_operand.vmem [shape: bf16[256,8], index: 1, kind: input, shape index: {}]
  %s2 = inlined_call_operand.vmem [shape: bf16[256,32], index: 2, kind: input, shape index: {}]
  %s3 = inlined_call_operand.vmem [shape: bf16[8,256,256], index: 3, kind: input, shape index: {}]
  %s4 = inlined_call_operand.vmem [shape: bf16[2,64,256], index: 4, kind: input, shape index: {}]
  %s5 = inlined_call_operand.vmem [shape: bf16[8,256], index: 5, kind: input, shape index: {}]
  %s6 = inlined_call_operand.vmem [shape: bf16[256,128], index: 6, kind: input, shape index: {}]
  %s7 = inlined_call_operand.vmem [shape: bf16[32,128], index: 7, kind: input, shape index: {}]
  %s8 = inlined_call_operand.vmem [shape: f32[16,256], index: 8, kind: input, shape index: {}]
  %s9 = inlined_call_operand.vmem [shape: f32[8,256], index: 9, kind: input, shape index: {}]
  %s10 = inlined_call_operand.vmem [shape: f32[1,4], index: 10, kind: input, shape index: {}]
  %s11 = inlined_call_operand.vmem [shape: f32[256,4], index: 11, kind: output, shape index: {}]
  %s12 = sld [smem:[#allocation0]]
  $region54: #{nerf_forward.1} parent=0
    _
  %s14 = ssub.s32 1, %s12
  %s15 = scalar_select 0, %s14, %s12
  // Predicated region
  $region2: #{nerf_forward.1} parent=0 // pred_check
    _
  $region3: #{nerf_forward.1} parent=0 // pred_check_branch
    %17 = sbr.rel (0) target = $region5
  $region4: #{nerf_forward.1} parent=0 // pred_region
    _
  $region5: #{nerf_forward.1} parent=0 // pred_fallthru
    _
  // Predicated region
  $region6: #{nerf_forward.1} parent=0 // pred_check
    _
  $region7: #{nerf_forward.1} parent=0 // pred_check_branch
    %19 = sbr.rel (0) target = $region9
  $region8: #{nerf_forward.1} parent=0 // pred_region
    _
  $region9: #{nerf_forward.1} parent=0 // pred_fallthru
    _
  // Predicated region
  $region10: #{nerf_forward.1} parent=0 // pred_check
    _
  $region11: #{nerf_forward.1} parent=0 // pred_check_branch
    %21 = sbr.rel (0) target = $region13
  $region12: #{nerf_forward.1} parent=0 // pred_region
    _
  $region13: #{nerf_forward.1} parent=0 // pred_fallthru
    _
  // Predicated region
  $region14: #{nerf_forward.1} parent=0 // pred_check
    _
  $region15: #{nerf_forward.1} parent=0 // pred_check_branch
    %23 = sbr.rel (0) target = $region17
  $region16: #{nerf_forward.1} parent=0 // pred_region
    _
  $region17: #{nerf_forward.1} parent=0 // pred_fallthru
    _
  // Predicated region
  $region18: #{nerf_forward.1} parent=0 // pred_check
    _
  $region19: #{nerf_forward.1} parent=0 // pred_check_branch
    %25 = sbr.rel (0) target = $region21
  $region20: #{nerf_forward.1} parent=0 // pred_region
    _
  $region21: #{nerf_forward.1} parent=0 // pred_fallthru
    _
  // Predicated region
  $region22: #{nerf_forward.1} parent=0 // pred_check
    _
  $region23: #{nerf_forward.1} parent=0 // pred_check_branch
    %27 = sbr.rel (0) target = $region25
  $region24: #{nerf_forward.1} parent=0 // pred_region
    _
  $region25: #{nerf_forward.1} parent=0 // pred_fallthru
    _
  // Predicated region
  $region26: #{nerf_forward.1} parent=0 // pred_check
    _
  $region27: #{nerf_forward.1} parent=0 // pred_check_branch
    %29 = sbr.rel (0) target = $region29
  $region28: #{nerf_forward.1} parent=0 // pred_region
    _
  $region29: #{nerf_forward.1} parent=0 // pred_fallthru
    _
  // Predicated region
  $region30: #{nerf_forward.1} parent=0 // pred_check
    _
  $region31: #{nerf_forward.1} parent=0 // pred_check_branch
    %31 = sbr.rel (0) target = $region33
  $region32: #{nerf_forward.1} parent=0 // pred_region
    _
  $region33: #{nerf_forward.1} parent=0 // pred_fallthru
    _
  // Predicated region
  $region34: #{nerf_forward.1} parent=0 // pred_check
    _
  $region35: #{nerf_forward.1} parent=0 // pred_check_branch
    %33 = sbr.rel (0) target = $region37
  $region36: #{nerf_forward.1} parent=0 // pred_region
    _
  $region37: #{nerf_forward.1} parent=0 // pred_fallthru
    _
  // Predicated region
  $region38: #{nerf_forward.1} parent=0 // pred_check
    _
  $region39: #{nerf_forward.1} parent=0 // pred_check_branch
    %35 = sbr.rel (0) target = $region41
  $region40: #{nerf_forward.1} parent=0 // pred_region
    _
  $region41: #{nerf_forward.1} parent=0 // pred_fallthru
    _
  // Predicated region
  $region42: #{nerf_forward.1} parent=0 // pred_check
    _
  $region43: #{nerf_forward.1} parent=0 // pred_check_branch
    %37 = sbr.rel (0) target = $region45
  $region44: #{nerf_forward.1} parent=0 // pred_region
    _
  $region45: #{nerf_forward.1} parent=0 // pred_fallthru
    _
  %v39 = vld [vmem:[%s0] sm:$0xf]
  %v40 = vld [vmem:[%s0 + $0x4] sm:$0xf]
  %v41 = vld [vmem:[%s0 + $0x8] sm:$0xf]
  %v42 = vld [vmem:[%s0 + $0xc] sm:$0xf]
  %v43 = vld [vmem:[%s0 + $0x10] sm:$0xf]
  %v44 = vld [vmem:[%s0 + $0x14] sm:$0xf]
  %v45 = vld [vmem:[%s0 + $0x18] sm:$0xf]
  %v46 = vld [vmem:[%s0 + $0x1c] sm:$0xf]
  %v47 = vld [vmem:[%s0 + $0x20] sm:$0xf]
  %v48 = vld [vmem:[%s0 + $0x24] sm:$0xf]
  %v49 = vld [vmem:[%s0 + $0x28] sm:$0xf]
  %v50 = vld [vmem:[%s0 + $0x2c] sm:$0xf]
  %v51 = vld [vmem:[%s0 + $0x30] sm:$0xf]
  %v52 = vld [vmem:[%s0 + $0x34] sm:$0xf]
  %v53 = vld [vmem:[%s0 + $0x38] sm:$0xf]
  %v54 = vld [vmem:[%s0 + $0x3c] sm:$0xf]
  %v55 = vld [vmem:[%s0 + $0x40] sm:$0xf]
  %v56 = vld [vmem:[%s0 + $0x44] sm:$0xf]
  %v57 = vld [vmem:[%s0 + $0x48] sm:$0xf]
  %v58 = vld [vmem:[%s0 + $0x4c] sm:$0xf]
  %v59 = vld [vmem:[%s0 + $0x50] sm:$0xf]
  %v60 = vld [vmem:[%s0 + $0x54] sm:$0xf]
  %v61 = vld [vmem:[%s0 + $0x58] sm:$0xf]
  %v62 = vld [vmem:[%s0 + $0x5c] sm:$0xf]
  %v63 = vld [vmem:[%s0 + $0x60] sm:$0xf]
  %v64 = vld [vmem:[%s0 + $0x64] sm:$0xf]
  %v65 = vld [vmem:[%s0 + $0x68] sm:$0xf]
  %v66 = vld [vmem:[%s0 + $0x6c] sm:$0xf]
  %v67 = vld [vmem:[%s0 + $0x70] sm:$0xf]
  %v68 = vld [vmem:[%s0 + $0x74] sm:$0xf]
  %v69 = vld [vmem:[%s0 + $0x78] sm:$0xf]
  %v70 = vld [vmem:[%s0 + $0x7c] sm:$0xf]
  %v71 = vld [vmem:[%s1] sm:$0xf]
  %v72 = vld [vmem:[%s1 + $0x4] sm:$0xf]
  %v73 = vld [vmem:[%s1 + $0x8] sm:$0xf]
  %v74 = vld [vmem:[%s1 + $0xc] sm:$0xf]
  %v75 = vld [vmem:[%s1 + $0x10] sm:$0xf]
  %v76 = vld [vmem:[%s1 + $0x14] sm:$0xf]
  %v77 = vld [vmem:[%s1 + $0x18] sm:$0xf]
  %v78 = vld [vmem:[%s1 + $0x1c] sm:$0xf]
  %v79 = vld [vmem:[%s1 + $0x20] sm:$0xf]
  %v80 = vld [vmem:[%s1 + $0x24] sm:$0xf]
  %v81 = vld [vmem:[%s1 + $0x28] sm:$0xf]
  %v82 = vld [vmem:[%s1 + $0x2c] sm:$0xf]
  %v83 = vld [vmem:[%s1 + $0x30] sm:$0xf]
  %v84 = vld [vmem:[%s1 + $0x34] sm:$0xf]
  %v85 = vld [vmem:[%s1 + $0x38] sm:$0xf]
  %v86 = vld [vmem:[%s1 + $0x3c] sm:$0xf]
  %v87 = vld [vmem:[%s1 + $0x40] sm:$0xf]
  %v88 = vld [vmem:[%s1 + $0x44] sm:$0xf]
  %v89 = vld [vmem:[%s1 + $0x48] sm:$0xf]
  %v90 = vld [vmem:[%s1 + $0x4c] sm:$0xf]
  %v91 = vld [vmem:[%s1 + $0x50] sm:$0xf]
  %v92 = vld [vmem:[%s1 + $0x54] sm:$0xf]
  %v93 = vld [vmem:[%s1 + $0x58] sm:$0xf]
  %v94 = vld [vmem:[%s1 + $0x5c] sm:$0xf]
  %v95 = vld [vmem:[%s1 + $0x60] sm:$0xf]
  %v96 = vld [vmem:[%s1 + $0x64] sm:$0xf]
  %v97 = vld [vmem:[%s1 + $0x68] sm:$0xf]
  %v98 = vld [vmem:[%s1 + $0x6c] sm:$0xf]
  %v99 = vld [vmem:[%s1 + $0x70] sm:$0xf]
  %v100 = vld [vmem:[%s1 + $0x74] sm:$0xf]
  %v101 = vld [vmem:[%s1 + $0x78] sm:$0xf]
  %v102 = vld [vmem:[%s1 + $0x7c] sm:$0xf]
  %v103 = vld [vmem:[%s2] sm:$0xf]
  %v104 = vld [vmem:[%s2 + $0x4] sm:$0xf]
  %v105 = vld [vmem:[%s2 + $0x8] sm:$0xf]
  %v106 = vld [vmem:[%s2 + $0xc] sm:$0xf]
  %v107 = vld [vmem:[%s2 + $0x10] sm:$0xf]
  %v108 = vld [vmem:[%s2 + $0x14] sm:$0xf]
  %v109 = vld [vmem:[%s2 + $0x18] sm:$0xf]
  %v110 = vld [vmem:[%s2 + $0x1c] sm:$0xf]
  %v111 = vld [vmem:[%s2 + $0x20] sm:$0xf]
  %v112 = vld [vmem:[%s2 + $0x24] sm:$0xf]
  %v113 = vld [vmem:[%s2 + $0x28] sm:$0xf]
  %v114 = vld [vmem:[%s2 + $0x2c] sm:$0xf]
  %v115 = vld [vmem:[%s2 + $0x30] sm:$0xf]
  %v116 = vld [vmem:[%s2 + $0x34] sm:$0xf]
  %v117 = vld [vmem:[%s2 + $0x38] sm:$0xf]
  %v118 = vld [vmem:[%s2 + $0x3c] sm:$0xf]
  %v119 = vld [vmem:[%s2 + $0x40] sm:$0xf]
  %v120 = vld [vmem:[%s2 + $0x44] sm:$0xf]
  %v121 = vld [vmem:[%s2 + $0x48] sm:$0xf]
  %v122 = vld [vmem:[%s2 + $0x4c] sm:$0xf]
  %v123 = vld [vmem:[%s2 + $0x50] sm:$0xf]
  %v124 = vld [vmem:[%s2 + $0x54] sm:$0xf]
  %v125 = vld [vmem:[%s2 + $0x58] sm:$0xf]
  %v126 = vld [vmem:[%s2 + $0x5c] sm:$0xf]
  %v127 = vld [vmem:[%s2 + $0x60] sm:$0xf]
  %v128 = vld [vmem:[%s2 + $0x64] sm:$0xf]
  %v129 = vld [vmem:[%s2 + $0x68] sm:$0xf]
  %v130 = vld [vmem:[%s2 + $0x6c] sm:$0xf]
  %v131 = vld [vmem:[%s2 + $0x70] sm:$0xf]
  %v132 = vld [vmem:[%s2 + $0x74] sm:$0xf]
  %v133 = vld [vmem:[%s2 + $0x78] sm:$0xf]
  %v134 = vld [vmem:[%s2 + $0x7c] sm:$0xf]
  %v135 = vld [vmem:[%s5] sm:$0xff]
  %v136 = vld [vmem:[%s8] ss:$8 sm:$0x3]
  %v138 = vlaneseq
  %v139 = vshrl.u32 %v138, 7
  %v140 = vsub.s32 0, %v139
  %v141 = vrot.slane %v136, %v140
  %v142 = vlaneseq
  %v143 = vshrl.u32 %v142, 7
  %v144 = vsub.s32 1, %v143
  %v145 = vrot.slane %v136, %v144
  %v180 = vunpack.c.l.b16 %v71
  %v181 = vunpack.c.l.b16 %v72
  %v182 = vunpack.c.l.b16 %v73
  %v183 = vunpack.c.l.b16 %v74
  %v184 = vunpack.c.l.b16 %v75
  %v185 = vunpack.c.l.b16 %v76
  %v186 = vunpack.c.l.b16 %v77
  %v187 = vunpack.c.l.b16 %v78
  %v188 = vunpack.c.l.b16 %v79
  %v189 = vunpack.c.l.b16 %v80
  %v190 = vunpack.c.l.b16 %v81
  %v191 = vunpack.c.l.b16 %v82
  %v192 = vunpack.c.l.b16 %v83
  %v193 = vunpack.c.l.b16 %v84
  %v194 = vunpack.c.l.b16 %v85
  %v195 = vunpack.c.l.b16 %v86
  %v196 = vunpack.c.l.b16 %v87
  %v197 = vunpack.c.l.b16 %v88
  %v198 = vunpack.c.l.b16 %v89
  %v199 = vunpack.c.l.b16 %v90
  %v200 = vunpack.c.l.b16 %v91
  %v201 = vunpack.c.l.b16 %v92
  %v202 = vunpack.c.l.b16 %v93
  %v203 = vunpack.c.l.b16 %v94
  %v204 = vunpack.c.l.b16 %v95
  %v205 = vunpack.c.l.b16 %v96
  %v206 = vunpack.c.l.b16 %v97
  %v207 = vunpack.c.l.b16 %v98
  %v208 = vunpack.c.l.b16 %v99
  %v209 = vunpack.c.l.b16 %v100
  %v210 = vunpack.c.l.b16 %v101
  %v211 = vunpack.c.l.b16 %v102
  %v212 = vpack.c.b16 %v181, %v180
  %v213 = vpack.c.b16 %v183, %v182
  %v214 = vpack.c.b16 %v185, %v184
  %v215 = vpack.c.b16 %v187, %v186
  %v216 = vpack.c.b16 %v189, %v188
  %v217 = vpack.c.b16 %v191, %v190
  %v218 = vpack.c.b16 %v193, %v192
  %v219 = vpack.c.b16 %v195, %v194
  %v220 = vpack.c.b16 %v197, %v196
  %v221 = vpack.c.b16 %v199, %v198
  %v222 = vpack.c.b16 %v201, %v200
  %v223 = vpack.c.b16 %v203, %v202
  %v224 = vpack.c.b16 %v205, %v204
  %v225 = vpack.c.b16 %v207, %v206
  %v226 = vpack.c.b16 %v209, %v208
  %v227 = vpack.c.b16 %v211, %v210
  %v229 = vunpack.c.l.b16 %v135
  %v230 = vunpack.c.h.b16 %v135
  %v231 = vpack.c.b16 %v229, %v229
  %v232 = vpack.c.b16 %v230, %v230
  %vm233 = vcmask 64512
  %v235 = vsel %vm233, %v212, 0
  %v238 = vsel %vm233, %v213, 0
  %v241 = vsel %vm233, %v214, 0
  %v244 = vsel %vm233, %v215, 0
  %v247 = vsel %vm233, %v216, 0
  %v250 = vsel %vm233, %v217, 0
  %v253 = vsel %vm233, %v218, 0
  %v256 = vsel %vm233, %v219, 0
  %v259 = vsel %vm233, %v220, 0
  %v262 = vsel %vm233, %v221, 0
  %v265 = vsel %vm233, %v222, 0
  %v268 = vsel %vm233, %v223, 0
  %v271 = vsel %vm233, %v224, 0
  %v274 = vsel %vm233, %v225, 0
  %v277 = vsel %vm233, %v226, 0
  %v280 = vsel %vm233, %v227, 0
  %vm282 = vcmask 1043456
  %v284 = vsel %vm282, %v231, 0
  %v287 = vsel %vm282, %v232, 0
  %289 = vmatprep.subr.bf16.mxu0 0
  %290 = vmatpush1.bf16.msra.mxu0 0
  %291 = vmatprep.subr.bf16.mxu0 0
  %292 = vmatpush1.bf16.msra.mxu0 0
  %293 = vmatprep.subr.bf16.mxu0 0
  %294 = vmatpush1.bf16.msra.mxu0 0
  %295 = vmatprep.subr.bf16.mxu0 0
  %296 = vmatpush1.bf16.msra.mxu0 0
  %297 = vmatprep.subr.bf16.mxu0 0
  %298 = vmatpush1.bf16.msra.mxu0 0
  %299 = vmatprep.subr.bf16.mxu0 0
  %300 = vmatpush1.bf16.msra.mxu0 0
  %301 = vmatprep.subr.bf16.mxu0 0
  %302 = vmatpush1.bf16.msra.mxu0 0
  %303 = vmatprep.subr.bf16.mxu0 %v287
  %304 = vmatpush1.bf16.msra.mxu0 %v284
  %305 = vmatprep.subr.bf16.mxu0 0
  %306 = vmatpush2.bf16.msra.mxu0 0
  %307 = vmatprep.subr.bf16.mxu0 0
  %308 = vmatpush2.bf16.msra.mxu0 0
  %309 = vmatprep.subr.bf16.mxu0 0
  %310 = vmatpush2.bf16.msra.mxu0 0
  %311 = vmatprep.subr.bf16.mxu0 0
  %312 = vmatpush2.bf16.msra.mxu0 0
  %313 = vmatprep.subr.bf16.mxu0 0
  %314 = vmatpush2.bf16.msra.mxu0 0
  %315 = vmatprep.subr.bf16.mxu0 0
  %316 = vmatpush2.bf16.msra.mxu0 0
  %317 = vmatprep.subr.bf16.mxu0 0
  %318 = vmatpush2.bf16.msra.mxu0 0
  %319 = vmatprep.subr.bf16.mxu0 0
  %320 = vmatpush2.bf16.msra.mxu0 0
  %321 = vmatprep.mubr.bf16.mxu0 0
  %322 = vmatmul.mubr.bf16.gmra.mxu0 %v235
  %v323 = vpop.f32.mrf.mxu0
  %v324 = vadd.f32 %v141, %v323
  %v325 = vpop.f32.mrf.mxu0
  %v326 = vadd.f32 %v145, %v325
  %v327 = vpop.f32.mrf.mxu0
  %v328 = vadd.f32 %v141, %v327
  %v329 = vpop.f32.mrf.mxu0
  %v330 = vadd.f32 %v145, %v329
  %331 = vmatprep.mubr.bf16.mxu0 0
  %332 = vmatmul.mubr.bf16.gmra.mxu0 %v238
  %v333 = vpop.f32.mrf.mxu0
  %v334 = vadd.f32 %v141, %v333
  %v335 = vpop.f32.mrf.mxu0
  %v336 = vadd.f32 %v145, %v335
  %v337 = vpop.f32.mrf.mxu0
  %v338 = vadd.f32 %v141, %v337
  %v339 = vpop.f32.mrf.mxu0
  %v340 = vadd.f32 %v145, %v339
  %341 = vmatprep.mubr.bf16.mxu0 0
  %342 = vmatmul.mubr.bf16.gmra.mxu0 %v241
  %v343 = vpop.f32.mrf.mxu0
  %v344 = vadd.f32 %v141, %v343
  %v345 = vpop.f32.mrf.mxu0
  %v346 = vadd.f32 %v145, %v345
  %v347 = vpop.f32.mrf.mxu0
  %v348 = vadd.f32 %v141, %v347
  %v349 = vpop.f32.mrf.mxu0
  %v350 = vadd.f32 %v145, %v349
  %351 = vmatprep.mubr.bf16.mxu0 0
  %352 = vmatmul.mubr.bf16.gmra.mxu0 %v244
  %v353 = vpop.f32.mrf.mxu0
  %v354 = vadd.f32 %v141, %v353
  %v355 = vpop.f32.mrf.mxu0
  %v356 = vadd.f32 %v145, %v355
  %v357 = vpop.f32.mrf.mxu0
  %v358 = vadd.f32 %v141, %v357
  %v359 = vpop.f32.mrf.mxu0
  %v360 = vadd.f32 %v145, %v359
  %361 = vmatprep.mubr.bf16.mxu0 0
  %362 = vmatmul.mubr.bf16.gmra.mxu0 %v247
  %v363 = vpop.f32.mrf.mxu0
  %v364 = vadd.f32 %v141, %v363
  %v365 = vpop.f32.mrf.mxu0
  %v366 = vadd.f32 %v145, %v365
  %v367 = vpop.f32.mrf.mxu0
  %v368 = vadd.f32 %v141, %v367
  %v369 = vpop.f32.mrf.mxu0
  %v370 = vadd.f32 %v145, %v369
  %371 = vmatprep.mubr.bf16.mxu0 0
  %372 = vmatmul.mubr.bf16.gmra.mxu0 %v250
  %v373 = vpop.f32.mrf.mxu0
  %v374 = vadd.f32 %v141, %v373
  %v375 = vpop.f32.mrf.mxu0
  %v376 = vadd.f32 %v145, %v375
  %v377 = vpop.f32.mrf.mxu0
  %v378 = vadd.f32 %v141, %v377
  %v379 = vpop.f32.mrf.mxu0
  %v380 = vadd.f32 %v145, %v379
  %381 = vmatprep.mubr.bf16.mxu0 0
  %382 = vmatmul.mubr.bf16.gmra.mxu0 %v253
  %v383 = vpop.f32.mrf.mxu0
  %v384 = vadd.f32 %v141, %v383
  %v385 = vpop.f32.mrf.mxu0
  %v386 = vadd.f32 %v145, %v385
  %v387 = vpop.f32.mrf.mxu0
  %v388 = vadd.f32 %v141, %v387
  %v389 = vpop.f32.mrf.mxu0
  %v390 = vadd.f32 %v145, %v389
  %391 = vmatprep.mubr.bf16.mxu0 0
  %392 = vmatmul.mubr.bf16.gmra.mxu0 %v256
  %v393 = vpop.f32.mrf.mxu0
  %v394 = vadd.f32 %v141, %v393
  %v395 = vpop.f32.mrf.mxu0
  %v396 = vadd.f32 %v145, %v395
  %v397 = vpop.f32.mrf.mxu0
  %v398 = vadd.f32 %v141, %v397
  %v399 = vpop.f32.mrf.mxu0
  %v400 = vadd.f32 %v145, %v399
  %401 = vmatprep.mubr.bf16.mxu0 0
  %402 = vmatmul.mubr.bf16.gmra.mxu0 %v259
  %v403 = vpop.f32.mrf.mxu0
  %v404 = vadd.f32 %v141, %v403
  %v405 = vpop.f32.mrf.mxu0
  %v406 = vadd.f32 %v145, %v405
  %v407 = vpop.f32.mrf.mxu0
  %v408 = vadd.f32 %v141, %v407
  %v409 = vpop.f32.mrf.mxu0
  %v410 = vadd.f32 %v145, %v409
  %411 = vmatprep.mubr.bf16.mxu0 0
  %412 = vmatmul.mubr.bf16.gmra.mxu0 %v262
  %v413 = vpop.f32.mrf.mxu0
  %v414 = vadd.f32 %v141, %v413
  %v415 = vpop.f32.mrf.mxu0
  %v416 = vadd.f32 %v145, %v415
  %v417 = vpop.f32.mrf.mxu0
  %v418 = vadd.f32 %v141, %v417
  %v419 = vpop.f32.mrf.mxu0
  %v420 = vadd.f32 %v145, %v419
  %421 = vmatprep.mubr.bf16.mxu0 0
  %422 = vmatmul.mubr.bf16.gmra.mxu0 %v265
  %v423 = vpop.f32.mrf.mxu0
  %v424 = vadd.f32 %v141, %v423
  %v425 = vpop.f32.mrf.mxu0
  %v426 = vadd.f32 %v145, %v425
  %v427 = vpop.f32.mrf.mxu0
  %v428 = vadd.f32 %v141, %v427
  %v429 = vpop.f32.mrf.mxu0
  %v430 = vadd.f32 %v145, %v429
  %431 = vmatprep.mubr.bf16.mxu0 0
  %432 = vmatmul.mubr.bf16.gmra.mxu0 %v268
  %v433 = vpop.f32.mrf.mxu0
  %v434 = vadd.f32 %v141, %v433
  %v435 = vpop.f32.mrf.mxu0
  %v436 = vadd.f32 %v145, %v435
  %v437 = vpop.f32.mrf.mxu0
  %v438 = vadd.f32 %v141, %v437
  %v439 = vpop.f32.mrf.mxu0
  %v440 = vadd.f32 %v145, %v439
  %441 = vmatprep.mubr.bf16.mxu0 0
  %442 = vmatmul.mubr.bf16.gmra.mxu0 %v271
  %v443 = vpop.f32.mrf.mxu0
  %v444 = vadd.f32 %v141, %v443
  %v445 = vpop.f32.mrf.mxu0
  %v446 = vadd.f32 %v145, %v445
  %v447 = vpop.f32.mrf.mxu0
  %v448 = vadd.f32 %v141, %v447
  %v449 = vpop.f32.mrf.mxu0
  %v450 = vadd.f32 %v145, %v449
  %451 = vmatprep.mubr.bf16.mxu0 0
  %452 = vmatmul.mubr.bf16.gmra.mxu0 %v274
  %v453 = vpop.f32.mrf.mxu0
  %v454 = vadd.f32 %v141, %v453
  %v455 = vpop.f32.mrf.mxu0
  %v456 = vadd.f32 %v145, %v455
  %v457 = vpop.f32.mrf.mxu0
  %v458 = vadd.f32 %v141, %v457
  %v459 = vpop.f32.mrf.mxu0
  %v460 = vadd.f32 %v145, %v459
  %461 = vmatprep.mubr.bf16.mxu0 0
  %462 = vmatmul.mubr.bf16.gmra.mxu0 %v277
  %v463 = vpop.f32.mrf.mxu0
  %v464 = vadd.f32 %v141, %v463
  %v465 = vpop.f32.mrf.mxu0
  %v466 = vadd.f32 %v145, %v465
  %v467 = vpop.f32.mrf.mxu0
  %v468 = vadd.f32 %v141, %v467
  %v469 = vpop.f32.mrf.mxu0
  %v470 = vadd.f32 %v145, %v469
  %471 = vmatprep.mubr.bf16.mxu0 0
  %472 = vmatmul.mubr.bf16.gmra.mxu0 %v280
  %v473 = vpop.f32.mrf.mxu0
  %v474 = vadd.f32 %v141, %v473
  %v475 = vpop.f32.mrf.mxu0
  %v476 = vadd.f32 %v145, %v475
  %v477 = vpop.f32.mrf.mxu0
  %v478 = vadd.f32 %v141, %v477
  %v479 = vpop.f32.mrf.mxu0
  %v480 = vadd.f32 %v145, %v479
  %481 = vdwg.mxu0
  %v482 = vld [vmem:[%s4] sm:$0xff]
  %v483 = vld [vmem:[%s4 + $0x8] sm:$0xff]
  %v484 = vld [vmem:[%s4 + $0x10] sm:$0xff]
  %v485 = vld [vmem:[%s4 + $0x18] sm:$0xff]
  %v486 = vld [vmem:[%s4 + $0x20] sm:$0xff]
  %v487 = vld [vmem:[%s4 + $0x28] sm:$0xff]
  %v488 = vld [vmem:[%s4 + $0x30] sm:$0xff]
  %v489 = vld [vmem:[%s4 + $0x38] sm:$0xff]
  %s490 = scalar_lea.vmem %s8, 1
  %v491 = vld [vmem:[%s490] ss:$8 sm:$0x3]
  %v493 = vlaneseq
  %v494 = vshrl.u32 %v493, 7
  %v495 = vsub.s32 0, %v494
  %v496 = vrot.slane %v491, %v495
  %v497 = vlaneseq
  %v498 = vshrl.u32 %v497, 7
  %v499 = vsub.s32 1, %v498
  %v500 = vrot.slane %v491, %v499
  %v535 = vunpack.c.l.b16 %v39
  %v536 = vunpack.c.l.b16 %v40
  %v537 = vunpack.c.l.b16 %v41
  %v538 = vunpack.c.l.b16 %v42
  %v539 = vunpack.c.l.b16 %v43
  %v540 = vunpack.c.l.b16 %v44
  %v541 = vunpack.c.l.b16 %v45
  %v542 = vunpack.c.l.b16 %v46
  %v543 = vunpack.c.l.b16 %v47
  %v544 = vunpack.c.l.b16 %v48
  %v545 = vunpack.c.l.b16 %v49
  %v546 = vunpack.c.l.b16 %v50
  %v547 = vunpack.c.l.b16 %v51
  %v548 = vunpack.c.l.b16 %v52
  %v549 = vunpack.c.l.b16 %v53
  %v550 = vunpack.c.l.b16 %v54
  %v551 = vunpack.c.l.b16 %v55
  %v552 = vunpack.c.l.b16 %v56
  %v553 = vunpack.c.l.b16 %v57
  %v554 = vunpack.c.l.b16 %v58
  %v555 = vunpack.c.l.b16 %v59
  %v556 = vunpack.c.l.b16 %v60
  %v557 = vunpack.c.l.b16 %v61
  %v558 = vunpack.c.l.b16 %v62
  %v559 = vunpack.c.l.b16 %v63
  %v560 = vunpack.c.l.b16 %v64
  %v561 = vunpack.c.l.b16 %v65
  %v562 = vunpack.c.l.b16 %v66
  %v563 = vunpack.c.l.b16 %v67
  %v564 = vunpack.c.l.b16 %v68
  %v565 = vunpack.c.l.b16 %v69
  %v566 = vunpack.c.l.b16 %v70
  %v567 = vpack.c.b16 %v536, %v535
  %v568 = vpack.c.b16 %v538, %v537
  %v569 = vpack.c.b16 %v540, %v539
  %v570 = vpack.c.b16 %v542, %v541
  %v571 = vpack.c.b16 %v544, %v543
  %v572 = vpack.c.b16 %v546, %v545
  %v573 = vpack.c.b16 %v548, %v547
  %v574 = vpack.c.b16 %v550, %v549
  %v575 = vpack.c.b16 %v552, %v551
  %v576 = vpack.c.b16 %v554, %v553
  %v577 = vpack.c.b16 %v556, %v555
  %v578 = vpack.c.b16 %v558, %v557
  %v579 = vpack.c.b16 %v560, %v559
  %v580 = vpack.c.b16 %v562, %v561
  %v581 = vpack.c.b16 %v564, %v563
  %v582 = vpack.c.b16 %v566, %v565
  %v591 = vunpack.c.l.b16 %v482
  %v592 = vunpack.c.h.b16 %v482
  %v593 = vunpack.c.l.b16 %v483
  %v594 = vunpack.c.h.b16 %v483
  %v595 = vunpack.c.l.b16 %v484
  %v596 = vunpack.c.h.b16 %v484
  %v597 = vunpack.c.l.b16 %v485
  %v598 = vunpack.c.h.b16 %v485
  %v599 = vunpack.c.l.b16 %v486
  %v600 = vunpack.c.h.b16 %v486
  %v601 = vunpack.c.l.b16 %v487
  %v602 = vunpack.c.h.b16 %v487
  %v603 = vunpack.c.l.b16 %v488
  %v604 = vunpack.c.h.b16 %v488
  %v605 = vunpack.c.l.b16 %v489
  %v606 = vunpack.c.h.b16 %v489
  %v607 = vpack.c.b16 %v593, %v591
  %v608 = vpack.c.b16 %v594, %v592
  %v609 = vpack.c.b16 %v597, %v595
  %v610 = vpack.c.b16 %v598, %v596
  %v611 = vpack.c.b16 %v601, %v599
  %v612 = vpack.c.b16 %v602, %v600
  %v613 = vpack.c.b16 %v605, %v603
  %v614 = vpack.c.b16 %v606, %v604
  %vm623 = vcmask 523264
  %v625 = vsel %vm623, %v567, 0
  %v628 = vsel %vm623, %v568, 0
  %v631 = vsel %vm623, %v569, 0
  %v634 = vsel %vm623, %v570, 0
  %v637 = vsel %vm623, %v571, 0
  %v640 = vsel %vm623, %v572, 0
  %v643 = vsel %vm623, %v573, 0
  %v646 = vsel %vm623, %v574, 0
  %v649 = vsel %vm623, %v575, 0
  %v652 = vsel %vm623, %v576, 0
  %v655 = vsel %vm623, %v577, 0
  %v658 = vsel %vm623, %v578, 0
  %v661 = vsel %vm623, %v579, 0
  %v664 = vsel %vm623, %v580, 0
  %v667 = vsel %vm623, %v581, 0
  %v670 = vsel %vm623, %v582, 0
  %672 = vmatprep.subr.bf16.mxu0 0
  %673 = vmatpush1.bf16.msra.mxu0 0
  %674 = vmatprep.subr.bf16.mxu0 0
  %675 = vmatpush1.bf16.msra.mxu0 0
  %676 = vmatprep.subr.bf16.mxu0 0
  %677 = vmatpush1.bf16.msra.mxu0 0
  %678 = vmatprep.subr.bf16.mxu0 0
  %679 = vmatpush1.bf16.msra.mxu0 0
  %680 = vmatprep.subr.bf16.mxu0 %v614
  %681 = vmatpush1.bf16.msra.mxu0 %v613
  %682 = vmatprep.subr.bf16.mxu0 %v612
  %683 = vmatpush1.bf16.msra.mxu0 %v611
  %684 = vmatprep.subr.bf16.mxu0 %v610
  %685 = vmatpush1.bf16.msra.mxu0 %v609
  %686 = vmatprep.subr.bf16.mxu0 %v608
  %687 = vmatpush1.bf16.msra.mxu0 %v607
  %688 = vmatprep.subr.bf16.mxu0 0
  %689 = vmatpush2.bf16.msra.mxu0 0
  %690 = vmatprep.subr.bf16.mxu0 0
  %691 = vmatpush2.bf16.msra.mxu0 0
  %692 = vmatprep.subr.bf16.mxu0 0
  %693 = vmatpush2.bf16.msra.mxu0 0
  %694 = vmatprep.subr.bf16.mxu0 0
  %695 = vmatpush2.bf16.msra.mxu0 0
  %696 = vmatprep.subr.bf16.mxu0 0
  %697 = vmatpush2.bf16.msra.mxu0 0
  %698 = vmatprep.subr.bf16.mxu0 0
  %699 = vmatpush2.bf16.msra.mxu0 0
  %700 = vmatprep.subr.bf16.mxu0 0
  %701 = vmatpush2.bf16.msra.mxu0 0
  %702 = vmatprep.subr.bf16.mxu0 0
  %703 = vmatpush2.bf16.msra.mxu0 0
  %704 = vmatprep.mubr.bf16.mxu0 0
  %705 = vmatmul.mubr.bf16.gmra.mxu0 %v625
  %v706 = vpop.f32.mrf.mxu0
  %v707 = vadd.f32 %v496, %v706
  %v708 = vpop.f32.mrf.mxu0
  %v709 = vadd.f32 %v500, %v708
  %v710 = vpop.f32.mrf.mxu0
  %v711 = vadd.f32 %v496, %v710
  %v712 = vpop.f32.mrf.mxu0
  %v713 = vadd.f32 %v500, %v712
  %714 = vmatprep.mubr.bf16.mxu0 0
  %715 = vmatmul.mubr.bf16.gmra.mxu0 %v628
  %v716 = vpop.f32.mrf.mxu0
  %v717 = vadd.f32 %v496, %v716
  %v718 = vpop.f32.mrf.mxu0
  %v719 = vadd.f32 %v500, %v718
  %v720 = vpop.f32.mrf.mxu0
  %v721 = vadd.f32 %v496, %v720
  %v722 = vpop.f32.mrf.mxu0
  %v723 = vadd.f32 %v500, %v722
  %724 = vmatprep.mubr.bf16.mxu0 0
  %725 = vmatmul.mubr.bf16.gmra.mxu0 %v631
  %v726 = vpop.f32.mrf.mxu0
  %v727 = vadd.f32 %v496, %v726
  %v728 = vpop.f32.mrf.mxu0
  %v729 = vadd.f32 %v500, %v728
  %v730 = vpop.f32.mrf.mxu0
  %v731 = vadd.f32 %v496, %v730
  %v732 = vpop.f32.mrf.mxu0
  %v733 = vadd.f32 %v500, %v732
  %734 = vmatprep.mubr.bf16.mxu0 0
  %735 = vmatmul.mubr.bf16.gmra.mxu0 %v634
  %v736 = vpop.f32.mrf.mxu0
  %v737 = vadd.f32 %v496, %v736
  %v738 = vpop.f32.mrf.mxu0
  %v739 = vadd.f32 %v500, %v738
  %v740 = vpop.f32.mrf.mxu0
  %v741 = vadd.f32 %v496, %v740
  %v742 = vpop.f32.mrf.mxu0
  %v743 = vadd.f32 %v500, %v742
  %744 = vmatprep.mubr.bf16.mxu0 0
  %745 = vmatmul.mubr.bf16.gmra.mxu0 %v637
  %v746 = vpop.f32.mrf.mxu0
  %v747 = vadd.f32 %v496, %v746
  %v748 = vpop.f32.mrf.mxu0
  %v749 = vadd.f32 %v500, %v748
  %v750 = vpop.f32.mrf.mxu0
  %v751 = vadd.f32 %v496, %v750
  %v752 = vpop.f32.mrf.mxu0
  %v753 = vadd.f32 %v500, %v752
  %754 = vmatprep.mubr.bf16.mxu0 0
  %755 = vmatmul.mubr.bf16.gmra.mxu0 %v640
  %v756 = vpop.f32.mrf.mxu0
  %v757 = vadd.f32 %v496, %v756
  %v758 = vpop.f32.mrf.mxu0
  %v759 = vadd.f32 %v500, %v758
  %v760 = vpop.f32.mrf.mxu0
  %v761 = vadd.f32 %v496, %v760
  %v762 = vpop.f32.mrf.mxu0
  %v763 = vadd.f32 %v500, %v762
  %764 = vmatprep.mubr.bf16.mxu0 0
  %765 = vmatmul.mubr.bf16.gmra.mxu0 %v643
  %v766 = vpop.f32.mrf.mxu0
  %v767 = vadd.f32 %v496, %v766
  %v768 = vpop.f32.mrf.mxu0
  %v769 = vadd.f32 %v500, %v768
  %v770 = vpop.f32.mrf.mxu0
  %v771 = vadd.f32 %v496, %v770
  %v772 = vpop.f32.mrf.mxu0
  %v773 = vadd.f32 %v500, %v772
  %774 = vmatprep.mubr.bf16.mxu0 0
  %775 = vmatmul.mubr.bf16.gmra.mxu0 %v646
  %v776 = vpop.f32.mrf.mxu0
  %v777 = vadd.f32 %v496, %v776
  %v778 = vpop.f32.mrf.mxu0
  %v779 = vadd.f32 %v500, %v778
  %v780 = vpop.f32.mrf.mxu0
  %v781 = vadd.f32 %v496, %v780
  %v782 = vpop.f32.mrf.mxu0
  %v783 = vadd.f32 %v500, %v782
  %784 = vmatprep.mubr.bf16.mxu0 0
  %785 = vmatmul.mubr.bf16.gmra.mxu0 %v649
  %v786 = vpop.f32.mrf.mxu0
  %v787 = vadd.f32 %v496, %v786
  %v788 = vpop.f32.mrf.mxu0
  %v789 = vadd.f32 %v500, %v788
  %v790 = vpop.f32.mrf.mxu0
  %v791 = vadd.f32 %v496, %v790
  %v792 = vpop.f32.mrf.mxu0
  %v793 = vadd.f32 %v500, %v792
  %794 = vmatprep.mubr.bf16.mxu0 0
  %795 = vmatmul.mubr.bf16.gmra.mxu0 %v652
  %v796 = vpop.f32.mrf.mxu0
  %v797 = vadd.f32 %v496, %v796
  %v798 = vpop.f32.mrf.mxu0
  %v799 = vadd.f32 %v500, %v798
  %v800 = vpop.f32.mrf.mxu0
  %v801 = vadd.f32 %v496, %v800
  %v802 = vpop.f32.mrf.mxu0
  %v803 = vadd.f32 %v500, %v802
  %804 = vmatprep.mubr.bf16.mxu0 0
  %805 = vmatmul.mubr.bf16.gmra.mxu0 %v655
  %v806 = vpop.f32.mrf.mxu0
  %v807 = vadd.f32 %v496, %v806
  %v808 = vpop.f32.mrf.mxu0
  %v809 = vadd.f32 %v500, %v808
  %v810 = vpop.f32.mrf.mxu0
  %v811 = vadd.f32 %v496, %v810
  %v812 = vpop.f32.mrf.mxu0
  %v813 = vadd.f32 %v500, %v812
  %814 = vmatprep.mubr.bf16.mxu0 0
  %815 = vmatmul.mubr.bf16.gmra.mxu0 %v658
  %v816 = vpop.f32.mrf.mxu0
  %v817 = vadd.f32 %v496, %v816
  %v818 = vpop.f32.mrf.mxu0
  %v819 = vadd.f32 %v500, %v818
  %v820 = vpop.f32.mrf.mxu0
  %v821 = vadd.f32 %v496, %v820
  %v822 = vpop.f32.mrf.mxu0
  %v823 = vadd.f32 %v500, %v822
  %824 = vmatprep.mubr.bf16.mxu0 0
  %825 = vmatmul.mubr.bf16.gmra.mxu0 %v661
  %v826 = vpop.f32.mrf.mxu0
  %v827 = vadd.f32 %v496, %v826
  %v828 = vpop.f32.mrf.mxu0
  %v829 = vadd.f32 %v500, %v828
  %v830 = vpop.f32.mrf.mxu0
  %v831 = vadd.f32 %v496, %v830
  %v832 = vpop.f32.mrf.mxu0
  %v833 = vadd.f32 %v500, %v832
  %834 = vmatprep.mubr.bf16.mxu0 0
  %835 = vmatmul.mubr.bf16.gmra.mxu0 %v664
  %v836 = vpop.f32.mrf.mxu0
  %v837 = vadd.f32 %v496, %v836
  %v838 = vpop.f32.mrf.mxu0
  %v839 = vadd.f32 %v500, %v838
  %v840 = vpop.f32.mrf.mxu0
  %v841 = vadd.f32 %v496, %v840
  %v842 = vpop.f32.mrf.mxu0
  %v843 = vadd.f32 %v500, %v842
  %844 = vmatprep.mubr.bf16.mxu0 0
  %845 = vmatmul.mubr.bf16.gmra.mxu0 %v667
  %v846 = vpop.f32.mrf.mxu0
  %v847 = vadd.f32 %v496, %v846
  %v848 = vpop.f32.mrf.mxu0
  %v849 = vadd.f32 %v500, %v848
  %v850 = vpop.f32.mrf.mxu0
  %v851 = vadd.f32 %v496, %v850
  %v852 = vpop.f32.mrf.mxu0
  %v853 = vadd.f32 %v500, %v852
  %854 = vmatprep.mubr.bf16.mxu0 0
  %855 = vmatmul.mubr.bf16.gmra.mxu0 %v670
  %v856 = vpop.f32.mrf.mxu0
  %v857 = vadd.f32 %v496, %v856
  %v858 = vpop.f32.mrf.mxu0
  %v859 = vadd.f32 %v500, %v858
  %v860 = vpop.f32.mrf.mxu0
  %v861 = vadd.f32 %v496, %v860
  %v862 = vpop.f32.mrf.mxu0
  %v863 = vadd.f32 %v500, %v862
  %864 = vdwg.mxu0
  %v865 = vmul.f32 %v707, %v324
  %v866 = vmul.f32 %v709, %v326
  %v867 = vmul.f32 %v711, %v328
  %v868 = vmul.f32 %v713, %v330
  %v869 = vmul.f32 %v717, %v334
  %v870 = vmul.f32 %v719, %v336
  %v871 = vmul.f32 %v721, %v338
  %v872 = vmul.f32 %v723, %v340
  %v873 = vmul.f32 %v727, %v344
  %v874 = vmul.f32 %v729, %v346
  %v875 = vmul.f32 %v731, %v348
  %v876 = vmul.f32 %v733, %v350
  %v877 = vmul.f32 %v737, %v354
  %v878 = vmul.f32 %v739, %v356
  %v879 = vmul.f32 %v741, %v358
  %v880 = vmul.f32 %v743, %v360
  %v881 = vmul.f32 %v747, %v364
  %v882 = vmul.f32 %v749, %v366
  %v883 = vmul.f32 %v751, %v368
  %v884 = vmul.f32 %v753, %v370
  %v885 = vmul.f32 %v757, %v374
  %v886 = vmul.f32 %v759, %v376
  %v887 = vmul.f32 %v761, %v378
  %v888 = vmul.f32 %v763, %v380
  %v889 = vmul.f32 %v767, %v384
  %v890 = vmul.f32 %v769, %v386
  %v891 = vmul.f32 %v771, %v388
  %v892 = vmul.f32 %v773, %v390
  %v893 = vmul.f32 %v777, %v394
  %v894 = vmul.f32 %v779, %v396
  %v895 = vmul.f32 %v781, %v398
  %v896 = vmul.f32 %v783, %v400
  %v897 = vmul.f32 %v787, %v404
  %v898 = vmul.f32 %v789, %v406
  %v899 = vmul.f32 %v791, %v408
  %v900 = vmul.f32 %v793, %v410
  %v901 = vmul.f32 %v797, %v414
  %v902 = vmul.f32 %v799, %v416
  %v903 = vmul.f32 %v801, %v418
  %v904 = vmul.f32 %v803, %v420
  %v905 = vmul.f32 %v807, %v424
  %v906 = vmul.f32 %v809, %v426
  %v907 = vmul.f32 %v811, %v428
  %v908 = vmul.f32 %v813, %v430
  %v909 = vmul.f32 %v817, %v434
  %v910 = vmul.f32 %v819, %v436
  %v911 = vmul.f32 %v821, %v438
  %v912 = vmul.f32 %v823, %v440
  %v913 = vmul.f32 %v827, %v444
  %v914 = vmul.f32 %v829, %v446
  %v915 = vmul.f32 %v831, %v448
  %v916 = vmul.f32 %v833, %v450
  %v917 = vmul.f32 %v837, %v454
  %v918 = vmul.f32 %v839, %v456
  %v919 = vmul.f32 %v841, %v458
  %v920 = vmul.f32 %v843, %v460
  %v921 = vmul.f32 %v847, %v464
  %v922 = vmul.f32 %v849, %v466
  %v923 = vmul.f32 %v851, %v468
  %v924 = vmul.f32 %v853, %v470
  %v925 = vmul.f32 %v857, %v474
  %v926 = vmul.f32 %v859, %v476
  %v927 = vmul.f32 %v861, %v478
  %v928 = vmul.f32 %v863, %v480
  %v929 = vmax.f32 %v865, 0.0
  %v930 = vmax.f32 %v866, 0.0
  %v931 = vmax.f32 %v867, 0.0
  %v932 = vmax.f32 %v868, 0.0
  %v933 = vmax.f32 %v869, 0.0
  %v934 = vmax.f32 %v870, 0.0
  %v935 = vmax.f32 %v871, 0.0
  %v936 = vmax.f32 %v872, 0.0
  %v937 = vmax.f32 %v873, 0.0
  %v938 = vmax.f32 %v874, 0.0
  %v939 = vmax.f32 %v875, 0.0
  %v940 = vmax.f32 %v876, 0.0
  %v941 = vmax.f32 %v877, 0.0
  %v942 = vmax.f32 %v878, 0.0
  %v943 = vmax.f32 %v879, 0.0
  %v944 = vmax.f32 %v880, 0.0
  %v945 = vmax.f32 %v881, 0.0
  %v946 = vmax.f32 %v882, 0.0
  %v947 = vmax.f32 %v883, 0.0
  %v948 = vmax.f32 %v884, 0.0
  %v949 = vmax.f32 %v885, 0.0
  %v950 = vmax.f32 %v886, 0.0
  %v951 = vmax.f32 %v887, 0.0
  %v952 = vmax.f32 %v888, 0.0
  %v953 = vmax.f32 %v889, 0.0
  %v954 = vmax.f32 %v890, 0.0
  %v955 = vmax.f32 %v891, 0.0
  %v956 = vmax.f32 %v892, 0.0
  %v957 = vmax.f32 %v893, 0.0
  %v958 = vmax.f32 %v894, 0.0
  %v959 = vmax.f32 %v895, 0.0
  %v960 = vmax.f32 %v896, 0.0
  %v961 = vmax.f32 %v897, 0.0
  %v962 = vmax.f32 %v898, 0.0
  %v963 = vmax.f32 %v899, 0.0
  %v964 = vmax.f32 %v900, 0.0
  %v965 = vmax.f32 %v901, 0.0
  %v966 = vmax.f32 %v902, 0.0
  %v967 = vmax.f32 %v903, 0.0
  %v968 = vmax.f32 %v904, 0.0
  %v969 = vmax.f32 %v905, 0.0
  %v970 = vmax.f32 %v906, 0.0
  %v971 = vmax.f32 %v907, 0.0
  %v972 = vmax.f32 %v908, 0.0
  %v973 = vmax.f32 %v909, 0.0
  %v974 = vmax.f32 %v910, 0.0
  %v975 = vmax.f32 %v911, 0.0
  %v976 = vmax.f32 %v912, 0.0
  %v977 = vmax.f32 %v913, 0.0
  %v978 = vmax.f32 %v914, 0.0
  %v979 = vmax.f32 %v915, 0.0
  %v980 = vmax.f32 %v916, 0.0
  %v981 = vmax.f32 %v917, 0.0
  %v982 = vmax.f32 %v918, 0.0
  %v983 = vmax.f32 %v919, 0.0
  %v984 = vmax.f32 %v920, 0.0
  %v985 = vmax.f32 %v921, 0.0
  %v986 = vmax.f32 %v922, 0.0
  %v987 = vmax.f32 %v923, 0.0
  %v988 = vmax.f32 %v924, 0.0
  %v989 = vmax.f32 %v925, 0.0
  %v990 = vmax.f32 %v926, 0.0
  %v991 = vmax.f32 %v927, 0.0
  %v992 = vmax.f32 %v928, 0.0
  %v993 = vpack.c.bf16 %v931, %v929
  %v994 = vpack.c.bf16 %v932, %v930
  %v995 = vpack.c.bf16 %v935, %v933
  %v996 = vpack.c.bf16 %v936, %v934
  %v997 = vpack.c.bf16 %v939, %v937
  %v998 = vpack.c.bf16 %v940, %v938
  %v999 = vpack.c.bf16 %v943, %v941
  %v1000 = vpack.c.bf16 %v944, %v942
  %v1001 = vpack.c.bf16 %v947, %v945
  %v1002 = vpack.c.bf16 %v948, %v946
  %v1003 = vpack.c.bf16 %v951, %v949
  %v1004 = vpack.c.bf16 %v952, %v950
  %v1005 = vpack.c.bf16 %v955, %v953
  %v1006 = vpack.c.bf16 %v956, %v954
  %v1007 = vpack.c.bf16 %v959, %v957
  %v1008 = vpack.c.bf16 %v960, %v958
  %v1009 = vpack.c.bf16 %v963, %v961
  %v1010 = vpack.c.bf16 %v964, %v962
  %v1011 = vpack.c.bf16 %v967, %v965
  %v1012 = vpack.c.bf16 %v968, %v966
  %v1013 = vpack.c.bf16 %v971, %v969
  %v1014 = vpack.c.bf16 %v972, %v970
  %v1015 = vpack.c.bf16 %v975, %v973
  %v1016 = vpack.c.bf16 %v976, %v974
  %v1017 = vpack.c.bf16 %v979, %v977
  %v1018 = vpack.c.bf16 %v980, %v978
  %v1019 = vpack.c.bf16 %v983, %v981
  %v1020 = vpack.c.bf16 %v984, %v982
  %v1021 = vpack.c.bf16 %v987, %v985
  %v1022 = vpack.c.bf16 %v988, %v986
  %v1023 = vpack.c.bf16 %v991, %v989
  %v1024 = vpack.c.bf16 %v992, %v990
  %v1025 = vld [vmem:[%s3] sm:$0xff]
  %v1026 = vld [vmem:[%s3 + $0x8] sm:$0xff]
  %v1027 = vld [vmem:[%s3 + $0x10] sm:$0xff]
  %v1028 = vld [vmem:[%s3 + $0x18] sm:$0xff]
  %v1029 = vld [vmem:[%s3 + $0x20] sm:$0xff]
  %v1030 = vld [vmem:[%s3 + $0x28] sm:$0xff]
  %v1031 = vld [vmem:[%s3 + $0x30] sm:$0xff]
  %v1032 = vld [vmem:[%s3 + $0x38] sm:$0xff]
  %v1033 = vld [vmem:[%s3 + $0x40] sm:$0xff]
  %v1034 = vld [vmem:[%s3 + $0x48] sm:$0xff]
  %v1035 = vld [vmem:[%s3 + $0x50] sm:$0xff]
  %v1036 = vld [vmem:[%s3 + $0x58] sm:$0xff]
  %v1037 = vld [vmem:[%s3 + $0x60] sm:$0xff]
  %v1038 = vld [vmem:[%s3 + $0x68] sm:$0xff]
  %v1039 = vld [vmem:[%s3 + $0x70] sm:$0xff]
  %v1040 = vld [vmem:[%s3 + $0x78] sm:$0xff]
  %v1041 = vld [vmem:[%s3 + $0x80] sm:$0xff]
  %v1042 = vld [vmem:[%s3 + $0x88] sm:$0xff]
  %v1043 = vld [vmem:[%s3 + $0x90] sm:$0xff]
  %v1044 = vld [vmem:[%s3 + $0x98] sm:$0xff]
  %v1045 = vld [vmem:[%s3 + $0xa0] sm:$0xff]
  %v1046 = vld [vmem:[%s3 + $0xa8] sm:$0xff]
  %v1047 = vld [vmem:[%s3 + $0xb0] sm:$0xff]
  %v1048 = vld [vmem:[%s3 + $0xb8] sm:$0xff]
  %v1049 = vld [vmem:[%s3 + $0xc0] sm:$0xff]
  %v1050 = vld [vmem:[%s3 + $0xc8] sm:$0xff]
  %v1051 = vld [vmem:[%s3 + $0xd0] sm:$0xff]
  %v1052 = vld [vmem:[%s3 + $0xd8] sm:$0xff]
  %v1053 = vld [vmem:[%s3 + $0xe0] sm:$0xff]
  %v1054 = vld [vmem:[%s3 + $0xe8] sm:$0xff]
  %v1055 = vld [vmem:[%s3 + $0xf0] sm:$0xff]
  %v1056 = vld [vmem:[%s3 + $0xf8] sm:$0xff]
  %s1057 = scalar_lea.vmem %s8, 2
  %v1058 = vld [vmem:[%s1057] ss:$8 sm:$0x3]
  %v1060 = vlaneseq
  %v1061 = vshrl.u32 %v1060, 7
  %v1062 = vsub.s32 0, %v1061
  %v1063 = vrot.slane %v1058, %v1062
  %v1064 = vlaneseq
  %v1065 = vshrl.u32 %v1064, 7
  %v1066 = vsub.s32 1, %v1065
  %v1067 = vrot.slane %v1058, %v1066
  %v1102 = vunpack.c.l.b16 %v1025
  %v1103 = vunpack.c.h.b16 %v1025
  %v1104 = vunpack.c.l.b16 %v1026
  %v1105 = vunpack.c.h.b16 %v1026
  %v1106 = vunpack.c.l.b16 %v1027
  %v1107 = vunpack.c.h.b16 %v1027
  %v1108 = vunpack.c.l.b16 %v1028
  %v1109 = vunpack.c.h.b16 %v1028
  %v1110 = vunpack.c.l.b16 %v1029
  %v1111 = vunpack.c.h.b16 %v1029
  %v1112 = vunpack.c.l.b16 %v1030
  %v1113 = vunpack.c.h.b16 %v1030
  %v1114 = vunpack.c.l.b16 %v1031
  %v1115 = vunpack.c.h.b16 %v1031
  %v1116 = vunpack.c.l.b16 %v1032
  %v1117 = vunpack.c.h.b16 %v1032
  %v1118 = vunpack.c.l.b16 %v1033
  %v1119 = vunpack.c.h.b16 %v1033
  %v1120 = vunpack.c.l.b16 %v1034
  %v1121 = vunpack.c.h.b16 %v1034
  %v1122 = vunpack.c.l.b16 %v1035
  %v1123 = vunpack.c.h.b16 %v1035
  %v1124 = vunpack.c.l.b16 %v1036
  %v1125 = vunpack.c.h.b16 %v1036
  %v1126 = vunpack.c.l.b16 %v1037
  %v1127 = vunpack.c.h.b16 %v1037
  %v1128 = vunpack.c.l.b16 %v1038
  %v1129 = vunpack.c.h.b16 %v1038
  %v1130 = vunpack.c.l.b16 %v1039
  %v1131 = vunpack.c.h.b16 %v1039
  %v1132 = vunpack.c.l.b16 %v1040
  %v1133 = vunpack.c.h.b16 %v1040
  %v1134 = vunpack.c.l.b16 %v1041
  %v1135 = vunpack.c.h.b16 %v1041
  %v1136 = vunpack.c.l.b16 %v1042
  %v1137 = vunpack.c.h.b16 %v1042
  %v1138 = vunpack.c.l.b16 %v1043
  %v1139 = vunpack.c.h.b16 %v1043
  %v1140 = vunpack.c.l.b16 %v1044
  %v1141 = vunpack.c.h.b16 %v1044
  %v1142 = vunpack.c.l.b16 %v1045
  %v1143 = vunpack.c.h.b16 %v1045
  %v1144 = vunpack.c.l.b16 %v1046
  %v1145 = vunpack.c.h.b16 %v1046
  %v1146 = vunpack.c.l.b16 %v1047
  %v1147 = vunpack.c.h.b16 %v1047
  %v1148 = vunpack.c.l.b16 %v1048
  %v1149 = vunpack.c.h.b16 %v1048
  %v1150 = vunpack.c.l.b16 %v1049
  %v1151 = vunpack.c.h.b16 %v1049
  %v1152 = vunpack.c.l.b16 %v1050
  %v1153 = vunpack.c.h.b16 %v1050
  %v1154 = vunpack.c.l.b16 %v1051
  %v1155 = vunpack.c.h.b16 %v1051
  %v1156 = vunpack.c.l.b16 %v1052
  %v1157 = vunpack.c.h.b16 %v1052
  %v1158 = vunpack.c.l.b16 %v1053
  %v1159 = vunpack.c.h.b16 %v1053
  %v1160 = vunpack.c.l.b16 %v1054
  %v1161 = vunpack.c.h.b16 %v1054
  %v1162 = vunpack.c.l.b16 %v1055
  %v1163 = vunpack.c.h.b16 %v1055
  %v1164 = vunpack.c.l.b16 %v1056
  %v1165 = vunpack.c.h.b16 %v1056
  %v1166 = vpack.c.b16 %v1104, %v1102
  %v1167 = vpack.c.b16 %v1105, %v1103
  %v1168 = vpack.c.b16 %v1108, %v1106
  %v1169 = vpack.c.b16 %v1109, %v1107
  %v1170 = vpack.c.b16 %v1112, %v1110
  %v1171 = vpack.c.b16 %v1113, %v1111
  %v1172 = vpack.c.b16 %v1116, %v1114
  %v1173 = vpack.c.b16 %v1117, %v1115
  %v1174 = vpack.c.b16 %v1120, %v1118
  %v1175 = vpack.c.b16 %v1121, %v1119
  %v1176 = vpack.c.b16 %v1124, %v1122
  %v1177 = vpack.c.b16 %v1125, %v1123
  %v1178 = vpack.c.b16 %v1128, %v1126
  %v1179 = vpack.c.b16 %v1129, %v1127
  %v1180 = vpack.c.b16 %v1132, %v1130
  %v1181 = vpack.c.b16 %v1133, %v1131
  %v1182 = vpack.c.b16 %v1136, %v1134
  %v1183 = vpack.c.b16 %v1137, %v1135
  %v1184 = vpack.c.b16 %v1140, %v1138
  %v1185 = vpack.c.b16 %v1141, %v1139
  %v1186 = vpack.c.b16 %v1144, %v1142
  %v1187 = vpack.c.b16 %v1145, %v1143
  %v1188 = vpack.c.b16 %v1148, %v1146
  %v1189 = vpack.c.b16 %v1149, %v1147
  %v1190 = vpack.c.b16 %v1152, %v1150
  %v1191 = vpack.c.b16 %v1153, %v1151
  %v1192 = vpack.c.b16 %v1156, %v1154
  %v1193 = vpack.c.b16 %v1157, %v1155
  %v1194 = vpack.c.b16 %v1160, %v1158
  %v1195 = vpack.c.b16 %v1161, %v1159
  %v1196 = vpack.c.b16 %v1164, %v1162
  %v1197 = vpack.c.b16 %v1165, %v1163
  %1230 = vmatprep.subr.bf16.mxu0 %v1181
  %1231 = vmatpush1.bf16.msra.mxu0 %v1180
  %1232 = vmatprep.subr.bf16.mxu0 %v1179
  %1233 = vmatpush1.bf16.msra.mxu0 %v1178
  %1234 = vmatprep.subr.bf16.mxu0 %v1177
  %1235 = vmatpush1.bf16.msra.mxu0 %v1176
  %1236 = vmatprep.subr.bf16.mxu0 %v1175
  %1237 = vmatpush1.bf16.msra.mxu0 %v1174
  %1238 = vmatprep.subr.bf16.mxu0 %v1173
  %1239 = vmatpush1.bf16.msra.mxu0 %v1172
  %1240 = vmatprep.subr.bf16.mxu0 %v1171
  %1241 = vmatpush1.bf16.msra.mxu0 %v1170
  %1242 = vmatprep.subr.bf16.mxu0 %v1169
  %1243 = vmatpush1.bf16.msra.mxu0 %v1168
  %1244 = vmatprep.subr.bf16.mxu0 %v1167
  %1245 = vmatpush1.bf16.msra.mxu0 %v1166
  %1246 = vmatprep.subr.bf16.mxu0 %v1197
  %1247 = vmatpush2.bf16.msra.mxu0 %v1196
  %1248 = vmatprep.subr.bf16.mxu0 %v1195
  %1249 = vmatpush2.bf16.msra.mxu0 %v1194
  %1250 = vmatprep.subr.bf16.mxu0 %v1193
  %1251 = vmatpush2.bf16.msra.mxu0 %v1192
  %1252 = vmatprep.subr.bf16.mxu0 %v1191
  %1253 = vmatpush2.bf16.msra.mxu0 %v1190
  %1254 = vmatprep.subr.bf16.mxu0 %v1189
  %1255 = vmatpush2.bf16.msra.mxu0 %v1188
  %1256 = vmatprep.subr.bf16.mxu0 %v1187
  %1257 = vmatpush2.bf16.msra.mxu0 %v1186
  %1258 = vmatprep.subr.bf16.mxu0 %v1185
  %1259 = vmatpush2.bf16.msra.mxu0 %v1184
  %1260 = vmatprep.subr.bf16.mxu0 %v1183
  %1261 = vmatpush2.bf16.msra.mxu0 %v1182
  %1262 = vmatprep.mubr.bf16.mxu0 %v994
  %1263 = vmatmul.mubr.bf16.gmra.mxu0 %v993
  %v1264 = vpop.f32.mrf.mxu0
  %v1265 = vadd.f32 %v1063, %v1264
  %v1266 = vpop.f32.mrf.mxu0
  %v1267 = vadd.f32 %v1067, %v1266
  %v1268 = vpop.f32.mrf.mxu0
  %v1269 = vadd.f32 %v1063, %v1268
  %v1270 = vpop.f32.mrf.mxu0
  %v1271 = vadd.f32 %v1067, %v1270
  %1272 = vmatprep.mubr.bf16.mxu0 %v996
  %1273 = vmatmul.mubr.bf16.gmra.mxu0 %v995
  %v1274 = vpop.f32.mrf.mxu0
  %v1275 = vadd.f32 %v1063, %v1274
  %v1276 = vpop.f32.mrf.mxu0
  %v1277 = vadd.f32 %v1067, %v1276
  %v1278 = vpop.f32.mrf.mxu0
  %v1279 = vadd.f32 %v1063, %v1278
  %v1280 = vpop.f32.mrf.mxu0
  %v1281 = vadd.f32 %v1067, %v1280
  %1282 = vmatprep.mubr.bf16.mxu0 %v998
  %1283 = vmatmul.mubr.bf16.gmra.mxu0 %v997
  %v1284 = vpop.f32.mrf.mxu0
  %v1285 = vadd.f32 %v1063, %v1284
  %v1286 = vpop.f32.mrf.mxu0
  %v1287 = vadd.f32 %v1067, %v1286
  %v1288 = vpop.f32.mrf.mxu0
  %v1289 = vadd.f32 %v1063, %v1288
  %v1290 = vpop.f32.mrf.mxu0
  %v1291 = vadd.f32 %v1067, %v1290
  %1292 = vmatprep.mubr.bf16.mxu0 %v1000
  %1293 = vmatmul.mubr.bf16.gmra.mxu0 %v999
  %v1294 = vpop.f32.mrf.mxu0
  %v1295 = vadd.f32 %v1063, %v1294
  %v1296 = vpop.f32.mrf.mxu0
  %v1297 = vadd.f32 %v1067, %v1296
  %v1298 = vpop.f32.mrf.mxu0
  %v1299 = vadd.f32 %v1063, %v1298
  %v1300 = vpop.f32.mrf.mxu0
  %v1301 = vadd.f32 %v1067, %v1300
  %1302 = vmatprep.mubr.bf16.mxu0 %v1002
  %1303 = vmatmul.mubr.bf16.gmra.mxu0 %v1001
  %v1304 = vpop.f32.mrf.mxu0
  %v1305 = vadd.f32 %v1063, %v1304
  %v1306 = vpop.f32.mrf.mxu0
  %v1307 = vadd.f32 %v1067, %v1306
  %v1308 = vpop.f32.mrf.mxu0
  %v1309 = vadd.f32 %v1063, %v1308
  %v1310 = vpop.f32.mrf.mxu0
  %v1311 = vadd.f32 %v1067, %v1310
  %1312 = vmatprep.mubr.bf16.mxu0 %v1004
  %1313 = vmatmul.mubr.bf16.gmra.mxu0 %v1003
  %v1314 = vpop.f32.mrf.mxu0
  %v1315 = vadd.f32 %v1063, %v1314
  %v1316 = vpop.f32.mrf.mxu0
  %v1317 = vadd.f32 %v1067, %v1316
  %v1318 = vpop.f32.mrf.mxu0
  %v1319 = vadd.f32 %v1063, %v1318
  %v1320 = vpop.f32.mrf.mxu0
  %v1321 = vadd.f32 %v1067, %v1320
  %1322 = vmatprep.mubr.bf16.mxu0 %v1006
  %1323 = vmatmul.mubr.bf16.gmra.mxu0 %v1005
  %v1324 = vpop.f32.mrf.mxu0
  %v1325 = vadd.f32 %v1063, %v1324
  %v1326 = vpop.f32.mrf.mxu0
  %v1327 = vadd.f32 %v1067, %v1326
  %v1328 = vpop.f32.mrf.mxu0
  %v1329 = vadd.f32 %v1063, %v1328
  %v1330 = vpop.f32.mrf.mxu0
  %v1331 = vadd.f32 %v1067, %v1330
  %1332 = vmatprep.mubr.bf16.mxu0 %v1008
  %1333 = vmatmul.mubr.bf16.gmra.mxu0 %v1007
  %v1334 = vpop.f32.mrf.mxu0
  %v1335 = vadd.f32 %v1063, %v1334
  %v1336 = vpop.f32.mrf.mxu0
  %v1337 = vadd.f32 %v1067, %v1336
  %v1338 = vpop.f32.mrf.mxu0
  %v1339 = vadd.f32 %v1063, %v1338
  %v1340 = vpop.f32.mrf.mxu0
  %v1341 = vadd.f32 %v1067, %v1340
  %1342 = vmatprep.mubr.bf16.mxu0 %v1010
  %1343 = vmatmul.mubr.bf16.gmra.mxu0 %v1009
  %v1344 = vpop.f32.mrf.mxu0
  %v1345 = vadd.f32 %v1063, %v1344
  %v1346 = vpop.f32.mrf.mxu0
  %v1347 = vadd.f32 %v1067, %v1346
  %v1348 = vpop.f32.mrf.mxu0
  %v1349 = vadd.f32 %v1063, %v1348
  %v1350 = vpop.f32.mrf.mxu0
  %v1351 = vadd.f32 %v1067, %v1350
  %1352 = vmatprep.mubr.bf16.mxu0 %v1012
  %1353 = vmatmul.mubr.bf16.gmra.mxu0 %v1011
  %v1354 = vpop.f32.mrf.mxu0
  %v1355 = vadd.f32 %v1063, %v1354
  %v1356 = vpop.f32.mrf.mxu0
  %v1357 = vadd.f32 %v1067, %v1356
  %v1358 = vpop.f32.mrf.mxu0
  %v1359 = vadd.f32 %v1063, %v1358
  %v1360 = vpop.f32.mrf.mxu0
  %v1361 = vadd.f32 %v1067, %v1360
  %1362 = vmatprep.mubr.bf16.mxu0 %v1014
  %1363 = vmatmul.mubr.bf16.gmra.mxu0 %v1013
  %v1364 = vpop.f32.mrf.mxu0
  %v1365 = vadd.f32 %v1063, %v1364
  %v1366 = vpop.f32.mrf.mxu0
  %v1367 = vadd.f32 %v1067, %v1366
  %v1368 = vpop.f32.mrf.mxu0
  %v1369 = vadd.f32 %v1063, %v1368
  %v1370 = vpop.f32.mrf.mxu0
  %v1371 = vadd.f32 %v1067, %v1370
  %1372 = vmatprep.mubr.bf16.mxu0 %v1016
  %1373 = vmatmul.mubr.bf16.gmra.mxu0 %v1015
  %v1374 = vpop.f32.mrf.mxu0
  %v1375 = vadd.f32 %v1063, %v1374
  %v1376 = vpop.f32.mrf.mxu0
  %v1377 = vadd.f32 %v1067, %v1376
  %v1378 = vpop.f32.mrf.mxu0
  %v1379 = vadd.f32 %v1063, %v1378
  %v1380 = vpop.f32.mrf.mxu0
  %v1381 = vadd.f32 %v1067, %v1380
  %1382 = vmatprep.mubr.bf16.mxu0 %v1018
  %1383 = vmatmul.mubr.bf16.gmra.mxu0 %v1017
  %v1384 = vpop.f32.mrf.mxu0
  %v1385 = vadd.f32 %v1063, %v1384
  %v1386 = vpop.f32.mrf.mxu0
  %v1387 = vadd.f32 %v1067, %v1386
  %v1388 = vpop.f32.mrf.mxu0
  %v1389 = vadd.f32 %v1063, %v1388
  %v1390 = vpop.f32.mrf.mxu0
  %v1391 = vadd.f32 %v1067, %v1390
  %1392 = vmatprep.mubr.bf16.mxu0 %v1020
  %1393 = vmatmul.mubr.bf16.gmra.mxu0 %v1019
  %v1394 = vpop.f32.mrf.mxu0
  %v1395 = vadd.f32 %v1063, %v1394
  %v1396 = vpop.f32.mrf.mxu0
  %v1397 = vadd.f32 %v1067, %v1396
  %v1398 = vpop.f32.mrf.mxu0
  %v1399 = vadd.f32 %v1063, %v1398
  %v1400 = vpop.f32.mrf.mxu0
  %v1401 = vadd.f32 %v1067, %v1400
  %1402 = vmatprep.mubr.bf16.mxu0 %v1022
  %1403 = vmatmul.mubr.bf16.gmra.mxu0 %v1021
  %v1404 = vpop.f32.mrf.mxu0
  %v1405 = vadd.f32 %v1063, %v1404
  %v1406 = vpop.f32.mrf.mxu0
  %v1407 = vadd.f32 %v1067, %v1406
  %v1408 = vpop.f32.mrf.mxu0
  %v1409 = vadd.f32 %v1063, %v1408
  %v1410 = vpop.f32.mrf.mxu0
  %v1411 = vadd.f32 %v1067, %v1410
  %1412 = vmatprep.mubr.bf16.mxu0 %v1024
  %1413 = vmatmul.mubr.bf16.gmra.mxu0 %v1023
  %v1414 = vpop.f32.mrf.mxu0
  %v1415 = vadd.f32 %v1063, %v1414
  %v1416 = vpop.f32.mrf.mxu0
  %v1417 = vadd.f32 %v1067, %v1416
  %v1418 = vpop.f32.mrf.mxu0
  %v1419 = vadd.f32 %v1063, %v1418
  %v1420 = vpop.f32.mrf.mxu0
  %v1421 = vadd.f32 %v1067, %v1420
  %1422 = vdwg.mxu0
  %v1423 = vmul.f32 %v1265, %v324
  %v1424 = vmul.f32 %v1267, %v326
  %v1425 = vmul.f32 %v1269, %v328
  %v1426 = vmul.f32 %v1271, %v330
  %v1427 = vmul.f32 %v1275, %v334
  %v1428 = vmul.f32 %v1277, %v336
  %v1429 = vmul.f32 %v1279, %v338
  %v1430 = vmul.f32 %v1281, %v340
  %v1431 = vmul.f32 %v1285, %v344
  %v1432 = vmul.f32 %v1287, %v346
  %v1433 = vmul.f32 %v1289, %v348
  %v1434 = vmul.f32 %v1291, %v350
  %v1435 = vmul.f32 %v1295, %v354
  %v1436 = vmul.f32 %v1297, %v356
  %v1437 = vmul.f32 %v1299, %v358
  %v1438 = vmul.f32 %v1301, %v360
  %v1439 = vmul.f32 %v1305, %v364
  %v1440 = vmul.f32 %v1307, %v366
  %v1441 = vmul.f32 %v1309, %v368
  %v1442 = vmul.f32 %v1311, %v370
  %v1443 = vmul.f32 %v1315, %v374
  %v1444 = vmul.f32 %v1317, %v376
  %v1445 = vmul.f32 %v1319, %v378
  %v1446 = vmul.f32 %v1321, %v380
  %v1447 = vmul.f32 %v1325, %v384
  %v1448 = vmul.f32 %v1327, %v386
  %v1449 = vmul.f32 %v1329, %v388
  %v1450 = vmul.f32 %v1331, %v390
  %v1451 = vmul.f32 %v1335, %v394
  %v1452 = vmul.f32 %v1337, %v396
  %v1453 = vmul.f32 %v1339, %v398
  %v1454 = vmul.f32 %v1341, %v400
  %v1455 = vmul.f32 %v1345, %v404
  %v1456 = vmul.f32 %v1347, %v406
  %v1457 = vmul.f32 %v1349, %v408
  %v1458 = vmul.f32 %v1351, %v410
  %v1459 = vmul.f32 %v1355, %v414
  %v1460 = vmul.f32 %v1357, %v416
  %v1461 = vmul.f32 %v1359, %v418
  %v1462 = vmul.f32 %v1361, %v420
  %v1463 = vmul.f32 %v1365, %v424
  %v1464 = vmul.f32 %v1367, %v426
  %v1465 = vmul.f32 %v1369, %v428
  %v1466 = vmul.f32 %v1371, %v430
  %v1467 = vmul.f32 %v1375, %v434
  %v1468 = vmul.f32 %v1377, %v436
  %v1469 = vmul.f32 %v1379, %v438
  %v1470 = vmul.f32 %v1381, %v440
  %v1471 = vmul.f32 %v1385, %v444
  %v1472 = vmul.f32 %v1387, %v446
  %v1473 = vmul.f32 %v1389, %v448
  %v1474 = vmul.f32 %v1391, %v450
  %v1475 = vmul.f32 %v1395, %v454
  %v1476 = vmul.f32 %v1397, %v456
  %v1477 = vmul.f32 %v1399, %v458
  %v1478 = vmul.f32 %v1401, %v460
  %v1479 = vmul.f32 %v1405, %v464
  %v1480 = vmul.f32 %v1407, %v466
  %v1481 = vmul.f32 %v1409, %v468
  %v1482 = vmul.f32 %v1411, %v470
  %v1483 = vmul.f32 %v1415, %v474
  %v1484 = vmul.f32 %v1417, %v476
  %v1485 = vmul.f32 %v1419, %v478
  %v1486 = vmul.f32 %v1421, %v480
  %v1487 = vmax.f32 %v1423, 0.0
  %v1488 = vmax.f32 %v1424, 0.0
  %v1489 = vmax.f32 %v1425, 0.0
  %v1490 = vmax.f32 %v1426, 0.0
  %v1491 = vmax.f32 %v1427, 0.0
  %v1492 = vmax.f32 %v1428, 0.0
  %v1493 = vmax.f32 %v1429, 0.0
  %v1494 = vmax.f32 %v1430, 0.0
  %v1495 = vmax.f32 %v1431, 0.0
  %v1496 = vmax.f32 %v1432, 0.0
  %v1497 = vmax.f32 %v1433, 0.0
  %v1498 = vmax.f32 %v1434, 0.0
  %v1499 = vmax.f32 %v1435, 0.0
  %v1500 = vmax.f32 %v1436, 0.0
  %v1501 = vmax.f32 %v1437, 0.0
  %v1502 = vmax.f32 %v1438, 0.0
  %v1503 = vmax.f32 %v1439, 0.0
  %v1504 = vmax.f32 %v1440, 0.0
  %v1505 = vmax.f32 %v1441, 0.0
  %v1506 = vmax.f32 %v1442, 0.0
  %v1507 = vmax.f32 %v1443, 0.0
  %v1508 = vmax.f32 %v1444, 0.0
  %v1509 = vmax.f32 %v1445, 0.0
  %v1510 = vmax.f32 %v1446, 0.0
  %v1511 = vmax.f32 %v1447, 0.0
  %v1512 = vmax.f32 %v1448, 0.0
  %v1513 = vmax.f32 %v1449, 0.0
  %v1514 = vmax.f32 %v1450, 0.0
  %v1515 = vmax.f32 %v1451, 0.0
  %v1516 = vmax.f32 %v1452, 0.0
  %v1517 = vmax.f32 %v1453, 0.0
  %v1518 = vmax.f32 %v1454, 0.0
  %v1519 = vmax.f32 %v1455, 0.0
  %v1520 = vmax.f32 %v1456, 0.0
  %v1521 = vmax.f32 %v1457, 0.0
  %v1522 = vmax.f32 %v1458, 0.0
  %v1523 = vmax.f32 %v1459, 0.0
  %v1524 = vmax.f32 %v1460, 0.0
  %v1525 = vmax.f32 %v1461, 0.0
  %v1526 = vmax.f32 %v1462, 0.0
  %v1527 = vmax.f32 %v1463, 0.0
  %v1528 = vmax.f32 %v1464, 0.0
  %v1529 = vmax.f32 %v1465, 0.0
  %v1530 = vmax.f32 %v1466, 0.0
  %v1531 = vmax.f32 %v1467, 0.0
  %v1532 = vmax.f32 %v1468, 0.0
  %v1533 = vmax.f32 %v1469, 0.0
  %v1534 = vmax.f32 %v1470, 0.0
  %v1535 = vmax.f32 %v1471, 0.0
  %v1536 = vmax.f32 %v1472, 0.0
  %v1537 = vmax.f32 %v1473, 0.0
  %v1538 = vmax.f32 %v1474, 0.0
  %v1539 = vmax.f32 %v1475, 0.0
  %v1540 = vmax.f32 %v1476, 0.0
  %v1541 = vmax.f32 %v1477, 0.0
  %v1542 = vmax.f32 %v1478, 0.0
  %v1543 = vmax.f32 %v1479, 0.0
  %v1544 = vmax.f32 %v1480, 0.0
  %v1545 = vmax.f32 %v1481, 0.0
  %v1546 = vmax.f32 %v1482, 0.0
  %v1547 = vmax.f32 %v1483, 0.0
  %v1548 = vmax.f32 %v1484, 0.0
  %v1549 = vmax.f32 %v1485, 0.0
  %v1550 = vmax.f32 %v1486, 0.0
  %v1551 = vpack.c.bf16 %v1489, %v1487
  %v1552 = vpack.c.bf16 %v1490, %v1488
  %v1553 = vpack.c.bf16 %v1493, %v1491
  %v1554 = vpack.c.bf16 %v1494, %v1492
  %v1555 = vpack.c.bf16 %v1497, %v1495
  %v1556 = vpack.c.bf16 %v1498, %v1496
  %v1557 = vpack.c.bf16 %v1501, %v1499
  %v1558 = vpack.c.bf16 %v1502, %v1500
  %v1559 = vpack.c.bf16 %v1505, %v1503
  %v1560 = vpack.c.bf16 %v1506, %v1504
  %v1561 = vpack.c.bf16 %v1509, %v1507
  %v1562 = vpack.c.bf16 %v1510, %v1508
  %v1563 = vpack.c.bf16 %v1513, %v1511
  %v1564 = vpack.c.bf16 %v1514, %v1512
  %v1565 = vpack.c.bf16 %v1517, %v1515
  %v1566 = vpack.c.bf16 %v1518, %v1516
  %v1567 = vpack.c.bf16 %v1521, %v1519
  %v1568 = vpack.c.bf16 %v1522, %v1520
  %v1569 = vpack.c.bf16 %v1525, %v1523
  %v1570 = vpack.c.bf16 %v1526, %v1524
  %v1571 = vpack.c.bf16 %v1529, %v1527
  %v1572 = vpack.c.bf16 %v1530, %v1528
  %v1573 = vpack.c.bf16 %v1533, %v1531
  %v1574 = vpack.c.bf16 %v1534, %v1532
  %v1575 = vpack.c.bf16 %v1537, %v1535
  %v1576 = vpack.c.bf16 %v1538, %v1536
  %v1577 = vpack.c.bf16 %v1541, %v1539
  %v1578 = vpack.c.bf16 %v1542, %v1540
  %v1579 = vpack.c.bf16 %v1545, %v1543
  %v1580 = vpack.c.bf16 %v1546, %v1544
  %v1581 = vpack.c.bf16 %v1549, %v1547
  %v1582 = vpack.c.bf16 %v1550, %v1548
  %s1583 = scalar_lea.vmem %s3, 256
  %v1584 = vld [vmem:[%s1583] sm:$0xff]
  %v1585 = vld [vmem:[%s1583 + $0x8] sm:$0xff]
  %v1586 = vld [vmem:[%s1583 + $0x10] sm:$0xff]
  %v1587 = vld [vmem:[%s1583 + $0x18] sm:$0xff]
  %v1588 = vld [vmem:[%s1583 + $0x20] sm:$0xff]
  %v1589 = vld [vmem:[%s1583 + $0x28] sm:$0xff]
  %v1590 = vld [vmem:[%s1583 + $0x30] sm:$0xff]
  %v1591 = vld [vmem:[%s1583 + $0x38] sm:$0xff]
  %v1592 = vld [vmem:[%s1583 + $0x40] sm:$0xff]
  %v1593 = vld [vmem:[%s1583 + $0x48] sm:$0xff]
  %v1594 = vld [vmem:[%s1583 + $0x50] sm:$0xff]
  %v1595 = vld [vmem:[%s1583 + $0x58] sm:$0xff]
  %v1596 = vld [vmem:[%s1583 + $0x60] sm:$0xff]
  %v1597 = vld [vmem:[%s1583 + $0x68] sm:$0xff]
  %v1598 = vld [vmem:[%s1583 + $0x70] sm:$0xff]
  %v1599 = vld [vmem:[%s1583 + $0x78] sm:$0xff]
  %v1600 = vld [vmem:[%s1583 + $0x80] sm:$0xff]
  %v1601 = vld [vmem:[%s1583 + $0x88] sm:$0xff]
  %v1602 = vld [vmem:[%s1583 + $0x90] sm:$0xff]
  %v1603 = vld [vmem:[%s1583 + $0x98] sm:$0xff]
  %v1604 = vld [vmem:[%s1583 + $0xa0] sm:$0xff]
  %v1605 = vld [vmem:[%s1583 + $0xa8] sm:$0xff]
  %v1606 = vld [vmem:[%s1583 + $0xb0] sm:$0xff]
  %v1607 = vld [vmem:[%s1583 + $0xb8] sm:$0xff]
  %v1608 = vld [vmem:[%s1583 + $0xc0] sm:$0xff]
  %v1609 = vld [vmem:[%s1583 + $0xc8] sm:$0xff]
  %v1610 = vld [vmem:[%s1583 + $0xd0] sm:$0xff]
  %v1611 = vld [vmem:[%s1583 + $0xd8] sm:$0xff]
  %v1612 = vld [vmem:[%s1583 + $0xe0] sm:$0xff]
  %v1613 = vld [vmem:[%s1583 + $0xe8] sm:$0xff]
  %v1614 = vld [vmem:[%s1583 + $0xf0] sm:$0xff]
  %v1615 = vld [vmem:[%s1583 + $0xf8] sm:$0xff]
  %s1616 = scalar_lea.vmem %s8, 3
  %v1617 = vld [vmem:[%s1616] ss:$8 sm:$0x3]
  %v1619 = vlaneseq
  %v1620 = vshrl.u32 %v1619, 7
  %v1621 = vsub.s32 0, %v1620
  %v1622 = vrot.slane %v1617, %v1621
  %v1623 = vlaneseq
  %v1624 = vshrl.u32 %v1623, 7
  %v1625 = vsub.s32 1, %v1624
  %v1626 = vrot.slane %v1617, %v1625
  %v1661 = vunpack.c.l.b16 %v1584
  %v1662 = vunpack.c.h.b16 %v1584
  %v1663 = vunpack.c.l.b16 %v1585
  %v1664 = vunpack.c.h.b16 %v1585
  %v1665 = vunpack.c.l.b16 %v1586
  %v1666 = vunpack.c.h.b16 %v1586
  %v1667 = vunpack.c.l.b16 %v1587
  %v1668 = vunpack.c.h.b16 %v1587
  %v1669 = vunpack.c.l.b16 %v1588
  %v1670 = vunpack.c.h.b16 %v1588
  %v1671 = vunpack.c.l.b16 %v1589
  %v1672 = vunpack.c.h.b16 %v1589
  %v1673 = vunpack.c.l.b16 %v1590
  %v1674 = vunpack.c.h.b16 %v1590
  %v1675 = vunpack.c.l.b16 %v1591
  %v1676 = vunpack.c.h.b16 %v1591
  %v1677 = vunpack.c.l.b16 %v1592
  %v1678 = vunpack.c.h.b16 %v1592
  %v1679 = vunpack.c.l.b16 %v1593
  %v1680 = vunpack.c.h.b16 %v1593
  %v1681 = vunpack.c.l.b16 %v1594
  %v1682 = vunpack.c.h.b16 %v1594
  %v1683 = vunpack.c.l.b16 %v1595
  %v1684 = vunpack.c.h.b16 %v1595
  %v1685 = vunpack.c.l.b16 %v1596
  %v1686 = vunpack.c.h.b16 %v1596
  %v1687 = vunpack.c.l.b16 %v1597
  %v1688 = vunpack.c.h.b16 %v1597
  %v1689 = vunpack.c.l.b16 %v1598
  %v1690 = vunpack.c.h.b16 %v1598
  %v1691 = vunpack.c.l.b16 %v1599
  %v1692 = vunpack.c.h.b16 %v1599
  %v1693 = vunpack.c.l.b16 %v1600
  %v1694 = vunpack.c.h.b16 %v1600
  %v1695 = vunpack.c.l.b16 %v1601
  %v1696 = vunpack.c.h.b16 %v1601
  %v1697 = vunpack.c.l.b16 %v1602
  %v1698 = vunpack.c.h.b16 %v1602
  %v1699 = vunpack.c.l.b16 %v1603
  %v1700 = vunpack.c.h.b16 %v1603
  %v1701 = vunpack.c.l.b16 %v1604
  %v1702 = vunpack.c.h.b16 %v1604
  %v1703 = vunpack.c.l.b16 %v1605
  %v1704 = vunpack.c.h.b16 %v1605
  %v1705 = vunpack.c.l.b16 %v1606
  %v1706 = vunpack.c.h.b16 %v1606
  %v1707 = vunpack.c.l.b16 %v1607
  %v1708 = vunpack.c.h.b16 %v1607
  %v1709 = vunpack.c.l.b16 %v1608
  %v1710 = vunpack.c.h.b16 %v1608
  %v1711 = vunpack.c.l.b16 %v1609
  %v1712 = vunpack.c.h.b16 %v1609
  %v1713 = vunpack.c.l.b16 %v1610
  %v1714 = vunpack.c.h.b16 %v1610
  %v1715 = vunpack.c.l.b16 %v1611
  %v1716 = vunpack.c.h.b16 %v1611
  %v1717 = vunpack.c.l.b16 %v1612
  %v1718 = vunpack.c.h.b16 %v1612
  %v1719 = vunpack.c.l.b16 %v1613
  %v1720 = vunpack.c.h.b16 %v1613
  %v1721 = vunpack.c.l.b16 %v1614
  %v1722 = vunpack.c.h.b16 %v1614
  %v1723 = vunpack.c.l.b16 %v1615
  %v1724 = vunpack.c.h.b16 %v1615
  %v1725 = vpack.c.b16 %v1663, %v1661
  %v1726 = vpack.c.b16 %v1664, %v1662
  %v1727 = vpack.c.b16 %v1667, %v1665
  %v1728 = vpack.c.b16 %v1668, %v1666
  %v1729 = vpack.c.b16 %v1671, %v1669
  %v1730 = vpack.c.b16 %v1672, %v1670
  %v1731 = vpack.c.b16 %v1675, %v1673
  %v1732 = vpack.c.b16 %v1676, %v1674
  %v1733 = vpack.c.b16 %v1679, %v1677
  %v1734 = vpack.c.b16 %v1680, %v1678
  %v1735 = vpack.c.b16 %v1683, %v1681
  %v1736 = vpack.c.b16 %v1684, %v1682
  %v1737 = vpack.c.b16 %v1687, %v1685
  %v1738 = vpack.c.b16 %v1688, %v1686
  %v1739 = vpack.c.b16 %v1691, %v1689
  %v1740 = vpack.c.b16 %v1692, %v1690
  %v1741 = vpack.c.b16 %v1695, %v1693
  %v1742 = vpack.c.b16 %v1696, %v1694
  %v1743 = vpack.c.b16 %v1699, %v1697
  %v1744 = vpack.c.b16 %v1700, %v1698
  %v1745 = vpack.c.b16 %v1703, %v1701
  %v1746 = vpack.c.b16 %v1704, %v1702
  %v1747 = vpack.c.b16 %v1707, %v1705
  %v1748 = vpack.c.b16 %v1708, %v1706
  %v1749 = vpack.c.b16 %v1711, %v1709
  %v1750 = vpack.c.b16 %v1712, %v1710
  %v1751 = vpack.c.b16 %v1715, %v1713
  %v1752 = vpack.c.b16 %v1716, %v1714
  %v1753 = vpack.c.b16 %v1719, %v1717
  %v1754 = vpack.c.b16 %v1720, %v1718
  %v1755 = vpack.c.b16 %v1723, %v1721
  %v1756 = vpack.c.b16 %v1724, %v1722
  %1789 = vmatprep.subr.bf16.mxu0 %v1740
  %1790 = vmatpush1.bf16.msra.mxu0 %v1739
  %1791 = vmatprep.subr.bf16.mxu0 %v1738
  %1792 = vmatpush1.bf16.msra.mxu0 %v1737
  %1793 = vmatprep.subr.bf16.mxu0 %v1736
  %1794 = vmatpush1.bf16.msra.mxu0 %v1735
  %1795 = vmatprep.subr.bf16.mxu0 %v1734
  %1796 = vmatpush1.bf16.msra.mxu0 %v1733
  %1797 = vmatprep.subr.bf16.mxu0 %v1732
  %1798 = vmatpush1.bf16.msra.mxu0 %v1731
  %1799 = vmatprep.subr.bf16.mxu0 %v1730
  %1800 = vmatpush1.bf16.msra.mxu0 %v1729
  %1801 = vmatprep.subr.bf16.mxu0 %v1728
  %1802 = vmatpush1.bf16.msra.mxu0 %v1727
  %1803 = vmatprep.subr.bf16.mxu0 %v1726
  %1804 = vmatpush1.bf16.msra.mxu0 %v1725
  %1805 = vmatprep.subr.bf16.mxu0 %v1756
  %1806 = vmatpush2.bf16.msra.mxu0 %v1755
  %1807 = vmatprep.subr.bf16.mxu0 %v1754
  %1808 = vmatpush2.bf16.msra.mxu0 %v1753
  %1809 = vmatprep.subr.bf16.mxu0 %v1752
  %1810 = vmatpush2.bf16.msra.mxu0 %v1751
  %1811 = vmatprep.subr.bf16.mxu0 %v1750
  %1812 = vmatpush2.bf16.msra.mxu0 %v1749
  %1813 = vmatprep.subr.bf16.mxu0 %v1748
  %1814 = vmatpush2.bf16.msra.mxu0 %v1747
  %1815 = vmatprep.subr.bf16.mxu0 %v1746
  %1816 = vmatpush2.bf16.msra.mxu0 %v1745
  %1817 = vmatprep.subr.bf16.mxu0 %v1744
  %1818 = vmatpush2.bf16.msra.mxu0 %v1743
  %1819 = vmatprep.subr.bf16.mxu0 %v1742
  %1820 = vmatpush2.bf16.msra.mxu0 %v1741
  %1821 = vmatprep.mubr.bf16.mxu0 %v1552
  %1822 = vmatmul.mubr.bf16.gmra.mxu0 %v1551
  %v1823 = vpop.f32.mrf.mxu0
  %v1824 = vadd.f32 %v1622, %v1823
  %v1825 = vpop.f32.mrf.mxu0
  %v1826 = vadd.f32 %v1626, %v1825
  %v1827 = vpop.f32.mrf.mxu0
  %v1828 = vadd.f32 %v1622, %v1827
  %v1829 = vpop.f32.mrf.mxu0
  %v1830 = vadd.f32 %v1626, %v1829
  %1831 = vmatprep.mubr.bf16.mxu0 %v1554
  %1832 = vmatmul.mubr.bf16.gmra.mxu0 %v1553
  %v1833 = vpop.f32.mrf.mxu0
  %v1834 = vadd.f32 %v1622, %v1833
  %v1835 = vpop.f32.mrf.mxu0
  %v1836 = vadd.f32 %v1626, %v1835
  %v1837 = vpop.f32.mrf.mxu0
  %v1838 = vadd.f32 %v1622, %v1837
  %v1839 = vpop.f32.mrf.mxu0
  %v1840 = vadd.f32 %v1626, %v1839
  %1841 = vmatprep.mubr.bf16.mxu0 %v1556
  %1842 = vmatmul.mubr.bf16.gmra.mxu0 %v1555
  %v1843 = vpop.f32.mrf.mxu0
  %v1844 = vadd.f32 %v1622, %v1843
  %v1845 = vpop.f32.mrf.mxu0
  %v1846 = vadd.f32 %v1626, %v1845
  %v1847 = vpop.f32.mrf.mxu0
  %v1848 = vadd.f32 %v1622, %v1847
  %v1849 = vpop.f32.mrf.mxu0
  %v1850 = vadd.f32 %v1626, %v1849
  %1851 = vmatprep.mubr.bf16.mxu0 %v1558
  %1852 = vmatmul.mubr.bf16.gmra.mxu0 %v1557
  %v1853 = vpop.f32.mrf.mxu0
  %v1854 = vadd.f32 %v1622, %v1853
  %v1855 = vpop.f32.mrf.mxu0
  %v1856 = vadd.f32 %v1626, %v1855
  %v1857 = vpop.f32.mrf.mxu0
  %v1858 = vadd.f32 %v1622, %v1857
  %v1859 = vpop.f32.mrf.mxu0
  %v1860 = vadd.f32 %v1626, %v1859
  %1861 = vmatprep.mubr.bf16.mxu0 %v1560
  %1862 = vmatmul.mubr.bf16.gmra.mxu0 %v1559
  %v1863 = vpop.f32.mrf.mxu0
  %v1864 = vadd.f32 %v1622, %v1863
  %v1865 = vpop.f32.mrf.mxu0
  %v1866 = vadd.f32 %v1626, %v1865
  %v1867 = vpop.f32.mrf.mxu0
  %v1868 = vadd.f32 %v1622, %v1867
  %v1869 = vpop.f32.mrf.mxu0
  %v1870 = vadd.f32 %v1626, %v1869
  %1871 = vmatprep.mubr.bf16.mxu0 %v1562
  %1872 = vmatmul.mubr.bf16.gmra.mxu0 %v1561
  %v1873 = vpop.f32.mrf.mxu0
  %v1874 = vadd.f32 %v1622, %v1873
  %v1875 = vpop.f32.mrf.mxu0
  %v1876 = vadd.f32 %v1626, %v1875
  %v1877 = vpop.f32.mrf.mxu0
  %v1878 = vadd.f32 %v1622, %v1877
  %v1879 = vpop.f32.mrf.mxu0
  %v1880 = vadd.f32 %v1626, %v1879
  %1881 = vmatprep.mubr.bf16.mxu0 %v1564
  %1882 = vmatmul.mubr.bf16.gmra.mxu0 %v1563
  %v1883 = vpop.f32.mrf.mxu0
  %v1884 = vadd.f32 %v1622, %v1883
  %v1885 = vpop.f32.mrf.mxu0
  %v1886 = vadd.f32 %v1626, %v1885
  %v1887 = vpop.f32.mrf.mxu0
  %v1888 = vadd.f32 %v1622, %v1887
  %v1889 = vpop.f32.mrf.mxu0
  %v1890 = vadd.f32 %v1626, %v1889
  %1891 = vmatprep.mubr.bf16.mxu0 %v1566
  %1892 = vmatmul.mubr.bf16.gmra.mxu0 %v1565
  %v1893 = vpop.f32.mrf.mxu0
  %v1894 = vadd.f32 %v1622, %v1893
  %v1895 = vpop.f32.mrf.mxu0
  %v1896 = vadd.f32 %v1626, %v1895
  %v1897 = vpop.f32.mrf.mxu0
  %v1898 = vadd.f32 %v1622, %v1897
  %v1899 = vpop.f32.mrf.mxu0
  %v1900 = vadd.f32 %v1626, %v1899
  %1901 = vmatprep.mubr.bf16.mxu0 %v1568
  %1902 = vmatmul.mubr.bf16.gmra.mxu0 %v1567
  %v1903 = vpop.f32.mrf.mxu0
  %v1904 = vadd.f32 %v1622, %v1903
  %v1905 = vpop.f32.mrf.mxu0
  %v1906 = vadd.f32 %v1626, %v1905
  %v1907 = vpop.f32.mrf.mxu0
  %v1908 = vadd.f32 %v1622, %v1907
  %v1909 = vpop.f32.mrf.mxu0
  %v1910 = vadd.f32 %v1626, %v1909
  %1911 = vmatprep.mubr.bf16.mxu0 %v1570
  %1912 = vmatmul.mubr.bf16.gmra.mxu0 %v1569
  %v1913 = vpop.f32.mrf.mxu0
  %v1914 = vadd.f32 %v1622, %v1913
  %v1915 = vpop.f32.mrf.mxu0
  %v1916 = vadd.f32 %v1626, %v1915
  %v1917 = vpop.f32.mrf.mxu0
  %v1918 = vadd.f32 %v1622, %v1917
  %v1919 = vpop.f32.mrf.mxu0
  %v1920 = vadd.f32 %v1626, %v1919
  %1921 = vmatprep.mubr.bf16.mxu0 %v1572
  %1922 = vmatmul.mubr.bf16.gmra.mxu0 %v1571
  %v1923 = vpop.f32.mrf.mxu0
  %v1924 = vadd.f32 %v1622, %v1923
  %v1925 = vpop.f32.mrf.mxu0
  %v1926 = vadd.f32 %v1626, %v1925
  %v1927 = vpop.f32.mrf.mxu0
  %v1928 = vadd.f32 %v1622, %v1927
  %v1929 = vpop.f32.mrf.mxu0
  %v1930 = vadd.f32 %v1626, %v1929
  %1931 = vmatprep.mubr.bf16.mxu0 %v1574
  %1932 = vmatmul.mubr.bf16.gmra.mxu0 %v1573
  %v1933 = vpop.f32.mrf.mxu0
  %v1934 = vadd.f32 %v1622, %v1933
  %v1935 = vpop.f32.mrf.mxu0
  %v1936 = vadd.f32 %v1626, %v1935
  %v1937 = vpop.f32.mrf.mxu0
  %v1938 = vadd.f32 %v1622, %v1937
  %v1939 = vpop.f32.mrf.mxu0
  %v1940 = vadd.f32 %v1626, %v1939
  %1941 = vmatprep.mubr.bf16.mxu0 %v1576
  %1942 = vmatmul.mubr.bf16.gmra.mxu0 %v1575
  %v1943 = vpop.f32.mrf.mxu0
  %v1944 = vadd.f32 %v1622, %v1943
  %v1945 = vpop.f32.mrf.mxu0
  %v1946 = vadd.f32 %v1626, %v1945
  %v1947 = vpop.f32.mrf.mxu0
  %v1948 = vadd.f32 %v1622, %v1947
  %v1949 = vpop.f32.mrf.mxu0
  %v1950 = vadd.f32 %v1626, %v1949
  %1951 = vmatprep.mubr.bf16.mxu0 %v1578
  %1952 = vmatmul.mubr.bf16.gmra.mxu0 %v1577
  %v1953 = vpop.f32.mrf.mxu0
  %v1954 = vadd.f32 %v1622, %v1953
  %v1955 = vpop.f32.mrf.mxu0
  %v1956 = vadd.f32 %v1626, %v1955
  %v1957 = vpop.f32.mrf.mxu0
  %v1958 = vadd.f32 %v1622, %v1957
  %v1959 = vpop.f32.mrf.mxu0
  %v1960 = vadd.f32 %v1626, %v1959
  %1961 = vmatprep.mubr.bf16.mxu0 %v1580
  %1962 = vmatmul.mubr.bf16.gmra.mxu0 %v1579
  %v1963 = vpop.f32.mrf.mxu0
  %v1964 = vadd.f32 %v1622, %v1963
  %v1965 = vpop.f32.mrf.mxu0
  %v1966 = vadd.f32 %v1626, %v1965
  %v1967 = vpop.f32.mrf.mxu0
  %v1968 = vadd.f32 %v1622, %v1967
  %v1969 = vpop.f32.mrf.mxu0
  %v1970 = vadd.f32 %v1626, %v1969
  %1971 = vmatprep.mubr.bf16.mxu0 %v1582
  %1972 = vmatmul.mubr.bf16.gmra.mxu0 %v1581
  %v1973 = vpop.f32.mrf.mxu0
  %v1974 = vadd.f32 %v1622, %v1973
  %v1975 = vpop.f32.mrf.mxu0
  %v1976 = vadd.f32 %v1626, %v1975
  %v1977 = vpop.f32.mrf.mxu0
  %v1978 = vadd.f32 %v1622, %v1977
  %v1979 = vpop.f32.mrf.mxu0
  %v1980 = vadd.f32 %v1626, %v1979
  %1981 = vdwg.mxu0
  %v1982 = vmul.f32 %v1824, %v324
  %v1983 = vmul.f32 %v1826, %v326
  %v1984 = vmul.f32 %v1828, %v328
  %v1985 = vmul.f32 %v1830, %v330
  %v1986 = vmul.f32 %v1834, %v334
  %v1987 = vmul.f32 %v1836, %v336
  %v1988 = vmul.f32 %v1838, %v338
  %v1989 = vmul.f32 %v1840, %v340
  %v1990 = vmul.f32 %v1844, %v344
  %v1991 = vmul.f32 %v1846, %v346
  %v1992 = vmul.f32 %v1848, %v348
  %v1993 = vmul.f32 %v1850, %v350
  %v1994 = vmul.f32 %v1854, %v354
  %v1995 = vmul.f32 %v1856, %v356
  %v1996 = vmul.f32 %v1858, %v358
  %v1997 = vmul.f32 %v1860, %v360
  %v1998 = vmul.f32 %v1864, %v364
  %v1999 = vmul.f32 %v1866, %v366
  %v2000 = vmul.f32 %v1868, %v368
  %v2001 = vmul.f32 %v1870, %v370
  %v2002 = vmul.f32 %v1874, %v374
  %v2003 = vmul.f32 %v1876, %v376
  %v2004 = vmul.f32 %v1878, %v378
  %v2005 = vmul.f32 %v1880, %v380
  %v2006 = vmul.f32 %v1884, %v384
  %v2007 = vmul.f32 %v1886, %v386
  %v2008 = vmul.f32 %v1888, %v388
  %v2009 = vmul.f32 %v1890, %v390
  %v2010 = vmul.f32 %v1894, %v394
  %v2011 = vmul.f32 %v1896, %v396
  %v2012 = vmul.f32 %v1898, %v398
  %v2013 = vmul.f32 %v1900, %v400
  %v2014 = vmul.f32 %v1904, %v404
  %v2015 = vmul.f32 %v1906, %v406
  %v2016 = vmul.f32 %v1908, %v408
  %v2017 = vmul.f32 %v1910, %v410
  %v2018 = vmul.f32 %v1914, %v414
  %v2019 = vmul.f32 %v1916, %v416
  %v2020 = vmul.f32 %v1918, %v418
  %v2021 = vmul.f32 %v1920, %v420
  %v2022 = vmul.f32 %v1924, %v424
  %v2023 = vmul.f32 %v1926, %v426
  %v2024 = vmul.f32 %v1928, %v428
  %v2025 = vmul.f32 %v1930, %v430
  %v2026 = vmul.f32 %v1934, %v434
  %v2027 = vmul.f32 %v1936, %v436
  %v2028 = vmul.f32 %v1938, %v438
  %v2029 = vmul.f32 %v1940, %v440
  %v2030 = vmul.f32 %v1944, %v444
  %v2031 = vmul.f32 %v1946, %v446
  %v2032 = vmul.f32 %v1948, %v448
  %v2033 = vmul.f32 %v1950, %v450
  %v2034 = vmul.f32 %v1954, %v454
  %v2035 = vmul.f32 %v1956, %v456
  %v2036 = vmul.f32 %v1958, %v458
  %v2037 = vmul.f32 %v1960, %v460
  %v2038 = vmul.f32 %v1964, %v464
  %v2039 = vmul.f32 %v1966, %v466
  %v2040 = vmul.f32 %v1968, %v468
  %v2041 = vmul.f32 %v1970, %v470
  %v2042 = vmul.f32 %v1974, %v474
  %v2043 = vmul.f32 %v1976, %v476
  %v2044 = vmul.f32 %v1978, %v478
  %v2045 = vmul.f32 %v1980, %v480
  %v2046 = vmax.f32 %v1982, 0.0
  %v2047 = vmax.f32 %v1983, 0.0
  %v2048 = vmax.f32 %v1984, 0.0
  %v2049 = vmax.f32 %v1985, 0.0
  %v2050 = vmax.f32 %v1986, 0.0
  %v2051 = vmax.f32 %v1987, 0.0
  %v2052 = vmax.f32 %v1988, 0.0
  %v2053 = vmax.f32 %v1989, 0.0
  %v2054 = vmax.f32 %v1990, 0.0
  %v2055 = vmax.f32 %v1991, 0.0
  %v2056 = vmax.f32 %v1992, 0.0
  %v2057 = vmax.f32 %v1993, 0.0
  %v2058 = vmax.f32 %v1994, 0.0
  %v2059 = vmax.f32 %v1995, 0.0
  %v2060 = vmax.f32 %v1996, 0.0
  %v2061 = vmax.f32 %v1997, 0.0
  %v2062 = vmax.f32 %v1998, 0.0
  %v2063 = vmax.f32 %v1999, 0.0
  %v2064 = vmax.f32 %v2000, 0.0
  %v2065 = vmax.f32 %v2001, 0.0
  %v2066 = vmax.f32 %v2002, 0.0
  %v2067 = vmax.f32 %v2003, 0.0
  %v2068 = vmax.f32 %v2004, 0.0
  %v2069 = vmax.f32 %v2005, 0.0
  %v2070 = vmax.f32 %v2006, 0.0
  %v2071 = vmax.f32 %v2007, 0.0
  %v2072 = vmax.f32 %v2008, 0.0
  %v2073 = vmax.f32 %v2009, 0.0
  %v2074 = vmax.f32 %v2010, 0.0
  %v2075 = vmax.f32 %v2011, 0.0
  %v2076 = vmax.f32 %v2012, 0.0
  %v2077 = vmax.f32 %v2013, 0.0
  %v2078 = vmax.f32 %v2014, 0.0
  %v2079 = vmax.f32 %v2015, 0.0
  %v2080 = vmax.f32 %v2016, 0.0
  %v2081 = vmax.f32 %v2017, 0.0
  %v2082 = vmax.f32 %v2018, 0.0
  %v2083 = vmax.f32 %v2019, 0.0
  %v2084 = vmax.f32 %v2020, 0.0
  %v2085 = vmax.f32 %v2021, 0.0
  %v2086 = vmax.f32 %v2022, 0.0
  %v2087 = vmax.f32 %v2023, 0.0
  %v2088 = vmax.f32 %v2024, 0.0
  %v2089 = vmax.f32 %v2025, 0.0
  %v2090 = vmax.f32 %v2026, 0.0
  %v2091 = vmax.f32 %v2027, 0.0
  %v2092 = vmax.f32 %v2028, 0.0
  %v2093 = vmax.f32 %v2029, 0.0
  %v2094 = vmax.f32 %v2030, 0.0
  %v2095 = vmax.f32 %v2031, 0.0
  %v2096 = vmax.f32 %v2032, 0.0
  %v2097 = vmax.f32 %v2033, 0.0
  %v2098 = vmax.f32 %v2034, 0.0
  %v2099 = vmax.f32 %v2035, 0.0
  %v2100 = vmax.f32 %v2036, 0.0
  %v2101 = vmax.f32 %v2037, 0.0
  %v2102 = vmax.f32 %v2038, 0.0
  %v2103 = vmax.f32 %v2039, 0.0
  %v2104 = vmax.f32 %v2040, 0.0
  %v2105 = vmax.f32 %v2041, 0.0
  %v2106 = vmax.f32 %v2042, 0.0
  %v2107 = vmax.f32 %v2043, 0.0
  %v2108 = vmax.f32 %v2044, 0.0
  %v2109 = vmax.f32 %v2045, 0.0
  %v2110 = vpack.c.bf16 %v2048, %v2046
  %v2111 = vpack.c.bf16 %v2049, %v2047
  %v2112 = vpack.c.bf16 %v2052, %v2050
  %v2113 = vpack.c.bf16 %v2053, %v2051
  %v2114 = vpack.c.bf16 %v2056, %v2054
  %v2115 = vpack.c.bf16 %v2057, %v2055
  %v2116 = vpack.c.bf16 %v2060, %v2058
  %v2117 = vpack.c.bf16 %v2061, %v2059
  %v2118 = vpack.c.bf16 %v2064, %v2062
  %v2119 = vpack.c.bf16 %v2065, %v2063
  %v2120 = vpack.c.bf16 %v2068, %v2066
  %v2121 = vpack.c.bf16 %v2069, %v2067
  %v2122 = vpack.c.bf16 %v2072, %v2070
  %v2123 = vpack.c.bf16 %v2073, %v2071
  %v2124 = vpack.c.bf16 %v2076, %v2074
  %v2125 = vpack.c.bf16 %v2077, %v2075
  %v2126 = vpack.c.bf16 %v2080, %v2078
  %v2127 = vpack.c.bf16 %v2081, %v2079
  %v2128 = vpack.c.bf16 %v2084, %v2082
  %v2129 = vpack.c.bf16 %v2085, %v2083
  %v2130 = vpack.c.bf16 %v2088, %v2086
  %v2131 = vpack.c.bf16 %v2089, %v2087
  %v2132 = vpack.c.bf16 %v2092, %v2090
  %v2133 = vpack.c.bf16 %v2093, %v2091
  %v2134 = vpack.c.bf16 %v2096, %v2094
  %v2135 = vpack.c.bf16 %v2097, %v2095
  %v2136 = vpack.c.bf16 %v2100, %v2098
  %v2137 = vpack.c.bf16 %v2101, %v2099
  %v2138 = vpack.c.bf16 %v2104, %v2102
  %v2139 = vpack.c.bf16 %v2105, %v2103
  %v2140 = vpack.c.bf16 %v2108, %v2106
  %v2141 = vpack.c.bf16 %v2109, %v2107
  %s2142 = scalar_lea.vmem %s3, 512
  %v2143 = vld [vmem:[%s2142] sm:$0xff]
  %v2144 = vld [vmem:[%s2142 + $0x8] sm:$0xff]
  %v2145 = vld [vmem:[%s2142 + $0x10] sm:$0xff]
  %v2146 = vld [vmem:[%s2142 + $0x18] sm:$0xff]
  %v2147 = vld [vmem:[%s2142 + $0x20] sm:$0xff]
  %v2148 = vld [vmem:[%s2142 + $0x28] sm:$0xff]
  %v2149 = vld [vmem:[%s2142 + $0x30] sm:$0xff]
  %v2150 = vld [vmem:[%s2142 + $0x38] sm:$0xff]
  %v2151 = vld [vmem:[%s2142 + $0x40] sm:$0xff]
  %v2152 = vld [vmem:[%s2142 + $0x48] sm:$0xff]
  %v2153 = vld [vmem:[%s2142 + $0x50] sm:$0xff]
  %v2154 = vld [vmem:[%s2142 + $0x58] sm:$0xff]
  %v2155 = vld [vmem:[%s2142 + $0x60] sm:$0xff]
  %v2156 = vld [vmem:[%s2142 + $0x68] sm:$0xff]
  %v2157 = vld [vmem:[%s2142 + $0x70] sm:$0xff]
  %v2158 = vld [vmem:[%s2142 + $0x78] sm:$0xff]
  %v2159 = vld [vmem:[%s2142 + $0x80] sm:$0xff]
  %v2160 = vld [vmem:[%s2142 + $0x88] sm:$0xff]
  %v2161 = vld [vmem:[%s2142 + $0x90] sm:$0xff]
  %v2162 = vld [vmem:[%s2142 + $0x98] sm:$0xff]
  %v2163 = vld [vmem:[%s2142 + $0xa0] sm:$0xff]
  %v2164 = vld [vmem:[%s2142 + $0xa8] sm:$0xff]
  %v2165 = vld [vmem:[%s2142 + $0xb0] sm:$0xff]
  %v2166 = vld [vmem:[%s2142 + $0xb8] sm:$0xff]
  %v2167 = vld [vmem:[%s2142 + $0xc0] sm:$0xff]
  %v2168 = vld [vmem:[%s2142 + $0xc8] sm:$0xff]
  %v2169 = vld [vmem:[%s2142 + $0xd0] sm:$0xff]
  %v2170 = vld [vmem:[%s2142 + $0xd8] sm:$0xff]
  %v2171 = vld [vmem:[%s2142 + $0xe0] sm:$0xff]
  %v2172 = vld [vmem:[%s2142 + $0xe8] sm:$0xff]
  %v2173 = vld [vmem:[%s2142 + $0xf0] sm:$0xff]
  %v2174 = vld [vmem:[%s2142 + $0xf8] sm:$0xff]
  %s2175 = scalar_lea.vmem %s8, 4
  %v2176 = vld [vmem:[%s2175] ss:$8 sm:$0x3]
  %v2178 = vlaneseq
  %v2179 = vshrl.u32 %v2178, 7
  %v2180 = vsub.s32 0, %v2179
  %v2181 = vrot.slane %v2176, %v2180
  %v2182 = vlaneseq
  %v2183 = vshrl.u32 %v2182, 7
  %v2184 = vsub.s32 1, %v2183
  %v2185 = vrot.slane %v2176, %v2184
  %v2220 = vunpack.c.l.b16 %v2143
  %v2221 = vunpack.c.h.b16 %v2143
  %v2222 = vunpack.c.l.b16 %v2144
  %v2223 = vunpack.c.h.b16 %v2144
  %v2224 = vunpack.c.l.b16 %v2145
  %v2225 = vunpack.c.h.b16 %v2145
  %v2226 = vunpack.c.l.b16 %v2146
  %v2227 = vunpack.c.h.b16 %v2146
  %v2228 = vunpack.c.l.b16 %v2147
  %v2229 = vunpack.c.h.b16 %v2147
  %v2230 = vunpack.c.l.b16 %v2148
  %v2231 = vunpack.c.h.b16 %v2148
  %v2232 = vunpack.c.l.b16 %v2149
  %v2233 = vunpack.c.h.b16 %v2149
  %v2234 = vunpack.c.l.b16 %v2150
  %v2235 = vunpack.c.h.b16 %v2150
  %v2236 = vunpack.c.l.b16 %v2151
  %v2237 = vunpack.c.h.b16 %v2151
  %v2238 = vunpack.c.l.b16 %v2152
  %v2239 = vunpack.c.h.b16 %v2152
  %v2240 = vunpack.c.l.b16 %v2153
  %v2241 = vunpack.c.h.b16 %v2153
  %v2242 = vunpack.c.l.b16 %v2154
  %v2243 = vunpack.c.h.b16 %v2154
  %v2244 = vunpack.c.l.b16 %v2155
  %v2245 = vunpack.c.h.b16 %v2155
  %v2246 = vunpack.c.l.b16 %v2156
  %v2247 = vunpack.c.h.b16 %v2156
  %v2248 = vunpack.c.l.b16 %v2157
  %v2249 = vunpack.c.h.b16 %v2157
  %v2250 = vunpack.c.l.b16 %v2158
  %v2251 = vunpack.c.h.b16 %v2158
  %v2252 = vunpack.c.l.b16 %v2159
  %v2253 = vunpack.c.h.b16 %v2159
  %v2254 = vunpack.c.l.b16 %v2160
  %v2255 = vunpack.c.h.b16 %v2160
  %v2256 = vunpack.c.l.b16 %v2161
  %v2257 = vunpack.c.h.b16 %v2161
  %v2258 = vunpack.c.l.b16 %v2162
  %v2259 = vunpack.c.h.b16 %v2162
  %v2260 = vunpack.c.l.b16 %v2163
  %v2261 = vunpack.c.h.b16 %v2163
  %v2262 = vunpack.c.l.b16 %v2164
  %v2263 = vunpack.c.h.b16 %v2164
  %v2264 = vunpack.c.l.b16 %v2165
  %v2265 = vunpack.c.h.b16 %v2165
  %v2266 = vunpack.c.l.b16 %v2166
  %v2267 = vunpack.c.h.b16 %v2166
  %v2268 = vunpack.c.l.b16 %v2167
  %v2269 = vunpack.c.h.b16 %v2167
  %v2270 = vunpack.c.l.b16 %v2168
  %v2271 = vunpack.c.h.b16 %v2168
  %v2272 = vunpack.c.l.b16 %v2169
  %v2273 = vunpack.c.h.b16 %v2169
  %v2274 = vunpack.c.l.b16 %v2170
  %v2275 = vunpack.c.h.b16 %v2170
  %v2276 = vunpack.c.l.b16 %v2171
  %v2277 = vunpack.c.h.b16 %v2171
  %v2278 = vunpack.c.l.b16 %v2172
  %v2279 = vunpack.c.h.b16 %v2172
  %v2280 = vunpack.c.l.b16 %v2173
  %v2281 = vunpack.c.h.b16 %v2173
  %v2282 = vunpack.c.l.b16 %v2174
  %v2283 = vunpack.c.h.b16 %v2174
  %v2284 = vpack.c.b16 %v2222, %v2220
  %v2285 = vpack.c.b16 %v2223, %v2221
  %v2286 = vpack.c.b16 %v2226, %v2224
  %v2287 = vpack.c.b16 %v2227, %v2225
  %v2288 = vpack.c.b16 %v2230, %v2228
  %v2289 = vpack.c.b16 %v2231, %v2229
  %v2290 = vpack.c.b16 %v2234, %v2232
  %v2291 = vpack.c.b16 %v2235, %v2233
  %v2292 = vpack.c.b16 %v2238, %v2236
  %v2293 = vpack.c.b16 %v2239, %v2237
  %v2294 = vpack.c.b16 %v2242, %v2240
  %v2295 = vpack.c.b16 %v2243, %v2241
  %v2296 = vpack.c.b16 %v2246, %v2244
  %v2297 = vpack.c.b16 %v2247, %v2245
  %v2298 = vpack.c.b16 %v2250, %v2248
  %v2299 = vpack.c.b16 %v2251, %v2249
  %v2300 = vpack.c.b16 %v2254, %v2252
  %v2301 = vpack.c.b16 %v2255, %v2253
  %v2302 = vpack.c.b16 %v2258, %v2256
  %v2303 = vpack.c.b16 %v2259, %v2257
  %v2304 = vpack.c.b16 %v2262, %v2260
  %v2305 = vpack.c.b16 %v2263, %v2261
  %v2306 = vpack.c.b16 %v2266, %v2264
  %v2307 = vpack.c.b16 %v2267, %v2265
  %v2308 = vpack.c.b16 %v2270, %v2268
  %v2309 = vpack.c.b16 %v2271, %v2269
  %v2310 = vpack.c.b16 %v2274, %v2272
  %v2311 = vpack.c.b16 %v2275, %v2273
  %v2312 = vpack.c.b16 %v2278, %v2276
  %v2313 = vpack.c.b16 %v2279, %v2277
  %v2314 = vpack.c.b16 %v2282, %v2280
  %v2315 = vpack.c.b16 %v2283, %v2281
  %2348 = vmatprep.subr.bf16.mxu0 %v2299
  %2349 = vmatpush1.bf16.msra.mxu0 %v2298
  %2350 = vmatprep.subr.bf16.mxu0 %v2297
  %2351 = vmatpush1.bf16.msra.mxu0 %v2296
  %2352 = vmatprep.subr.bf16.mxu0 %v2295
  %2353 = vmatpush1.bf16.msra.mxu0 %v2294
  %2354 = vmatprep.subr.bf16.mxu0 %v2293
  %2355 = vmatpush1.bf16.msra.mxu0 %v2292
  %2356 = vmatprep.subr.bf16.mxu0 %v2291
  %2357 = vmatpush1.bf16.msra.mxu0 %v2290
  %2358 = vmatprep.subr.bf16.mxu0 %v2289
  %2359 = vmatpush1.bf16.msra.mxu0 %v2288
  %2360 = vmatprep.subr.bf16.mxu0 %v2287
  %2361 = vmatpush1.bf16.msra.mxu0 %v2286
  %2362 = vmatprep.subr.bf16.mxu0 %v2285
  %2363 = vmatpush1.bf16.msra.mxu0 %v2284
  %2364 = vmatprep.subr.bf16.mxu0 %v2315
  %2365 = vmatpush2.bf16.msra.mxu0 %v2314
  %2366 = vmatprep.subr.bf16.mxu0 %v2313
  %2367 = vmatpush2.bf16.msra.mxu0 %v2312
  %2368 = vmatprep.subr.bf16.mxu0 %v2311
  %2369 = vmatpush2.bf16.msra.mxu0 %v2310
  %2370 = vmatprep.subr.bf16.mxu0 %v2309
  %2371 = vmatpush2.bf16.msra.mxu0 %v2308
  %2372 = vmatprep.subr.bf16.mxu0 %v2307
  %2373 = vmatpush2.bf16.msra.mxu0 %v2306
  %2374 = vmatprep.subr.bf16.mxu0 %v2305
  %2375 = vmatpush2.bf16.msra.mxu0 %v2304
  %2376 = vmatprep.subr.bf16.mxu0 %v2303
  %2377 = vmatpush2.bf16.msra.mxu0 %v2302
  %2378 = vmatprep.subr.bf16.mxu0 %v2301
  %2379 = vmatpush2.bf16.msra.mxu0 %v2300
  %2380 = vmatprep.mubr.bf16.mxu0 %v2111
  %2381 = vmatmul.mubr.bf16.gmra.mxu0 %v2110
  %v2382 = vpop.f32.mrf.mxu0
  %v2383 = vadd.f32 %v2181, %v2382
  %v2384 = vpop.f32.mrf.mxu0
  %v2385 = vadd.f32 %v2185, %v2384
  %v2386 = vpop.f32.mrf.mxu0
  %v2387 = vadd.f32 %v2181, %v2386
  %v2388 = vpop.f32.mrf.mxu0
  %v2389 = vadd.f32 %v2185, %v2388
  %2390 = vmatprep.mubr.bf16.mxu0 %v2113
  %2391 = vmatmul.mubr.bf16.gmra.mxu0 %v2112
  %v2392 = vpop.f32.mrf.mxu0
  %v2393 = vadd.f32 %v2181, %v2392
  %v2394 = vpop.f32.mrf.mxu0
  %v2395 = vadd.f32 %v2185, %v2394
  %v2396 = vpop.f32.mrf.mxu0
  %v2397 = vadd.f32 %v2181, %v2396
  %v2398 = vpop.f32.mrf.mxu0
  %v2399 = vadd.f32 %v2185, %v2398
  %2400 = vmatprep.mubr.bf16.mxu0 %v2115
  %2401 = vmatmul.mubr.bf16.gmra.mxu0 %v2114
  %v2402 = vpop.f32.mrf.mxu0
  %v2403 = vadd.f32 %v2181, %v2402
  %v2404 = vpop.f32.mrf.mxu0
  %v2405 = vadd.f32 %v2185, %v2404
  %v2406 = vpop.f32.mrf.mxu0
  %v2407 = vadd.f32 %v2181, %v2406
  %v2408 = vpop.f32.mrf.mxu0
  %v2409 = vadd.f32 %v2185, %v2408
  %2410 = vmatprep.mubr.bf16.mxu0 %v2117
  %2411 = vmatmul.mubr.bf16.gmra.mxu0 %v2116
  %v2412 = vpop.f32.mrf.mxu0
  %v2413 = vadd.f32 %v2181, %v2412
  %v2414 = vpop.f32.mrf.mxu0
  %v2415 = vadd.f32 %v2185, %v2414
  %v2416 = vpop.f32.mrf.mxu0
  %v2417 = vadd.f32 %v2181, %v2416
  %v2418 = vpop.f32.mrf.mxu0
  %v2419 = vadd.f32 %v2185, %v2418
  %2420 = vmatprep.mubr.bf16.mxu0 %v2119
  %2421 = vmatmul.mubr.bf16.gmra.mxu0 %v2118
  %v2422 = vpop.f32.mrf.mxu0
  %v2423 = vadd.f32 %v2181, %v2422
  %v2424 = vpop.f32.mrf.mxu0
  %v2425 = vadd.f32 %v2185, %v2424
  %v2426 = vpop.f32.mrf.mxu0
  %v2427 = vadd.f32 %v2181, %v2426
  %v2428 = vpop.f32.mrf.mxu0
  %v2429 = vadd.f32 %v2185, %v2428
  %2430 = vmatprep.mubr.bf16.mxu0 %v2121
  %2431 = vmatmul.mubr.bf16.gmra.mxu0 %v2120
  %v2432 = vpop.f32.mrf.mxu0
  %v2433 = vadd.f32 %v2181, %v2432
  %v2434 = vpop.f32.mrf.mxu0
  %v2435 = vadd.f32 %v2185, %v2434
  %v2436 = vpop.f32.mrf.mxu0
  %v2437 = vadd.f32 %v2181, %v2436
  %v2438 = vpop.f32.mrf.mxu0
  %v2439 = vadd.f32 %v2185, %v2438
  %2440 = vmatprep.mubr.bf16.mxu0 %v2123
  %2441 = vmatmul.mubr.bf16.gmra.mxu0 %v2122
  %v2442 = vpop.f32.mrf.mxu0
  %v2443 = vadd.f32 %v2181, %v2442
  %v2444 = vpop.f32.mrf.mxu0
  %v2445 = vadd.f32 %v2185, %v2444
  %v2446 = vpop.f32.mrf.mxu0
  %v2447 = vadd.f32 %v2181, %v2446
  %v2448 = vpop.f32.mrf.mxu0
  %v2449 = vadd.f32 %v2185, %v2448
  %2450 = vmatprep.mubr.bf16.mxu0 %v2125
  %2451 = vmatmul.mubr.bf16.gmra.mxu0 %v2124
  %v2452 = vpop.f32.mrf.mxu0
  %v2453 = vadd.f32 %v2181, %v2452
  %v2454 = vpop.f32.mrf.mxu0
  %v2455 = vadd.f32 %v2185, %v2454
  %v2456 = vpop.f32.mrf.mxu0
  %v2457 = vadd.f32 %v2181, %v2456
  %v2458 = vpop.f32.mrf.mxu0
  %v2459 = vadd.f32 %v2185, %v2458
  %2460 = vmatprep.mubr.bf16.mxu0 %v2127
  %2461 = vmatmul.mubr.bf16.gmra.mxu0 %v2126
  %v2462 = vpop.f32.mrf.mxu0
  %v2463 = vadd.f32 %v2181, %v2462
  %v2464 = vpop.f32.mrf.mxu0
  %v2465 = vadd.f32 %v2185, %v2464
  %v2466 = vpop.f32.mrf.mxu0
  %v2467 = vadd.f32 %v2181, %v2466
  %v2468 = vpop.f32.mrf.mxu0
  %v2469 = vadd.f32 %v2185, %v2468
  %2470 = vmatprep.mubr.bf16.mxu0 %v2129
  %2471 = vmatmul.mubr.bf16.gmra.mxu0 %v2128
  %v2472 = vpop.f32.mrf.mxu0
  %v2473 = vadd.f32 %v2181, %v2472
  %v2474 = vpop.f32.mrf.mxu0
  %v2475 = vadd.f32 %v2185, %v2474
  %v2476 = vpop.f32.mrf.mxu0
  %v2477 = vadd.f32 %v2181, %v2476
  %v2478 = vpop.f32.mrf.mxu0
  %v2479 = vadd.f32 %v2185, %v2478
  %2480 = vmatprep.mubr.bf16.mxu0 %v2131
  %2481 = vmatmul.mubr.bf16.gmra.mxu0 %v2130
  %v2482 = vpop.f32.mrf.mxu0
  %v2483 = vadd.f32 %v2181, %v2482
  %v2484 = vpop.f32.mrf.mxu0
  %v2485 = vadd.f32 %v2185, %v2484
  %v2486 = vpop.f32.mrf.mxu0
  %v2487 = vadd.f32 %v2181, %v2486
  %v2488 = vpop.f32.mrf.mxu0
  %v2489 = vadd.f32 %v2185, %v2488
  %2490 = vmatprep.mubr.bf16.mxu0 %v2133
  %2491 = vmatmul.mubr.bf16.gmra.mxu0 %v2132
  %v2492 = vpop.f32.mrf.mxu0
  %v2493 = vadd.f32 %v2181, %v2492
  %v2494 = vpop.f32.mrf.mxu0
  %v2495 = vadd.f32 %v2185, %v2494
  %v2496 = vpop.f32.mrf.mxu0
  %v2497 = vadd.f32 %v2181, %v2496
  %v2498 = vpop.f32.mrf.mxu0
  %v2499 = vadd.f32 %v2185, %v2498
  %2500 = vmatprep.mubr.bf16.mxu0 %v2135
  %2501 = vmatmul.mubr.bf16.gmra.mxu0 %v2134
  %v2502 = vpop.f32.mrf.mxu0
  %v2503 = vadd.f32 %v2181, %v2502
  %v2504 = vpop.f32.mrf.mxu0
  %v2505 = vadd.f32 %v2185, %v2504
  %v2506 = vpop.f32.mrf.mxu0
  %v2507 = vadd.f32 %v2181, %v2506
  %v2508 = vpop.f32.mrf.mxu0
  %v2509 = vadd.f32 %v2185, %v2508
  %2510 = vmatprep.mubr.bf16.mxu0 %v2137
  %2511 = vmatmul.mubr.bf16.gmra.mxu0 %v2136
  %v2512 = vpop.f32.mrf.mxu0
  %v2513 = vadd.f32 %v2181, %v2512
  %v2514 = vpop.f32.mrf.mxu0
  %v2515 = vadd.f32 %v2185, %v2514
  %v2516 = vpop.f32.mrf.mxu0
  %v2517 = vadd.f32 %v2181, %v2516
  %v2518 = vpop.f32.mrf.mxu0
  %v2519 = vadd.f32 %v2185, %v2518
  %2520 = vmatprep.mubr.bf16.mxu0 %v2139
  %2521 = vmatmul.mubr.bf16.gmra.mxu0 %v2138
  %v2522 = vpop.f32.mrf.mxu0
  %v2523 = vadd.f32 %v2181, %v2522
  %v2524 = vpop.f32.mrf.mxu0
  %v2525 = vadd.f32 %v2185, %v2524
  %v2526 = vpop.f32.mrf.mxu0
  %v2527 = vadd.f32 %v2181, %v2526
  %v2528 = vpop.f32.mrf.mxu0
  %v2529 = vadd.f32 %v2185, %v2528
  %2530 = vmatprep.mubr.bf16.mxu0 %v2141
  %2531 = vmatmul.mubr.bf16.gmra.mxu0 %v2140
  %v2532 = vpop.f32.mrf.mxu0
  %v2533 = vadd.f32 %v2181, %v2532
  %v2534 = vpop.f32.mrf.mxu0
  %v2535 = vadd.f32 %v2185, %v2534
  %v2536 = vpop.f32.mrf.mxu0
  %v2537 = vadd.f32 %v2181, %v2536
  %v2538 = vpop.f32.mrf.mxu0
  %v2539 = vadd.f32 %v2185, %v2538
  %2540 = vdwg.mxu0
  %v2541 = vmul.f32 %v2383, %v324
  %v2542 = vmul.f32 %v2385, %v326
  %v2543 = vmul.f32 %v2387, %v328
  %v2544 = vmul.f32 %v2389, %v330
  %v2545 = vmul.f32 %v2393, %v334
  %v2546 = vmul.f32 %v2395, %v336
  %v2547 = vmul.f32 %v2397, %v338
  %v2548 = vmul.f32 %v2399, %v340
  %v2549 = vmul.f32 %v2403, %v344
  %v2550 = vmul.f32 %v2405, %v346
  %v2551 = vmul.f32 %v2407, %v348
  %v2552 = vmul.f32 %v2409, %v350
  %v2553 = vmul.f32 %v2413, %v354
  %v2554 = vmul.f32 %v2415, %v356
  %v2555 = vmul.f32 %v2417, %v358
  %v2556 = vmul.f32 %v2419, %v360
  %v2557 = vmul.f32 %v2423, %v364
  %v2558 = vmul.f32 %v2425, %v366
  %v2559 = vmul.f32 %v2427, %v368
  %v2560 = vmul.f32 %v2429, %v370
  %v2561 = vmul.f32 %v2433, %v374
  %v2562 = vmul.f32 %v2435, %v376
  %v2563 = vmul.f32 %v2437, %v378
  %v2564 = vmul.f32 %v2439, %v380
  %v2565 = vmul.f32 %v2443, %v384
  %v2566 = vmul.f32 %v2445, %v386
  %v2567 = vmul.f32 %v2447, %v388
  %v2568 = vmul.f32 %v2449, %v390
  %v2569 = vmul.f32 %v2453, %v394
  %v2570 = vmul.f32 %v2455, %v396
  %v2571 = vmul.f32 %v2457, %v398
  %v2572 = vmul.f32 %v2459, %v400
  %v2573 = vmul.f32 %v2463, %v404
  %v2574 = vmul.f32 %v2465, %v406
  %v2575 = vmul.f32 %v2467, %v408
  %v2576 = vmul.f32 %v2469, %v410
  %v2577 = vmul.f32 %v2473, %v414
  %v2578 = vmul.f32 %v2475, %v416
  %v2579 = vmul.f32 %v2477, %v418
  %v2580 = vmul.f32 %v2479, %v420
  %v2581 = vmul.f32 %v2483, %v424
  %v2582 = vmul.f32 %v2485, %v426
  %v2583 = vmul.f32 %v2487, %v428
  %v2584 = vmul.f32 %v2489, %v430
  %v2585 = vmul.f32 %v2493, %v434
  %v2586 = vmul.f32 %v2495, %v436
  %v2587 = vmul.f32 %v2497, %v438
  %v2588 = vmul.f32 %v2499, %v440
  %v2589 = vmul.f32 %v2503, %v444
  %v2590 = vmul.f32 %v2505, %v446
  %v2591 = vmul.f32 %v2507, %v448
  %v2592 = vmul.f32 %v2509, %v450
  %v2593 = vmul.f32 %v2513, %v454
  %v2594 = vmul.f32 %v2515, %v456
  %v2595 = vmul.f32 %v2517, %v458
  %v2596 = vmul.f32 %v2519, %v460
  %v2597 = vmul.f32 %v2523, %v464
  %v2598 = vmul.f32 %v2525, %v466
  %v2599 = vmul.f32 %v2527, %v468
  %v2600 = vmul.f32 %v2529, %v470
  %v2601 = vmul.f32 %v2533, %v474
  %v2602 = vmul.f32 %v2535, %v476
  %v2603 = vmul.f32 %v2537, %v478
  %v2604 = vmul.f32 %v2539, %v480
  %v2605 = vmax.f32 %v2541, 0.0
  %v2606 = vmax.f32 %v2542, 0.0
  %v2607 = vmax.f32 %v2543, 0.0
  %v2608 = vmax.f32 %v2544, 0.0
  %v2609 = vmax.f32 %v2545, 0.0
  %v2610 = vmax.f32 %v2546, 0.0
  %v2611 = vmax.f32 %v2547, 0.0
  %v2612 = vmax.f32 %v2548, 0.0
  %v2613 = vmax.f32 %v2549, 0.0
  %v2614 = vmax.f32 %v2550, 0.0
  %v2615 = vmax.f32 %v2551, 0.0
  %v2616 = vmax.f32 %v2552, 0.0
  %v2617 = vmax.f32 %v2553, 0.0
  %v2618 = vmax.f32 %v2554, 0.0
  %v2619 = vmax.f32 %v2555, 0.0
  %v2620 = vmax.f32 %v2556, 0.0
  %v2621 = vmax.f32 %v2557, 0.0
  %v2622 = vmax.f32 %v2558, 0.0
  %v2623 = vmax.f32 %v2559, 0.0
  %v2624 = vmax.f32 %v2560, 0.0
  %v2625 = vmax.f32 %v2561, 0.0
  %v2626 = vmax.f32 %v2562, 0.0
  %v2627 = vmax.f32 %v2563, 0.0
  %v2628 = vmax.f32 %v2564, 0.0
  %v2629 = vmax.f32 %v2565, 0.0
  %v2630 = vmax.f32 %v2566, 0.0
  %v2631 = vmax.f32 %v2567, 0.0
  %v2632 = vmax.f32 %v2568, 0.0
  %v2633 = vmax.f32 %v2569, 0.0
  %v2634 = vmax.f32 %v2570, 0.0
  %v2635 = vmax.f32 %v2571, 0.0
  %v2636 = vmax.f32 %v2572, 0.0
  %v2637 = vmax.f32 %v2573, 0.0
  %v2638 = vmax.f32 %v2574, 0.0
  %v2639 = vmax.f32 %v2575, 0.0
  %v2640 = vmax.f32 %v2576, 0.0
  %v2641 = vmax.f32 %v2577, 0.0
  %v2642 = vmax.f32 %v2578, 0.0
  %v2643 = vmax.f32 %v2579, 0.0
  %v2644 = vmax.f32 %v2580, 0.0
  %v2645 = vmax.f32 %v2581, 0.0
  %v2646 = vmax.f32 %v2582, 0.0
  %v2647 = vmax.f32 %v2583, 0.0
  %v2648 = vmax.f32 %v2584, 0.0
  %v2649 = vmax.f32 %v2585, 0.0
  %v2650 = vmax.f32 %v2586, 0.0
  %v2651 = vmax.f32 %v2587, 0.0
  %v2652 = vmax.f32 %v2588, 0.0
  %v2653 = vmax.f32 %v2589, 0.0
  %v2654 = vmax.f32 %v2590, 0.0
  %v2655 = vmax.f32 %v2591, 0.0
  %v2656 = vmax.f32 %v2592, 0.0
  %v2657 = vmax.f32 %v2593, 0.0
  %v2658 = vmax.f32 %v2594, 0.0
  %v2659 = vmax.f32 %v2595, 0.0
  %v2660 = vmax.f32 %v2596, 0.0
  %v2661 = vmax.f32 %v2597, 0.0
  %v2662 = vmax.f32 %v2598, 0.0
  %v2663 = vmax.f32 %v2599, 0.0
  %v2664 = vmax.f32 %v2600, 0.0
  %v2665 = vmax.f32 %v2601, 0.0
  %v2666 = vmax.f32 %v2602, 0.0
  %v2667 = vmax.f32 %v2603, 0.0
  %v2668 = vmax.f32 %v2604, 0.0
  %v2669 = vpack.c.bf16 %v2607, %v2605
  %v2670 = vpack.c.bf16 %v2608, %v2606
  %v2671 = vpack.c.bf16 %v2611, %v2609
  %v2672 = vpack.c.bf16 %v2612, %v2610
  %v2673 = vpack.c.bf16 %v2615, %v2613
  %v2674 = vpack.c.bf16 %v2616, %v2614
  %v2675 = vpack.c.bf16 %v2619, %v2617
  %v2676 = vpack.c.bf16 %v2620, %v2618
  %v2677 = vpack.c.bf16 %v2623, %v2621
  %v2678 = vpack.c.bf16 %v2624, %v2622
  %v2679 = vpack.c.bf16 %v2627, %v2625
  %v2680 = vpack.c.bf16 %v2628, %v2626
  %v2681 = vpack.c.bf16 %v2631, %v2629
  %v2682 = vpack.c.bf16 %v2632, %v2630
  %v2683 = vpack.c.bf16 %v2635, %v2633
  %v2684 = vpack.c.bf16 %v2636, %v2634
  %v2685 = vpack.c.bf16 %v2639, %v2637
  %v2686 = vpack.c.bf16 %v2640, %v2638
  %v2687 = vpack.c.bf16 %v2643, %v2641
  %v2688 = vpack.c.bf16 %v2644, %v2642
  %v2689 = vpack.c.bf16 %v2647, %v2645
  %v2690 = vpack.c.bf16 %v2648, %v2646
  %v2691 = vpack.c.bf16 %v2651, %v2649
  %v2692 = vpack.c.bf16 %v2652, %v2650
  %v2693 = vpack.c.bf16 %v2655, %v2653
  %v2694 = vpack.c.bf16 %v2656, %v2654
  %v2695 = vpack.c.bf16 %v2659, %v2657
  %v2696 = vpack.c.bf16 %v2660, %v2658
  %v2697 = vpack.c.bf16 %v2663, %v2661
  %v2698 = vpack.c.bf16 %v2664, %v2662
  %v2699 = vpack.c.bf16 %v2667, %v2665
  %v2700 = vpack.c.bf16 %v2668, %v2666
  %s2701 = scalar_lea.vmem %s3, 768
  %v2702 = vld [vmem:[%s2701] sm:$0xff]
  %v2703 = vld [vmem:[%s2701 + $0x8] sm:$0xff]
  %v2704 = vld [vmem:[%s2701 + $0x10] sm:$0xff]
  %v2705 = vld [vmem:[%s2701 + $0x18] sm:$0xff]
  %v2706 = vld [vmem:[%s2701 + $0x20] sm:$0xff]
  %v2707 = vld [vmem:[%s2701 + $0x28] sm:$0xff]
  %v2708 = vld [vmem:[%s2701 + $0x30] sm:$0xff]
  %v2709 = vld [vmem:[%s2701 + $0x38] sm:$0xff]
  %v2710 = vld [vmem:[%s2701 + $0x40] sm:$0xff]
  %v2711 = vld [vmem:[%s2701 + $0x48] sm:$0xff]
  %v2712 = vld [vmem:[%s2701 + $0x50] sm:$0xff]
  %v2713 = vld [vmem:[%s2701 + $0x58] sm:$0xff]
  %v2714 = vld [vmem:[%s2701 + $0x60] sm:$0xff]
  %v2715 = vld [vmem:[%s2701 + $0x68] sm:$0xff]
  %v2716 = vld [vmem:[%s2701 + $0x70] sm:$0xff]
  %v2717 = vld [vmem:[%s2701 + $0x78] sm:$0xff]
  %v2718 = vld [vmem:[%s2701 + $0x80] sm:$0xff]
  %v2719 = vld [vmem:[%s2701 + $0x88] sm:$0xff]
  %v2720 = vld [vmem:[%s2701 + $0x90] sm:$0xff]
  %v2721 = vld [vmem:[%s2701 + $0x98] sm:$0xff]
  %v2722 = vld [vmem:[%s2701 + $0xa0] sm:$0xff]
  %v2723 = vld [vmem:[%s2701 + $0xa8] sm:$0xff]
  %v2724 = vld [vmem:[%s2701 + $0xb0] sm:$0xff]
  %v2725 = vld [vmem:[%s2701 + $0xb8] sm:$0xff]
  %v2726 = vld [vmem:[%s2701 + $0xc0] sm:$0xff]
  %v2727 = vld [vmem:[%s2701 + $0xc8] sm:$0xff]
  %v2728 = vld [vmem:[%s2701 + $0xd0] sm:$0xff]
  %v2729 = vld [vmem:[%s2701 + $0xd8] sm:$0xff]
  %v2730 = vld [vmem:[%s2701 + $0xe0] sm:$0xff]
  %v2731 = vld [vmem:[%s2701 + $0xe8] sm:$0xff]
  %v2732 = vld [vmem:[%s2701 + $0xf0] sm:$0xff]
  %v2733 = vld [vmem:[%s2701 + $0xf8] sm:$0xff]
  %s2734 = scalar_lea.vmem %s8, 5
  %v2735 = vld [vmem:[%s2734] ss:$8 sm:$0x3]
  %v2737 = vlaneseq
  %v2738 = vshrl.u32 %v2737, 7
  %v2739 = vsub.s32 0, %v2738
  %v2740 = vrot.slane %v2735, %v2739
  %v2741 = vlaneseq
  %v2742 = vshrl.u32 %v2741, 7
  %v2743 = vsub.s32 1, %v2742
  %v2744 = vrot.slane %v2735, %v2743
  %v2779 = vunpack.c.l.b16 %v2702
  %v2780 = vunpack.c.h.b16 %v2702
  %v2781 = vunpack.c.l.b16 %v2703
  %v2782 = vunpack.c.h.b16 %v2703
  %v2783 = vunpack.c.l.b16 %v2704
  %v2784 = vunpack.c.h.b16 %v2704
  %v2785 = vunpack.c.l.b16 %v2705
  %v2786 = vunpack.c.h.b16 %v2705
  %v2787 = vunpack.c.l.b16 %v2706
  %v2788 = vunpack.c.h.b16 %v2706
  %v2789 = vunpack.c.l.b16 %v2707
  %v2790 = vunpack.c.h.b16 %v2707
  %v2791 = vunpack.c.l.b16 %v2708
  %v2792 = vunpack.c.h.b16 %v2708
  %v2793 = vunpack.c.l.b16 %v2709
  %v2794 = vunpack.c.h.b16 %v2709
  %v2795 = vunpack.c.l.b16 %v2710
  %v2796 = vunpack.c.h.b16 %v2710
  %v2797 = vunpack.c.l.b16 %v2711
  %v2798 = vunpack.c.h.b16 %v2711
  %v2799 = vunpack.c.l.b16 %v2712
  %v2800 = vunpack.c.h.b16 %v2712
  %v2801 = vunpack.c.l.b16 %v2713
  %v2802 = vunpack.c.h.b16 %v2713
  %v2803 = vunpack.c.l.b16 %v2714
  %v2804 = vunpack.c.h.b16 %v2714
  %v2805 = vunpack.c.l.b16 %v2715
  %v2806 = vunpack.c.h.b16 %v2715
  %v2807 = vunpack.c.l.b16 %v2716
  %v2808 = vunpack.c.h.b16 %v2716
  %v2809 = vunpack.c.l.b16 %v2717
  %v2810 = vunpack.c.h.b16 %v2717
  %v2811 = vunpack.c.l.b16 %v2718
  %v2812 = vunpack.c.h.b16 %v2718
  %v2813 = vunpack.c.l.b16 %v2719
  %v2814 = vunpack.c.h.b16 %v2719
  %v2815 = vunpack.c.l.b16 %v2720
  %v2816 = vunpack.c.h.b16 %v2720
  %v2817 = vunpack.c.l.b16 %v2721
  %v2818 = vunpack.c.h.b16 %v2721
  %v2819 = vunpack.c.l.b16 %v2722
  %v2820 = vunpack.c.h.b16 %v2722
  %v2821 = vunpack.c.l.b16 %v2723
  %v2822 = vunpack.c.h.b16 %v2723
  %v2823 = vunpack.c.l.b16 %v2724
  %v2824 = vunpack.c.h.b16 %v2724
  %v2825 = vunpack.c.l.b16 %v2725
  %v2826 = vunpack.c.h.b16 %v2725
  %v2827 = vunpack.c.l.b16 %v2726
  %v2828 = vunpack.c.h.b16 %v2726
  %v2829 = vunpack.c.l.b16 %v2727
  %v2830 = vunpack.c.h.b16 %v2727
  %v2831 = vunpack.c.l.b16 %v2728
  %v2832 = vunpack.c.h.b16 %v2728
  %v2833 = vunpack.c.l.b16 %v2729
  %v2834 = vunpack.c.h.b16 %v2729
  %v2835 = vunpack.c.l.b16 %v2730
  %v2836 = vunpack.c.h.b16 %v2730
  %v2837 = vunpack.c.l.b16 %v2731
  %v2838 = vunpack.c.h.b16 %v2731
  %v2839 = vunpack.c.l.b16 %v2732
  %v2840 = vunpack.c.h.b16 %v2732
  %v2841 = vunpack.c.l.b16 %v2733
  %v2842 = vunpack.c.h.b16 %v2733
  %v2843 = vpack.c.b16 %v2781, %v2779
  %v2844 = vpack.c.b16 %v2782, %v2780
  %v2845 = vpack.c.b16 %v2785, %v2783
  %v2846 = vpack.c.b16 %v2786, %v2784
  %v2847 = vpack.c.b16 %v2789, %v2787
  %v2848 = vpack.c.b16 %v2790, %v2788
  %v2849 = vpack.c.b16 %v2793, %v2791
  %v2850 = vpack.c.b16 %v2794, %v2792
  %v2851 = vpack.c.b16 %v2797, %v2795
  %v2852 = vpack.c.b16 %v2798, %v2796
  %v2853 = vpack.c.b16 %v2801, %v2799
  %v2854 = vpack.c.b16 %v2802, %v2800
  %v2855 = vpack.c.b16 %v2805, %v2803
  %v2856 = vpack.c.b16 %v2806, %v2804
  %v2857 = vpack.c.b16 %v2809, %v2807
  %v2858 = vpack.c.b16 %v2810, %v2808
  %v2859 = vpack.c.b16 %v2813, %v2811
  %v2860 = vpack.c.b16 %v2814, %v2812
  %v2861 = vpack.c.b16 %v2817, %v2815
  %v2862 = vpack.c.b16 %v2818, %v2816
  %v2863 = vpack.c.b16 %v2821, %v2819
  %v2864 = vpack.c.b16 %v2822, %v2820
  %v2865 = vpack.c.b16 %v2825, %v2823
  %v2866 = vpack.c.b16 %v2826, %v2824
  %v2867 = vpack.c.b16 %v2829, %v2827
  %v2868 = vpack.c.b16 %v2830, %v2828
  %v2869 = vpack.c.b16 %v2833, %v2831
  %v2870 = vpack.c.b16 %v2834, %v2832
  %v2871 = vpack.c.b16 %v2837, %v2835
  %v2872 = vpack.c.b16 %v2838, %v2836
  %v2873 = vpack.c.b16 %v2841, %v2839
  %v2874 = vpack.c.b16 %v2842, %v2840
  %2907 = vmatprep.subr.bf16.mxu0 %v2858
  %2908 = vmatpush1.bf16.msra.mxu0 %v2857
  %2909 = vmatprep.subr.bf16.mxu0 %v2856
  %2910 = vmatpush1.bf16.msra.mxu0 %v2855
  %2911 = vmatprep.subr.bf16.mxu0 %v2854
  %2912 = vmatpush1.bf16.msra.mxu0 %v2853
  %2913 = vmatprep.subr.bf16.mxu0 %v2852
  %2914 = vmatpush1.bf16.msra.mxu0 %v2851
  %2915 = vmatprep.subr.bf16.mxu0 %v2850
  %2916 = vmatpush1.bf16.msra.mxu0 %v2849
  %2917 = vmatprep.subr.bf16.mxu0 %v2848
  %2918 = vmatpush1.bf16.msra.mxu0 %v2847
  %2919 = vmatprep.subr.bf16.mxu0 %v2846
  %2920 = vmatpush1.bf16.msra.mxu0 %v2845
  %2921 = vmatprep.subr.bf16.mxu0 %v2844
  %2922 = vmatpush1.bf16.msra.mxu0 %v2843
  %2923 = vmatprep.subr.bf16.mxu0 %v2874
  %2924 = vmatpush2.bf16.msra.mxu0 %v2873
  %2925 = vmatprep.subr.bf16.mxu0 %v2872
  %2926 = vmatpush2.bf16.msra.mxu0 %v2871
  %2927 = vmatprep.subr.bf16.mxu0 %v2870
  %2928 = vmatpush2.bf16.msra.mxu0 %v2869
  %2929 = vmatprep.subr.bf16.mxu0 %v2868
  %2930 = vmatpush2.bf16.msra.mxu0 %v2867
  %2931 = vmatprep.subr.bf16.mxu0 %v2866
  %2932 = vmatpush2.bf16.msra.mxu0 %v2865
  %2933 = vmatprep.subr.bf16.mxu0 %v2864
  %2934 = vmatpush2.bf16.msra.mxu0 %v2863
  %2935 = vmatprep.subr.bf16.mxu0 %v2862
  %2936 = vmatpush2.bf16.msra.mxu0 %v2861
  %2937 = vmatprep.subr.bf16.mxu0 %v2860
  %2938 = vmatpush2.bf16.msra.mxu0 %v2859
  %2939 = vmatprep.mubr.bf16.mxu0 %v2670
  %2940 = vmatmul.mubr.bf16.gmra.mxu0 %v2669
  %v2941 = vpop.f32.mrf.mxu0
  %v2942 = vadd.f32 %v2740, %v2941
  %v2943 = vpop.f32.mrf.mxu0
  %v2944 = vadd.f32 %v2744, %v2943
  %v2945 = vpop.f32.mrf.mxu0
  %v2946 = vadd.f32 %v2740, %v2945
  %v2947 = vpop.f32.mrf.mxu0
  %v2948 = vadd.f32 %v2744, %v2947
  %2949 = vmatprep.mubr.bf16.mxu0 %v2672
  %2950 = vmatmul.mubr.bf16.gmra.mxu0 %v2671
  %v2951 = vpop.f32.mrf.mxu0
  %v2952 = vadd.f32 %v2740, %v2951
  %v2953 = vpop.f32.mrf.mxu0
  %v2954 = vadd.f32 %v2744, %v2953
  %v2955 = vpop.f32.mrf.mxu0
  %v2956 = vadd.f32 %v2740, %v2955
  %v2957 = vpop.f32.mrf.mxu0
  %v2958 = vadd.f32 %v2744, %v2957
  %2959 = vmatprep.mubr.bf16.mxu0 %v2674
  %2960 = vmatmul.mubr.bf16.gmra.mxu0 %v2673
  %v2961 = vpop.f32.mrf.mxu0
  %v2962 = vadd.f32 %v2740, %v2961
  %v2963 = vpop.f32.mrf.mxu0
  %v2964 = vadd.f32 %v2744, %v2963
  %v2965 = vpop.f32.mrf.mxu0
  %v2966 = vadd.f32 %v2740, %v2965
  %v2967 = vpop.f32.mrf.mxu0
  %v2968 = vadd.f32 %v2744, %v2967
  %2969 = vmatprep.mubr.bf16.mxu0 %v2676
  %2970 = vmatmul.mubr.bf16.gmra.mxu0 %v2675
  %v2971 = vpop.f32.mrf.mxu0
  %v2972 = vadd.f32 %v2740, %v2971
  %v2973 = vpop.f32.mrf.mxu0
  %v2974 = vadd.f32 %v2744, %v2973
  %v2975 = vpop.f32.mrf.mxu0
  %v2976 = vadd.f32 %v2740, %v2975
  %v2977 = vpop.f32.mrf.mxu0
  %v2978 = vadd.f32 %v2744, %v2977
  %2979 = vmatprep.mubr.bf16.mxu0 %v2678
  %2980 = vmatmul.mubr.bf16.gmra.mxu0 %v2677
  %v2981 = vpop.f32.mrf.mxu0
  %v2982 = vadd.f32 %v2740, %v2981
  %v2983 = vpop.f32.mrf.mxu0
  %v2984 = vadd.f32 %v2744, %v2983
  %v2985 = vpop.f32.mrf.mxu0
  %v2986 = vadd.f32 %v2740, %v2985
  %v2987 = vpop.f32.mrf.mxu0
  %v2988 = vadd.f32 %v2744, %v2987
  %2989 = vmatprep.mubr.bf16.mxu0 %v2680
  %2990 = vmatmul.mubr.bf16.gmra.mxu0 %v2679
  %v2991 = vpop.f32.mrf.mxu0
  %v2992 = vadd.f32 %v2740, %v2991
  %v2993 = vpop.f32.mrf.mxu0
  %v2994 = vadd.f32 %v2744, %v2993
  %v2995 = vpop.f32.mrf.mxu0
  %v2996 = vadd.f32 %v2740, %v2995
  %v2997 = vpop.f32.mrf.mxu0
  %v2998 = vadd.f32 %v2744, %v2997
  %2999 = vmatprep.mubr.bf16.mxu0 %v2682
  %3000 = vmatmul.mubr.bf16.gmra.mxu0 %v2681
  %v3001 = vpop.f32.mrf.mxu0
  %v3002 = vadd.f32 %v2740, %v3001
  %v3003 = vpop.f32.mrf.mxu0
  %v3004 = vadd.f32 %v2744, %v3003
  %v3005 = vpop.f32.mrf.mxu0
  %v3006 = vadd.f32 %v2740, %v3005
  %v3007 = vpop.f32.mrf.mxu0
  %v3008 = vadd.f32 %v2744, %v3007
  %3009 = vmatprep.mubr.bf16.mxu0 %v2684
  %3010 = vmatmul.mubr.bf16.gmra.mxu0 %v2683
  %v3011 = vpop.f32.mrf.mxu0
  %v3012 = vadd.f32 %v2740, %v3011
  %v3013 = vpop.f32.mrf.mxu0
  %v3014 = vadd.f32 %v2744, %v3013
  %v3015 = vpop.f32.mrf.mxu0
  %v3016 = vadd.f32 %v2740, %v3015
  %v3017 = vpop.f32.mrf.mxu0
  %v3018 = vadd.f32 %v2744, %v3017
  %3019 = vmatprep.mubr.bf16.mxu0 %v2686
  %3020 = vmatmul.mubr.bf16.gmra.mxu0 %v2685
  %v3021 = vpop.f32.mrf.mxu0
  %v3022 = vadd.f32 %v2740, %v3021
  %v3023 = vpop.f32.mrf.mxu0
  %v3024 = vadd.f32 %v2744, %v3023
  %v3025 = vpop.f32.mrf.mxu0
  %v3026 = vadd.f32 %v2740, %v3025
  %v3027 = vpop.f32.mrf.mxu0
  %v3028 = vadd.f32 %v2744, %v3027
  %3029 = vmatprep.mubr.bf16.mxu0 %v2688
  %3030 = vmatmul.mubr.bf16.gmra.mxu0 %v2687
  %v3031 = vpop.f32.mrf.mxu0
  %v3032 = vadd.f32 %v2740, %v3031
  %v3033 = vpop.f32.mrf.mxu0
  %v3034 = vadd.f32 %v2744, %v3033
  %v3035 = vpop.f32.mrf.mxu0
  %v3036 = vadd.f32 %v2740, %v3035
  %v3037 = vpop.f32.mrf.mxu0
  %v3038 = vadd.f32 %v2744, %v3037
  %3039 = vmatprep.mubr.bf16.mxu0 %v2690
  %3040 = vmatmul.mubr.bf16.gmra.mxu0 %v2689
  %v3041 = vpop.f32.mrf.mxu0
  %v3042 = vadd.f32 %v2740, %v3041
  %v3043 = vpop.f32.mrf.mxu0
  %v3044 = vadd.f32 %v2744, %v3043
  %v3045 = vpop.f32.mrf.mxu0
  %v3046 = vadd.f32 %v2740, %v3045
  %v3047 = vpop.f32.mrf.mxu0
  %v3048 = vadd.f32 %v2744, %v3047
  %3049 = vmatprep.mubr.bf16.mxu0 %v2692
  %3050 = vmatmul.mubr.bf16.gmra.mxu0 %v2691
  %v3051 = vpop.f32.mrf.mxu0
  %v3052 = vadd.f32 %v2740, %v3051
  %v3053 = vpop.f32.mrf.mxu0
  %v3054 = vadd.f32 %v2744, %v3053
  %v3055 = vpop.f32.mrf.mxu0
  %v3056 = vadd.f32 %v2740, %v3055
  %v3057 = vpop.f32.mrf.mxu0
  %v3058 = vadd.f32 %v2744, %v3057
  %3059 = vmatprep.mubr.bf16.mxu0 %v2694
  %3060 = vmatmul.mubr.bf16.gmra.mxu0 %v2693
  %v3061 = vpop.f32.mrf.mxu0
  %v3062 = vadd.f32 %v2740, %v3061
  %v3063 = vpop.f32.mrf.mxu0
  %v3064 = vadd.f32 %v2744, %v3063
  %v3065 = vpop.f32.mrf.mxu0
  %v3066 = vadd.f32 %v2740, %v3065
  %v3067 = vpop.f32.mrf.mxu0
  %v3068 = vadd.f32 %v2744, %v3067
  %3069 = vmatprep.mubr.bf16.mxu0 %v2696
  %3070 = vmatmul.mubr.bf16.gmra.mxu0 %v2695
  %v3071 = vpop.f32.mrf.mxu0
  %v3072 = vadd.f32 %v2740, %v3071
  %v3073 = vpop.f32.mrf.mxu0
  %v3074 = vadd.f32 %v2744, %v3073
  %v3075 = vpop.f32.mrf.mxu0
  %v3076 = vadd.f32 %v2740, %v3075
  %v3077 = vpop.f32.mrf.mxu0
  %v3078 = vadd.f32 %v2744, %v3077
  %3079 = vmatprep.mubr.bf16.mxu0 %v2698
  %3080 = vmatmul.mubr.bf16.gmra.mxu0 %v2697
  %v3081 = vpop.f32.mrf.mxu0
  %v3082 = vadd.f32 %v2740, %v3081
  %v3083 = vpop.f32.mrf.mxu0
  %v3084 = vadd.f32 %v2744, %v3083
  %v3085 = vpop.f32.mrf.mxu0
  %v3086 = vadd.f32 %v2740, %v3085
  %v3087 = vpop.f32.mrf.mxu0
  %v3088 = vadd.f32 %v2744, %v3087
  %3089 = vmatprep.mubr.bf16.mxu0 %v2700
  %3090 = vmatmul.mubr.bf16.gmra.mxu0 %v2699
  %v3091 = vpop.f32.mrf.mxu0
  %v3092 = vadd.f32 %v2740, %v3091
  %v3093 = vpop.f32.mrf.mxu0
  %v3094 = vadd.f32 %v2744, %v3093
  %v3095 = vpop.f32.mrf.mxu0
  %v3096 = vadd.f32 %v2740, %v3095
  %v3097 = vpop.f32.mrf.mxu0
  %v3098 = vadd.f32 %v2744, %v3097
  %3099 = vdwg.mxu0
  %v3100 = vmul.f32 %v2942, %v324
  %v3101 = vmul.f32 %v2944, %v326
  %v3102 = vmul.f32 %v2946, %v328
  %v3103 = vmul.f32 %v2948, %v330
  %v3104 = vmul.f32 %v2952, %v334
  %v3105 = vmul.f32 %v2954, %v336
  %v3106 = vmul.f32 %v2956, %v338
  %v3107 = vmul.f32 %v2958, %v340
  %v3108 = vmul.f32 %v2962, %v344
  %v3109 = vmul.f32 %v2964, %v346
  %v3110 = vmul.f32 %v2966, %v348
  %v3111 = vmul.f32 %v2968, %v350
  %v3112 = vmul.f32 %v2972, %v354
  %v3113 = vmul.f32 %v2974, %v356
  %v3114 = vmul.f32 %v2976, %v358
  %v3115 = vmul.f32 %v2978, %v360
  %v3116 = vmul.f32 %v2982, %v364
  %v3117 = vmul.f32 %v2984, %v366
  %v3118 = vmul.f32 %v2986, %v368
  %v3119 = vmul.f32 %v2988, %v370
  %v3120 = vmul.f32 %v2992, %v374
  %v3121 = vmul.f32 %v2994, %v376
  %v3122 = vmul.f32 %v2996, %v378
  %v3123 = vmul.f32 %v2998, %v380
  %v3124 = vmul.f32 %v3002, %v384
  %v3125 = vmul.f32 %v3004, %v386
  %v3126 = vmul.f32 %v3006, %v388
  %v3127 = vmul.f32 %v3008, %v390
  %v3128 = vmul.f32 %v3012, %v394
  %v3129 = vmul.f32 %v3014, %v396
  %v3130 = vmul.f32 %v3016, %v398
  %v3131 = vmul.f32 %v3018, %v400
  %v3132 = vmul.f32 %v3022, %v404
  %v3133 = vmul.f32 %v3024, %v406
  %v3134 = vmul.f32 %v3026, %v408
  %v3135 = vmul.f32 %v3028, %v410
  %v3136 = vmul.f32 %v3032, %v414
  %v3137 = vmul.f32 %v3034, %v416
  %v3138 = vmul.f32 %v3036, %v418
  %v3139 = vmul.f32 %v3038, %v420
  %v3140 = vmul.f32 %v3042, %v424
  %v3141 = vmul.f32 %v3044, %v426
  %v3142 = vmul.f32 %v3046, %v428
  %v3143 = vmul.f32 %v3048, %v430
  %v3144 = vmul.f32 %v3052, %v434
  %v3145 = vmul.f32 %v3054, %v436
  %v3146 = vmul.f32 %v3056, %v438
  %v3147 = vmul.f32 %v3058, %v440
  %v3148 = vmul.f32 %v3062, %v444
  %v3149 = vmul.f32 %v3064, %v446
  %v3150 = vmul.f32 %v3066, %v448
  %v3151 = vmul.f32 %v3068, %v450
  %v3152 = vmul.f32 %v3072, %v454
  %v3153 = vmul.f32 %v3074, %v456
  %v3154 = vmul.f32 %v3076, %v458
  %v3155 = vmul.f32 %v3078, %v460
  %v3156 = vmul.f32 %v3082, %v464
  %v3157 = vmul.f32 %v3084, %v466
  %v3158 = vmul.f32 %v3086, %v468
  %v3159 = vmul.f32 %v3088, %v470
  %v3160 = vmul.f32 %v3092, %v474
  %v3161 = vmul.f32 %v3094, %v476
  %v3162 = vmul.f32 %v3096, %v478
  %v3163 = vmul.f32 %v3098, %v480
  %v3164 = vmax.f32 %v3100, 0.0
  %v3165 = vmax.f32 %v3101, 0.0
  %v3166 = vmax.f32 %v3102, 0.0
  %v3167 = vmax.f32 %v3103, 0.0
  %v3168 = vmax.f32 %v3104, 0.0
  %v3169 = vmax.f32 %v3105, 0.0
  %v3170 = vmax.f32 %v3106, 0.0
  %v3171 = vmax.f32 %v3107, 0.0
  %v3172 = vmax.f32 %v3108, 0.0
  %v3173 = vmax.f32 %v3109, 0.0
  %v3174 = vmax.f32 %v3110, 0.0
  %v3175 = vmax.f32 %v3111, 0.0
  %v3176 = vmax.f32 %v3112, 0.0
  %v3177 = vmax.f32 %v3113, 0.0
  %v3178 = vmax.f32 %v3114, 0.0
  %v3179 = vmax.f32 %v3115, 0.0
  %v3180 = vmax.f32 %v3116, 0.0
  %v3181 = vmax.f32 %v3117, 0.0
  %v3182 = vmax.f32 %v3118, 0.0
  %v3183 = vmax.f32 %v3119, 0.0
  %v3184 = vmax.f32 %v3120, 0.0
  %v3185 = vmax.f32 %v3121, 0.0
  %v3186 = vmax.f32 %v3122, 0.0
  %v3187 = vmax.f32 %v3123, 0.0
  %v3188 = vmax.f32 %v3124, 0.0
  %v3189 = vmax.f32 %v3125, 0.0
  %v3190 = vmax.f32 %v3126, 0.0
  %v3191 = vmax.f32 %v3127, 0.0
  %v3192 = vmax.f32 %v3128, 0.0
  %v3193 = vmax.f32 %v3129, 0.0
  %v3194 = vmax.f32 %v3130, 0.0
  %v3195 = vmax.f32 %v3131, 0.0
  %v3196 = vmax.f32 %v3132, 0.0
  %v3197 = vmax.f32 %v3133, 0.0
  %v3198 = vmax.f32 %v3134, 0.0
  %v3199 = vmax.f32 %v3135, 0.0
  %v3200 = vmax.f32 %v3136, 0.0
  %v3201 = vmax.f32 %v3137, 0.0
  %v3202 = vmax.f32 %v3138, 0.0
  %v3203 = vmax.f32 %v3139, 0.0
  %v3204 = vmax.f32 %v3140, 0.0
  %v3205 = vmax.f32 %v3141, 0.0
  %v3206 = vmax.f32 %v3142, 0.0
  %v3207 = vmax.f32 %v3143, 0.0
  %v3208 = vmax.f32 %v3144, 0.0
  %v3209 = vmax.f32 %v3145, 0.0
  %v3210 = vmax.f32 %v3146, 0.0
  %v3211 = vmax.f32 %v3147, 0.0
  %v3212 = vmax.f32 %v3148, 0.0
  %v3213 = vmax.f32 %v3149, 0.0
  %v3214 = vmax.f32 %v3150, 0.0
  %v3215 = vmax.f32 %v3151, 0.0
  %v3216 = vmax.f32 %v3152, 0.0
  %v3217 = vmax.f32 %v3153, 0.0
  %v3218 = vmax.f32 %v3154, 0.0
  %v3219 = vmax.f32 %v3155, 0.0
  %v3220 = vmax.f32 %v3156, 0.0
  %v3221 = vmax.f32 %v3157, 0.0
  %v3222 = vmax.f32 %v3158, 0.0
  %v3223 = vmax.f32 %v3159, 0.0
  %v3224 = vmax.f32 %v3160, 0.0
  %v3225 = vmax.f32 %v3161, 0.0
  %v3226 = vmax.f32 %v3162, 0.0
  %v3227 = vmax.f32 %v3163, 0.0
  %v3228 = vpack.c.bf16 %v3166, %v3164
  %v3229 = vpack.c.bf16 %v3167, %v3165
  %v3230 = vpack.c.bf16 %v3170, %v3168
  %v3231 = vpack.c.bf16 %v3171, %v3169
  %v3232 = vpack.c.bf16 %v3174, %v3172
  %v3233 = vpack.c.bf16 %v3175, %v3173
  %v3234 = vpack.c.bf16 %v3178, %v3176
  %v3235 = vpack.c.bf16 %v3179, %v3177
  %v3236 = vpack.c.bf16 %v3182, %v3180
  %v3237 = vpack.c.bf16 %v3183, %v3181
  %v3238 = vpack.c.bf16 %v3186, %v3184
  %v3239 = vpack.c.bf16 %v3187, %v3185
  %v3240 = vpack.c.bf16 %v3190, %v3188
  %v3241 = vpack.c.bf16 %v3191, %v3189
  %v3242 = vpack.c.bf16 %v3194, %v3192
  %v3243 = vpack.c.bf16 %v3195, %v3193
  %v3244 = vpack.c.bf16 %v3198, %v3196
  %v3245 = vpack.c.bf16 %v3199, %v3197
  %v3246 = vpack.c.bf16 %v3202, %v3200
  %v3247 = vpack.c.bf16 %v3203, %v3201
  %v3248 = vpack.c.bf16 %v3206, %v3204
  %v3249 = vpack.c.bf16 %v3207, %v3205
  %v3250 = vpack.c.bf16 %v3210, %v3208
  %v3251 = vpack.c.bf16 %v3211, %v3209
  %v3252 = vpack.c.bf16 %v3214, %v3212
  %v3253 = vpack.c.bf16 %v3215, %v3213
  %v3254 = vpack.c.bf16 %v3218, %v3216
  %v3255 = vpack.c.bf16 %v3219, %v3217
  %v3256 = vpack.c.bf16 %v3222, %v3220
  %v3257 = vpack.c.bf16 %v3223, %v3221
  %v3258 = vpack.c.bf16 %v3226, %v3224
  %v3259 = vpack.c.bf16 %v3227, %v3225
  %s3260 = scalar_lea.vmem %s3, 1024
  %v3261 = vld [vmem:[%s3260] sm:$0xff]
  %v3262 = vld [vmem:[%s3260 + $0x8] sm:$0xff]
  %v3263 = vld [vmem:[%s3260 + $0x10] sm:$0xff]
  %v3264 = vld [vmem:[%s3260 + $0x18] sm:$0xff]
  %v3265 = vld [vmem:[%s3260 + $0x20] sm:$0xff]
  %v3266 = vld [vmem:[%s3260 + $0x28] sm:$0xff]
  %v3267 = vld [vmem:[%s3260 + $0x30] sm:$0xff]
  %v3268 = vld [vmem:[%s3260 + $0x38] sm:$0xff]
  %v3269 = vld [vmem:[%s3260 + $0x40] sm:$0xff]
  %v3270 = vld [vmem:[%s3260 + $0x48] sm:$0xff]
  %v3271 = vld [vmem:[%s3260 + $0x50] sm:$0xff]
  %v3272 = vld [vmem:[%s3260 + $0x58] sm:$0xff]
  %v3273 = vld [vmem:[%s3260 + $0x60] sm:$0xff]
  %v3274 = vld [vmem:[%s3260 + $0x68] sm:$0xff]
  %v3275 = vld [vmem:[%s3260 + $0x70] sm:$0xff]
  %v3276 = vld [vmem:[%s3260 + $0x78] sm:$0xff]
  %v3277 = vld [vmem:[%s3260 + $0x80] sm:$0xff]
  %v3278 = vld [vmem:[%s3260 + $0x88] sm:$0xff]
  %v3279 = vld [vmem:[%s3260 + $0x90] sm:$0xff]
  %v3280 = vld [vmem:[%s3260 + $0x98] sm:$0xff]
  %v3281 = vld [vmem:[%s3260 + $0xa0] sm:$0xff]
  %v3282 = vld [vmem:[%s3260 + $0xa8] sm:$0xff]
  %v3283 = vld [vmem:[%s3260 + $0xb0] sm:$0xff]
  %v3284 = vld [vmem:[%s3260 + $0xb8] sm:$0xff]
  %v3285 = vld [vmem:[%s3260 + $0xc0] sm:$0xff]
  %v3286 = vld [vmem:[%s3260 + $0xc8] sm:$0xff]
  %v3287 = vld [vmem:[%s3260 + $0xd0] sm:$0xff]
  %v3288 = vld [vmem:[%s3260 + $0xd8] sm:$0xff]
  %v3289 = vld [vmem:[%s3260 + $0xe0] sm:$0xff]
  %v3290 = vld [vmem:[%s3260 + $0xe8] sm:$0xff]
  %v3291 = vld [vmem:[%s3260 + $0xf0] sm:$0xff]
  %v3292 = vld [vmem:[%s3260 + $0xf8] sm:$0xff]
  %s3293 = scalar_lea.vmem %s4, 64
  %v3294 = vld [vmem:[%s3293] sm:$0xff]
  %v3295 = vld [vmem:[%s3293 + $0x8] sm:$0xff]
  %v3296 = vld [vmem:[%s3293 + $0x10] sm:$0xff]
  %v3297 = vld [vmem:[%s3293 + $0x18] sm:$0xff]
  %v3298 = vld [vmem:[%s3293 + $0x20] sm:$0xff]
  %v3299 = vld [vmem:[%s3293 + $0x28] sm:$0xff]
  %v3300 = vld [vmem:[%s3293 + $0x30] sm:$0xff]
  %v3301 = vld [vmem:[%s3293 + $0x38] sm:$0xff]
  %v3310 = vunpack.c.l.b16 %v3294
  %v3311 = vunpack.c.h.b16 %v3294
  %v3312 = vunpack.c.l.b16 %v3295
  %v3313 = vunpack.c.h.b16 %v3295
  %v3314 = vunpack.c.l.b16 %v3296
  %v3315 = vunpack.c.h.b16 %v3296
  %v3316 = vunpack.c.l.b16 %v3297
  %v3317 = vunpack.c.h.b16 %v3297
  %v3318 = vunpack.c.l.b16 %v3298
  %v3319 = vunpack.c.h.b16 %v3298
  %v3320 = vunpack.c.l.b16 %v3299
  %v3321 = vunpack.c.h.b16 %v3299
  %v3322 = vunpack.c.l.b16 %v3300
  %v3323 = vunpack.c.h.b16 %v3300
  %v3324 = vunpack.c.l.b16 %v3301
  %v3325 = vunpack.c.h.b16 %v3301
  %v3326 = vpack.c.b16 %v3312, %v3310
  %v3327 = vpack.c.b16 %v3313, %v3311
  %v3328 = vpack.c.b16 %v3316, %v3314
  %v3329 = vpack.c.b16 %v3317, %v3315
  %v3330 = vpack.c.b16 %v3320, %v3318
  %v3331 = vpack.c.b16 %v3321, %v3319
  %v3332 = vpack.c.b16 %v3324, %v3322
  %v3333 = vpack.c.b16 %v3325, %v3323
  %3342 = vmatprep.subr.bf16.mxu0 0
  %3343 = vmatpush1.bf16.msra.mxu0 0
  %3344 = vmatprep.subr.bf16.mxu0 0
  %3345 = vmatpush1.bf16.msra.mxu0 0
  %3346 = vmatprep.subr.bf16.mxu0 0
  %3347 = vmatpush1.bf16.msra.mxu0 0
  %3348 = vmatprep.subr.bf16.mxu0 0
  %3349 = vmatpush1.bf16.msra.mxu0 0
  %3350 = vmatprep.subr.bf16.mxu0 %v3333
  %3351 = vmatpush1.bf16.msra.mxu0 %v3332
  %3352 = vmatprep.subr.bf16.mxu0 %v3331
  %3353 = vmatpush1.bf16.msra.mxu0 %v3330
  %3354 = vmatprep.subr.bf16.mxu0 %v3329
  %3355 = vmatpush1.bf16.msra.mxu0 %v3328
  %3356 = vmatprep.subr.bf16.mxu0 %v3327
  %3357 = vmatpush1.bf16.msra.mxu0 %v3326
  %3358 = vmatprep.subr.bf16.mxu0 0
  %3359 = vmatpush2.bf16.msra.mxu0 0
  %3360 = vmatprep.subr.bf16.mxu0 0
  %3361 = vmatpush2.bf16.msra.mxu0 0
  %3362 = vmatprep.subr.bf16.mxu0 0
  %3363 = vmatpush2.bf16.msra.mxu0 0
  %3364 = vmatprep.subr.bf16.mxu0 0
  %3365 = vmatpush2.bf16.msra.mxu0 0
  %3366 = vmatprep.subr.bf16.mxu0 0
  %3367 = vmatpush2.bf16.msra.mxu0 0
  %3368 = vmatprep.subr.bf16.mxu0 0
  %3369 = vmatpush2.bf16.msra.mxu0 0
  %3370 = vmatprep.subr.bf16.mxu0 0
  %3371 = vmatpush2.bf16.msra.mxu0 0
  %3372 = vmatprep.subr.bf16.mxu0 0
  %3373 = vmatpush2.bf16.msra.mxu0 0
  %3374 = vmatprep.mubr.bf16.mxu0 0
  %3375 = vmatmul.mubr.bf16.gmra.mxu0 %v625
  %v3376 = vpop.f32.mrf.mxu0
  %v3377 = vadd.f32 0.0, %v3376
  %v3378 = vpop.f32.mrf.mxu0
  %v3379 = vadd.f32 0.0, %v3378
  %v3380 = vpop.f32.mrf.mxu0
  %v3381 = vadd.f32 0.0, %v3380
  %v3382 = vpop.f32.mrf.mxu0
  %v3383 = vadd.f32 0.0, %v3382
  %3384 = vmatprep.mubr.bf16.mxu0 0
  %3385 = vmatmul.mubr.bf16.gmra.mxu0 %v628
  %v3386 = vpop.f32.mrf.mxu0
  %v3387 = vadd.f32 0.0, %v3386
  %v3388 = vpop.f32.mrf.mxu0
  %v3389 = vadd.f32 0.0, %v3388
  %v3390 = vpop.f32.mrf.mxu0
  %v3391 = vadd.f32 0.0, %v3390
  %v3392 = vpop.f32.mrf.mxu0
  %v3393 = vadd.f32 0.0, %v3392
  %3394 = vmatprep.mubr.bf16.mxu0 0
  %3395 = vmatmul.mubr.bf16.gmra.mxu0 %v631
  %v3396 = vpop.f32.mrf.mxu0
  %v3397 = vadd.f32 0.0, %v3396
  %v3398 = vpop.f32.mrf.mxu0
  %v3399 = vadd.f32 0.0, %v3398
  %v3400 = vpop.f32.mrf.mxu0
  %v3401 = vadd.f32 0.0, %v3400
  %v3402 = vpop.f32.mrf.mxu0
  %v3403 = vadd.f32 0.0, %v3402
  %3404 = vmatprep.mubr.bf16.mxu0 0
  %3405 = vmatmul.mubr.bf16.gmra.mxu0 %v634
  %v3406 = vpop.f32.mrf.mxu0
  %v3407 = vadd.f32 0.0, %v3406
  %v3408 = vpop.f32.mrf.mxu0
  %v3409 = vadd.f32 0.0, %v3408
  %v3410 = vpop.f32.mrf.mxu0
  %v3411 = vadd.f32 0.0, %v3410
  %v3412 = vpop.f32.mrf.mxu0
  %v3413 = vadd.f32 0.0, %v3412
  %3414 = vmatprep.mubr.bf16.mxu0 0
  %3415 = vmatmul.mubr.bf16.gmra.mxu0 %v637
  %v3416 = vpop.f32.mrf.mxu0
  %v3417 = vadd.f32 0.0, %v3416
  %v3418 = vpop.f32.mrf.mxu0
  %v3419 = vadd.f32 0.0, %v3418
  %v3420 = vpop.f32.mrf.mxu0
  %v3421 = vadd.f32 0.0, %v3420
  %v3422 = vpop.f32.mrf.mxu0
  %v3423 = vadd.f32 0.0, %v3422
  %3424 = vmatprep.mubr.bf16.mxu0 0
  %3425 = vmatmul.mubr.bf16.gmra.mxu0 %v640
  %v3426 = vpop.f32.mrf.mxu0
  %v3427 = vadd.f32 0.0, %v3426
  %v3428 = vpop.f32.mrf.mxu0
  %v3429 = vadd.f32 0.0, %v3428
  %v3430 = vpop.f32.mrf.mxu0
  %v3431 = vadd.f32 0.0, %v3430
  %v3432 = vpop.f32.mrf.mxu0
  %v3433 = vadd.f32 0.0, %v3432
  %3434 = vmatprep.mubr.bf16.mxu0 0
  %3435 = vmatmul.mubr.bf16.gmra.mxu0 %v643
  %v3436 = vpop.f32.mrf.mxu0
  %v3437 = vadd.f32 0.0, %v3436
  %v3438 = vpop.f32.mrf.mxu0
  %v3439 = vadd.f32 0.0, %v3438
  %v3440 = vpop.f32.mrf.mxu0
  %v3441 = vadd.f32 0.0, %v3440
  %v3442 = vpop.f32.mrf.mxu0
  %v3443 = vadd.f32 0.0, %v3442
  %3444 = vmatprep.mubr.bf16.mxu0 0
  %3445 = vmatmul.mubr.bf16.gmra.mxu0 %v646
  %v3446 = vpop.f32.mrf.mxu0
  %v3447 = vadd.f32 0.0, %v3446
  %v3448 = vpop.f32.mrf.mxu0
  %v3449 = vadd.f32 0.0, %v3448
  %v3450 = vpop.f32.mrf.mxu0
  %v3451 = vadd.f32 0.0, %v3450
  %v3452 = vpop.f32.mrf.mxu0
  %v3453 = vadd.f32 0.0, %v3452
  %3454 = vmatprep.mubr.bf16.mxu0 0
  %3455 = vmatmul.mubr.bf16.gmra.mxu0 %v649
  %v3456 = vpop.f32.mrf.mxu0
  %v3457 = vadd.f32 0.0, %v3456
  %v3458 = vpop.f32.mrf.mxu0
  %v3459 = vadd.f32 0.0, %v3458
  %v3460 = vpop.f32.mrf.mxu0
  %v3461 = vadd.f32 0.0, %v3460
  %v3462 = vpop.f32.mrf.mxu0
  %v3463 = vadd.f32 0.0, %v3462
  %3464 = vmatprep.mubr.bf16.mxu0 0
  %3465 = vmatmul.mubr.bf16.gmra.mxu0 %v652
  %v3466 = vpop.f32.mrf.mxu0
  %v3467 = vadd.f32 0.0, %v3466
  %v3468 = vpop.f32.mrf.mxu0
  %v3469 = vadd.f32 0.0, %v3468
  %v3470 = vpop.f32.mrf.mxu0
  %v3471 = vadd.f32 0.0, %v3470
  %v3472 = vpop.f32.mrf.mxu0
  %v3473 = vadd.f32 0.0, %v3472
  %3474 = vmatprep.mubr.bf16.mxu0 0
  %3475 = vmatmul.mubr.bf16.gmra.mxu0 %v655
  %v3476 = vpop.f32.mrf.mxu0
  %v3477 = vadd.f32 0.0, %v3476
  %v3478 = vpop.f32.mrf.mxu0
  %v3479 = vadd.f32 0.0, %v3478
  %v3480 = vpop.f32.mrf.mxu0
  %v3481 = vadd.f32 0.0, %v3480
  %v3482 = vpop.f32.mrf.mxu0
  %v3483 = vadd.f32 0.0, %v3482
  %3484 = vmatprep.mubr.bf16.mxu0 0
  %3485 = vmatmul.mubr.bf16.gmra.mxu0 %v658
  %v3486 = vpop.f32.mrf.mxu0
  %v3487 = vadd.f32 0.0, %v3486
  %v3488 = vpop.f32.mrf.mxu0
  %v3489 = vadd.f32 0.0, %v3488
  %v3490 = vpop.f32.mrf.mxu0
  %v3491 = vadd.f32 0.0, %v3490
  %v3492 = vpop.f32.mrf.mxu0
  %v3493 = vadd.f32 0.0, %v3492
  %3494 = vmatprep.mubr.bf16.mxu0 0
  %3495 = vmatmul.mubr.bf16.gmra.mxu0 %v661
  %v3496 = vpop.f32.mrf.mxu0
  %v3497 = vadd.f32 0.0, %v3496
  %v3498 = vpop.f32.mrf.mxu0
  %v3499 = vadd.f32 0.0, %v3498
  %v3500 = vpop.f32.mrf.mxu0
  %v3501 = vadd.f32 0.0, %v3500
  %v3502 = vpop.f32.mrf.mxu0
  %v3503 = vadd.f32 0.0, %v3502
  %3504 = vmatprep.mubr.bf16.mxu0 0
  %3505 = vmatmul.mubr.bf16.gmra.mxu0 %v664
  %v3506 = vpop.f32.mrf.mxu0
  %v3507 = vadd.f32 0.0, %v3506
  %v3508 = vpop.f32.mrf.mxu0
  %v3509 = vadd.f32 0.0, %v3508
  %v3510 = vpop.f32.mrf.mxu0
  %v3511 = vadd.f32 0.0, %v3510
  %v3512 = vpop.f32.mrf.mxu0
  %v3513 = vadd.f32 0.0, %v3512
  %3514 = vmatprep.mubr.bf16.mxu0 0
  %3515 = vmatmul.mubr.bf16.gmra.mxu0 %v667
  %v3516 = vpop.f32.mrf.mxu0
  %v3517 = vadd.f32 0.0, %v3516
  %v3518 = vpop.f32.mrf.mxu0
  %v3519 = vadd.f32 0.0, %v3518
  %v3520 = vpop.f32.mrf.mxu0
  %v3521 = vadd.f32 0.0, %v3520
  %v3522 = vpop.f32.mrf.mxu0
  %v3523 = vadd.f32 0.0, %v3522
  %3524 = vmatprep.mubr.bf16.mxu0 0
  %3525 = vmatmul.mubr.bf16.gmra.mxu0 %v670
  %v3526 = vpop.f32.mrf.mxu0
  %v3527 = vadd.f32 0.0, %v3526
  %v3528 = vpop.f32.mrf.mxu0
  %v3529 = vadd.f32 0.0, %v3528
  %v3530 = vpop.f32.mrf.mxu0
  %v3531 = vadd.f32 0.0, %v3530
  %v3532 = vpop.f32.mrf.mxu0
  %v3533 = vadd.f32 0.0, %v3532
  %3534 = vdwg.mxu0
  %v3567 = vunpack.c.l.b16 %v3261
  %v3568 = vunpack.c.h.b16 %v3261
  %v3569 = vunpack.c.l.b16 %v3262
  %v3570 = vunpack.c.h.b16 %v3262
  %v3571 = vunpack.c.l.b16 %v3263
  %v3572 = vunpack.c.h.b16 %v3263
  %v3573 = vunpack.c.l.b16 %v3264
  %v3574 = vunpack.c.h.b16 %v3264
  %v3575 = vunpack.c.l.b16 %v3265
  %v3576 = vunpack.c.h.b16 %v3265
  %v3577 = vunpack.c.l.b16 %v3266
  %v3578 = vunpack.c.h.b16 %v3266
  %v3579 = vunpack.c.l.b16 %v3267
  %v3580 = vunpack.c.h.b16 %v3267
  %v3581 = vunpack.c.l.b16 %v3268
  %v3582 = vunpack.c.h.b16 %v3268
  %v3583 = vunpack.c.l.b16 %v3269
  %v3584 = vunpack.c.h.b16 %v3269
  %v3585 = vunpack.c.l.b16 %v3270
  %v3586 = vunpack.c.h.b16 %v3270
  %v3587 = vunpack.c.l.b16 %v3271
  %v3588 = vunpack.c.h.b16 %v3271
  %v3589 = vunpack.c.l.b16 %v3272
  %v3590 = vunpack.c.h.b16 %v3272
  %v3591 = vunpack.c.l.b16 %v3273
  %v3592 = vunpack.c.h.b16 %v3273
  %v3593 = vunpack.c.l.b16 %v3274
  %v3594 = vunpack.c.h.b16 %v3274
  %v3595 = vunpack.c.l.b16 %v3275
  %v3596 = vunpack.c.h.b16 %v3275
  %v3597 = vunpack.c.l.b16 %v3276
  %v3598 = vunpack.c.h.b16 %v3276
  %v3599 = vunpack.c.l.b16 %v3277
  %v3600 = vunpack.c.h.b16 %v3277
  %v3601 = vunpack.c.l.b16 %v3278
  %v3602 = vunpack.c.h.b16 %v3278
  %v3603 = vunpack.c.l.b16 %v3279
  %v3604 = vunpack.c.h.b16 %v3279
  %v3605 = vunpack.c.l.b16 %v3280
  %v3606 = vunpack.c.h.b16 %v3280
  %v3607 = vunpack.c.l.b16 %v3281
  %v3608 = vunpack.c.h.b16 %v3281
  %v3609 = vunpack.c.l.b16 %v3282
  %v3610 = vunpack.c.h.b16 %v3282
  %v3611 = vunpack.c.l.b16 %v3283
  %v3612 = vunpack.c.h.b16 %v3283
  %v3613 = vunpack.c.l.b16 %v3284
  %v3614 = vunpack.c.h.b16 %v3284
  %v3615 = vunpack.c.l.b16 %v3285
  %v3616 = vunpack.c.h.b16 %v3285
  %v3617 = vunpack.c.l.b16 %v3286
  %v3618 = vunpack.c.h.b16 %v3286
  %v3619 = vunpack.c.l.b16 %v3287
  %v3620 = vunpack.c.h.b16 %v3287
  %v3621 = vunpack.c.l.b16 %v3288
  %v3622 = vunpack.c.h.b16 %v3288
  %v3623 = vunpack.c.l.b16 %v3289
  %v3624 = vunpack.c.h.b16 %v3289
  %v3625 = vunpack.c.l.b16 %v3290
  %v3626 = vunpack.c.h.b16 %v3290
  %v3627 = vunpack.c.l.b16 %v3291
  %v3628 = vunpack.c.h.b16 %v3291
  %v3629 = vunpack.c.l.b16 %v3292
  %v3630 = vunpack.c.h.b16 %v3292
  %v3631 = vpack.c.b16 %v3569, %v3567
  %v3632 = vpack.c.b16 %v3570, %v3568
  %v3633 = vpack.c.b16 %v3573, %v3571
  %v3634 = vpack.c.b16 %v3574, %v3572
  %v3635 = vpack.c.b16 %v3577, %v3575
  %v3636 = vpack.c.b16 %v3578, %v3576
  %v3637 = vpack.c.b16 %v3581, %v3579
  %v3638 = vpack.c.b16 %v3582, %v3580
  %v3639 = vpack.c.b16 %v3585, %v3583
  %v3640 = vpack.c.b16 %v3586, %v3584
  %v3641 = vpack.c.b16 %v3589, %v3587
  %v3642 = vpack.c.b16 %v3590, %v3588
  %v3643 = vpack.c.b16 %v3593, %v3591
  %v3644 = vpack.c.b16 %v3594, %v3592
  %v3645 = vpack.c.b16 %v3597, %v3595
  %v3646 = vpack.c.b16 %v3598, %v3596
  %v3647 = vpack.c.b16 %v3601, %v3599
  %v3648 = vpack.c.b16 %v3602, %v3600
  %v3649 = vpack.c.b16 %v3605, %v3603
  %v3650 = vpack.c.b16 %v3606, %v3604
  %v3651 = vpack.c.b16 %v3609, %v3607
  %v3652 = vpack.c.b16 %v3610, %v3608
  %v3653 = vpack.c.b16 %v3613, %v3611
  %v3654 = vpack.c.b16 %v3614, %v3612
  %v3655 = vpack.c.b16 %v3617, %v3615
  %v3656 = vpack.c.b16 %v3618, %v3616
  %v3657 = vpack.c.b16 %v3621, %v3619
  %v3658 = vpack.c.b16 %v3622, %v3620
  %v3659 = vpack.c.b16 %v3625, %v3623
  %v3660 = vpack.c.b16 %v3626, %v3624
  %v3661 = vpack.c.b16 %v3629, %v3627
  %v3662 = vpack.c.b16 %v3630, %v3628
  %3695 = vmatprep.subr.bf16.mxu0 %v3646
  %3696 = vmatpush1.bf16.msra.mxu0 %v3645
  %3697 = vmatprep.subr.bf16.mxu0 %v3644
  %3698 = vmatpush1.bf16.msra.mxu0 %v3643
  %3699 = vmatprep.subr.bf16.mxu0 %v3642
  %3700 = vmatpush1.bf16.msra.mxu0 %v3641
  %3701 = vmatprep.subr.bf16.mxu0 %v3640
  %3702 = vmatpush1.bf16.msra.mxu0 %v3639
  %3703 = vmatprep.subr.bf16.mxu0 %v3638
  %3704 = vmatpush1.bf16.msra.mxu0 %v3637
  %3705 = vmatprep.subr.bf16.mxu0 %v3636
  %3706 = vmatpush1.bf16.msra.mxu0 %v3635
  %3707 = vmatprep.subr.bf16.mxu0 %v3634
  %3708 = vmatpush1.bf16.msra.mxu0 %v3633
  %3709 = vmatprep.subr.bf16.mxu0 %v3632
  %3710 = vmatpush1.bf16.msra.mxu0 %v3631
  %3711 = vmatprep.subr.bf16.mxu0 %v3662
  %3712 = vmatpush2.bf16.msra.mxu0 %v3661
  %3713 = vmatprep.subr.bf16.mxu0 %v3660
  %3714 = vmatpush2.bf16.msra.mxu0 %v3659
  %3715 = vmatprep.subr.bf16.mxu0 %v3658
  %3716 = vmatpush2.bf16.msra.mxu0 %v3657
  %3717 = vmatprep.subr.bf16.mxu0 %v3656
  %3718 = vmatpush2.bf16.msra.mxu0 %v3655
  %3719 = vmatprep.subr.bf16.mxu0 %v3654
  %3720 = vmatpush2.bf16.msra.mxu0 %v3653
  %3721 = vmatprep.subr.bf16.mxu0 %v3652
  %3722 = vmatpush2.bf16.msra.mxu0 %v3651
  %3723 = vmatprep.subr.bf16.mxu0 %v3650
  %3724 = vmatpush2.bf16.msra.mxu0 %v3649
  %3725 = vmatprep.subr.bf16.mxu0 %v3648
  %3726 = vmatpush2.bf16.msra.mxu0 %v3647
  %3727 = vmatprep.mubr.bf16.mxu0 %v3229
  %3728 = vmatmul.mubr.bf16.gmra.mxu0 %v3228
  %v3729 = vpop.f32.mrf.mxu0
  %v3730 = vadd.f32 %v3377, %v3729
  %v3731 = vpop.f32.mrf.mxu0
  %v3732 = vadd.f32 %v3379, %v3731
  %v3733 = vpop.f32.mrf.mxu0
  %v3734 = vadd.f32 %v3381, %v3733
  %v3735 = vpop.f32.mrf.mxu0
  %v3736 = vadd.f32 %v3383, %v3735
  %3737 = vmatprep.mubr.bf16.mxu0 %v3231
  %3738 = vmatmul.mubr.bf16.gmra.mxu0 %v3230
  %v3739 = vpop.f32.mrf.mxu0
  %v3740 = vadd.f32 %v3387, %v3739
  %v3741 = vpop.f32.mrf.mxu0
  %v3742 = vadd.f32 %v3389, %v3741
  %v3743 = vpop.f32.mrf.mxu0
  %v3744 = vadd.f32 %v3391, %v3743
  %v3745 = vpop.f32.mrf.mxu0
  %v3746 = vadd.f32 %v3393, %v3745
  %3747 = vmatprep.mubr.bf16.mxu0 %v3233
  %3748 = vmatmul.mubr.bf16.gmra.mxu0 %v3232
  %v3749 = vpop.f32.mrf.mxu0
  %v3750 = vadd.f32 %v3397, %v3749
  %v3751 = vpop.f32.mrf.mxu0
  %v3752 = vadd.f32 %v3399, %v3751
  %v3753 = vpop.f32.mrf.mxu0
  %v3754 = vadd.f32 %v3401, %v3753
  %v3755 = vpop.f32.mrf.mxu0
  %v3756 = vadd.f32 %v3403, %v3755
  %3757 = vmatprep.mubr.bf16.mxu0 %v3235
  %3758 = vmatmul.mubr.bf16.gmra.mxu0 %v3234
  %v3759 = vpop.f32.mrf.mxu0
  %v3760 = vadd.f32 %v3407, %v3759
  %v3761 = vpop.f32.mrf.mxu0
  %v3762 = vadd.f32 %v3409, %v3761
  %v3763 = vpop.f32.mrf.mxu0
  %v3764 = vadd.f32 %v3411, %v3763
  %v3765 = vpop.f32.mrf.mxu0
  %v3766 = vadd.f32 %v3413, %v3765
  %3767 = vmatprep.mubr.bf16.mxu0 %v3237
  %3768 = vmatmul.mubr.bf16.gmra.mxu0 %v3236
  %v3769 = vpop.f32.mrf.mxu0
  %v3770 = vadd.f32 %v3417, %v3769
  %v3771 = vpop.f32.mrf.mxu0
  %v3772 = vadd.f32 %v3419, %v3771
  %v3773 = vpop.f32.mrf.mxu0
  %v3774 = vadd.f32 %v3421, %v3773
  %v3775 = vpop.f32.mrf.mxu0
  %v3776 = vadd.f32 %v3423, %v3775
  %3777 = vmatprep.mubr.bf16.mxu0 %v3239
  %3778 = vmatmul.mubr.bf16.gmra.mxu0 %v3238
  %v3779 = vpop.f32.mrf.mxu0
  %v3780 = vadd.f32 %v3427, %v3779
  %v3781 = vpop.f32.mrf.mxu0
  %v3782 = vadd.f32 %v3429, %v3781
  %v3783 = vpop.f32.mrf.mxu0
  %v3784 = vadd.f32 %v3431, %v3783
  %v3785 = vpop.f32.mrf.mxu0
  %v3786 = vadd.f32 %v3433, %v3785
  %3787 = vmatprep.mubr.bf16.mxu0 %v3241
  %3788 = vmatmul.mubr.bf16.gmra.mxu0 %v3240
  %v3789 = vpop.f32.mrf.mxu0
  %v3790 = vadd.f32 %v3437, %v3789
  %v3791 = vpop.f32.mrf.mxu0
  %v3792 = vadd.f32 %v3439, %v3791
  %v3793 = vpop.f32.mrf.mxu0
  %v3794 = vadd.f32 %v3441, %v3793
  %v3795 = vpop.f32.mrf.mxu0
  %v3796 = vadd.f32 %v3443, %v3795
  %3797 = vmatprep.mubr.bf16.mxu0 %v3243
  %3798 = vmatmul.mubr.bf16.gmra.mxu0 %v3242
  %v3799 = vpop.f32.mrf.mxu0
  %v3800 = vadd.f32 %v3447, %v3799
  %v3801 = vpop.f32.mrf.mxu0
  %v3802 = vadd.f32 %v3449, %v3801
  %v3803 = vpop.f32.mrf.mxu0
  %v3804 = vadd.f32 %v3451, %v3803
  %v3805 = vpop.f32.mrf.mxu0
  %v3806 = vadd.f32 %v3453, %v3805
  %3807 = vmatprep.mubr.bf16.mxu0 %v3245
  %3808 = vmatmul.mubr.bf16.gmra.mxu0 %v3244
  %v3809 = vpop.f32.mrf.mxu0
  %v3810 = vadd.f32 %v3457, %v3809
  %v3811 = vpop.f32.mrf.mxu0
  %v3812 = vadd.f32 %v3459, %v3811
  %v3813 = vpop.f32.mrf.mxu0
  %v3814 = vadd.f32 %v3461, %v3813
  %v3815 = vpop.f32.mrf.mxu0
  %v3816 = vadd.f32 %v3463, %v3815
  %3817 = vmatprep.mubr.bf16.mxu0 %v3247
  %3818 = vmatmul.mubr.bf16.gmra.mxu0 %v3246
  %v3819 = vpop.f32.mrf.mxu0
  %v3820 = vadd.f32 %v3467, %v3819
  %v3821 = vpop.f32.mrf.mxu0
  %v3822 = vadd.f32 %v3469, %v3821
  %v3823 = vpop.f32.mrf.mxu0
  %v3824 = vadd.f32 %v3471, %v3823
  %v3825 = vpop.f32.mrf.mxu0
  %v3826 = vadd.f32 %v3473, %v3825
  %3827 = vmatprep.mubr.bf16.mxu0 %v3249
  %3828 = vmatmul.mubr.bf16.gmra.mxu0 %v3248
  %v3829 = vpop.f32.mrf.mxu0
  %v3830 = vadd.f32 %v3477, %v3829
  %v3831 = vpop.f32.mrf.mxu0
  %v3832 = vadd.f32 %v3479, %v3831
  %v3833 = vpop.f32.mrf.mxu0
  %v3834 = vadd.f32 %v3481, %v3833
  %v3835 = vpop.f32.mrf.mxu0
  %v3836 = vadd.f32 %v3483, %v3835
  %3837 = vmatprep.mubr.bf16.mxu0 %v3251
  %3838 = vmatmul.mubr.bf16.gmra.mxu0 %v3250
  %v3839 = vpop.f32.mrf.mxu0
  %v3840 = vadd.f32 %v3487, %v3839
  %v3841 = vpop.f32.mrf.mxu0
  %v3842 = vadd.f32 %v3489, %v3841
  %v3843 = vpop.f32.mrf.mxu0
  %v3844 = vadd.f32 %v3491, %v3843
  %v3845 = vpop.f32.mrf.mxu0
  %v3846 = vadd.f32 %v3493, %v3845
  %3847 = vmatprep.mubr.bf16.mxu0 %v3253
  %3848 = vmatmul.mubr.bf16.gmra.mxu0 %v3252
  %v3849 = vpop.f32.mrf.mxu0
  %v3850 = vadd.f32 %v3497, %v3849
  %v3851 = vpop.f32.mrf.mxu0
  %v3852 = vadd.f32 %v3499, %v3851
  %v3853 = vpop.f32.mrf.mxu0
  %v3854 = vadd.f32 %v3501, %v3853
  %v3855 = vpop.f32.mrf.mxu0
  %v3856 = vadd.f32 %v3503, %v3855
  %3857 = vmatprep.mubr.bf16.mxu0 %v3255
  %3858 = vmatmul.mubr.bf16.gmra.mxu0 %v3254
  %v3859 = vpop.f32.mrf.mxu0
  %v3860 = vadd.f32 %v3507, %v3859
  %v3861 = vpop.f32.mrf.mxu0
  %v3862 = vadd.f32 %v3509, %v3861
  %v3863 = vpop.f32.mrf.mxu0
  %v3864 = vadd.f32 %v3511, %v3863
  %v3865 = vpop.f32.mrf.mxu0
  %v3866 = vadd.f32 %v3513, %v3865
  %3867 = vmatprep.mubr.bf16.mxu0 %v3257
  %3868 = vmatmul.mubr.bf16.gmra.mxu0 %v3256
  %v3869 = vpop.f32.mrf.mxu0
  %v3870 = vadd.f32 %v3517, %v3869
  %v3871 = vpop.f32.mrf.mxu0
  %v3872 = vadd.f32 %v3519, %v3871
  %v3873 = vpop.f32.mrf.mxu0
  %v3874 = vadd.f32 %v3521, %v3873
  %v3875 = vpop.f32.mrf.mxu0
  %v3876 = vadd.f32 %v3523, %v3875
  %3877 = vmatprep.mubr.bf16.mxu0 %v3259
  %3878 = vmatmul.mubr.bf16.gmra.mxu0 %v3258
  %v3879 = vpop.f32.mrf.mxu0
  %v3880 = vadd.f32 %v3527, %v3879
  %v3881 = vpop.f32.mrf.mxu0
  %v3882 = vadd.f32 %v3529, %v3881
  %v3883 = vpop.f32.mrf.mxu0
  %v3884 = vadd.f32 %v3531, %v3883
  %v3885 = vpop.f32.mrf.mxu0
  %v3886 = vadd.f32 %v3533, %v3885
  %3887 = vdwg.mxu0
  %s3888 = scalar_lea.vmem %s8, 6
  %v3889 = vld [vmem:[%s3888] ss:$8 sm:$0x3]
  %v3891 = vlaneseq
  %v3892 = vshrl.u32 %v3891, 7
  %v3893 = vsub.s32 0, %v3892
  %v3894 = vrot.slane %v3889, %v3893
  %v3895 = vlaneseq
  %v3896 = vshrl.u32 %v3895, 7
  %v3897 = vsub.s32 1, %v3896
  %v3898 = vrot.slane %v3889, %v3897
  %v3901 = vadd.f32 %v3730, %v3894
  %v3902 = vadd.f32 %v3732, %v3898
  %v3903 = vadd.f32 %v3734, %v3894
  %v3904 = vadd.f32 %v3736, %v3898
  %v3905 = vadd.f32 %v3740, %v3894
  %v3906 = vadd.f32 %v3742, %v3898
  %v3907 = vadd.f32 %v3744, %v3894
  %v3908 = vadd.f32 %v3746, %v3898
  %v3909 = vadd.f32 %v3750, %v3894
  %v3910 = vadd.f32 %v3752, %v3898
  %v3911 = vadd.f32 %v3754, %v3894
  %v3912 = vadd.f32 %v3756, %v3898
  %v3913 = vadd.f32 %v3760, %v3894
  %v3914 = vadd.f32 %v3762, %v3898
  %v3915 = vadd.f32 %v3764, %v3894
  %v3916 = vadd.f32 %v3766, %v3898
  %v3917 = vadd.f32 %v3770, %v3894
  %v3918 = vadd.f32 %v3772, %v3898
  %v3919 = vadd.f32 %v3774, %v3894
  %v3920 = vadd.f32 %v3776, %v3898
  %v3921 = vadd.f32 %v3780, %v3894
  %v3922 = vadd.f32 %v3782, %v3898
  %v3923 = vadd.f32 %v3784, %v3894
  %v3924 = vadd.f32 %v3786, %v3898
  %v3925 = vadd.f32 %v3790, %v3894
  %v3926 = vadd.f32 %v3792, %v3898
  %v3927 = vadd.f32 %v3794, %v3894
  %v3928 = vadd.f32 %v3796, %v3898
  %v3929 = vadd.f32 %v3800, %v3894
  %v3930 = vadd.f32 %v3802, %v3898
  %v3931 = vadd.f32 %v3804, %v3894
  %v3932 = vadd.f32 %v3806, %v3898
  %v3933 = vadd.f32 %v3810, %v3894
  %v3934 = vadd.f32 %v3812, %v3898
  %v3935 = vadd.f32 %v3814, %v3894
  %v3936 = vadd.f32 %v3816, %v3898
  %v3937 = vadd.f32 %v3820, %v3894
  %v3938 = vadd.f32 %v3822, %v3898
  %v3939 = vadd.f32 %v3824, %v3894
  %v3940 = vadd.f32 %v3826, %v3898
  %v3941 = vadd.f32 %v3830, %v3894
  %v3942 = vadd.f32 %v3832, %v3898
  %v3943 = vadd.f32 %v3834, %v3894
  %v3944 = vadd.f32 %v3836, %v3898
  %v3945 = vadd.f32 %v3840, %v3894
  %v3946 = vadd.f32 %v3842, %v3898
  %v3947 = vadd.f32 %v3844, %v3894
  %v3948 = vadd.f32 %v3846, %v3898
  %v3949 = vadd.f32 %v3850, %v3894
  %v3950 = vadd.f32 %v3852, %v3898
  %v3951 = vadd.f32 %v3854, %v3894
  %v3952 = vadd.f32 %v3856, %v3898
  %v3953 = vadd.f32 %v3860, %v3894
  %v3954 = vadd.f32 %v3862, %v3898
  %v3955 = vadd.f32 %v3864, %v3894
  %v3956 = vadd.f32 %v3866, %v3898
  %v3957 = vadd.f32 %v3870, %v3894
  %v3958 = vadd.f32 %v3872, %v3898
  %v3959 = vadd.f32 %v3874, %v3894
  %v3960 = vadd.f32 %v3876, %v3898
  %v3961 = vadd.f32 %v3880, %v3894
  %v3962 = vadd.f32 %v3882, %v3898
  %v3963 = vadd.f32 %v3884, %v3894
  %v3964 = vadd.f32 %v3886, %v3898
  %v3965 = vmul.f32 %v3901, %v324
  %v3966 = vmul.f32 %v3902, %v326
  %v3967 = vmul.f32 %v3903, %v328
  %v3968 = vmul.f32 %v3904, %v330
  %v3969 = vmul.f32 %v3905, %v334
  %v3970 = vmul.f32 %v3906, %v336
  %v3971 = vmul.f32 %v3907, %v338
  %v3972 = vmul.f32 %v3908, %v340
  %v3973 = vmul.f32 %v3909, %v344
  %v3974 = vmul.f32 %v3910, %v346
  %v3975 = vmul.f32 %v3911, %v348
  %v3976 = vmul.f32 %v3912, %v350
  %v3977 = vmul.f32 %v3913, %v354
  %v3978 = vmul.f32 %v3914, %v356
  %v3979 = vmul.f32 %v3915, %v358
  %v3980 = vmul.f32 %v3916, %v360
  %v3981 = vmul.f32 %v3917, %v364
  %v3982 = vmul.f32 %v3918, %v366
  %v3983 = vmul.f32 %v3919, %v368
  %v3984 = vmul.f32 %v3920, %v370
  %v3985 = vmul.f32 %v3921, %v374
  %v3986 = vmul.f32 %v3922, %v376
  %v3987 = vmul.f32 %v3923, %v378
  %v3988 = vmul.f32 %v3924, %v380
  %v3989 = vmul.f32 %v3925, %v384
  %v3990 = vmul.f32 %v3926, %v386
  %v3991 = vmul.f32 %v3927, %v388
  %v3992 = vmul.f32 %v3928, %v390
  %v3993 = vmul.f32 %v3929, %v394
  %v3994 = vmul.f32 %v3930, %v396
  %v3995 = vmul.f32 %v3931, %v398
  %v3996 = vmul.f32 %v3932, %v400
  %v3997 = vmul.f32 %v3933, %v404
  %v3998 = vmul.f32 %v3934, %v406
  %v3999 = vmul.f32 %v3935, %v408
  %v4000 = vmul.f32 %v3936, %v410
  %v4001 = vmul.f32 %v3937, %v414
  %v4002 = vmul.f32 %v3938, %v416
  %v4003 = vmul.f32 %v3939, %v418
  %v4004 = vmul.f32 %v3940, %v420
  %v4005 = vmul.f32 %v3941, %v424
  %v4006 = vmul.f32 %v3942, %v426
  %v4007 = vmul.f32 %v3943, %v428
  %v4008 = vmul.f32 %v3944, %v430
  %v4009 = vmul.f32 %v3945, %v434
  %v4010 = vmul.f32 %v3946, %v436
  %v4011 = vmul.f32 %v3947, %v438
  %v4012 = vmul.f32 %v3948, %v440
  %v4013 = vmul.f32 %v3949, %v444
  %v4014 = vmul.f32 %v3950, %v446
  %v4015 = vmul.f32 %v3951, %v448
  %v4016 = vmul.f32 %v3952, %v450
  %v4017 = vmul.f32 %v3953, %v454
  %v4018 = vmul.f32 %v3954, %v456
  %v4019 = vmul.f32 %v3955, %v458
  %v4020 = vmul.f32 %v3956, %v460
  %v4021 = vmul.f32 %v3957, %v464
  %v4022 = vmul.f32 %v3958, %v466
  %v4023 = vmul.f32 %v3959, %v468
  %v4024 = vmul.f32 %v3960, %v470
  %v4025 = vmul.f32 %v3961, %v474
  %v4026 = vmul.f32 %v3962, %v476
  %v4027 = vmul.f32 %v3963, %v478
  %v4028 = vmul.f32 %v3964, %v480
  %v4029 = vmax.f32 %v3965, 0.0
  %v4030 = vmax.f32 %v3966, 0.0
  %v4031 = vmax.f32 %v3967, 0.0
  %v4032 = vmax.f32 %v3968, 0.0
  %v4033 = vmax.f32 %v3969, 0.0
  %v4034 = vmax.f32 %v3970, 0.0
  %v4035 = vmax.f32 %v3971, 0.0
  %v4036 = vmax.f32 %v3972, 0.0
  %v4037 = vmax.f32 %v3973, 0.0
  %v4038 = vmax.f32 %v3974, 0.0
  %v4039 = vmax.f32 %v3975, 0.0
  %v4040 = vmax.f32 %v3976, 0.0
  %v4041 = vmax.f32 %v3977, 0.0
  %v4042 = vmax.f32 %v3978, 0.0
  %v4043 = vmax.f32 %v3979, 0.0
  %v4044 = vmax.f32 %v3980, 0.0
  %v4045 = vmax.f32 %v3981, 0.0
  %v4046 = vmax.f32 %v3982, 0.0
  %v4047 = vmax.f32 %v3983, 0.0
  %v4048 = vmax.f32 %v3984, 0.0
  %v4049 = vmax.f32 %v3985, 0.0
  %v4050 = vmax.f32 %v3986, 0.0
  %v4051 = vmax.f32 %v3987, 0.0
  %v4052 = vmax.f32 %v3988, 0.0
  %v4053 = vmax.f32 %v3989, 0.0
  %v4054 = vmax.f32 %v3990, 0.0
  %v4055 = vmax.f32 %v3991, 0.0
  %v4056 = vmax.f32 %v3992, 0.0
  %v4057 = vmax.f32 %v3993, 0.0
  %v4058 = vmax.f32 %v3994, 0.0
  %v4059 = vmax.f32 %v3995, 0.0
  %v4060 = vmax.f32 %v3996, 0.0
  %v4061 = vmax.f32 %v3997, 0.0
  %v4062 = vmax.f32 %v3998, 0.0
  %v4063 = vmax.f32 %v3999, 0.0
  %v4064 = vmax.f32 %v4000, 0.0
  %v4065 = vmax.f32 %v4001, 0.0
  %v4066 = vmax.f32 %v4002, 0.0
  %v4067 = vmax.f32 %v4003, 0.0
  %v4068 = vmax.f32 %v4004, 0.0
  %v4069 = vmax.f32 %v4005, 0.0
  %v4070 = vmax.f32 %v4006, 0.0
  %v4071 = vmax.f32 %v4007, 0.0
  %v4072 = vmax.f32 %v4008, 0.0
  %v4073 = vmax.f32 %v4009, 0.0
  %v4074 = vmax.f32 %v4010, 0.0
  %v4075 = vmax.f32 %v4011, 0.0
  %v4076 = vmax.f32 %v4012, 0.0
  %v4077 = vmax.f32 %v4013, 0.0
  %v4078 = vmax.f32 %v4014, 0.0
  %v4079 = vmax.f32 %v4015, 0.0
  %v4080 = vmax.f32 %v4016, 0.0
  %v4081 = vmax.f32 %v4017, 0.0
  %v4082 = vmax.f32 %v4018, 0.0
  %v4083 = vmax.f32 %v4019, 0.0
  %v4084 = vmax.f32 %v4020, 0.0
  %v4085 = vmax.f32 %v4021, 0.0
  %v4086 = vmax.f32 %v4022, 0.0
  %v4087 = vmax.f32 %v4023, 0.0
  %v4088 = vmax.f32 %v4024, 0.0
  %v4089 = vmax.f32 %v4025, 0.0
  %v4090 = vmax.f32 %v4026, 0.0
  %v4091 = vmax.f32 %v4027, 0.0
  %v4092 = vmax.f32 %v4028, 0.0
  %v4093 = vpack.c.bf16 %v4031, %v4029
  %v4094 = vpack.c.bf16 %v4032, %v4030
  %v4095 = vpack.c.bf16 %v4035, %v4033
  %v4096 = vpack.c.bf16 %v4036, %v4034
  %v4097 = vpack.c.bf16 %v4039, %v4037
  %v4098 = vpack.c.bf16 %v4040, %v4038
  %v4099 = vpack.c.bf16 %v4043, %v4041
  %v4100 = vpack.c.bf16 %v4044, %v4042
  %v4101 = vpack.c.bf16 %v4047, %v4045
  %v4102 = vpack.c.bf16 %v4048, %v4046
  %v4103 = vpack.c.bf16 %v4051, %v4049
  %v4104 = vpack.c.bf16 %v4052, %v4050
  %v4105 = vpack.c.bf16 %v4055, %v4053
  %v4106 = vpack.c.bf16 %v4056, %v4054
  %v4107 = vpack.c.bf16 %v4059, %v4057
  %v4108 = vpack.c.bf16 %v4060, %v4058
  %v4109 = vpack.c.bf16 %v4063, %v4061
  %v4110 = vpack.c.bf16 %v4064, %v4062
  %v4111 = vpack.c.bf16 %v4067, %v4065
  %v4112 = vpack.c.bf16 %v4068, %v4066
  %v4113 = vpack.c.bf16 %v4071, %v4069
  %v4114 = vpack.c.bf16 %v4072, %v4070
  %v4115 = vpack.c.bf16 %v4075, %v4073
  %v4116 = vpack.c.bf16 %v4076, %v4074
  %v4117 = vpack.c.bf16 %v4079, %v4077
  %v4118 = vpack.c.bf16 %v4080, %v4078
  %v4119 = vpack.c.bf16 %v4083, %v4081
  %v4120 = vpack.c.bf16 %v4084, %v4082
  %v4121 = vpack.c.bf16 %v4087, %v4085
  %v4122 = vpack.c.bf16 %v4088, %v4086
  %v4123 = vpack.c.bf16 %v4091, %v4089
  %v4124 = vpack.c.bf16 %v4092, %v4090
  %s4125 = scalar_lea.vmem %s3, 1280
  %v4126 = vld [vmem:[%s4125] sm:$0xff]
  %v4127 = vld [vmem:[%s4125 + $0x8] sm:$0xff]
  %v4128 = vld [vmem:[%s4125 + $0x10] sm:$0xff]
  %v4129 = vld [vmem:[%s4125 + $0x18] sm:$0xff]
  %v4130 = vld [vmem:[%s4125 + $0x20] sm:$0xff]
  %v4131 = vld [vmem:[%s4125 + $0x28] sm:$0xff]
  %v4132 = vld [vmem:[%s4125 + $0x30] sm:$0xff]
  %v4133 = vld [vmem:[%s4125 + $0x38] sm:$0xff]
  %v4134 = vld [vmem:[%s4125 + $0x40] sm:$0xff]
  %v4135 = vld [vmem:[%s4125 + $0x48] sm:$0xff]
  %v4136 = vld [vmem:[%s4125 + $0x50] sm:$0xff]
  %v4137 = vld [vmem:[%s4125 + $0x58] sm:$0xff]
  %v4138 = vld [vmem:[%s4125 + $0x60] sm:$0xff]
  %v4139 = vld [vmem:[%s4125 + $0x68] sm:$0xff]
  %v4140 = vld [vmem:[%s4125 + $0x70] sm:$0xff]
  %v4141 = vld [vmem:[%s4125 + $0x78] sm:$0xff]
  %v4142 = vld [vmem:[%s4125 + $0x80] sm:$0xff]
  %v4143 = vld [vmem:[%s4125 + $0x88] sm:$0xff]
  %v4144 = vld [vmem:[%s4125 + $0x90] sm:$0xff]
  %v4145 = vld [vmem:[%s4125 + $0x98] sm:$0xff]
  %v4146 = vld [vmem:[%s4125 + $0xa0] sm:$0xff]
  %v4147 = vld [vmem:[%s4125 + $0xa8] sm:$0xff]
  %v4148 = vld [vmem:[%s4125 + $0xb0] sm:$0xff]
  %v4149 = vld [vmem:[%s4125 + $0xb8] sm:$0xff]
  %v4150 = vld [vmem:[%s4125 + $0xc0] sm:$0xff]
  %v4151 = vld [vmem:[%s4125 + $0xc8] sm:$0xff]
  %v4152 = vld [vmem:[%s4125 + $0xd0] sm:$0xff]
  %v4153 = vld [vmem:[%s4125 + $0xd8] sm:$0xff]
  %v4154 = vld [vmem:[%s4125 + $0xe0] sm:$0xff]
  %v4155 = vld [vmem:[%s4125 + $0xe8] sm:$0xff]
  %v4156 = vld [vmem:[%s4125 + $0xf0] sm:$0xff]
  %v4157 = vld [vmem:[%s4125 + $0xf8] sm:$0xff]
  %s4158 = scalar_lea.vmem %s8, 7
  %v4159 = vld [vmem:[%s4158] ss:$8 sm:$0x3]
  %v4161 = vlaneseq
  %v4162 = vshrl.u32 %v4161, 7
  %v4163 = vsub.s32 0, %v4162
  %v4164 = vrot.slane %v4159, %v4163
  %v4165 = vlaneseq
  %v4166 = vshrl.u32 %v4165, 7
  %v4167 = vsub.s32 1, %v4166
  %v4168 = vrot.slane %v4159, %v4167
  %v4203 = vunpack.c.l.b16 %v4126
  %v4204 = vunpack.c.h.b16 %v4126
  %v4205 = vunpack.c.l.b16 %v4127
  %v4206 = vunpack.c.h.b16 %v4127
  %v4207 = vunpack.c.l.b16 %v4128
  %v4208 = vunpack.c.h.b16 %v4128
  %v4209 = vunpack.c.l.b16 %v4129
  %v4210 = vunpack.c.h.b16 %v4129
  %v4211 = vunpack.c.l.b16 %v4130
  %v4212 = vunpack.c.h.b16 %v4130
  %v4213 = vunpack.c.l.b16 %v4131
  %v4214 = vunpack.c.h.b16 %v4131
  %v4215 = vunpack.c.l.b16 %v4132
  %v4216 = vunpack.c.h.b16 %v4132
  %v4217 = vunpack.c.l.b16 %v4133
  %v4218 = vunpack.c.h.b16 %v4133
  %v4219 = vunpack.c.l.b16 %v4134
  %v4220 = vunpack.c.h.b16 %v4134
  %v4221 = vunpack.c.l.b16 %v4135
  %v4222 = vunpack.c.h.b16 %v4135
  %v4223 = vunpack.c.l.b16 %v4136
  %v4224 = vunpack.c.h.b16 %v4136
  %v4225 = vunpack.c.l.b16 %v4137
  %v4226 = vunpack.c.h.b16 %v4137
  %v4227 = vunpack.c.l.b16 %v4138
  %v4228 = vunpack.c.h.b16 %v4138
  %v4229 = vunpack.c.l.b16 %v4139
  %v4230 = vunpack.c.h.b16 %v4139
  %v4231 = vunpack.c.l.b16 %v4140
  %v4232 = vunpack.c.h.b16 %v4140
  %v4233 = vunpack.c.l.b16 %v4141
  %v4234 = vunpack.c.h.b16 %v4141
  %v4235 = vunpack.c.l.b16 %v4142
  %v4236 = vunpack.c.h.b16 %v4142
  %v4237 = vunpack.c.l.b16 %v4143
  %v4238 = vunpack.c.h.b16 %v4143
  %v4239 = vunpack.c.l.b16 %v4144
  %v4240 = vunpack.c.h.b16 %v4144
  %v4241 = vunpack.c.l.b16 %v4145
  %v4242 = vunpack.c.h.b16 %v4145
  %v4243 = vunpack.c.l.b16 %v4146
  %v4244 = vunpack.c.h.b16 %v4146
  %v4245 = vunpack.c.l.b16 %v4147
  %v4246 = vunpack.c.h.b16 %v4147
  %v4247 = vunpack.c.l.b16 %v4148
  %v4248 = vunpack.c.h.b16 %v4148
  %v4249 = vunpack.c.l.b16 %v4149
  %v4250 = vunpack.c.h.b16 %v4149
  %v4251 = vunpack.c.l.b16 %v4150
  %v4252 = vunpack.c.h.b16 %v4150
  %v4253 = vunpack.c.l.b16 %v4151
  %v4254 = vunpack.c.h.b16 %v4151
  %v4255 = vunpack.c.l.b16 %v4152
  %v4256 = vunpack.c.h.b16 %v4152
  %v4257 = vunpack.c.l.b16 %v4153
  %v4258 = vunpack.c.h.b16 %v4153
  %v4259 = vunpack.c.l.b16 %v4154
  %v4260 = vunpack.c.h.b16 %v4154
  %v4261 = vunpack.c.l.b16 %v4155
  %v4262 = vunpack.c.h.b16 %v4155
  %v4263 = vunpack.c.l.b16 %v4156
  %v4264 = vunpack.c.h.b16 %v4156
  %v4265 = vunpack.c.l.b16 %v4157
  %v4266 = vunpack.c.h.b16 %v4157
  %v4267 = vpack.c.b16 %v4205, %v4203
  %v4268 = vpack.c.b16 %v4206, %v4204
  %v4269 = vpack.c.b16 %v4209, %v4207
  %v4270 = vpack.c.b16 %v4210, %v4208
  %v4271 = vpack.c.b16 %v4213, %v4211
  %v4272 = vpack.c.b16 %v4214, %v4212
  %v4273 = vpack.c.b16 %v4217, %v4215
  %v4274 = vpack.c.b16 %v4218, %v4216
  %v4275 = vpack.c.b16 %v4221, %v4219
  %v4276 = vpack.c.b16 %v4222, %v4220
  %v4277 = vpack.c.b16 %v4225, %v4223
  %v4278 = vpack.c.b16 %v4226, %v4224
  %v4279 = vpack.c.b16 %v4229, %v4227
  %v4280 = vpack.c.b16 %v4230, %v4228
  %v4281 = vpack.c.b16 %v4233, %v4231
  %v4282 = vpack.c.b16 %v4234, %v4232
  %v4283 = vpack.c.b16 %v4237, %v4235
  %v4284 = vpack.c.b16 %v4238, %v4236
  %v4285 = vpack.c.b16 %v4241, %v4239
  %v4286 = vpack.c.b16 %v4242, %v4240
  %v4287 = vpack.c.b16 %v4245, %v4243
  %v4288 = vpack.c.b16 %v4246, %v4244
  %v4289 = vpack.c.b16 %v4249, %v4247
  %v4290 = vpack.c.b16 %v4250, %v4248
  %v4291 = vpack.c.b16 %v4253, %v4251
  %v4292 = vpack.c.b16 %v4254, %v4252
  %v4293 = vpack.c.b16 %v4257, %v4255
  %v4294 = vpack.c.b16 %v4258, %v4256
  %v4295 = vpack.c.b16 %v4261, %v4259
  %v4296 = vpack.c.b16 %v4262, %v4260
  %v4297 = vpack.c.b16 %v4265, %v4263
  %v4298 = vpack.c.b16 %v4266, %v4264
  %4331 = vmatprep.subr.bf16.mxu0 %v4282
  %4332 = vmatpush1.bf16.msra.mxu0 %v4281
  %4333 = vmatprep.subr.bf16.mxu0 %v4280
  %4334 = vmatpush1.bf16.msra.mxu0 %v4279
  %4335 = vmatprep.subr.bf16.mxu0 %v4278
  %4336 = vmatpush1.bf16.msra.mxu0 %v4277
  %4337 = vmatprep.subr.bf16.mxu0 %v4276
  %4338 = vmatpush1.bf16.msra.mxu0 %v4275
  %4339 = vmatprep.subr.bf16.mxu0 %v4274
  %4340 = vmatpush1.bf16.msra.mxu0 %v4273
  %4341 = vmatprep.subr.bf16.mxu0 %v4272
  %4342 = vmatpush1.bf16.msra.mxu0 %v4271
  %4343 = vmatprep.subr.bf16.mxu0 %v4270
  %4344 = vmatpush1.bf16.msra.mxu0 %v4269
  %4345 = vmatprep.subr.bf16.mxu0 %v4268
  %4346 = vmatpush1.bf16.msra.mxu0 %v4267
  %4347 = vmatprep.subr.bf16.mxu0 %v4298
  %4348 = vmatpush2.bf16.msra.mxu0 %v4297
  %4349 = vmatprep.subr.bf16.mxu0 %v4296
  %4350 = vmatpush2.bf16.msra.mxu0 %v4295
  %4351 = vmatprep.subr.bf16.mxu0 %v4294
  %4352 = vmatpush2.bf16.msra.mxu0 %v4293
  %4353 = vmatprep.subr.bf16.mxu0 %v4292
  %4354 = vmatpush2.bf16.msra.mxu0 %v4291
  %4355 = vmatprep.subr.bf16.mxu0 %v4290
  %4356 = vmatpush2.bf16.msra.mxu0 %v4289
  %4357 = vmatprep.subr.bf16.mxu0 %v4288
  %4358 = vmatpush2.bf16.msra.mxu0 %v4287
  %4359 = vmatprep.subr.bf16.mxu0 %v4286
  %4360 = vmatpush2.bf16.msra.mxu0 %v4285
  %4361 = vmatprep.subr.bf16.mxu0 %v4284
  %4362 = vmatpush2.bf16.msra.mxu0 %v4283
  %4363 = vmatprep.mubr.bf16.mxu0 %v4094
  %4364 = vmatmul.mubr.bf16.gmra.mxu0 %v4093
  %v4365 = vpop.f32.mrf.mxu0
  %v4366 = vadd.f32 %v4164, %v4365
  %v4367 = vpop.f32.mrf.mxu0
  %v4368 = vadd.f32 %v4168, %v4367
  %v4369 = vpop.f32.mrf.mxu0
  %v4370 = vadd.f32 %v4164, %v4369
  %v4371 = vpop.f32.mrf.mxu0
  %v4372 = vadd.f32 %v4168, %v4371
  %4373 = vmatprep.mubr.bf16.mxu0 %v4096
  %4374 = vmatmul.mubr.bf16.gmra.mxu0 %v4095
  %v4375 = vpop.f32.mrf.mxu0
  %v4376 = vadd.f32 %v4164, %v4375
  %v4377 = vpop.f32.mrf.mxu0
  %v4378 = vadd.f32 %v4168, %v4377
  %v4379 = vpop.f32.mrf.mxu0
  %v4380 = vadd.f32 %v4164, %v4379
  %v4381 = vpop.f32.mrf.mxu0
  %v4382 = vadd.f32 %v4168, %v4381
  %4383 = vmatprep.mubr.bf16.mxu0 %v4098
  %4384 = vmatmul.mubr.bf16.gmra.mxu0 %v4097
  %v4385 = vpop.f32.mrf.mxu0
  %v4386 = vadd.f32 %v4164, %v4385
  %v4387 = vpop.f32.mrf.mxu0
  %v4388 = vadd.f32 %v4168, %v4387
  %v4389 = vpop.f32.mrf.mxu0
  %v4390 = vadd.f32 %v4164, %v4389
  %v4391 = vpop.f32.mrf.mxu0
  %v4392 = vadd.f32 %v4168, %v4391
  %4393 = vmatprep.mubr.bf16.mxu0 %v4100
  %4394 = vmatmul.mubr.bf16.gmra.mxu0 %v4099
  %v4395 = vpop.f32.mrf.mxu0
  %v4396 = vadd.f32 %v4164, %v4395
  %v4397 = vpop.f32.mrf.mxu0
  %v4398 = vadd.f32 %v4168, %v4397
  %v4399 = vpop.f32.mrf.mxu0
  %v4400 = vadd.f32 %v4164, %v4399
  %v4401 = vpop.f32.mrf.mxu0
  %v4402 = vadd.f32 %v4168, %v4401
  %4403 = vmatprep.mubr.bf16.mxu0 %v4102
  %4404 = vmatmul.mubr.bf16.gmra.mxu0 %v4101
  %v4405 = vpop.f32.mrf.mxu0
  %v4406 = vadd.f32 %v4164, %v4405
  %v4407 = vpop.f32.mrf.mxu0
  %v4408 = vadd.f32 %v4168, %v4407
  %v4409 = vpop.f32.mrf.mxu0
  %v4410 = vadd.f32 %v4164, %v4409
  %v4411 = vpop.f32.mrf.mxu0
  %v4412 = vadd.f32 %v4168, %v4411
  %4413 = vmatprep.mubr.bf16.mxu0 %v4104
  %4414 = vmatmul.mubr.bf16.gmra.mxu0 %v4103
  %v4415 = vpop.f32.mrf.mxu0
  %v4416 = vadd.f32 %v4164, %v4415
  %v4417 = vpop.f32.mrf.mxu0
  %v4418 = vadd.f32 %v4168, %v4417
  %v4419 = vpop.f32.mrf.mxu0
  %v4420 = vadd.f32 %v4164, %v4419
  %v4421 = vpop.f32.mrf.mxu0
  %v4422 = vadd.f32 %v4168, %v4421
  %4423 = vmatprep.mubr.bf16.mxu0 %v4106
  %4424 = vmatmul.mubr.bf16.gmra.mxu0 %v4105
  %v4425 = vpop.f32.mrf.mxu0
  %v4426 = vadd.f32 %v4164, %v4425
  %v4427 = vpop.f32.mrf.mxu0
  %v4428 = vadd.f32 %v4168, %v4427
  %v4429 = vpop.f32.mrf.mxu0
  %v4430 = vadd.f32 %v4164, %v4429
  %v4431 = vpop.f32.mrf.mxu0
  %v4432 = vadd.f32 %v4168, %v4431
  %4433 = vmatprep.mubr.bf16.mxu0 %v4108
  %4434 = vmatmul.mubr.bf16.gmra.mxu0 %v4107
  %v4435 = vpop.f32.mrf.mxu0
  %v4436 = vadd.f32 %v4164, %v4435
  %v4437 = vpop.f32.mrf.mxu0
  %v4438 = vadd.f32 %v4168, %v4437
  %v4439 = vpop.f32.mrf.mxu0
  %v4440 = vadd.f32 %v4164, %v4439
  %v4441 = vpop.f32.mrf.mxu0
  %v4442 = vadd.f32 %v4168, %v4441
  %4443 = vmatprep.mubr.bf16.mxu0 %v4110
  %4444 = vmatmul.mubr.bf16.gmra.mxu0 %v4109
  %v4445 = vpop.f32.mrf.mxu0
  %v4446 = vadd.f32 %v4164, %v4445
  %v4447 = vpop.f32.mrf.mxu0
  %v4448 = vadd.f32 %v4168, %v4447
  %v4449 = vpop.f32.mrf.mxu0
  %v4450 = vadd.f32 %v4164, %v4449
  %v4451 = vpop.f32.mrf.mxu0
  %v4452 = vadd.f32 %v4168, %v4451
  %4453 = vmatprep.mubr.bf16.mxu0 %v4112
  %4454 = vmatmul.mubr.bf16.gmra.mxu0 %v4111
  %v4455 = vpop.f32.mrf.mxu0
  %v4456 = vadd.f32 %v4164, %v4455
  %v4457 = vpop.f32.mrf.mxu0
  %v4458 = vadd.f32 %v4168, %v4457
  %v4459 = vpop.f32.mrf.mxu0
  %v4460 = vadd.f32 %v4164, %v4459
  %v4461 = vpop.f32.mrf.mxu0
  %v4462 = vadd.f32 %v4168, %v4461
  %4463 = vmatprep.mubr.bf16.mxu0 %v4114
  %4464 = vmatmul.mubr.bf16.gmra.mxu0 %v4113
  %v4465 = vpop.f32.mrf.mxu0
  %v4466 = vadd.f32 %v4164, %v4465
  %v4467 = vpop.f32.mrf.mxu0
  %v4468 = vadd.f32 %v4168, %v4467
  %v4469 = vpop.f32.mrf.mxu0
  %v4470 = vadd.f32 %v4164, %v4469
  %v4471 = vpop.f32.mrf.mxu0
  %v4472 = vadd.f32 %v4168, %v4471
  %4473 = vmatprep.mubr.bf16.mxu0 %v4116
  %4474 = vmatmul.mubr.bf16.gmra.mxu0 %v4115
  %v4475 = vpop.f32.mrf.mxu0
  %v4476 = vadd.f32 %v4164, %v4475
  %v4477 = vpop.f32.mrf.mxu0
  %v4478 = vadd.f32 %v4168, %v4477
  %v4479 = vpop.f32.mrf.mxu0
  %v4480 = vadd.f32 %v4164, %v4479
  %v4481 = vpop.f32.mrf.mxu0
  %v4482 = vadd.f32 %v4168, %v4481
  %4483 = vmatprep.mubr.bf16.mxu0 %v4118
  %4484 = vmatmul.mubr.bf16.gmra.mxu0 %v4117
  %v4485 = vpop.f32.mrf.mxu0
  %v4486 = vadd.f32 %v4164, %v4485
  %v4487 = vpop.f32.mrf.mxu0
  %v4488 = vadd.f32 %v4168, %v4487
  %v4489 = vpop.f32.mrf.mxu0
  %v4490 = vadd.f32 %v4164, %v4489
  %v4491 = vpop.f32.mrf.mxu0
  %v4492 = vadd.f32 %v4168, %v4491
  %4493 = vmatprep.mubr.bf16.mxu0 %v4120
  %4494 = vmatmul.mubr.bf16.gmra.mxu0 %v4119
  %v4495 = vpop.f32.mrf.mxu0
  %v4496 = vadd.f32 %v4164, %v4495
  %v4497 = vpop.f32.mrf.mxu0
  %v4498 = vadd.f32 %v4168, %v4497
  %v4499 = vpop.f32.mrf.mxu0
  %v4500 = vadd.f32 %v4164, %v4499
  %v4501 = vpop.f32.mrf.mxu0
  %v4502 = vadd.f32 %v4168, %v4501
  %4503 = vmatprep.mubr.bf16.mxu0 %v4122
  %4504 = vmatmul.mubr.bf16.gmra.mxu0 %v4121
  %v4505 = vpop.f32.mrf.mxu0
  %v4506 = vadd.f32 %v4164, %v4505
  %v4507 = vpop.f32.mrf.mxu0
  %v4508 = vadd.f32 %v4168, %v4507
  %v4509 = vpop.f32.mrf.mxu0
  %v4510 = vadd.f32 %v4164, %v4509
  %v4511 = vpop.f32.mrf.mxu0
  %v4512 = vadd.f32 %v4168, %v4511
  %4513 = vmatprep.mubr.bf16.mxu0 %v4124
  %4514 = vmatmul.mubr.bf16.gmra.mxu0 %v4123
  %v4515 = vpop.f32.mrf.mxu0
  %v4516 = vadd.f32 %v4164, %v4515
  %v4517 = vpop.f32.mrf.mxu0
  %v4518 = vadd.f32 %v4168, %v4517
  %v4519 = vpop.f32.mrf.mxu0
  %v4520 = vadd.f32 %v4164, %v4519
  %v4521 = vpop.f32.mrf.mxu0
  %v4522 = vadd.f32 %v4168, %v4521
  %4523 = vdwg.mxu0
  %v4524 = vmul.f32 %v4366, %v324
  %v4525 = vmul.f32 %v4368, %v326
  %v4526 = vmul.f32 %v4370, %v328
  %v4527 = vmul.f32 %v4372, %v330
  %v4528 = vmul.f32 %v4376, %v334
  %v4529 = vmul.f32 %v4378, %v336
  %v4530 = vmul.f32 %v4380, %v338
  %v4531 = vmul.f32 %v4382, %v340
  %v4532 = vmul.f32 %v4386, %v344
  %v4533 = vmul.f32 %v4388, %v346
  %v4534 = vmul.f32 %v4390, %v348
  %v4535 = vmul.f32 %v4392, %v350
  %v4536 = vmul.f32 %v4396, %v354
  %v4537 = vmul.f32 %v4398, %v356
  %v4538 = vmul.f32 %v4400, %v358
  %v4539 = vmul.f32 %v4402, %v360
  %v4540 = vmul.f32 %v4406, %v364
  %v4541 = vmul.f32 %v4408, %v366
  %v4542 = vmul.f32 %v4410, %v368
  %v4543 = vmul.f32 %v4412, %v370
  %v4544 = vmul.f32 %v4416, %v374
  %v4545 = vmul.f32 %v4418, %v376
  %v4546 = vmul.f32 %v4420, %v378
  %v4547 = vmul.f32 %v4422, %v380
  %v4548 = vmul.f32 %v4426, %v384
  %v4549 = vmul.f32 %v4428, %v386
  %v4550 = vmul.f32 %v4430, %v388
  %v4551 = vmul.f32 %v4432, %v390
  %v4552 = vmul.f32 %v4436, %v394
  %v4553 = vmul.f32 %v4438, %v396
  %v4554 = vmul.f32 %v4440, %v398
  %v4555 = vmul.f32 %v4442, %v400
  %v4556 = vmul.f32 %v4446, %v404
  %v4557 = vmul.f32 %v4448, %v406
  %v4558 = vmul.f32 %v4450, %v408
  %v4559 = vmul.f32 %v4452, %v410
  %v4560 = vmul.f32 %v4456, %v414
  %v4561 = vmul.f32 %v4458, %v416
  %v4562 = vmul.f32 %v4460, %v418
  %v4563 = vmul.f32 %v4462, %v420
  %v4564 = vmul.f32 %v4466, %v424
  %v4565 = vmul.f32 %v4468, %v426
  %v4566 = vmul.f32 %v4470, %v428
  %v4567 = vmul.f32 %v4472, %v430
  %v4568 = vmul.f32 %v4476, %v434
  %v4569 = vmul.f32 %v4478, %v436
  %v4570 = vmul.f32 %v4480, %v438
  %v4571 = vmul.f32 %v4482, %v440
  %v4572 = vmul.f32 %v4486, %v444
  %v4573 = vmul.f32 %v4488, %v446
  %v4574 = vmul.f32 %v4490, %v448
  %v4575 = vmul.f32 %v4492, %v450
  %v4576 = vmul.f32 %v4496, %v454
  %v4577 = vmul.f32 %v4498, %v456
  %v4578 = vmul.f32 %v4500, %v458
  %v4579 = vmul.f32 %v4502, %v460
  %v4580 = vmul.f32 %v4506, %v464
  %v4581 = vmul.f32 %v4508, %v466
  %v4582 = vmul.f32 %v4510, %v468
  %v4583 = vmul.f32 %v4512, %v470
  %v4584 = vmul.f32 %v4516, %v474
  %v4585 = vmul.f32 %v4518, %v476
  %v4586 = vmul.f32 %v4520, %v478
  %v4587 = vmul.f32 %v4522, %v480
  %v4588 = vmax.f32 %v4524, 0.0
  %v4589 = vmax.f32 %v4525, 0.0
  %v4590 = vmax.f32 %v4526, 0.0
  %v4591 = vmax.f32 %v4527, 0.0
  %v4592 = vmax.f32 %v4528, 0.0
  %v4593 = vmax.f32 %v4529, 0.0
  %v4594 = vmax.f32 %v4530, 0.0
  %v4595 = vmax.f32 %v4531, 0.0
  %v4596 = vmax.f32 %v4532, 0.0
  %v4597 = vmax.f32 %v4533, 0.0
  %v4598 = vmax.f32 %v4534, 0.0
  %v4599 = vmax.f32 %v4535, 0.0
  %v4600 = vmax.f32 %v4536, 0.0
  %v4601 = vmax.f32 %v4537, 0.0
  %v4602 = vmax.f32 %v4538, 0.0
  %v4603 = vmax.f32 %v4539, 0.0
  %v4604 = vmax.f32 %v4540, 0.0
  %v4605 = vmax.f32 %v4541, 0.0
  %v4606 = vmax.f32 %v4542, 0.0
  %v4607 = vmax.f32 %v4543, 0.0
  %v4608 = vmax.f32 %v4544, 0.0
  %v4609 = vmax.f32 %v4545, 0.0
  %v4610 = vmax.f32 %v4546, 0.0
  %v4611 = vmax.f32 %v4547, 0.0
  %v4612 = vmax.f32 %v4548, 0.0
  %v4613 = vmax.f32 %v4549, 0.0
  %v4614 = vmax.f32 %v4550, 0.0
  %v4615 = vmax.f32 %v4551, 0.0
  %v4616 = vmax.f32 %v4552, 0.0
  %v4617 = vmax.f32 %v4553, 0.0
  %v4618 = vmax.f32 %v4554, 0.0
  %v4619 = vmax.f32 %v4555, 0.0
  %v4620 = vmax.f32 %v4556, 0.0
  %v4621 = vmax.f32 %v4557, 0.0
  %v4622 = vmax.f32 %v4558, 0.0
  %v4623 = vmax.f32 %v4559, 0.0
  %v4624 = vmax.f32 %v4560, 0.0
  %v4625 = vmax.f32 %v4561, 0.0
  %v4626 = vmax.f32 %v4562, 0.0
  %v4627 = vmax.f32 %v4563, 0.0
  %v4628 = vmax.f32 %v4564, 0.0
  %v4629 = vmax.f32 %v4565, 0.0
  %v4630 = vmax.f32 %v4566, 0.0
  %v4631 = vmax.f32 %v4567, 0.0
  %v4632 = vmax.f32 %v4568, 0.0
  %v4633 = vmax.f32 %v4569, 0.0
  %v4634 = vmax.f32 %v4570, 0.0
  %v4635 = vmax.f32 %v4571, 0.0
  %v4636 = vmax.f32 %v4572, 0.0
  %v4637 = vmax.f32 %v4573, 0.0
  %v4638 = vmax.f32 %v4574, 0.0
  %v4639 = vmax.f32 %v4575, 0.0
  %v4640 = vmax.f32 %v4576, 0.0
  %v4641 = vmax.f32 %v4577, 0.0
  %v4642 = vmax.f32 %v4578, 0.0
  %v4643 = vmax.f32 %v4579, 0.0
  %v4644 = vmax.f32 %v4580, 0.0
  %v4645 = vmax.f32 %v4581, 0.0
  %v4646 = vmax.f32 %v4582, 0.0
  %v4647 = vmax.f32 %v4583, 0.0
  %v4648 = vmax.f32 %v4584, 0.0
  %v4649 = vmax.f32 %v4585, 0.0
  %v4650 = vmax.f32 %v4586, 0.0
  %v4651 = vmax.f32 %v4587, 0.0
  %v4652 = vpack.c.bf16 %v4590, %v4588
  %v4653 = vpack.c.bf16 %v4591, %v4589
  %v4654 = vpack.c.bf16 %v4594, %v4592
  %v4655 = vpack.c.bf16 %v4595, %v4593
  %v4656 = vpack.c.bf16 %v4598, %v4596
  %v4657 = vpack.c.bf16 %v4599, %v4597
  %v4658 = vpack.c.bf16 %v4602, %v4600
  %v4659 = vpack.c.bf16 %v4603, %v4601
  %v4660 = vpack.c.bf16 %v4606, %v4604
  %v4661 = vpack.c.bf16 %v4607, %v4605
  %v4662 = vpack.c.bf16 %v4610, %v4608
  %v4663 = vpack.c.bf16 %v4611, %v4609
  %v4664 = vpack.c.bf16 %v4614, %v4612
  %v4665 = vpack.c.bf16 %v4615, %v4613
  %v4666 = vpack.c.bf16 %v4618, %v4616
  %v4667 = vpack.c.bf16 %v4619, %v4617
  %v4668 = vpack.c.bf16 %v4622, %v4620
  %v4669 = vpack.c.bf16 %v4623, %v4621
  %v4670 = vpack.c.bf16 %v4626, %v4624
  %v4671 = vpack.c.bf16 %v4627, %v4625
  %v4672 = vpack.c.bf16 %v4630, %v4628
  %v4673 = vpack.c.bf16 %v4631, %v4629
  %v4674 = vpack.c.bf16 %v4634, %v4632
  %v4675 = vpack.c.bf16 %v4635, %v4633
  %v4676 = vpack.c.bf16 %v4638, %v4636
  %v4677 = vpack.c.bf16 %v4639, %v4637
  %v4678 = vpack.c.bf16 %v4642, %v4640
  %v4679 = vpack.c.bf16 %v4643, %v4641
  %v4680 = vpack.c.bf16 %v4646, %v4644
  %v4681 = vpack.c.bf16 %v4647, %v4645
  %v4682 = vpack.c.bf16 %v4650, %v4648
  %v4683 = vpack.c.bf16 %v4651, %v4649
  %s4684 = scalar_lea.vmem %s3, 1536
  %v4685 = vld [vmem:[%s4684] sm:$0xff]
  %v4686 = vld [vmem:[%s4684 + $0x8] sm:$0xff]
  %v4687 = vld [vmem:[%s4684 + $0x10] sm:$0xff]
  %v4688 = vld [vmem:[%s4684 + $0x18] sm:$0xff]
  %v4689 = vld [vmem:[%s4684 + $0x20] sm:$0xff]
  %v4690 = vld [vmem:[%s4684 + $0x28] sm:$0xff]
  %v4691 = vld [vmem:[%s4684 + $0x30] sm:$0xff]
  %v4692 = vld [vmem:[%s4684 + $0x38] sm:$0xff]
  %v4693 = vld [vmem:[%s4684 + $0x40] sm:$0xff]
  %v4694 = vld [vmem:[%s4684 + $0x48] sm:$0xff]
  %v4695 = vld [vmem:[%s4684 + $0x50] sm:$0xff]
  %v4696 = vld [vmem:[%s4684 + $0x58] sm:$0xff]
  %v4697 = vld [vmem:[%s4684 + $0x60] sm:$0xff]
  %v4698 = vld [vmem:[%s4684 + $0x68] sm:$0xff]
  %v4699 = vld [vmem:[%s4684 + $0x70] sm:$0xff]
  %v4700 = vld [vmem:[%s4684 + $0x78] sm:$0xff]
  %v4701 = vld [vmem:[%s4684 + $0x80] sm:$0xff]
  %v4702 = vld [vmem:[%s4684 + $0x88] sm:$0xff]
  %v4703 = vld [vmem:[%s4684 + $0x90] sm:$0xff]
  %v4704 = vld [vmem:[%s4684 + $0x98] sm:$0xff]
  %v4705 = vld [vmem:[%s4684 + $0xa0] sm:$0xff]
  %v4706 = vld [vmem:[%s4684 + $0xa8] sm:$0xff]
  %v4707 = vld [vmem:[%s4684 + $0xb0] sm:$0xff]
  %v4708 = vld [vmem:[%s4684 + $0xb8] sm:$0xff]
  %v4709 = vld [vmem:[%s4684 + $0xc0] sm:$0xff]
  %v4710 = vld [vmem:[%s4684 + $0xc8] sm:$0xff]
  %v4711 = vld [vmem:[%s4684 + $0xd0] sm:$0xff]
  %v4712 = vld [vmem:[%s4684 + $0xd8] sm:$0xff]
  %v4713 = vld [vmem:[%s4684 + $0xe0] sm:$0xff]
  %v4714 = vld [vmem:[%s4684 + $0xe8] sm:$0xff]
  %v4715 = vld [vmem:[%s4684 + $0xf0] sm:$0xff]
  %v4716 = vld [vmem:[%s4684 + $0xf8] sm:$0xff]
  %s4717 = scalar_lea.vmem %s8, 16
  %v4718 = vld [vmem:[%s4717] ss:$8 sm:$0x3]
  %v4720 = vlaneseq
  %v4721 = vshrl.u32 %v4720, 7
  %v4722 = vsub.s32 0, %v4721
  %v4723 = vrot.slane %v4718, %v4722
  %v4724 = vlaneseq
  %v4725 = vshrl.u32 %v4724, 7
  %v4726 = vsub.s32 1, %v4725
  %v4727 = vrot.slane %v4718, %v4726
  %v4762 = vunpack.c.l.b16 %v4685
  %v4763 = vunpack.c.h.b16 %v4685
  %v4764 = vunpack.c.l.b16 %v4686
  %v4765 = vunpack.c.h.b16 %v4686
  %v4766 = vunpack.c.l.b16 %v4687
  %v4767 = vunpack.c.h.b16 %v4687
  %v4768 = vunpack.c.l.b16 %v4688
  %v4769 = vunpack.c.h.b16 %v4688
  %v4770 = vunpack.c.l.b16 %v4689
  %v4771 = vunpack.c.h.b16 %v4689
  %v4772 = vunpack.c.l.b16 %v4690
  %v4773 = vunpack.c.h.b16 %v4690
  %v4774 = vunpack.c.l.b16 %v4691
  %v4775 = vunpack.c.h.b16 %v4691
  %v4776 = vunpack.c.l.b16 %v4692
  %v4777 = vunpack.c.h.b16 %v4692
  %v4778 = vunpack.c.l.b16 %v4693
  %v4779 = vunpack.c.h.b16 %v4693
  %v4780 = vunpack.c.l.b16 %v4694
  %v4781 = vunpack.c.h.b16 %v4694
  %v4782 = vunpack.c.l.b16 %v4695
  %v4783 = vunpack.c.h.b16 %v4695
  %v4784 = vunpack.c.l.b16 %v4696
  %v4785 = vunpack.c.h.b16 %v4696
  %v4786 = vunpack.c.l.b16 %v4697
  %v4787 = vunpack.c.h.b16 %v4697
  %v4788 = vunpack.c.l.b16 %v4698
  %v4789 = vunpack.c.h.b16 %v4698
  %v4790 = vunpack.c.l.b16 %v4699
  %v4791 = vunpack.c.h.b16 %v4699
  %v4792 = vunpack.c.l.b16 %v4700
  %v4793 = vunpack.c.h.b16 %v4700
  %v4794 = vunpack.c.l.b16 %v4701
  %v4795 = vunpack.c.h.b16 %v4701
  %v4796 = vunpack.c.l.b16 %v4702
  %v4797 = vunpack.c.h.b16 %v4702
  %v4798 = vunpack.c.l.b16 %v4703
  %v4799 = vunpack.c.h.b16 %v4703
  %v4800 = vunpack.c.l.b16 %v4704
  %v4801 = vunpack.c.h.b16 %v4704
  %v4802 = vunpack.c.l.b16 %v4705
  %v4803 = vunpack.c.h.b16 %v4705
  %v4804 = vunpack.c.l.b16 %v4706
  %v4805 = vunpack.c.h.b16 %v4706
  %v4806 = vunpack.c.l.b16 %v4707
  %v4807 = vunpack.c.h.b16 %v4707
  %v4808 = vunpack.c.l.b16 %v4708
  %v4809 = vunpack.c.h.b16 %v4708
  %v4810 = vunpack.c.l.b16 %v4709
  %v4811 = vunpack.c.h.b16 %v4709
  %v4812 = vunpack.c.l.b16 %v4710
  %v4813 = vunpack.c.h.b16 %v4710
  %v4814 = vunpack.c.l.b16 %v4711
  %v4815 = vunpack.c.h.b16 %v4711
  %v4816 = vunpack.c.l.b16 %v4712
  %v4817 = vunpack.c.h.b16 %v4712
  %v4818 = vunpack.c.l.b16 %v4713
  %v4819 = vunpack.c.h.b16 %v4713
  %v4820 = vunpack.c.l.b16 %v4714
  %v4821 = vunpack.c.h.b16 %v4714
  %v4822 = vunpack.c.l.b16 %v4715
  %v4823 = vunpack.c.h.b16 %v4715
  %v4824 = vunpack.c.l.b16 %v4716
  %v4825 = vunpack.c.h.b16 %v4716
  %v4826 = vpack.c.b16 %v4764, %v4762
  %v4827 = vpack.c.b16 %v4765, %v4763
  %v4828 = vpack.c.b16 %v4768, %v4766
  %v4829 = vpack.c.b16 %v4769, %v4767
  %v4830 = vpack.c.b16 %v4772, %v4770
  %v4831 = vpack.c.b16 %v4773, %v4771
  %v4832 = vpack.c.b16 %v4776, %v4774
  %v4833 = vpack.c.b16 %v4777, %v4775
  %v4834 = vpack.c.b16 %v4780, %v4778
  %v4835 = vpack.c.b16 %v4781, %v4779
  %v4836 = vpack.c.b16 %v4784, %v4782
  %v4837 = vpack.c.b16 %v4785, %v4783
  %v4838 = vpack.c.b16 %v4788, %v4786
  %v4839 = vpack.c.b16 %v4789, %v4787
  %v4840 = vpack.c.b16 %v4792, %v4790
  %v4841 = vpack.c.b16 %v4793, %v4791
  %v4842 = vpack.c.b16 %v4796, %v4794
  %v4843 = vpack.c.b16 %v4797, %v4795
  %v4844 = vpack.c.b16 %v4800, %v4798
  %v4845 = vpack.c.b16 %v4801, %v4799
  %v4846 = vpack.c.b16 %v4804, %v4802
  %v4847 = vpack.c.b16 %v4805, %v4803
  %v4848 = vpack.c.b16 %v4808, %v4806
  %v4849 = vpack.c.b16 %v4809, %v4807
  %v4850 = vpack.c.b16 %v4812, %v4810
  %v4851 = vpack.c.b16 %v4813, %v4811
  %v4852 = vpack.c.b16 %v4816, %v4814
  %v4853 = vpack.c.b16 %v4817, %v4815
  %v4854 = vpack.c.b16 %v4820, %v4818
  %v4855 = vpack.c.b16 %v4821, %v4819
  %v4856 = vpack.c.b16 %v4824, %v4822
  %v4857 = vpack.c.b16 %v4825, %v4823
  %4890 = vmatprep.subr.bf16.mxu0 %v4841
  %4891 = vmatpush1.bf16.msra.mxu0 %v4840
  %4892 = vmatprep.subr.bf16.mxu0 %v4839
  %4893 = vmatpush1.bf16.msra.mxu0 %v4838
  %4894 = vmatprep.subr.bf16.mxu0 %v4837
  %4895 = vmatpush1.bf16.msra.mxu0 %v4836
  %4896 = vmatprep.subr.bf16.mxu0 %v4835
  %4897 = vmatpush1.bf16.msra.mxu0 %v4834
  %4898 = vmatprep.subr.bf16.mxu0 %v4833
  %4899 = vmatpush1.bf16.msra.mxu0 %v4832
  %4900 = vmatprep.subr.bf16.mxu0 %v4831
  %4901 = vmatpush1.bf16.msra.mxu0 %v4830
  %4902 = vmatprep.subr.bf16.mxu0 %v4829
  %4903 = vmatpush1.bf16.msra.mxu0 %v4828
  %4904 = vmatprep.subr.bf16.mxu0 %v4827
  %4905 = vmatpush1.bf16.msra.mxu0 %v4826
  %4906 = vmatprep.subr.bf16.mxu0 %v4857
  %4907 = vmatpush2.bf16.msra.mxu0 %v4856
  %4908 = vmatprep.subr.bf16.mxu0 %v4855
  %4909 = vmatpush2.bf16.msra.mxu0 %v4854
  %4910 = vmatprep.subr.bf16.mxu0 %v4853
  %4911 = vmatpush2.bf16.msra.mxu0 %v4852
  %4912 = vmatprep.subr.bf16.mxu0 %v4851
  %4913 = vmatpush2.bf16.msra.mxu0 %v4850
  %4914 = vmatprep.subr.bf16.mxu0 %v4849
  %4915 = vmatpush2.bf16.msra.mxu0 %v4848
  %4916 = vmatprep.subr.bf16.mxu0 %v4847
  %4917 = vmatpush2.bf16.msra.mxu0 %v4846
  %4918 = vmatprep.subr.bf16.mxu0 %v4845
  %4919 = vmatpush2.bf16.msra.mxu0 %v4844
  %4920 = vmatprep.subr.bf16.mxu0 %v4843
  %4921 = vmatpush2.bf16.msra.mxu0 %v4842
  %4922 = vmatprep.mubr.bf16.mxu0 %v4653
  %4923 = vmatmul.mubr.bf16.gmra.mxu0 %v4652
  %v4924 = vpop.f32.mrf.mxu0
  %v4925 = vadd.f32 %v4723, %v4924
  %v4926 = vpop.f32.mrf.mxu0
  %v4927 = vadd.f32 %v4727, %v4926
  %v4928 = vpop.f32.mrf.mxu0
  %v4929 = vadd.f32 %v4723, %v4928
  %v4930 = vpop.f32.mrf.mxu0
  %v4931 = vadd.f32 %v4727, %v4930
  %4932 = vmatprep.mubr.bf16.mxu0 %v4655
  %4933 = vmatmul.mubr.bf16.gmra.mxu0 %v4654
  %v4934 = vpop.f32.mrf.mxu0
  %v4935 = vadd.f32 %v4723, %v4934
  %v4936 = vpop.f32.mrf.mxu0
  %v4937 = vadd.f32 %v4727, %v4936
  %v4938 = vpop.f32.mrf.mxu0
  %v4939 = vadd.f32 %v4723, %v4938
  %v4940 = vpop.f32.mrf.mxu0
  %v4941 = vadd.f32 %v4727, %v4940
  %4942 = vmatprep.mubr.bf16.mxu0 %v4657
  %4943 = vmatmul.mubr.bf16.gmra.mxu0 %v4656
  %v4944 = vpop.f32.mrf.mxu0
  %v4945 = vadd.f32 %v4723, %v4944
  %v4946 = vpop.f32.mrf.mxu0
  %v4947 = vadd.f32 %v4727, %v4946
  %v4948 = vpop.f32.mrf.mxu0
  %v4949 = vadd.f32 %v4723, %v4948
  %v4950 = vpop.f32.mrf.mxu0
  %v4951 = vadd.f32 %v4727, %v4950
  %4952 = vmatprep.mubr.bf16.mxu0 %v4659
  %4953 = vmatmul.mubr.bf16.gmra.mxu0 %v4658
  %v4954 = vpop.f32.mrf.mxu0
  %v4955 = vadd.f32 %v4723, %v4954
  %v4956 = vpop.f32.mrf.mxu0
  %v4957 = vadd.f32 %v4727, %v4956
  %v4958 = vpop.f32.mrf.mxu0
  %v4959 = vadd.f32 %v4723, %v4958
  %v4960 = vpop.f32.mrf.mxu0
  %v4961 = vadd.f32 %v4727, %v4960
  %4962 = vmatprep.mubr.bf16.mxu0 %v4661
  %4963 = vmatmul.mubr.bf16.gmra.mxu0 %v4660
  %v4964 = vpop.f32.mrf.mxu0
  %v4965 = vadd.f32 %v4723, %v4964
  %v4966 = vpop.f32.mrf.mxu0
  %v4967 = vadd.f32 %v4727, %v4966
  %v4968 = vpop.f32.mrf.mxu0
  %v4969 = vadd.f32 %v4723, %v4968
  %v4970 = vpop.f32.mrf.mxu0
  %v4971 = vadd.f32 %v4727, %v4970
  %4972 = vmatprep.mubr.bf16.mxu0 %v4663
  %4973 = vmatmul.mubr.bf16.gmra.mxu0 %v4662
  %v4974 = vpop.f32.mrf.mxu0
  %v4975 = vadd.f32 %v4723, %v4974
  %v4976 = vpop.f32.mrf.mxu0
  %v4977 = vadd.f32 %v4727, %v4976
  %v4978 = vpop.f32.mrf.mxu0
  %v4979 = vadd.f32 %v4723, %v4978
  %v4980 = vpop.f32.mrf.mxu0
  %v4981 = vadd.f32 %v4727, %v4980
  %4982 = vmatprep.mubr.bf16.mxu0 %v4665
  %4983 = vmatmul.mubr.bf16.gmra.mxu0 %v4664
  %v4984 = vpop.f32.mrf.mxu0
  %v4985 = vadd.f32 %v4723, %v4984
  %v4986 = vpop.f32.mrf.mxu0
  %v4987 = vadd.f32 %v4727, %v4986
  %v4988 = vpop.f32.mrf.mxu0
  %v4989 = vadd.f32 %v4723, %v4988
  %v4990 = vpop.f32.mrf.mxu0
  %v4991 = vadd.f32 %v4727, %v4990
  %4992 = vmatprep.mubr.bf16.mxu0 %v4667
  %4993 = vmatmul.mubr.bf16.gmra.mxu0 %v4666
  %v4994 = vpop.f32.mrf.mxu0
  %v4995 = vadd.f32 %v4723, %v4994
  %v4996 = vpop.f32.mrf.mxu0
  %v4997 = vadd.f32 %v4727, %v4996
  %v4998 = vpop.f32.mrf.mxu0
  %v4999 = vadd.f32 %v4723, %v4998
  %v5000 = vpop.f32.mrf.mxu0
  %v5001 = vadd.f32 %v4727, %v5000
  %5002 = vmatprep.mubr.bf16.mxu0 %v4669
  %5003 = vmatmul.mubr.bf16.gmra.mxu0 %v4668
  %v5004 = vpop.f32.mrf.mxu0
  %v5005 = vadd.f32 %v4723, %v5004
  %v5006 = vpop.f32.mrf.mxu0
  %v5007 = vadd.f32 %v4727, %v5006
  %v5008 = vpop.f32.mrf.mxu0
  %v5009 = vadd.f32 %v4723, %v5008
  %v5010 = vpop.f32.mrf.mxu0
  %v5011 = vadd.f32 %v4727, %v5010
  %5012 = vmatprep.mubr.bf16.mxu0 %v4671
  %5013 = vmatmul.mubr.bf16.gmra.mxu0 %v4670
  %v5014 = vpop.f32.mrf.mxu0
  %v5015 = vadd.f32 %v4723, %v5014
  %v5016 = vpop.f32.mrf.mxu0
  %v5017 = vadd.f32 %v4727, %v5016
  %v5018 = vpop.f32.mrf.mxu0
  %v5019 = vadd.f32 %v4723, %v5018
  %v5020 = vpop.f32.mrf.mxu0
  %v5021 = vadd.f32 %v4727, %v5020
  %5022 = vmatprep.mubr.bf16.mxu0 %v4673
  %5023 = vmatmul.mubr.bf16.gmra.mxu0 %v4672
  %v5024 = vpop.f32.mrf.mxu0
  %v5025 = vadd.f32 %v4723, %v5024
  %v5026 = vpop.f32.mrf.mxu0
  %v5027 = vadd.f32 %v4727, %v5026
  %v5028 = vpop.f32.mrf.mxu0
  %v5029 = vadd.f32 %v4723, %v5028
  %v5030 = vpop.f32.mrf.mxu0
  %v5031 = vadd.f32 %v4727, %v5030
  %5032 = vmatprep.mubr.bf16.mxu0 %v4675
  %5033 = vmatmul.mubr.bf16.gmra.mxu0 %v4674
  %v5034 = vpop.f32.mrf.mxu0
  %v5035 = vadd.f32 %v4723, %v5034
  %v5036 = vpop.f32.mrf.mxu0
  %v5037 = vadd.f32 %v4727, %v5036
  %v5038 = vpop.f32.mrf.mxu0
  %v5039 = vadd.f32 %v4723, %v5038
  %v5040 = vpop.f32.mrf.mxu0
  %v5041 = vadd.f32 %v4727, %v5040
  %5042 = vmatprep.mubr.bf16.mxu0 %v4677
  %5043 = vmatmul.mubr.bf16.gmra.mxu0 %v4676
  %v5044 = vpop.f32.mrf.mxu0
  %v5045 = vadd.f32 %v4723, %v5044
  %v5046 = vpop.f32.mrf.mxu0
  %v5047 = vadd.f32 %v4727, %v5046
  %v5048 = vpop.f32.mrf.mxu0
  %v5049 = vadd.f32 %v4723, %v5048
  %v5050 = vpop.f32.mrf.mxu0
  %v5051 = vadd.f32 %v4727, %v5050
  %5052 = vmatprep.mubr.bf16.mxu0 %v4679
  %5053 = vmatmul.mubr.bf16.gmra.mxu0 %v4678
  %v5054 = vpop.f32.mrf.mxu0
  %v5055 = vadd.f32 %v4723, %v5054
  %v5056 = vpop.f32.mrf.mxu0
  %v5057 = vadd.f32 %v4727, %v5056
  %v5058 = vpop.f32.mrf.mxu0
  %v5059 = vadd.f32 %v4723, %v5058
  %v5060 = vpop.f32.mrf.mxu0
  %v5061 = vadd.f32 %v4727, %v5060
  %5062 = vmatprep.mubr.bf16.mxu0 %v4681
  %5063 = vmatmul.mubr.bf16.gmra.mxu0 %v4680
  %v5064 = vpop.f32.mrf.mxu0
  %v5065 = vadd.f32 %v4723, %v5064
  %v5066 = vpop.f32.mrf.mxu0
  %v5067 = vadd.f32 %v4727, %v5066
  %v5068 = vpop.f32.mrf.mxu0
  %v5069 = vadd.f32 %v4723, %v5068
  %v5070 = vpop.f32.mrf.mxu0
  %v5071 = vadd.f32 %v4727, %v5070
  %5072 = vmatprep.mubr.bf16.mxu0 %v4683
  %5073 = vmatmul.mubr.bf16.gmra.mxu0 %v4682
  %v5074 = vpop.f32.mrf.mxu0
  %v5075 = vadd.f32 %v4723, %v5074
  %v5076 = vpop.f32.mrf.mxu0
  %v5077 = vadd.f32 %v4727, %v5076
  %v5078 = vpop.f32.mrf.mxu0
  %v5079 = vadd.f32 %v4723, %v5078
  %v5080 = vpop.f32.mrf.mxu0
  %v5081 = vadd.f32 %v4727, %v5080
  %5082 = vdwg.mxu0
  %v5083 = vmul.f32 %v4925, %v324
  %v5084 = vmul.f32 %v4927, %v326
  %v5085 = vmul.f32 %v4929, %v328
  %v5086 = vmul.f32 %v4931, %v330
  %v5087 = vmul.f32 %v4935, %v334
  %v5088 = vmul.f32 %v4937, %v336
  %v5089 = vmul.f32 %v4939, %v338
  %v5090 = vmul.f32 %v4941, %v340
  %v5091 = vmul.f32 %v4945, %v344
  %v5092 = vmul.f32 %v4947, %v346
  %v5093 = vmul.f32 %v4949, %v348
  %v5094 = vmul.f32 %v4951, %v350
  %v5095 = vmul.f32 %v4955, %v354
  %v5096 = vmul.f32 %v4957, %v356
  %v5097 = vmul.f32 %v4959, %v358
  %v5098 = vmul.f32 %v4961, %v360
  %v5099 = vmul.f32 %v4965, %v364
  %v5100 = vmul.f32 %v4967, %v366
  %v5101 = vmul.f32 %v4969, %v368
  %v5102 = vmul.f32 %v4971, %v370
  %v5103 = vmul.f32 %v4975, %v374
  %v5104 = vmul.f32 %v4977, %v376
  %v5105 = vmul.f32 %v4979, %v378
  %v5106 = vmul.f32 %v4981, %v380
  %v5107 = vmul.f32 %v4985, %v384
  %v5108 = vmul.f32 %v4987, %v386
  %v5109 = vmul.f32 %v4989, %v388
  %v5110 = vmul.f32 %v4991, %v390
  %v5111 = vmul.f32 %v4995, %v394
  %v5112 = vmul.f32 %v4997, %v396
  %v5113 = vmul.f32 %v4999, %v398
  %v5114 = vmul.f32 %v5001, %v400
  %v5115 = vmul.f32 %v5005, %v404
  %v5116 = vmul.f32 %v5007, %v406
  %v5117 = vmul.f32 %v5009, %v408
  %v5118 = vmul.f32 %v5011, %v410
  %v5119 = vmul.f32 %v5015, %v414
  %v5120 = vmul.f32 %v5017, %v416
  %v5121 = vmul.f32 %v5019, %v418
  %v5122 = vmul.f32 %v5021, %v420
  %v5123 = vmul.f32 %v5025, %v424
  %v5124 = vmul.f32 %v5027, %v426
  %v5125 = vmul.f32 %v5029, %v428
  %v5126 = vmul.f32 %v5031, %v430
  %v5127 = vmul.f32 %v5035, %v434
  %v5128 = vmul.f32 %v5037, %v436
  %v5129 = vmul.f32 %v5039, %v438
  %v5130 = vmul.f32 %v5041, %v440
  %v5131 = vmul.f32 %v5045, %v444
  %v5132 = vmul.f32 %v5047, %v446
  %v5133 = vmul.f32 %v5049, %v448
  %v5134 = vmul.f32 %v5051, %v450
  %v5135 = vmul.f32 %v5055, %v454
  %v5136 = vmul.f32 %v5057, %v456
  %v5137 = vmul.f32 %v5059, %v458
  %v5138 = vmul.f32 %v5061, %v460
  %v5139 = vmul.f32 %v5065, %v464
  %v5140 = vmul.f32 %v5067, %v466
  %v5141 = vmul.f32 %v5069, %v468
  %v5142 = vmul.f32 %v5071, %v470
  %v5143 = vmul.f32 %v5075, %v474
  %v5144 = vmul.f32 %v5077, %v476
  %v5145 = vmul.f32 %v5079, %v478
  %v5146 = vmul.f32 %v5081, %v480
  %v5147 = vmax.f32 %v5083, 0.0
  %v5148 = vmax.f32 %v5084, 0.0
  %v5149 = vmax.f32 %v5085, 0.0
  %v5150 = vmax.f32 %v5086, 0.0
  %v5151 = vmax.f32 %v5087, 0.0
  %v5152 = vmax.f32 %v5088, 0.0
  %v5153 = vmax.f32 %v5089, 0.0
  %v5154 = vmax.f32 %v5090, 0.0
  %v5155 = vmax.f32 %v5091, 0.0
  %v5156 = vmax.f32 %v5092, 0.0
  %v5157 = vmax.f32 %v5093, 0.0
  %v5158 = vmax.f32 %v5094, 0.0
  %v5159 = vmax.f32 %v5095, 0.0
  %v5160 = vmax.f32 %v5096, 0.0
  %v5161 = vmax.f32 %v5097, 0.0
  %v5162 = vmax.f32 %v5098, 0.0
  %v5163 = vmax.f32 %v5099, 0.0
  %v5164 = vmax.f32 %v5100, 0.0
  %v5165 = vmax.f32 %v5101, 0.0
  %v5166 = vmax.f32 %v5102, 0.0
  %v5167 = vmax.f32 %v5103, 0.0
  %v5168 = vmax.f32 %v5104, 0.0
  %v5169 = vmax.f32 %v5105, 0.0
  %v5170 = vmax.f32 %v5106, 0.0
  %v5171 = vmax.f32 %v5107, 0.0
  %v5172 = vmax.f32 %v5108, 0.0
  %v5173 = vmax.f32 %v5109, 0.0
  %v5174 = vmax.f32 %v5110, 0.0
  %v5175 = vmax.f32 %v5111, 0.0
  %v5176 = vmax.f32 %v5112, 0.0
  %v5177 = vmax.f32 %v5113, 0.0
  %v5178 = vmax.f32 %v5114, 0.0
  %v5179 = vmax.f32 %v5115, 0.0
  %v5180 = vmax.f32 %v5116, 0.0
  %v5181 = vmax.f32 %v5117, 0.0
  %v5182 = vmax.f32 %v5118, 0.0
  %v5183 = vmax.f32 %v5119, 0.0
  %v5184 = vmax.f32 %v5120, 0.0
  %v5185 = vmax.f32 %v5121, 0.0
  %v5186 = vmax.f32 %v5122, 0.0
  %v5187 = vmax.f32 %v5123, 0.0
  %v5188 = vmax.f32 %v5124, 0.0
  %v5189 = vmax.f32 %v5125, 0.0
  %v5190 = vmax.f32 %v5126, 0.0
  %v5191 = vmax.f32 %v5127, 0.0
  %v5192 = vmax.f32 %v5128, 0.0
  %v5193 = vmax.f32 %v5129, 0.0
  %v5194 = vmax.f32 %v5130, 0.0
  %v5195 = vmax.f32 %v5131, 0.0
  %v5196 = vmax.f32 %v5132, 0.0
  %v5197 = vmax.f32 %v5133, 0.0
  %v5198 = vmax.f32 %v5134, 0.0
  %v5199 = vmax.f32 %v5135, 0.0
  %v5200 = vmax.f32 %v5136, 0.0
  %v5201 = vmax.f32 %v5137, 0.0
  %v5202 = vmax.f32 %v5138, 0.0
  %v5203 = vmax.f32 %v5139, 0.0
  %v5204 = vmax.f32 %v5140, 0.0
  %v5205 = vmax.f32 %v5141, 0.0
  %v5206 = vmax.f32 %v5142, 0.0
  %v5207 = vmax.f32 %v5143, 0.0
  %v5208 = vmax.f32 %v5144, 0.0
  %v5209 = vmax.f32 %v5145, 0.0
  %v5210 = vmax.f32 %v5146, 0.0
  %v5211 = vld [vmem:[%s9] ss:$8 sm:$0x3]
  %v5213 = vlaneseq
  %v5214 = vshrl.u32 %v5213, 7
  %v5215 = vsub.s32 0, %v5214
  %v5216 = vrot.slane %v5211, %v5215
  %v5217 = vlaneseq
  %v5218 = vshrl.u32 %v5217, 7
  %v5219 = vsub.s32 1, %v5218
  %v5220 = vrot.slane %v5211, %v5219
  %v5223 = vmul.f32 %v5147, %v5216
  %v5224 = vmul.f32 %v5148, %v5220
  %v5225 = vmul.f32 %v5149, %v5216
  %v5226 = vmul.f32 %v5150, %v5220
  %v5227 = vmul.f32 %v5151, %v5216
  %v5228 = vmul.f32 %v5152, %v5220
  %v5229 = vmul.f32 %v5153, %v5216
  %v5230 = vmul.f32 %v5154, %v5220
  %v5231 = vmul.f32 %v5155, %v5216
  %v5232 = vmul.f32 %v5156, %v5220
  %v5233 = vmul.f32 %v5157, %v5216
  %v5234 = vmul.f32 %v5158, %v5220
  %v5235 = vmul.f32 %v5159, %v5216
  %v5236 = vmul.f32 %v5160, %v5220
  %v5237 = vmul.f32 %v5161, %v5216
  %v5238 = vmul.f32 %v5162, %v5220
  %v5239 = vmul.f32 %v5163, %v5216
  %v5240 = vmul.f32 %v5164, %v5220
  %v5241 = vmul.f32 %v5165, %v5216
  %v5242 = vmul.f32 %v5166, %v5220
  %v5243 = vmul.f32 %v5167, %v5216
  %v5244 = vmul.f32 %v5168, %v5220
  %v5245 = vmul.f32 %v5169, %v5216
  %v5246 = vmul.f32 %v5170, %v5220
  %v5247 = vmul.f32 %v5171, %v5216
  %v5248 = vmul.f32 %v5172, %v5220
  %v5249 = vmul.f32 %v5173, %v5216
  %v5250 = vmul.f32 %v5174, %v5220
  %v5251 = vmul.f32 %v5175, %v5216
  %v5252 = vmul.f32 %v5176, %v5220
  %v5253 = vmul.f32 %v5177, %v5216
  %v5254 = vmul.f32 %v5178, %v5220
  %v5255 = vmul.f32 %v5179, %v5216
  %v5256 = vmul.f32 %v5180, %v5220
  %v5257 = vmul.f32 %v5181, %v5216
  %v5258 = vmul.f32 %v5182, %v5220
  %v5259 = vmul.f32 %v5183, %v5216
  %v5260 = vmul.f32 %v5184, %v5220
  %v5261 = vmul.f32 %v5185, %v5216
  %v5262 = vmul.f32 %v5186, %v5220
  %v5263 = vmul.f32 %v5187, %v5216
  %v5264 = vmul.f32 %v5188, %v5220
  %v5265 = vmul.f32 %v5189, %v5216
  %v5266 = vmul.f32 %v5190, %v5220
  %v5267 = vmul.f32 %v5191, %v5216
  %v5268 = vmul.f32 %v5192, %v5220
  %v5269 = vmul.f32 %v5193, %v5216
  %v5270 = vmul.f32 %v5194, %v5220
  %v5271 = vmul.f32 %v5195, %v5216
  %v5272 = vmul.f32 %v5196, %v5220
  %v5273 = vmul.f32 %v5197, %v5216
  %v5274 = vmul.f32 %v5198, %v5220
  %v5275 = vmul.f32 %v5199, %v5216
  %v5276 = vmul.f32 %v5200, %v5220
  %v5277 = vmul.f32 %v5201, %v5216
  %v5278 = vmul.f32 %v5202, %v5220
  %v5279 = vmul.f32 %v5203, %v5216
  %v5280 = vmul.f32 %v5204, %v5220
  %v5281 = vmul.f32 %v5205, %v5216
  %v5282 = vmul.f32 %v5206, %v5220
  %v5283 = vmul.f32 %v5207, %v5216
  %v5284 = vmul.f32 %v5208, %v5220
  %v5285 = vmul.f32 %v5209, %v5216
  %v5286 = vmul.f32 %v5210, %v5220
  %v5287 = vadd.f32 %v5223, %v5224
  %5288 = vadd.xlane.f32.xlu0 %v5287
  %v5289 = vpop.xlane.xlu0 %5288
  %v5290 = vadd.f32 %v5225, %v5226
  %5291 = vadd.xlane.f32.xlu0 %v5290
  %v5292 = vpop.xlane.xlu0 %5291
  %v5293 = vadd.f32 %v5227, %v5228
  %5294 = vadd.xlane.f32.xlu0 %v5293
  %v5295 = vpop.xlane.xlu0 %5294
  %v5296 = vadd.f32 %v5229, %v5230
  %5297 = vadd.xlane.f32.xlu0 %v5296
  %v5298 = vpop.xlane.xlu0 %5297
  %v5299 = vadd.f32 %v5231, %v5232
  %5300 = vadd.xlane.f32.xlu0 %v5299
  %v5301 = vpop.xlane.xlu0 %5300
  %v5302 = vadd.f32 %v5233, %v5234
  %5303 = vadd.xlane.f32.xlu0 %v5302
  %v5304 = vpop.xlane.xlu0 %5303
  %v5305 = vadd.f32 %v5235, %v5236
  %5306 = vadd.xlane.f32.xlu0 %v5305
  %v5307 = vpop.xlane.xlu0 %5306
  %v5308 = vadd.f32 %v5237, %v5238
  %5309 = vadd.xlane.f32.xlu0 %v5308
  %v5310 = vpop.xlane.xlu0 %5309
  %v5311 = vadd.f32 %v5239, %v5240
  %5312 = vadd.xlane.f32.xlu0 %v5311
  %v5313 = vpop.xlane.xlu0 %5312
  %v5314 = vadd.f32 %v5241, %v5242
  %5315 = vadd.xlane.f32.xlu0 %v5314
  %v5316 = vpop.xlane.xlu0 %5315
  %v5317 = vadd.f32 %v5243, %v5244
  %5318 = vadd.xlane.f32.xlu0 %v5317
  %v5319 = vpop.xlane.xlu0 %5318
  %v5320 = vadd.f32 %v5245, %v5246
  %5321 = vadd.xlane.f32.xlu0 %v5320
  %v5322 = vpop.xlane.xlu0 %5321
  %v5323 = vadd.f32 %v5247, %v5248
  %5324 = vadd.xlane.f32.xlu0 %v5323
  %v5325 = vpop.xlane.xlu0 %5324
  %v5326 = vadd.f32 %v5249, %v5250
  %5327 = vadd.xlane.f32.xlu0 %v5326
  %v5328 = vpop.xlane.xlu0 %5327
  %v5329 = vadd.f32 %v5251, %v5252
  %5330 = vadd.xlane.f32.xlu0 %v5329
  %v5331 = vpop.xlane.xlu0 %5330
  %v5332 = vadd.f32 %v5253, %v5254
  %5333 = vadd.xlane.f32.xlu0 %v5332
  %v5334 = vpop.xlane.xlu0 %5333
  %v5335 = vadd.f32 %v5255, %v5256
  %5336 = vadd.xlane.f32.xlu0 %v5335
  %v5337 = vpop.xlane.xlu0 %5336
  %v5338 = vadd.f32 %v5257, %v5258
  %5339 = vadd.xlane.f32.xlu0 %v5338
  %v5340 = vpop.xlane.xlu0 %5339
  %v5341 = vadd.f32 %v5259, %v5260
  %5342 = vadd.xlane.f32.xlu0 %v5341
  %v5343 = vpop.xlane.xlu0 %5342
  %v5344 = vadd.f32 %v5261, %v5262
  %5345 = vadd.xlane.f32.xlu0 %v5344
  %v5346 = vpop.xlane.xlu0 %5345
  %v5347 = vadd.f32 %v5263, %v5264
  %5348 = vadd.xlane.f32.xlu0 %v5347
  %v5349 = vpop.xlane.xlu0 %5348
  %v5350 = vadd.f32 %v5265, %v5266
  %5351 = vadd.xlane.f32.xlu0 %v5350
  %v5352 = vpop.xlane.xlu0 %5351
  %v5353 = vadd.f32 %v5267, %v5268
  %5354 = vadd.xlane.f32.xlu0 %v5353
  %v5355 = vpop.xlane.xlu0 %5354
  %v5356 = vadd.f32 %v5269, %v5270
  %5357 = vadd.xlane.f32.xlu0 %v5356
  %v5358 = vpop.xlane.xlu0 %5357
  %v5359 = vadd.f32 %v5271, %v5272
  %5360 = vadd.xlane.f32.xlu0 %v5359
  %v5361 = vpop.xlane.xlu0 %5360
  %v5362 = vadd.f32 %v5273, %v5274
  %5363 = vadd.xlane.f32.xlu0 %v5362
  %v5364 = vpop.xlane.xlu0 %5363
  %v5365 = vadd.f32 %v5275, %v5276
  %5366 = vadd.xlane.f32.xlu0 %v5365
  %v5367 = vpop.xlane.xlu0 %5366
  %v5368 = vadd.f32 %v5277, %v5278
  %5369 = vadd.xlane.f32.xlu0 %v5368
  %v5370 = vpop.xlane.xlu0 %5369
  %v5371 = vadd.f32 %v5279, %v5280
  %5372 = vadd.xlane.f32.xlu0 %v5371
  %v5373 = vpop.xlane.xlu0 %5372
  %v5374 = vadd.f32 %v5281, %v5282
  %5375 = vadd.xlane.f32.xlu0 %v5374
  %v5376 = vpop.xlane.xlu0 %5375
  %v5377 = vadd.f32 %v5283, %v5284
  %5378 = vadd.xlane.f32.xlu0 %v5377
  %v5379 = vpop.xlane.xlu0 %5378
  %v5380 = vadd.f32 %v5285, %v5286
  %5381 = vadd.xlane.f32.xlu0 %v5380
  %v5382 = vpop.xlane.xlu0 %5381
  %v5383 = vpack.c.bf16 %v5149, %v5147
  %v5384 = vpack.c.bf16 %v5150, %v5148
  %v5385 = vpack.c.bf16 %v5153, %v5151
  %v5386 = vpack.c.bf16 %v5154, %v5152
  %v5387 = vpack.c.bf16 %v5157, %v5155
  %v5388 = vpack.c.bf16 %v5158, %v5156
  %v5389 = vpack.c.bf16 %v5161, %v5159
  %v5390 = vpack.c.bf16 %v5162, %v5160
  %v5391 = vpack.c.bf16 %v5165, %v5163
  %v5392 = vpack.c.bf16 %v5166, %v5164
  %v5393 = vpack.c.bf16 %v5169, %v5167
  %v5394 = vpack.c.bf16 %v5170, %v5168
  %v5395 = vpack.c.bf16 %v5173, %v5171
  %v5396 = vpack.c.bf16 %v5174, %v5172
  %v5397 = vpack.c.bf16 %v5177, %v5175
  %v5398 = vpack.c.bf16 %v5178, %v5176
  %v5399 = vpack.c.bf16 %v5181, %v5179
  %v5400 = vpack.c.bf16 %v5182, %v5180
  %v5401 = vpack.c.bf16 %v5185, %v5183
  %v5402 = vpack.c.bf16 %v5186, %v5184
  %v5403 = vpack.c.bf16 %v5189, %v5187
  %v5404 = vpack.c.bf16 %v5190, %v5188
  %v5405 = vpack.c.bf16 %v5193, %v5191
  %v5406 = vpack.c.bf16 %v5194, %v5192
  %v5407 = vpack.c.bf16 %v5197, %v5195
  %v5408 = vpack.c.bf16 %v5198, %v5196
  %v5409 = vpack.c.bf16 %v5201, %v5199
  %v5410 = vpack.c.bf16 %v5202, %v5200
  %v5411 = vpack.c.bf16 %v5205, %v5203
  %v5412 = vpack.c.bf16 %v5206, %v5204
  %v5413 = vpack.c.bf16 %v5209, %v5207
  %v5414 = vpack.c.bf16 %v5210, %v5208
  %s5415 = scalar_lea.vmem %s3, 1792
  %v5416 = vld [vmem:[%s5415] sm:$0xff]
  %v5417 = vld [vmem:[%s5415 + $0x8] sm:$0xff]
  %v5418 = vld [vmem:[%s5415 + $0x10] sm:$0xff]
  %v5419 = vld [vmem:[%s5415 + $0x18] sm:$0xff]
  %v5420 = vld [vmem:[%s5415 + $0x20] sm:$0xff]
  %v5421 = vld [vmem:[%s5415 + $0x28] sm:$0xff]
  %v5422 = vld [vmem:[%s5415 + $0x30] sm:$0xff]
  %v5423 = vld [vmem:[%s5415 + $0x38] sm:$0xff]
  %v5424 = vld [vmem:[%s5415 + $0x40] sm:$0xff]
  %v5425 = vld [vmem:[%s5415 + $0x48] sm:$0xff]
  %v5426 = vld [vmem:[%s5415 + $0x50] sm:$0xff]
  %v5427 = vld [vmem:[%s5415 + $0x58] sm:$0xff]
  %v5428 = vld [vmem:[%s5415 + $0x60] sm:$0xff]
  %v5429 = vld [vmem:[%s5415 + $0x68] sm:$0xff]
  %v5430 = vld [vmem:[%s5415 + $0x70] sm:$0xff]
  %v5431 = vld [vmem:[%s5415 + $0x78] sm:$0xff]
  %v5432 = vld [vmem:[%s5415 + $0x80] sm:$0xff]
  %v5433 = vld [vmem:[%s5415 + $0x88] sm:$0xff]
  %v5434 = vld [vmem:[%s5415 + $0x90] sm:$0xff]
  %v5435 = vld [vmem:[%s5415 + $0x98] sm:$0xff]
  %v5436 = vld [vmem:[%s5415 + $0xa0] sm:$0xff]
  %v5437 = vld [vmem:[%s5415 + $0xa8] sm:$0xff]
  %v5438 = vld [vmem:[%s5415 + $0xb0] sm:$0xff]
  %v5439 = vld [vmem:[%s5415 + $0xb8] sm:$0xff]
  %v5440 = vld [vmem:[%s5415 + $0xc0] sm:$0xff]
  %v5441 = vld [vmem:[%s5415 + $0xc8] sm:$0xff]
  %v5442 = vld [vmem:[%s5415 + $0xd0] sm:$0xff]
  %v5443 = vld [vmem:[%s5415 + $0xd8] sm:$0xff]
  %v5444 = vld [vmem:[%s5415 + $0xe0] sm:$0xff]
  %v5445 = vld [vmem:[%s5415 + $0xe8] sm:$0xff]
  %v5446 = vld [vmem:[%s5415 + $0xf0] sm:$0xff]
  %v5447 = vld [vmem:[%s5415 + $0xf8] sm:$0xff]
  %s5448 = scalar_lea.vmem %s8, 17
  %v5449 = vld [vmem:[%s5448] ss:$8 sm:$0x3]
  %v5451 = vlaneseq
  %v5452 = vshrl.u32 %v5451, 7
  %v5453 = vsub.s32 0, %v5452
  %v5454 = vrot.slane %v5449, %v5453
  %v5455 = vlaneseq
  %v5456 = vshrl.u32 %v5455, 7
  %v5457 = vsub.s32 1, %v5456
  %v5458 = vrot.slane %v5449, %v5457
  %v5493 = vunpack.c.l.b16 %v5416
  %v5494 = vunpack.c.h.b16 %v5416
  %v5495 = vunpack.c.l.b16 %v5417
  %v5496 = vunpack.c.h.b16 %v5417
  %v5497 = vunpack.c.l.b16 %v5418
  %v5498 = vunpack.c.h.b16 %v5418
  %v5499 = vunpack.c.l.b16 %v5419
  %v5500 = vunpack.c.h.b16 %v5419
  %v5501 = vunpack.c.l.b16 %v5420
  %v5502 = vunpack.c.h.b16 %v5420
  %v5503 = vunpack.c.l.b16 %v5421
  %v5504 = vunpack.c.h.b16 %v5421
  %v5505 = vunpack.c.l.b16 %v5422
  %v5506 = vunpack.c.h.b16 %v5422
  %v5507 = vunpack.c.l.b16 %v5423
  %v5508 = vunpack.c.h.b16 %v5423
  %v5509 = vunpack.c.l.b16 %v5424
  %v5510 = vunpack.c.h.b16 %v5424
  %v5511 = vunpack.c.l.b16 %v5425
  %v5512 = vunpack.c.h.b16 %v5425
  %v5513 = vunpack.c.l.b16 %v5426
  %v5514 = vunpack.c.h.b16 %v5426
  %v5515 = vunpack.c.l.b16 %v5427
  %v5516 = vunpack.c.h.b16 %v5427
  %v5517 = vunpack.c.l.b16 %v5428
  %v5518 = vunpack.c.h.b16 %v5428
  %v5519 = vunpack.c.l.b16 %v5429
  %v5520 = vunpack.c.h.b16 %v5429
  %v5521 = vunpack.c.l.b16 %v5430
  %v5522 = vunpack.c.h.b16 %v5430
  %v5523 = vunpack.c.l.b16 %v5431
  %v5524 = vunpack.c.h.b16 %v5431
  %v5525 = vunpack.c.l.b16 %v5432
  %v5526 = vunpack.c.h.b16 %v5432
  %v5527 = vunpack.c.l.b16 %v5433
  %v5528 = vunpack.c.h.b16 %v5433
  %v5529 = vunpack.c.l.b16 %v5434
  %v5530 = vunpack.c.h.b16 %v5434
  %v5531 = vunpack.c.l.b16 %v5435
  %v5532 = vunpack.c.h.b16 %v5435
  %v5533 = vunpack.c.l.b16 %v5436
  %v5534 = vunpack.c.h.b16 %v5436
  %v5535 = vunpack.c.l.b16 %v5437
  %v5536 = vunpack.c.h.b16 %v5437
  %v5537 = vunpack.c.l.b16 %v5438
  %v5538 = vunpack.c.h.b16 %v5438
  %v5539 = vunpack.c.l.b16 %v5439
  %v5540 = vunpack.c.h.b16 %v5439
  %v5541 = vunpack.c.l.b16 %v5440
  %v5542 = vunpack.c.h.b16 %v5440
  %v5543 = vunpack.c.l.b16 %v5441
  %v5544 = vunpack.c.h.b16 %v5441
  %v5545 = vunpack.c.l.b16 %v5442
  %v5546 = vunpack.c.h.b16 %v5442
  %v5547 = vunpack.c.l.b16 %v5443
  %v5548 = vunpack.c.h.b16 %v5443
  %v5549 = vunpack.c.l.b16 %v5444
  %v5550 = vunpack.c.h.b16 %v5444
  %v5551 = vunpack.c.l.b16 %v5445
  %v5552 = vunpack.c.h.b16 %v5445
  %v5553 = vunpack.c.l.b16 %v5446
  %v5554 = vunpack.c.h.b16 %v5446
  %v5555 = vunpack.c.l.b16 %v5447
  %v5556 = vunpack.c.h.b16 %v5447
  %v5557 = vpack.c.b16 %v5495, %v5493
  %v5558 = vpack.c.b16 %v5496, %v5494
  %v5559 = vpack.c.b16 %v5499, %v5497
  %v5560 = vpack.c.b16 %v5500, %v5498
  %v5561 = vpack.c.b16 %v5503, %v5501
  %v5562 = vpack.c.b16 %v5504, %v5502
  %v5563 = vpack.c.b16 %v5507, %v5505
  %v5564 = vpack.c.b16 %v5508, %v5506
  %v5565 = vpack.c.b16 %v5511, %v5509
  %v5566 = vpack.c.b16 %v5512, %v5510
  %v5567 = vpack.c.b16 %v5515, %v5513
  %v5568 = vpack.c.b16 %v5516, %v5514
  %v5569 = vpack.c.b16 %v5519, %v5517
  %v5570 = vpack.c.b16 %v5520, %v5518
  %v5571 = vpack.c.b16 %v5523, %v5521
  %v5572 = vpack.c.b16 %v5524, %v5522
  %v5573 = vpack.c.b16 %v5527, %v5525
  %v5574 = vpack.c.b16 %v5528, %v5526
  %v5575 = vpack.c.b16 %v5531, %v5529
  %v5576 = vpack.c.b16 %v5532, %v5530
  %v5577 = vpack.c.b16 %v5535, %v5533
  %v5578 = vpack.c.b16 %v5536, %v5534
  %v5579 = vpack.c.b16 %v5539, %v5537
  %v5580 = vpack.c.b16 %v5540, %v5538
  %v5581 = vpack.c.b16 %v5543, %v5541
  %v5582 = vpack.c.b16 %v5544, %v5542
  %v5583 = vpack.c.b16 %v5547, %v5545
  %v5584 = vpack.c.b16 %v5548, %v5546
  %v5585 = vpack.c.b16 %v5551, %v5549
  %v5586 = vpack.c.b16 %v5552, %v5550
  %v5587 = vpack.c.b16 %v5555, %v5553
  %v5588 = vpack.c.b16 %v5556, %v5554
  %5621 = vmatprep.subr.bf16.mxu0 %v5572
  %5622 = vmatpush1.bf16.msra.mxu0 %v5571
  %5623 = vmatprep.subr.bf16.mxu0 %v5570
  %5624 = vmatpush1.bf16.msra.mxu0 %v5569
  %5625 = vmatprep.subr.bf16.mxu0 %v5568
  %5626 = vmatpush1.bf16.msra.mxu0 %v5567
  %5627 = vmatprep.subr.bf16.mxu0 %v5566
  %5628 = vmatpush1.bf16.msra.mxu0 %v5565
  %5629 = vmatprep.subr.bf16.mxu0 %v5564
  %5630 = vmatpush1.bf16.msra.mxu0 %v5563
  %5631 = vmatprep.subr.bf16.mxu0 %v5562
  %5632 = vmatpush1.bf16.msra.mxu0 %v5561
  %5633 = vmatprep.subr.bf16.mxu0 %v5560
  %5634 = vmatpush1.bf16.msra.mxu0 %v5559
  %5635 = vmatprep.subr.bf16.mxu0 %v5558
  %5636 = vmatpush1.bf16.msra.mxu0 %v5557
  %5637 = vmatprep.subr.bf16.mxu0 %v5588
  %5638 = vmatpush2.bf16.msra.mxu0 %v5587
  %5639 = vmatprep.subr.bf16.mxu0 %v5586
  %5640 = vmatpush2.bf16.msra.mxu0 %v5585
  %5641 = vmatprep.subr.bf16.mxu0 %v5584
  %5642 = vmatpush2.bf16.msra.mxu0 %v5583
  %5643 = vmatprep.subr.bf16.mxu0 %v5582
  %5644 = vmatpush2.bf16.msra.mxu0 %v5581
  %5645 = vmatprep.subr.bf16.mxu0 %v5580
  %5646 = vmatpush2.bf16.msra.mxu0 %v5579
  %5647 = vmatprep.subr.bf16.mxu0 %v5578
  %5648 = vmatpush2.bf16.msra.mxu0 %v5577
  %5649 = vmatprep.subr.bf16.mxu0 %v5576
  %5650 = vmatpush2.bf16.msra.mxu0 %v5575
  %5651 = vmatprep.subr.bf16.mxu0 %v5574
  %5652 = vmatpush2.bf16.msra.mxu0 %v5573
  %5653 = vmatprep.mubr.bf16.mxu0 %v5384
  %5654 = vmatmul.mubr.bf16.gmra.mxu0 %v5383
  %v5655 = vpop.f32.mrf.mxu0
  %v5656 = vadd.f32 %v5454, %v5655
  %v5657 = vpop.f32.mrf.mxu0
  %v5658 = vadd.f32 %v5458, %v5657
  %v5659 = vpop.f32.mrf.mxu0
  %v5660 = vadd.f32 %v5454, %v5659
  %v5661 = vpop.f32.mrf.mxu0
  %v5662 = vadd.f32 %v5458, %v5661
  %5663 = vmatprep.mubr.bf16.mxu0 %v5386
  %5664 = vmatmul.mubr.bf16.gmra.mxu0 %v5385
  %v5665 = vpop.f32.mrf.mxu0
  %v5666 = vadd.f32 %v5454, %v5665
  %v5667 = vpop.f32.mrf.mxu0
  %v5668 = vadd.f32 %v5458, %v5667
  %v5669 = vpop.f32.mrf.mxu0
  %v5670 = vadd.f32 %v5454, %v5669
  %v5671 = vpop.f32.mrf.mxu0
  %v5672 = vadd.f32 %v5458, %v5671
  %5673 = vmatprep.mubr.bf16.mxu0 %v5388
  %5674 = vmatmul.mubr.bf16.gmra.mxu0 %v5387
  %v5675 = vpop.f32.mrf.mxu0
  %v5676 = vadd.f32 %v5454, %v5675
  %v5677 = vpop.f32.mrf.mxu0
  %v5678 = vadd.f32 %v5458, %v5677
  %v5679 = vpop.f32.mrf.mxu0
  %v5680 = vadd.f32 %v5454, %v5679
  %v5681 = vpop.f32.mrf.mxu0
  %v5682 = vadd.f32 %v5458, %v5681
  %5683 = vmatprep.mubr.bf16.mxu0 %v5390
  %5684 = vmatmul.mubr.bf16.gmra.mxu0 %v5389
  %v5685 = vpop.f32.mrf.mxu0
  %v5686 = vadd.f32 %v5454, %v5685
  %v5687 = vpop.f32.mrf.mxu0
  %v5688 = vadd.f32 %v5458, %v5687
  %v5689 = vpop.f32.mrf.mxu0
  %v5690 = vadd.f32 %v5454, %v5689
  %v5691 = vpop.f32.mrf.mxu0
  %v5692 = vadd.f32 %v5458, %v5691
  %5693 = vmatprep.mubr.bf16.mxu0 %v5392
  %5694 = vmatmul.mubr.bf16.gmra.mxu0 %v5391
  %v5695 = vpop.f32.mrf.mxu0
  %v5696 = vadd.f32 %v5454, %v5695
  %v5697 = vpop.f32.mrf.mxu0
  %v5698 = vadd.f32 %v5458, %v5697
  %v5699 = vpop.f32.mrf.mxu0
  %v5700 = vadd.f32 %v5454, %v5699
  %v5701 = vpop.f32.mrf.mxu0
  %v5702 = vadd.f32 %v5458, %v5701
  %5703 = vmatprep.mubr.bf16.mxu0 %v5394
  %5704 = vmatmul.mubr.bf16.gmra.mxu0 %v5393
  %v5705 = vpop.f32.mrf.mxu0
  %v5706 = vadd.f32 %v5454, %v5705
  %v5707 = vpop.f32.mrf.mxu0
  %v5708 = vadd.f32 %v5458, %v5707
  %v5709 = vpop.f32.mrf.mxu0
  %v5710 = vadd.f32 %v5454, %v5709
  %v5711 = vpop.f32.mrf.mxu0
  %v5712 = vadd.f32 %v5458, %v5711
  %5713 = vmatprep.mubr.bf16.mxu0 %v5396
  %5714 = vmatmul.mubr.bf16.gmra.mxu0 %v5395
  %v5715 = vpop.f32.mrf.mxu0
  %v5716 = vadd.f32 %v5454, %v5715
  %v5717 = vpop.f32.mrf.mxu0
  %v5718 = vadd.f32 %v5458, %v5717
  %v5719 = vpop.f32.mrf.mxu0
  %v5720 = vadd.f32 %v5454, %v5719
  %v5721 = vpop.f32.mrf.mxu0
  %v5722 = vadd.f32 %v5458, %v5721
  %5723 = vmatprep.mubr.bf16.mxu0 %v5398
  %5724 = vmatmul.mubr.bf16.gmra.mxu0 %v5397
  %v5725 = vpop.f32.mrf.mxu0
  %v5726 = vadd.f32 %v5454, %v5725
  %v5727 = vpop.f32.mrf.mxu0
  %v5728 = vadd.f32 %v5458, %v5727
  %v5729 = vpop.f32.mrf.mxu0
  %v5730 = vadd.f32 %v5454, %v5729
  %v5731 = vpop.f32.mrf.mxu0
  %v5732 = vadd.f32 %v5458, %v5731
  %5733 = vmatprep.mubr.bf16.mxu0 %v5400
  %5734 = vmatmul.mubr.bf16.gmra.mxu0 %v5399
  %v5735 = vpop.f32.mrf.mxu0
  %v5736 = vadd.f32 %v5454, %v5735
  %v5737 = vpop.f32.mrf.mxu0
  %v5738 = vadd.f32 %v5458, %v5737
  %v5739 = vpop.f32.mrf.mxu0
  %v5740 = vadd.f32 %v5454, %v5739
  %v5741 = vpop.f32.mrf.mxu0
  %v5742 = vadd.f32 %v5458, %v5741
  %5743 = vmatprep.mubr.bf16.mxu0 %v5402
  %5744 = vmatmul.mubr.bf16.gmra.mxu0 %v5401
  %v5745 = vpop.f32.mrf.mxu0
  %v5746 = vadd.f32 %v5454, %v5745
  %v5747 = vpop.f32.mrf.mxu0
  %v5748 = vadd.f32 %v5458, %v5747
  %v5749 = vpop.f32.mrf.mxu0
  %v5750 = vadd.f32 %v5454, %v5749
  %v5751 = vpop.f32.mrf.mxu0
  %v5752 = vadd.f32 %v5458, %v5751
  %5753 = vmatprep.mubr.bf16.mxu0 %v5404
  %5754 = vmatmul.mubr.bf16.gmra.mxu0 %v5403
  %v5755 = vpop.f32.mrf.mxu0
  %v5756 = vadd.f32 %v5454, %v5755
  %v5757 = vpop.f32.mrf.mxu0
  %v5758 = vadd.f32 %v5458, %v5757
  %v5759 = vpop.f32.mrf.mxu0
  %v5760 = vadd.f32 %v5454, %v5759
  %v5761 = vpop.f32.mrf.mxu0
  %v5762 = vadd.f32 %v5458, %v5761
  %5763 = vmatprep.mubr.bf16.mxu0 %v5406
  %5764 = vmatmul.mubr.bf16.gmra.mxu0 %v5405
  %v5765 = vpop.f32.mrf.mxu0
  %v5766 = vadd.f32 %v5454, %v5765
  %v5767 = vpop.f32.mrf.mxu0
  %v5768 = vadd.f32 %v5458, %v5767
  %v5769 = vpop.f32.mrf.mxu0
  %v5770 = vadd.f32 %v5454, %v5769
  %v5771 = vpop.f32.mrf.mxu0
  %v5772 = vadd.f32 %v5458, %v5771
  %5773 = vmatprep.mubr.bf16.mxu0 %v5408
  %5774 = vmatmul.mubr.bf16.gmra.mxu0 %v5407
  %v5775 = vpop.f32.mrf.mxu0
  %v5776 = vadd.f32 %v5454, %v5775
  %v5777 = vpop.f32.mrf.mxu0
  %v5778 = vadd.f32 %v5458, %v5777
  %v5779 = vpop.f32.mrf.mxu0
  %v5780 = vadd.f32 %v5454, %v5779
  %v5781 = vpop.f32.mrf.mxu0
  %v5782 = vadd.f32 %v5458, %v5781
  %5783 = vmatprep.mubr.bf16.mxu0 %v5410
  %5784 = vmatmul.mubr.bf16.gmra.mxu0 %v5409
  %v5785 = vpop.f32.mrf.mxu0
  %v5786 = vadd.f32 %v5454, %v5785
  %v5787 = vpop.f32.mrf.mxu0
  %v5788 = vadd.f32 %v5458, %v5787
  %v5789 = vpop.f32.mrf.mxu0
  %v5790 = vadd.f32 %v5454, %v5789
  %v5791 = vpop.f32.mrf.mxu0
  %v5792 = vadd.f32 %v5458, %v5791
  %5793 = vmatprep.mubr.bf16.mxu0 %v5412
  %5794 = vmatmul.mubr.bf16.gmra.mxu0 %v5411
  %v5795 = vpop.f32.mrf.mxu0
  %v5796 = vadd.f32 %v5454, %v5795
  %v5797 = vpop.f32.mrf.mxu0
  %v5798 = vadd.f32 %v5458, %v5797
  %v5799 = vpop.f32.mrf.mxu0
  %v5800 = vadd.f32 %v5454, %v5799
  %v5801 = vpop.f32.mrf.mxu0
  %v5802 = vadd.f32 %v5458, %v5801
  %5803 = vmatprep.mubr.bf16.mxu0 %v5414
  %5804 = vmatmul.mubr.bf16.gmra.mxu0 %v5413
  %v5805 = vpop.f32.mrf.mxu0
  %v5806 = vadd.f32 %v5454, %v5805
  %v5807 = vpop.f32.mrf.mxu0
  %v5808 = vadd.f32 %v5458, %v5807
  %v5809 = vpop.f32.mrf.mxu0
  %v5810 = vadd.f32 %v5454, %v5809
  %v5811 = vpop.f32.mrf.mxu0
  %v5812 = vadd.f32 %v5458, %v5811
  %5813 = vdwg.mxu0
  %v5814 = vpack.c.bf16 %v5660, %v5656
  %v5815 = vpack.c.bf16 %v5662, %v5658
  %v5816 = vpack.c.bf16 %v5670, %v5666
  %v5817 = vpack.c.bf16 %v5672, %v5668
  %v5818 = vpack.c.bf16 %v5680, %v5676
  %v5819 = vpack.c.bf16 %v5682, %v5678
  %v5820 = vpack.c.bf16 %v5690, %v5686
  %v5821 = vpack.c.bf16 %v5692, %v5688
  %v5822 = vpack.c.bf16 %v5700, %v5696
  %v5823 = vpack.c.bf16 %v5702, %v5698
  %v5824 = vpack.c.bf16 %v5710, %v5706
  %v5825 = vpack.c.bf16 %v5712, %v5708
  %v5826 = vpack.c.bf16 %v5720, %v5716
  %v5827 = vpack.c.bf16 %v5722, %v5718
  %v5828 = vpack.c.bf16 %v5730, %v5726
  %v5829 = vpack.c.bf16 %v5732, %v5728
  %v5830 = vpack.c.bf16 %v5740, %v5736
  %v5831 = vpack.c.bf16 %v5742, %v5738
  %v5832 = vpack.c.bf16 %v5750, %v5746
  %v5833 = vpack.c.bf16 %v5752, %v5748
  %v5834 = vpack.c.bf16 %v5760, %v5756
  %v5835 = vpack.c.bf16 %v5762, %v5758
  %v5836 = vpack.c.bf16 %v5770, %v5766
  %v5837 = vpack.c.bf16 %v5772, %v5768
  %v5838 = vpack.c.bf16 %v5780, %v5776
  %v5839 = vpack.c.bf16 %v5782, %v5778
  %v5840 = vpack.c.bf16 %v5790, %v5786
  %v5841 = vpack.c.bf16 %v5792, %v5788
  %v5842 = vpack.c.bf16 %v5800, %v5796
  %v5843 = vpack.c.bf16 %v5802, %v5798
  %v5844 = vpack.c.bf16 %v5810, %v5806
  %v5845 = vpack.c.bf16 %v5812, %v5808
  %v5846 = vld [vmem:[%s6] sm:$0xf]
  %v5847 = vld [vmem:[%s6 + $0x4] sm:$0xf]
  %v5848 = vld [vmem:[%s6 + $0x8] sm:$0xf]
  %v5849 = vld [vmem:[%s6 + $0xc] sm:$0xf]
  %v5850 = vld [vmem:[%s6 + $0x10] sm:$0xf]
  %v5851 = vld [vmem:[%s6 + $0x14] sm:$0xf]
  %v5852 = vld [vmem:[%s6 + $0x18] sm:$0xf]
  %v5853 = vld [vmem:[%s6 + $0x1c] sm:$0xf]
  %v5854 = vld [vmem:[%s6 + $0x20] sm:$0xf]
  %v5855 = vld [vmem:[%s6 + $0x24] sm:$0xf]
  %v5856 = vld [vmem:[%s6 + $0x28] sm:$0xf]
  %v5857 = vld [vmem:[%s6 + $0x2c] sm:$0xf]
  %v5858 = vld [vmem:[%s6 + $0x30] sm:$0xf]
  %v5859 = vld [vmem:[%s6 + $0x34] sm:$0xf]
  %v5860 = vld [vmem:[%s6 + $0x38] sm:$0xf]
  %v5861 = vld [vmem:[%s6 + $0x3c] sm:$0xf]
  %v5862 = vld [vmem:[%s6 + $0x40] sm:$0xf]
  %v5863 = vld [vmem:[%s6 + $0x44] sm:$0xf]
  %v5864 = vld [vmem:[%s6 + $0x48] sm:$0xf]
  %v5865 = vld [vmem:[%s6 + $0x4c] sm:$0xf]
  %v5866 = vld [vmem:[%s6 + $0x50] sm:$0xf]
  %v5867 = vld [vmem:[%s6 + $0x54] sm:$0xf]
  %v5868 = vld [vmem:[%s6 + $0x58] sm:$0xf]
  %v5869 = vld [vmem:[%s6 + $0x5c] sm:$0xf]
  %v5870 = vld [vmem:[%s6 + $0x60] sm:$0xf]
  %v5871 = vld [vmem:[%s6 + $0x64] sm:$0xf]
  %v5872 = vld [vmem:[%s6 + $0x68] sm:$0xf]
  %v5873 = vld [vmem:[%s6 + $0x6c] sm:$0xf]
  %v5874 = vld [vmem:[%s6 + $0x70] sm:$0xf]
  %v5875 = vld [vmem:[%s6 + $0x74] sm:$0xf]
  %v5876 = vld [vmem:[%s6 + $0x78] sm:$0xf]
  %v5877 = vld [vmem:[%s6 + $0x7c] sm:$0xf]
  %v5878 = vld [vmem:[%s7] sm:$0xf]
  %v5879 = vld [vmem:[%s7 + $0x4] sm:$0xf]
  %v5880 = vld [vmem:[%s7 + $0x8] sm:$0xf]
  %v5881 = vld [vmem:[%s7 + $0xc] sm:$0xf]
  %v5914 = vunpack.c.l.b16 %v103
  %v5915 = vunpack.c.l.b16 %v104
  %v5916 = vunpack.c.l.b16 %v105
  %v5917 = vunpack.c.l.b16 %v106
  %v5918 = vunpack.c.l.b16 %v107
  %v5919 = vunpack.c.l.b16 %v108
  %v5920 = vunpack.c.l.b16 %v109
  %v5921 = vunpack.c.l.b16 %v110
  %v5922 = vunpack.c.l.b16 %v111
  %v5923 = vunpack.c.l.b16 %v112
  %v5924 = vunpack.c.l.b16 %v113
  %v5925 = vunpack.c.l.b16 %v114
  %v5926 = vunpack.c.l.b16 %v115
  %v5927 = vunpack.c.l.b16 %v116
  %v5928 = vunpack.c.l.b16 %v117
  %v5929 = vunpack.c.l.b16 %v118
  %v5930 = vunpack.c.l.b16 %v119
  %v5931 = vunpack.c.l.b16 %v120
  %v5932 = vunpack.c.l.b16 %v121
  %v5933 = vunpack.c.l.b16 %v122
  %v5934 = vunpack.c.l.b16 %v123
  %v5935 = vunpack.c.l.b16 %v124
  %v5936 = vunpack.c.l.b16 %v125
  %v5937 = vunpack.c.l.b16 %v126
  %v5938 = vunpack.c.l.b16 %v127
  %v5939 = vunpack.c.l.b16 %v128
  %v5940 = vunpack.c.l.b16 %v129
  %v5941 = vunpack.c.l.b16 %v130
  %v5942 = vunpack.c.l.b16 %v131
  %v5943 = vunpack.c.l.b16 %v132
  %v5944 = vunpack.c.l.b16 %v133
  %v5945 = vunpack.c.l.b16 %v134
  %v5946 = vpack.c.b16 %v5915, %v5914
  %v5947 = vpack.c.b16 %v5917, %v5916
  %v5948 = vpack.c.b16 %v5919, %v5918
  %v5949 = vpack.c.b16 %v5921, %v5920
  %v5950 = vpack.c.b16 %v5923, %v5922
  %v5951 = vpack.c.b16 %v5925, %v5924
  %v5952 = vpack.c.b16 %v5927, %v5926
  %v5953 = vpack.c.b16 %v5929, %v5928
  %v5954 = vpack.c.b16 %v5931, %v5930
  %v5955 = vpack.c.b16 %v5933, %v5932
  %v5956 = vpack.c.b16 %v5935, %v5934
  %v5957 = vpack.c.b16 %v5937, %v5936
  %v5958 = vpack.c.b16 %v5939, %v5938
  %v5959 = vpack.c.b16 %v5941, %v5940
  %v5960 = vpack.c.b16 %v5943, %v5942
  %v5961 = vpack.c.b16 %v5945, %v5944
  %v5966 = vunpack.c.l.b16 %v5878
  %v5967 = vunpack.c.l.b16 %v5879
  %v5968 = vunpack.c.l.b16 %v5880
  %v5969 = vunpack.c.l.b16 %v5881
  %v5970 = vpack.c.b16 %v5967, %v5966
  %v5971 = vpack.c.b16 %v5969, %v5968
  %vm5974 = vcmask 261120
  %v5976 = vsel %vm5974, %v5946, 0
  %v5979 = vsel %vm5974, %v5947, 0
  %v5982 = vsel %vm5974, %v5948, 0
  %v5985 = vsel %vm5974, %v5949, 0
  %v5988 = vsel %vm5974, %v5950, 0
  %v5991 = vsel %vm5974, %v5951, 0
  %v5994 = vsel %vm5974, %v5952, 0
  %v5997 = vsel %vm5974, %v5953, 0
  %v6000 = vsel %vm5974, %v5954, 0
  %v6003 = vsel %vm5974, %v5955, 0
  %v6006 = vsel %vm5974, %v5956, 0
  %v6009 = vsel %vm5974, %v5957, 0
  %v6012 = vsel %vm5974, %v5958, 0
  %v6015 = vsel %vm5974, %v5959, 0
  %v6018 = vsel %vm5974, %v5960, 0
  %v6021 = vsel %vm5974, %v5961, 0
  %6023 = vmatprep.subr.bf16.mxu0 0
  %6024 = vmatpush1.bf16.msra.mxu0 0
  %6025 = vmatprep.subr.bf16.mxu0 0
  %6026 = vmatpush1.bf16.msra.mxu0 0
  %6027 = vmatprep.subr.bf16.mxu0 0
  %6028 = vmatpush1.bf16.msra.mxu0 0
  %6029 = vmatprep.subr.bf16.mxu0 0
  %6030 = vmatpush1.bf16.msra.mxu0 0
  %6031 = vmatprep.subr.bf16.mxu0 0
  %6032 = vmatpush1.bf16.msra.mxu0 0
  %6033 = vmatprep.subr.bf16.mxu0 0
  %6034 = vmatpush1.bf16.msra.mxu0 0
  %6035 = vmatprep.subr.bf16.mxu0 0
  %6036 = vmatpush1.bf16.msra.mxu0 %v5971
  %6037 = vmatprep.subr.bf16.mxu0 0
  %6038 = vmatpush1.bf16.msra.mxu0 %v5970
  %6039 = vmatprep.subr.bf16.mxu0 0
  %6040 = vmatpush2.bf16.msra.mxu0 0
  %6041 = vmatprep.subr.bf16.mxu0 0
  %6042 = vmatpush2.bf16.msra.mxu0 0
  %6043 = vmatprep.subr.bf16.mxu0 0
  %6044 = vmatpush2.bf16.msra.mxu0 0
  %6045 = vmatprep.subr.bf16.mxu0 0
  %6046 = vmatpush2.bf16.msra.mxu0 0
  %6047 = vmatprep.subr.bf16.mxu0 0
  %6048 = vmatpush2.bf16.msra.mxu0 0
  %6049 = vmatprep.subr.bf16.mxu0 0
  %6050 = vmatpush2.bf16.msra.mxu0 0
  %6051 = vmatprep.subr.bf16.mxu0 0
  %6052 = vmatpush2.bf16.msra.mxu0 0
  %6053 = vmatprep.subr.bf16.mxu0 0
  %6054 = vmatpush2.bf16.msra.mxu0 0
  %6055 = vmatprep.mubr.bf16.mxu0 0
  %6056 = vmatmul.mubr.bf16.gmra.mxu0 %v5976
  %v6057 = vpop.f32.mrf.mxu0
  %v6058 = vadd.f32 0.0, %v6057
  %v6059 = vpop.f32.mrf.mxu0
  %v6060 = vpop.f32.mrf.mxu0
  %v6061 = vadd.f32 0.0, %v6060
  %v6062 = vpop.f32.mrf.mxu0
  %6063 = vmatprep.mubr.bf16.mxu0 0
  %6064 = vmatmul.mubr.bf16.gmra.mxu0 %v5979
  %v6065 = vpop.f32.mrf.mxu0
  %v6066 = vadd.f32 0.0, %v6065
  %v6067 = vpop.f32.mrf.mxu0
  %v6068 = vpop.f32.mrf.mxu0
  %v6069 = vadd.f32 0.0, %v6068
  %v6070 = vpop.f32.mrf.mxu0
  %6071 = vmatprep.mubr.bf16.mxu0 0
  %6072 = vmatmul.mubr.bf16.gmra.mxu0 %v5982
  %v6073 = vpop.f32.mrf.mxu0
  %v6074 = vadd.f32 0.0, %v6073
  %v6075 = vpop.f32.mrf.mxu0
  %v6076 = vpop.f32.mrf.mxu0
  %v6077 = vadd.f32 0.0, %v6076
  %v6078 = vpop.f32.mrf.mxu0
  %6079 = vmatprep.mubr.bf16.mxu0 0
  %6080 = vmatmul.mubr.bf16.gmra.mxu0 %v5985
  %v6081 = vpop.f32.mrf.mxu0
  %v6082 = vadd.f32 0.0, %v6081
  %v6083 = vpop.f32.mrf.mxu0
  %v6084 = vpop.f32.mrf.mxu0
  %v6085 = vadd.f32 0.0, %v6084
  %v6086 = vpop.f32.mrf.mxu0
  %6087 = vmatprep.mubr.bf16.mxu0 0
  %6088 = vmatmul.mubr.bf16.gmra.mxu0 %v5988
  %v6089 = vpop.f32.mrf.mxu0
  %v6090 = vadd.f32 0.0, %v6089
  %v6091 = vpop.f32.mrf.mxu0
  %v6092 = vpop.f32.mrf.mxu0
  %v6093 = vadd.f32 0.0, %v6092
  %v6094 = vpop.f32.mrf.mxu0
  %6095 = vmatprep.mubr.bf16.mxu0 0
  %6096 = vmatmul.mubr.bf16.gmra.mxu0 %v5991
  %v6097 = vpop.f32.mrf.mxu0
  %v6098 = vadd.f32 0.0, %v6097
  %v6099 = vpop.f32.mrf.mxu0
  %v6100 = vpop.f32.mrf.mxu0
  %v6101 = vadd.f32 0.0, %v6100
  %v6102 = vpop.f32.mrf.mxu0
  %6103 = vmatprep.mubr.bf16.mxu0 0
  %6104 = vmatmul.mubr.bf16.gmra.mxu0 %v5994
  %v6105 = vpop.f32.mrf.mxu0
  %v6106 = vadd.f32 0.0, %v6105
  %v6107 = vpop.f32.mrf.mxu0
  %v6108 = vpop.f32.mrf.mxu0
  %v6109 = vadd.f32 0.0, %v6108
  %v6110 = vpop.f32.mrf.mxu0
  %6111 = vmatprep.mubr.bf16.mxu0 0
  %6112 = vmatmul.mubr.bf16.gmra.mxu0 %v5997
  %v6113 = vpop.f32.mrf.mxu0
  %v6114 = vadd.f32 0.0, %v6113
  %v6115 = vpop.f32.mrf.mxu0
  %v6116 = vpop.f32.mrf.mxu0
  %v6117 = vadd.f32 0.0, %v6116
  %v6118 = vpop.f32.mrf.mxu0
  %6119 = vmatprep.mubr.bf16.mxu0 0
  %6120 = vmatmul.mubr.bf16.gmra.mxu0 %v6000
  %v6121 = vpop.f32.mrf.mxu0
  %v6122 = vadd.f32 0.0, %v6121
  %v6123 = vpop.f32.mrf.mxu0
  %v6124 = vpop.f32.mrf.mxu0
  %v6125 = vadd.f32 0.0, %v6124
  %v6126 = vpop.f32.mrf.mxu0
  %6127 = vmatprep.mubr.bf16.mxu0 0
  %6128 = vmatmul.mubr.bf16.gmra.mxu0 %v6003
  %v6129 = vpop.f32.mrf.mxu0
  %v6130 = vadd.f32 0.0, %v6129
  %v6131 = vpop.f32.mrf.mxu0
  %v6132 = vpop.f32.mrf.mxu0
  %v6133 = vadd.f32 0.0, %v6132
  %v6134 = vpop.f32.mrf.mxu0
  %6135 = vmatprep.mubr.bf16.mxu0 0
  %6136 = vmatmul.mubr.bf16.gmra.mxu0 %v6006
  %v6137 = vpop.f32.mrf.mxu0
  %v6138 = vadd.f32 0.0, %v6137
  %v6139 = vpop.f32.mrf.mxu0
  %v6140 = vpop.f32.mrf.mxu0
  %v6141 = vadd.f32 0.0, %v6140
  %v6142 = vpop.f32.mrf.mxu0
  %6143 = vmatprep.mubr.bf16.mxu0 0
  %6144 = vmatmul.mubr.bf16.gmra.mxu0 %v6009
  %v6145 = vpop.f32.mrf.mxu0
  %v6146 = vadd.f32 0.0, %v6145
  %v6147 = vpop.f32.mrf.mxu0
  %v6148 = vpop.f32.mrf.mxu0
  %v6149 = vadd.f32 0.0, %v6148
  %v6150 = vpop.f32.mrf.mxu0
  %6151 = vmatprep.mubr.bf16.mxu0 0
  %6152 = vmatmul.mubr.bf16.gmra.mxu0 %v6012
  %v6153 = vpop.f32.mrf.mxu0
  %v6154 = vadd.f32 0.0, %v6153
  %v6155 = vpop.f32.mrf.mxu0
  %v6156 = vpop.f32.mrf.mxu0
  %v6157 = vadd.f32 0.0, %v6156
  %v6158 = vpop.f32.mrf.mxu0
  %6159 = vmatprep.mubr.bf16.mxu0 0
  %6160 = vmatmul.mubr.bf16.gmra.mxu0 %v6015
  %v6161 = vpop.f32.mrf.mxu0
  %v6162 = vadd.f32 0.0, %v6161
  %v6163 = vpop.f32.mrf.mxu0
  %v6164 = vpop.f32.mrf.mxu0
  %v6165 = vadd.f32 0.0, %v6164
  %v6166 = vpop.f32.mrf.mxu0
  %6167 = vmatprep.mubr.bf16.mxu0 0
  %6168 = vmatmul.mubr.bf16.gmra.mxu0 %v6018
  %v6169 = vpop.f32.mrf.mxu0
  %v6170 = vadd.f32 0.0, %v6169
  %v6171 = vpop.f32.mrf.mxu0
  %v6172 = vpop.f32.mrf.mxu0
  %v6173 = vadd.f32 0.0, %v6172
  %v6174 = vpop.f32.mrf.mxu0
  %6175 = vmatprep.mubr.bf16.mxu0 0
  %6176 = vmatmul.mubr.bf16.gmra.mxu0 %v6021
  %v6177 = vpop.f32.mrf.mxu0
  %v6178 = vadd.f32 0.0, %v6177
  %v6179 = vpop.f32.mrf.mxu0
  %v6180 = vpop.f32.mrf.mxu0
  %v6181 = vadd.f32 0.0, %v6180
  %v6182 = vpop.f32.mrf.mxu0
  %6183 = vdwg.mxu0
  %v6216 = vunpack.c.l.b16 %v5846
  %v6217 = vunpack.c.l.b16 %v5847
  %v6218 = vunpack.c.l.b16 %v5848
  %v6219 = vunpack.c.l.b16 %v5849
  %v6220 = vunpack.c.l.b16 %v5850
  %v6221 = vunpack.c.l.b16 %v5851
  %v6222 = vunpack.c.l.b16 %v5852
  %v6223 = vunpack.c.l.b16 %v5853
  %v6224 = vunpack.c.l.b16 %v5854
  %v6225 = vunpack.c.l.b16 %v5855
  %v6226 = vunpack.c.l.b16 %v5856
  %v6227 = vunpack.c.l.b16 %v5857
  %v6228 = vunpack.c.l.b16 %v5858
  %v6229 = vunpack.c.l.b16 %v5859
  %v6230 = vunpack.c.l.b16 %v5860
  %v6231 = vunpack.c.l.b16 %v5861
  %v6232 = vunpack.c.l.b16 %v5862
  %v6233 = vunpack.c.l.b16 %v5863
  %v6234 = vunpack.c.l.b16 %v5864
  %v6235 = vunpack.c.l.b16 %v5865
  %v6236 = vunpack.c.l.b16 %v5866
  %v6237 = vunpack.c.l.b16 %v5867
  %v6238 = vunpack.c.l.b16 %v5868
  %v6239 = vunpack.c.l.b16 %v5869
  %v6240 = vunpack.c.l.b16 %v5870
  %v6241 = vunpack.c.l.b16 %v5871
  %v6242 = vunpack.c.l.b16 %v5872
  %v6243 = vunpack.c.l.b16 %v5873
  %v6244 = vunpack.c.l.b16 %v5874
  %v6245 = vunpack.c.l.b16 %v5875
  %v6246 = vunpack.c.l.b16 %v5876
  %v6247 = vunpack.c.l.b16 %v5877
  %v6248 = vpack.c.b16 %v6217, %v6216
  %v6249 = vpack.c.b16 %v6219, %v6218
  %v6250 = vpack.c.b16 %v6221, %v6220
  %v6251 = vpack.c.b16 %v6223, %v6222
  %v6252 = vpack.c.b16 %v6225, %v6224
  %v6253 = vpack.c.b16 %v6227, %v6226
  %v6254 = vpack.c.b16 %v6229, %v6228
  %v6255 = vpack.c.b16 %v6231, %v6230
  %v6256 = vpack.c.b16 %v6233, %v6232
  %v6257 = vpack.c.b16 %v6235, %v6234
  %v6258 = vpack.c.b16 %v6237, %v6236
  %v6259 = vpack.c.b16 %v6239, %v6238
  %v6260 = vpack.c.b16 %v6241, %v6240
  %v6261 = vpack.c.b16 %v6243, %v6242
  %v6262 = vpack.c.b16 %v6245, %v6244
  %v6263 = vpack.c.b16 %v6247, %v6246
  %6280 = vmatprep.subr.bf16.mxu0 0
  %6281 = vmatpush1.bf16.msra.mxu0 %v6255
  %6282 = vmatprep.subr.bf16.mxu0 0
  %6283 = vmatpush1.bf16.msra.mxu0 %v6254
  %6284 = vmatprep.subr.bf16.mxu0 0
  %6285 = vmatpush1.bf16.msra.mxu0 %v6253
  %6286 = vmatprep.subr.bf16.mxu0 0
  %6287 = vmatpush1.bf16.msra.mxu0 %v6252
  %6288 = vmatprep.subr.bf16.mxu0 0
  %6289 = vmatpush1.bf16.msra.mxu0 %v6251
  %6290 = vmatprep.subr.bf16.mxu0 0
  %6291 = vmatpush1.bf16.msra.mxu0 %v6250
  %6292 = vmatprep.subr.bf16.mxu0 0
  %6293 = vmatpush1.bf16.msra.mxu0 %v6249
  %6294 = vmatprep.subr.bf16.mxu0 0
  %6295 = vmatpush1.bf16.msra.mxu0 %v6248
  %6296 = vmatprep.subr.bf16.mxu0 0
  %6297 = vmatpush2.bf16.msra.mxu0 %v6263
  %6298 = vmatprep.subr.bf16.mxu0 0
  %6299 = vmatpush2.bf16.msra.mxu0 %v6262
  %6300 = vmatprep.subr.bf16.mxu0 0
  %6301 = vmatpush2.bf16.msra.mxu0 %v6261
  %6302 = vmatprep.subr.bf16.mxu0 0
  %6303 = vmatpush2.bf16.msra.mxu0 %v6260
  %6304 = vmatprep.subr.bf16.mxu0 0
  %6305 = vmatpush2.bf16.msra.mxu0 %v6259
  %6306 = vmatprep.subr.bf16.mxu0 0
  %6307 = vmatpush2.bf16.msra.mxu0 %v6258
  %6308 = vmatprep.subr.bf16.mxu0 0
  %6309 = vmatpush2.bf16.msra.mxu0 %v6257
  %6310 = vmatprep.subr.bf16.mxu0 0
  %6311 = vmatpush2.bf16.msra.mxu0 %v6256
  %6312 = vmatprep.mubr.bf16.mxu0 %v5815
  %6313 = vmatmul.mubr.bf16.gmra.mxu0 %v5814
  %v6314 = vpop.f32.mrf.mxu0
  %v6315 = vadd.f32 %v6058, %v6314
  %v6316 = vpop.f32.mrf.mxu0
  %v6317 = vpop.f32.mrf.mxu0
  %v6318 = vadd.f32 %v6061, %v6317
  %v6319 = vpop.f32.mrf.mxu0
  %6320 = vmatprep.mubr.bf16.mxu0 %v5817
  %6321 = vmatmul.mubr.bf16.gmra.mxu0 %v5816
  %v6322 = vpop.f32.mrf.mxu0
  %v6323 = vadd.f32 %v6066, %v6322
  %v6324 = vpop.f32.mrf.mxu0
  %v6325 = vpop.f32.mrf.mxu0
  %v6326 = vadd.f32 %v6069, %v6325
  %v6327 = vpop.f32.mrf.mxu0
  %6328 = vmatprep.mubr.bf16.mxu0 %v5819
  %6329 = vmatmul.mubr.bf16.gmra.mxu0 %v5818
  %v6330 = vpop.f32.mrf.mxu0
  %v6331 = vadd.f32 %v6074, %v6330
  %v6332 = vpop.f32.mrf.mxu0
  %v6333 = vpop.f32.mrf.mxu0
  %v6334 = vadd.f32 %v6077, %v6333
  %v6335 = vpop.f32.mrf.mxu0
  %6336 = vmatprep.mubr.bf16.mxu0 %v5821
  %6337 = vmatmul.mubr.bf16.gmra.mxu0 %v5820
  %v6338 = vpop.f32.mrf.mxu0
  %v6339 = vadd.f32 %v6082, %v6338
  %v6340 = vpop.f32.mrf.mxu0
  %v6341 = vpop.f32.mrf.mxu0
  %v6342 = vadd.f32 %v6085, %v6341
  %v6343 = vpop.f32.mrf.mxu0
  %6344 = vmatprep.mubr.bf16.mxu0 %v5823
  %6345 = vmatmul.mubr.bf16.gmra.mxu0 %v5822
  %v6346 = vpop.f32.mrf.mxu0
  %v6347 = vadd.f32 %v6090, %v6346
  %v6348 = vpop.f32.mrf.mxu0
  %v6349 = vpop.f32.mrf.mxu0
  %v6350 = vadd.f32 %v6093, %v6349
  %v6351 = vpop.f32.mrf.mxu0
  %6352 = vmatprep.mubr.bf16.mxu0 %v5825
  %6353 = vmatmul.mubr.bf16.gmra.mxu0 %v5824
  %v6354 = vpop.f32.mrf.mxu0
  %v6355 = vadd.f32 %v6098, %v6354
  %v6356 = vpop.f32.mrf.mxu0
  %v6357 = vpop.f32.mrf.mxu0
  %v6358 = vadd.f32 %v6101, %v6357
  %v6359 = vpop.f32.mrf.mxu0
  %6360 = vmatprep.mubr.bf16.mxu0 %v5827
  %6361 = vmatmul.mubr.bf16.gmra.mxu0 %v5826
  %v6362 = vpop.f32.mrf.mxu0
  %v6363 = vadd.f32 %v6106, %v6362
  %v6364 = vpop.f32.mrf.mxu0
  %v6365 = vpop.f32.mrf.mxu0
  %v6366 = vadd.f32 %v6109, %v6365
  %v6367 = vpop.f32.mrf.mxu0
  %6368 = vmatprep.mubr.bf16.mxu0 %v5829
  %6369 = vmatmul.mubr.bf16.gmra.mxu0 %v5828
  %v6370 = vpop.f32.mrf.mxu0
  %v6371 = vadd.f32 %v6114, %v6370
  %v6372 = vpop.f32.mrf.mxu0
  %v6373 = vpop.f32.mrf.mxu0
  %v6374 = vadd.f32 %v6117, %v6373
  %v6375 = vpop.f32.mrf.mxu0
  %6376 = vmatprep.mubr.bf16.mxu0 %v5831
  %6377 = vmatmul.mubr.bf16.gmra.mxu0 %v5830
  %v6378 = vpop.f32.mrf.mxu0
  %v6379 = vadd.f32 %v6122, %v6378
  %v6380 = vpop.f32.mrf.mxu0
  %v6381 = vpop.f32.mrf.mxu0
  %v6382 = vadd.f32 %v6125, %v6381
  %v6383 = vpop.f32.mrf.mxu0
  %6384 = vmatprep.mubr.bf16.mxu0 %v5833
  %6385 = vmatmul.mubr.bf16.gmra.mxu0 %v5832
  %v6386 = vpop.f32.mrf.mxu0
  %v6387 = vadd.f32 %v6130, %v6386
  %v6388 = vpop.f32.mrf.mxu0
  %v6389 = vpop.f32.mrf.mxu0
  %v6390 = vadd.f32 %v6133, %v6389
  %v6391 = vpop.f32.mrf.mxu0
  %6392 = vmatprep.mubr.bf16.mxu0 %v5835
  %6393 = vmatmul.mubr.bf16.gmra.mxu0 %v5834
  %v6394 = vpop.f32.mrf.mxu0
  %v6395 = vadd.f32 %v6138, %v6394
  %v6396 = vpop.f32.mrf.mxu0
  %v6397 = vpop.f32.mrf.mxu0
  %v6398 = vadd.f32 %v6141, %v6397
  %v6399 = vpop.f32.mrf.mxu0
  %6400 = vmatprep.mubr.bf16.mxu0 %v5837
  %6401 = vmatmul.mubr.bf16.gmra.mxu0 %v5836
  %v6402 = vpop.f32.mrf.mxu0
  %v6403 = vadd.f32 %v6146, %v6402
  %v6404 = vpop.f32.mrf.mxu0
  %v6405 = vpop.f32.mrf.mxu0
  %v6406 = vadd.f32 %v6149, %v6405
  %v6407 = vpop.f32.mrf.mxu0
  %6408 = vmatprep.mubr.bf16.mxu0 %v5839
  %6409 = vmatmul.mubr.bf16.gmra.mxu0 %v5838
  %v6410 = vpop.f32.mrf.mxu0
  %v6411 = vadd.f32 %v6154, %v6410
  %v6412 = vpop.f32.mrf.mxu0
  %v6413 = vpop.f32.mrf.mxu0
  %v6414 = vadd.f32 %v6157, %v6413
  %v6415 = vpop.f32.mrf.mxu0
  %6416 = vmatprep.mubr.bf16.mxu0 %v5841
  %6417 = vmatmul.mubr.bf16.gmra.mxu0 %v5840
  %v6418 = vpop.f32.mrf.mxu0
  %v6419 = vadd.f32 %v6162, %v6418
  %v6420 = vpop.f32.mrf.mxu0
  %v6421 = vpop.f32.mrf.mxu0
  %v6422 = vadd.f32 %v6165, %v6421
  %v6423 = vpop.f32.mrf.mxu0
  %6424 = vmatprep.mubr.bf16.mxu0 %v5843
  %6425 = vmatmul.mubr.bf16.gmra.mxu0 %v5842
  %v6426 = vpop.f32.mrf.mxu0
  %v6427 = vadd.f32 %v6170, %v6426
  %v6428 = vpop.f32.mrf.mxu0
  %v6429 = vpop.f32.mrf.mxu0
  %v6430 = vadd.f32 %v6173, %v6429
  %v6431 = vpop.f32.mrf.mxu0
  %6432 = vmatprep.mubr.bf16.mxu0 %v5845
  %6433 = vmatmul.mubr.bf16.gmra.mxu0 %v5844
  %v6434 = vpop.f32.mrf.mxu0
  %v6435 = vadd.f32 %v6178, %v6434
  %v6436 = vpop.f32.mrf.mxu0
  %v6437 = vpop.f32.mrf.mxu0
  %v6438 = vadd.f32 %v6181, %v6437
  %v6439 = vpop.f32.mrf.mxu0
  %6440 = vdwg.mxu0
  %v6441 = vld [vmem:[%s8 + $0x12] ss:$0 sm:$0xff]
  %v6442 = vadd.f32 %v6315, %v6441
  %v6443 = vadd.f32 %v6318, %v6441
  %v6444 = vadd.f32 %v6323, %v6441
  %v6445 = vadd.f32 %v6326, %v6441
  %v6446 = vadd.f32 %v6331, %v6441
  %v6447 = vadd.f32 %v6334, %v6441
  %v6448 = vadd.f32 %v6339, %v6441
  %v6449 = vadd.f32 %v6342, %v6441
  %v6450 = vadd.f32 %v6347, %v6441
  %v6451 = vadd.f32 %v6350, %v6441
  %v6452 = vadd.f32 %v6355, %v6441
  %v6453 = vadd.f32 %v6358, %v6441
  %v6454 = vadd.f32 %v6363, %v6441
  %v6455 = vadd.f32 %v6366, %v6441
  %v6456 = vadd.f32 %v6371, %v6441
  %v6457 = vadd.f32 %v6374, %v6441
  %v6458 = vadd.f32 %v6379, %v6441
  %v6459 = vadd.f32 %v6382, %v6441
  %v6460 = vadd.f32 %v6387, %v6441
  %v6461 = vadd.f32 %v6390, %v6441
  %v6462 = vadd.f32 %v6395, %v6441
  %v6463 = vadd.f32 %v6398, %v6441
  %v6464 = vadd.f32 %v6403, %v6441
  %v6465 = vadd.f32 %v6406, %v6441
  %v6466 = vadd.f32 %v6411, %v6441
  %v6467 = vadd.f32 %v6414, %v6441
  %v6468 = vadd.f32 %v6419, %v6441
  %v6469 = vadd.f32 %v6422, %v6441
  %v6470 = vadd.f32 %v6427, %v6441
  %v6471 = vadd.f32 %v6430, %v6441
  %v6472 = vadd.f32 %v6435, %v6441
  %v6473 = vadd.f32 %v6438, %v6441
  %v6474 = vmax.f32 %v6442, 0.0
  %v6475 = vmax.f32 %v6443, 0.0
  %v6476 = vmax.f32 %v6444, 0.0
  %v6477 = vmax.f32 %v6445, 0.0
  %v6478 = vmax.f32 %v6446, 0.0
  %v6479 = vmax.f32 %v6447, 0.0
  %v6480 = vmax.f32 %v6448, 0.0
  %v6481 = vmax.f32 %v6449, 0.0
  %v6482 = vmax.f32 %v6450, 0.0
  %v6483 = vmax.f32 %v6451, 0.0
  %v6484 = vmax.f32 %v6452, 0.0
  %v6485 = vmax.f32 %v6453, 0.0
  %v6486 = vmax.f32 %v6454, 0.0
  %v6487 = vmax.f32 %v6455, 0.0
  %v6488 = vmax.f32 %v6456, 0.0
  %v6489 = vmax.f32 %v6457, 0.0
  %v6490 = vmax.f32 %v6458, 0.0
  %v6491 = vmax.f32 %v6459, 0.0
  %v6492 = vmax.f32 %v6460, 0.0
  %v6493 = vmax.f32 %v6461, 0.0
  %v6494 = vmax.f32 %v6462, 0.0
  %v6495 = vmax.f32 %v6463, 0.0
  %v6496 = vmax.f32 %v6464, 0.0
  %v6497 = vmax.f32 %v6465, 0.0
  %v6498 = vmax.f32 %v6466, 0.0
  %v6499 = vmax.f32 %v6467, 0.0
  %v6500 = vmax.f32 %v6468, 0.0
  %v6501 = vmax.f32 %v6469, 0.0
  %v6502 = vmax.f32 %v6470, 0.0
  %v6503 = vmax.f32 %v6471, 0.0
  %v6504 = vmax.f32 %v6472, 0.0
  %v6505 = vmax.f32 %v6473, 0.0
  %v6506 = vld [vmem:[%s9 + $0x1] ss:$0 sm:$0xff]
  %v6507 = vmul.f32 %v6474, %v6506
  %v6508 = vmul.f32 %v6475, %v6506
  %v6509 = vmul.f32 %v6476, %v6506
  %v6510 = vmul.f32 %v6477, %v6506
  %v6511 = vmul.f32 %v6478, %v6506
  %v6512 = vmul.f32 %v6479, %v6506
  %v6513 = vmul.f32 %v6480, %v6506
  %v6514 = vmul.f32 %v6481, %v6506
  %v6515 = vmul.f32 %v6482, %v6506
  %v6516 = vmul.f32 %v6483, %v6506
  %v6517 = vmul.f32 %v6484, %v6506
  %v6518 = vmul.f32 %v6485, %v6506
  %v6519 = vmul.f32 %v6486, %v6506
  %v6520 = vmul.f32 %v6487, %v6506
  %v6521 = vmul.f32 %v6488, %v6506
  %v6522 = vmul.f32 %v6489, %v6506
  %v6523 = vmul.f32 %v6490, %v6506
  %v6524 = vmul.f32 %v6491, %v6506
  %v6525 = vmul.f32 %v6492, %v6506
  %v6526 = vmul.f32 %v6493, %v6506
  %v6527 = vmul.f32 %v6494, %v6506
  %v6528 = vmul.f32 %v6495, %v6506
  %v6529 = vmul.f32 %v6496, %v6506
  %v6530 = vmul.f32 %v6497, %v6506
  %v6531 = vmul.f32 %v6498, %v6506
  %v6532 = vmul.f32 %v6499, %v6506
  %v6533 = vmul.f32 %v6500, %v6506
  %v6534 = vmul.f32 %v6501, %v6506
  %v6535 = vmul.f32 %v6502, %v6506
  %v6536 = vmul.f32 %v6503, %v6506
  %v6537 = vmul.f32 %v6504, %v6506
  %v6538 = vmul.f32 %v6505, %v6506
  %6539 = vadd.xlane.f32.xlu0 %v6507
  %v6540 = vpop.xlane.xlu0 %6539
  %6541 = vadd.xlane.f32.xlu0 %v6508
  %v6542 = vpop.xlane.xlu0 %6541
  %6543 = vadd.xlane.f32.xlu0 %v6509
  %v6544 = vpop.xlane.xlu0 %6543
  %6545 = vadd.xlane.f32.xlu0 %v6510
  %v6546 = vpop.xlane.xlu0 %6545
  %6547 = vadd.xlane.f32.xlu0 %v6511
  %v6548 = vpop.xlane.xlu0 %6547
  %6549 = vadd.xlane.f32.xlu0 %v6512
  %v6550 = vpop.xlane.xlu0 %6549
  %6551 = vadd.xlane.f32.xlu0 %v6513
  %v6552 = vpop.xlane.xlu0 %6551
  %6553 = vadd.xlane.f32.xlu0 %v6514
  %v6554 = vpop.xlane.xlu0 %6553
  %6555 = vadd.xlane.f32.xlu0 %v6515
  %v6556 = vpop.xlane.xlu0 %6555
  %6557 = vadd.xlane.f32.xlu0 %v6516
  %v6558 = vpop.xlane.xlu0 %6557
  %6559 = vadd.xlane.f32.xlu0 %v6517
  %v6560 = vpop.xlane.xlu0 %6559
  %6561 = vadd.xlane.f32.xlu0 %v6518
  %v6562 = vpop.xlane.xlu0 %6561
  %6563 = vadd.xlane.f32.xlu0 %v6519
  %v6564 = vpop.xlane.xlu0 %6563
  %6565 = vadd.xlane.f32.xlu0 %v6520
  %v6566 = vpop.xlane.xlu0 %6565
  %6567 = vadd.xlane.f32.xlu0 %v6521
  %v6568 = vpop.xlane.xlu0 %6567
  %6569 = vadd.xlane.f32.xlu0 %v6522
  %v6570 = vpop.xlane.xlu0 %6569
  %6571 = vadd.xlane.f32.xlu0 %v6523
  %v6572 = vpop.xlane.xlu0 %6571
  %6573 = vadd.xlane.f32.xlu0 %v6524
  %v6574 = vpop.xlane.xlu0 %6573
  %6575 = vadd.xlane.f32.xlu0 %v6525
  %v6576 = vpop.xlane.xlu0 %6575
  %6577 = vadd.xlane.f32.xlu0 %v6526
  %v6578 = vpop.xlane.xlu0 %6577
  %6579 = vadd.xlane.f32.xlu0 %v6527
  %v6580 = vpop.xlane.xlu0 %6579
  %6581 = vadd.xlane.f32.xlu0 %v6528
  %v6582 = vpop.xlane.xlu0 %6581
  %6583 = vadd.xlane.f32.xlu0 %v6529
  %v6584 = vpop.xlane.xlu0 %6583
  %6585 = vadd.xlane.f32.xlu0 %v6530
  %v6586 = vpop.xlane.xlu0 %6585
  %6587 = vadd.xlane.f32.xlu0 %v6531
  %v6588 = vpop.xlane.xlu0 %6587
  %6589 = vadd.xlane.f32.xlu0 %v6532
  %v6590 = vpop.xlane.xlu0 %6589
  %6591 = vadd.xlane.f32.xlu0 %v6533
  %v6592 = vpop.xlane.xlu0 %6591
  %6593 = vadd.xlane.f32.xlu0 %v6534
  %v6594 = vpop.xlane.xlu0 %6593
  %6595 = vadd.xlane.f32.xlu0 %v6535
  %v6596 = vpop.xlane.xlu0 %6595
  %6597 = vadd.xlane.f32.xlu0 %v6536
  %v6598 = vpop.xlane.xlu0 %6597
  %6599 = vadd.xlane.f32.xlu0 %v6537
  %v6600 = vpop.xlane.xlu0 %6599
  %6601 = vadd.xlane.f32.xlu0 %v6538
  %v6602 = vpop.xlane.xlu0 %6601
  %v6603 = vld [vmem:[%s9 + $0x2] ss:$0 sm:$0xff]
  %v6604 = vmul.f32 %v6474, %v6603
  %v6605 = vmul.f32 %v6475, %v6603
  %v6606 = vmul.f32 %v6476, %v6603
  %v6607 = vmul.f32 %v6477, %v6603
  %v6608 = vmul.f32 %v6478, %v6603
  %v6609 = vmul.f32 %v6479, %v6603
  %v6610 = vmul.f32 %v6480, %v6603
  %v6611 = vmul.f32 %v6481, %v6603
  %v6612 = vmul.f32 %v6482, %v6603
  %v6613 = vmul.f32 %v6483, %v6603
  %v6614 = vmul.f32 %v6484, %v6603
  %v6615 = vmul.f32 %v6485, %v6603
  %v6616 = vmul.f32 %v6486, %v6603
  %v6617 = vmul.f32 %v6487, %v6603
  %v6618 = vmul.f32 %v6488, %v6603
  %v6619 = vmul.f32 %v6489, %v6603
  %v6620 = vmul.f32 %v6490, %v6603
  %v6621 = vmul.f32 %v6491, %v6603
  %v6622 = vmul.f32 %v6492, %v6603
  %v6623 = vmul.f32 %v6493, %v6603
  %v6624 = vmul.f32 %v6494, %v6603
  %v6625 = vmul.f32 %v6495, %v6603
  %v6626 = vmul.f32 %v6496, %v6603
  %v6627 = vmul.f32 %v6497, %v6603
  %v6628 = vmul.f32 %v6498, %v6603
  %v6629 = vmul.f32 %v6499, %v6603
  %v6630 = vmul.f32 %v6500, %v6603
  %v6631 = vmul.f32 %v6501, %v6603
  %v6632 = vmul.f32 %v6502, %v6603
  %v6633 = vmul.f32 %v6503, %v6603
  %v6634 = vmul.f32 %v6504, %v6603
  %v6635 = vmul.f32 %v6505, %v6603
  %6636 = vadd.xlane.f32.xlu0 %v6604
  %v6637 = vpop.xlane.xlu0 %6636
  %6638 = vadd.xlane.f32.xlu0 %v6605
  %v6639 = vpop.xlane.xlu0 %6638
  %6640 = vadd.xlane.f32.xlu0 %v6606
  %v6641 = vpop.xlane.xlu0 %6640
  %6642 = vadd.xlane.f32.xlu0 %v6607
  %v6643 = vpop.xlane.xlu0 %6642
  %6644 = vadd.xlane.f32.xlu0 %v6608
  %v6645 = vpop.xlane.xlu0 %6644
  %6646 = vadd.xlane.f32.xlu0 %v6609
  %v6647 = vpop.xlane.xlu0 %6646
  %6648 = vadd.xlane.f32.xlu0 %v6610
  %v6649 = vpop.xlane.xlu0 %6648
  %6650 = vadd.xlane.f32.xlu0 %v6611
  %v6651 = vpop.xlane.xlu0 %6650
  %6652 = vadd.xlane.f32.xlu0 %v6612
  %v6653 = vpop.xlane.xlu0 %6652
  %6654 = vadd.xlane.f32.xlu0 %v6613
  %v6655 = vpop.xlane.xlu0 %6654
  %6656 = vadd.xlane.f32.xlu0 %v6614
  %v6657 = vpop.xlane.xlu0 %6656
  %6658 = vadd.xlane.f32.xlu0 %v6615
  %v6659 = vpop.xlane.xlu0 %6658
  %6660 = vadd.xlane.f32.xlu0 %v6616
  %v6661 = vpop.xlane.xlu0 %6660
  %6662 = vadd.xlane.f32.xlu0 %v6617
  %v6663 = vpop.xlane.xlu0 %6662
  %6664 = vadd.xlane.f32.xlu0 %v6618
  %v6665 = vpop.xlane.xlu0 %6664
  %6666 = vadd.xlane.f32.xlu0 %v6619
  %v6667 = vpop.xlane.xlu0 %6666
  %6668 = vadd.xlane.f32.xlu0 %v6620
  %v6669 = vpop.xlane.xlu0 %6668
  %6670 = vadd.xlane.f32.xlu0 %v6621
  %v6671 = vpop.xlane.xlu0 %6670
  %6672 = vadd.xlane.f32.xlu0 %v6622
  %v6673 = vpop.xlane.xlu0 %6672
  %6674 = vadd.xlane.f32.xlu0 %v6623
  %v6675 = vpop.xlane.xlu0 %6674
  %6676 = vadd.xlane.f32.xlu0 %v6624
  %v6677 = vpop.xlane.xlu0 %6676
  %6678 = vadd.xlane.f32.xlu0 %v6625
  %v6679 = vpop.xlane.xlu0 %6678
  %6680 = vadd.xlane.f32.xlu0 %v6626
  %v6681 = vpop.xlane.xlu0 %6680
  %6682 = vadd.xlane.f32.xlu0 %v6627
  %v6683 = vpop.xlane.xlu0 %6682
  %6684 = vadd.xlane.f32.xlu0 %v6628
  %v6685 = vpop.xlane.xlu0 %6684
  %6686 = vadd.xlane.f32.xlu0 %v6629
  %v6687 = vpop.xlane.xlu0 %6686
  %6688 = vadd.xlane.f32.xlu0 %v6630
  %v6689 = vpop.xlane.xlu0 %6688
  %6690 = vadd.xlane.f32.xlu0 %v6631
  %v6691 = vpop.xlane.xlu0 %6690
  %6692 = vadd.xlane.f32.xlu0 %v6632
  %v6693 = vpop.xlane.xlu0 %6692
  %6694 = vadd.xlane.f32.xlu0 %v6633
  %v6695 = vpop.xlane.xlu0 %6694
  %6696 = vadd.xlane.f32.xlu0 %v6634
  %v6697 = vpop.xlane.xlu0 %6696
  %6698 = vadd.xlane.f32.xlu0 %v6635
  %v6699 = vpop.xlane.xlu0 %6698
  %v6700 = vld [vmem:[%s9 + $0x3] ss:$0 sm:$0xff]
  %v6701 = vmul.f32 %v6474, %v6700
  %v6702 = vmul.f32 %v6475, %v6700
  %v6703 = vmul.f32 %v6476, %v6700
  %v6704 = vmul.f32 %v6477, %v6700
  %v6705 = vmul.f32 %v6478, %v6700
  %v6706 = vmul.f32 %v6479, %v6700
  %v6707 = vmul.f32 %v6480, %v6700
  %v6708 = vmul.f32 %v6481, %v6700
  %v6709 = vmul.f32 %v6482, %v6700
  %v6710 = vmul.f32 %v6483, %v6700
  %v6711 = vmul.f32 %v6484, %v6700
  %v6712 = vmul.f32 %v6485, %v6700
  %v6713 = vmul.f32 %v6486, %v6700
  %v6714 = vmul.f32 %v6487, %v6700
  %v6715 = vmul.f32 %v6488, %v6700
  %v6716 = vmul.f32 %v6489, %v6700
  %v6717 = vmul.f32 %v6490, %v6700
  %v6718 = vmul.f32 %v6491, %v6700
  %v6719 = vmul.f32 %v6492, %v6700
  %v6720 = vmul.f32 %v6493, %v6700
  %v6721 = vmul.f32 %v6494, %v6700
  %v6722 = vmul.f32 %v6495, %v6700
  %v6723 = vmul.f32 %v6496, %v6700
  %v6724 = vmul.f32 %v6497, %v6700
  %v6725 = vmul.f32 %v6498, %v6700
  %v6726 = vmul.f32 %v6499, %v6700
  %v6727 = vmul.f32 %v6500, %v6700
  %v6728 = vmul.f32 %v6501, %v6700
  %v6729 = vmul.f32 %v6502, %v6700
  %v6730 = vmul.f32 %v6503, %v6700
  %v6731 = vmul.f32 %v6504, %v6700
  %v6732 = vmul.f32 %v6505, %v6700
  %6733 = vadd.xlane.f32.xlu0 %v6701
  %v6734 = vpop.xlane.xlu0 %6733
  %6735 = vadd.xlane.f32.xlu0 %v6702
  %v6736 = vpop.xlane.xlu0 %6735
  %6737 = vadd.xlane.f32.xlu0 %v6703
  %v6738 = vpop.xlane.xlu0 %6737
  %6739 = vadd.xlane.f32.xlu0 %v6704
  %v6740 = vpop.xlane.xlu0 %6739
  %6741 = vadd.xlane.f32.xlu0 %v6705
  %v6742 = vpop.xlane.xlu0 %6741
  %6743 = vadd.xlane.f32.xlu0 %v6706
  %v6744 = vpop.xlane.xlu0 %6743
  %6745 = vadd.xlane.f32.xlu0 %v6707
  %v6746 = vpop.xlane.xlu0 %6745
  %6747 = vadd.xlane.f32.xlu0 %v6708
  %v6748 = vpop.xlane.xlu0 %6747
  %6749 = vadd.xlane.f32.xlu0 %v6709
  %v6750 = vpop.xlane.xlu0 %6749
  %6751 = vadd.xlane.f32.xlu0 %v6710
  %v6752 = vpop.xlane.xlu0 %6751
  %6753 = vadd.xlane.f32.xlu0 %v6711
  %v6754 = vpop.xlane.xlu0 %6753
  %6755 = vadd.xlane.f32.xlu0 %v6712
  %v6756 = vpop.xlane.xlu0 %6755
  %6757 = vadd.xlane.f32.xlu0 %v6713
  %v6758 = vpop.xlane.xlu0 %6757
  %6759 = vadd.xlane.f32.xlu0 %v6714
  %v6760 = vpop.xlane.xlu0 %6759
  %6761 = vadd.xlane.f32.xlu0 %v6715
  %v6762 = vpop.xlane.xlu0 %6761
  %6763 = vadd.xlane.f32.xlu0 %v6716
  %v6764 = vpop.xlane.xlu0 %6763
  %6765 = vadd.xlane.f32.xlu0 %v6717
  %v6766 = vpop.xlane.xlu0 %6765
  %6767 = vadd.xlane.f32.xlu0 %v6718
  %v6768 = vpop.xlane.xlu0 %6767
  %6769 = vadd.xlane.f32.xlu0 %v6719
  %v6770 = vpop.xlane.xlu0 %6769
  %6771 = vadd.xlane.f32.xlu0 %v6720
  %v6772 = vpop.xlane.xlu0 %6771
  %6773 = vadd.xlane.f32.xlu0 %v6721
  %v6774 = vpop.xlane.xlu0 %6773
  %6775 = vadd.xlane.f32.xlu0 %v6722
  %v6776 = vpop.xlane.xlu0 %6775
  %6777 = vadd.xlane.f32.xlu0 %v6723
  %v6778 = vpop.xlane.xlu0 %6777
  %6779 = vadd.xlane.f32.xlu0 %v6724
  %v6780 = vpop.xlane.xlu0 %6779
  %6781 = vadd.xlane.f32.xlu0 %v6725
  %v6782 = vpop.xlane.xlu0 %6781
  %6783 = vadd.xlane.f32.xlu0 %v6726
  %v6784 = vpop.xlane.xlu0 %6783
  %6785 = vadd.xlane.f32.xlu0 %v6727
  %v6786 = vpop.xlane.xlu0 %6785
  %6787 = vadd.xlane.f32.xlu0 %v6728
  %v6788 = vpop.xlane.xlu0 %6787
  %6789 = vadd.xlane.f32.xlu0 %v6729
  %v6790 = vpop.xlane.xlu0 %6789
  %6791 = vadd.xlane.f32.xlu0 %v6730
  %v6792 = vpop.xlane.xlu0 %6791
  %6793 = vadd.xlane.f32.xlu0 %v6731
  %v6794 = vpop.xlane.xlu0 %6793
  %6795 = vadd.xlane.f32.xlu0 %v6732
  %v6796 = vpop.xlane.xlu0 %6795
  %vm6797 = vcmask 7168
  %v6798 = vsel %vm6797, %v6540, %v6637
  %v6799 = vsel %vm6797, %v6542, %v6639
  %v6800 = vsel %vm6797, %v6544, %v6641
  %v6801 = vsel %vm6797, %v6546, %v6643
  %v6802 = vsel %vm6797, %v6548, %v6645
  %v6803 = vsel %vm6797, %v6550, %v6647
  %v6804 = vsel %vm6797, %v6552, %v6649
  %v6805 = vsel %vm6797, %v6554, %v6651
  %v6806 = vsel %vm6797, %v6556, %v6653
  %v6807 = vsel %vm6797, %v6558, %v6655
  %v6808 = vsel %vm6797, %v6560, %v6657
  %v6809 = vsel %vm6797, %v6562, %v6659
  %v6810 = vsel %vm6797, %v6564, %v6661
  %v6811 = vsel %vm6797, %v6566, %v6663
  %v6812 = vsel %vm6797, %v6568, %v6665
  %v6813 = vsel %vm6797, %v6570, %v6667
  %v6814 = vsel %vm6797, %v6572, %v6669
  %v6815 = vsel %vm6797, %v6574, %v6671
  %v6816 = vsel %vm6797, %v6576, %v6673
  %v6817 = vsel %vm6797, %v6578, %v6675
  %v6818 = vsel %vm6797, %v6580, %v6677
  %v6819 = vsel %vm6797, %v6582, %v6679
  %v6820 = vsel %vm6797, %v6584, %v6681
  %v6821 = vsel %vm6797, %v6586, %v6683
  %v6822 = vsel %vm6797, %v6588, %v6685
  %v6823 = vsel %vm6797, %v6590, %v6687
  %v6824 = vsel %vm6797, %v6592, %v6689
  %v6825 = vsel %vm6797, %v6594, %v6691
  %v6826 = vsel %vm6797, %v6596, %v6693
  %v6827 = vsel %vm6797, %v6598, %v6695
  %v6828 = vsel %vm6797, %v6600, %v6697
  %v6829 = vsel %vm6797, %v6602, %v6699
  %vm6830 = vcmask 15360
  %v6831 = vsel %vm6830, %v6798, %v6734
  %v6832 = vsel %vm6830, %v6799, %v6736
  %v6833 = vsel %vm6830, %v6800, %v6738
  %v6834 = vsel %vm6830, %v6801, %v6740
  %v6835 = vsel %vm6830, %v6802, %v6742
  %v6836 = vsel %vm6830, %v6803, %v6744
  %v6837 = vsel %vm6830, %v6804, %v6746
  %v6838 = vsel %vm6830, %v6805, %v6748
  %v6839 = vsel %vm6830, %v6806, %v6750
  %v6840 = vsel %vm6830, %v6807, %v6752
  %v6841 = vsel %vm6830, %v6808, %v6754
  %v6842 = vsel %vm6830, %v6809, %v6756
  %v6843 = vsel %vm6830, %v6810, %v6758
  %v6844 = vsel %vm6830, %v6811, %v6760
  %v6845 = vsel %vm6830, %v6812, %v6762
  %v6846 = vsel %vm6830, %v6813, %v6764
  %v6847 = vsel %vm6830, %v6814, %v6766
  %v6848 = vsel %vm6830, %v6815, %v6768
  %v6849 = vsel %vm6830, %v6816, %v6770
  %v6850 = vsel %vm6830, %v6817, %v6772
  %v6851 = vsel %vm6830, %v6818, %v6774
  %v6852 = vsel %vm6830, %v6819, %v6776
  %v6853 = vsel %vm6830, %v6820, %v6778
  %v6854 = vsel %vm6830, %v6821, %v6780
  %v6855 = vsel %vm6830, %v6822, %v6782
  %v6856 = vsel %vm6830, %v6823, %v6784
  %v6857 = vsel %vm6830, %v6824, %v6786
  %v6858 = vsel %vm6830, %v6825, %v6788
  %v6859 = vsel %vm6830, %v6826, %v6790
  %v6860 = vsel %vm6830, %v6827, %v6792
  %v6861 = vsel %vm6830, %v6828, %v6794
  %v6862 = vsel %vm6830, %v6829, %v6796
  %vm6863 = vcmask 23552
  %v6864 = vsel %vm6863, %v6831, %v5289
  %v6865 = vsel %vm6863, %v6832, %v5292
  %v6866 = vsel %vm6863, %v6833, %v5295
  %v6867 = vsel %vm6863, %v6834, %v5298
  %v6868 = vsel %vm6863, %v6835, %v5301
  %v6869 = vsel %vm6863, %v6836, %v5304
  %v6870 = vsel %vm6863, %v6837, %v5307
  %v6871 = vsel %vm6863, %v6838, %v5310
  %v6872 = vsel %vm6863, %v6839, %v5313
  %v6873 = vsel %vm6863, %v6840, %v5316
  %v6874 = vsel %vm6863, %v6841, %v5319
  %v6875 = vsel %vm6863, %v6842, %v5322
  %v6876 = vsel %vm6863, %v6843, %v5325
  %v6877 = vsel %vm6863, %v6844, %v5328
  %v6878 = vsel %vm6863, %v6845, %v5331
  %v6879 = vsel %vm6863, %v6846, %v5334
  %v6880 = vsel %vm6863, %v6847, %v5337
  %v6881 = vsel %vm6863, %v6848, %v5340
  %v6882 = vsel %vm6863, %v6849, %v5343
  %v6883 = vsel %vm6863, %v6850, %v5346
  %v6884 = vsel %vm6863, %v6851, %v5349
  %v6885 = vsel %vm6863, %v6852, %v5352
  %v6886 = vsel %vm6863, %v6853, %v5355
  %v6887 = vsel %vm6863, %v6854, %v5358
  %v6888 = vsel %vm6863, %v6855, %v5361
  %v6889 = vsel %vm6863, %v6856, %v5364
  %v6890 = vsel %vm6863, %v6857, %v5367
  %v6891 = vsel %vm6863, %v6858, %v5370
  %v6892 = vsel %vm6863, %v6859, %v5373
  %v6893 = vsel %vm6863, %v6860, %v5376
  %v6894 = vsel %vm6863, %v6861, %v5379
  %v6895 = vsel %vm6863, %v6862, %v5382
  %v6896 = vld [vmem:[%s10] sm:$0x1]
  %v6898 = vlaneseq
  %v6899 = vshrl.u32 %v6898, 7
  %v6900 = vsub.s32 0, %v6899
  %v6901 = vrot.slane %v6896, %v6900
  %v6903 = vadd.f32 %v6864, %v6901
  %v6904 = vadd.f32 %v6865, %v6901
  %v6905 = vadd.f32 %v6866, %v6901
  %v6906 = vadd.f32 %v6867, %v6901
  %v6907 = vadd.f32 %v6868, %v6901
  %v6908 = vadd.f32 %v6869, %v6901
  %v6909 = vadd.f32 %v6870, %v6901
  %v6910 = vadd.f32 %v6871, %v6901
  %v6911 = vadd.f32 %v6872, %v6901
  %v6912 = vadd.f32 %v6873, %v6901
  %v6913 = vadd.f32 %v6874, %v6901
  %v6914 = vadd.f32 %v6875, %v6901
  %v6915 = vadd.f32 %v6876, %v6901
  %v6916 = vadd.f32 %v6877, %v6901
  %v6917 = vadd.f32 %v6878, %v6901
  %v6918 = vadd.f32 %v6879, %v6901
  %v6919 = vadd.f32 %v6880, %v6901
  %v6920 = vadd.f32 %v6881, %v6901
  %v6921 = vadd.f32 %v6882, %v6901
  %v6922 = vadd.f32 %v6883, %v6901
  %v6923 = vadd.f32 %v6884, %v6901
  %v6924 = vadd.f32 %v6885, %v6901
  %v6925 = vadd.f32 %v6886, %v6901
  %v6926 = vadd.f32 %v6887, %v6901
  %v6927 = vadd.f32 %v6888, %v6901
  %v6928 = vadd.f32 %v6889, %v6901
  %v6929 = vadd.f32 %v6890, %v6901
  %v6930 = vadd.f32 %v6891, %v6901
  %v6931 = vadd.f32 %v6892, %v6901
  %v6932 = vadd.f32 %v6893, %v6901
  %v6933 = vadd.f32 %v6894, %v6901
  %v6934 = vadd.f32 %v6895, %v6901
  %vm6935 = vcmask 31744
  %6936 = vst.msk [vmem:[%s11] sm:$0xff] %vm6935, %v6903
  %6937 = vst.msk [vmem:[%s11 + $0x8] sm:$0xff] %vm6935, %v6904
  %6938 = vst.msk [vmem:[%s11 + $0x10] sm:$0xff] %vm6935, %v6905
  %6939 = vst.msk [vmem:[%s11 + $0x18] sm:$0xff] %vm6935, %v6906
  %6940 = vst.msk [vmem:[%s11 + $0x20] sm:$0xff] %vm6935, %v6907
  %6941 = vst.msk [vmem:[%s11 + $0x28] sm:$0xff] %vm6935, %v6908
  %6942 = vst.msk [vmem:[%s11 + $0x30] sm:$0xff] %vm6935, %v6909
  %6943 = vst.msk [vmem:[%s11 + $0x38] sm:$0xff] %vm6935, %v6910
  %6944 = vst.msk [vmem:[%s11 + $0x40] sm:$0xff] %vm6935, %v6911
  %6945 = vst.msk [vmem:[%s11 + $0x48] sm:$0xff] %vm6935, %v6912
  %6946 = vst.msk [vmem:[%s11 + $0x50] sm:$0xff] %vm6935, %v6913
  %6947 = vst.msk [vmem:[%s11 + $0x58] sm:$0xff] %vm6935, %v6914
  %6948 = vst.msk [vmem:[%s11 + $0x60] sm:$0xff] %vm6935, %v6915
  %6949 = vst.msk [vmem:[%s11 + $0x68] sm:$0xff] %vm6935, %v6916
  %6950 = vst.msk [vmem:[%s11 + $0x70] sm:$0xff] %vm6935, %v6917
  %6951 = vst.msk [vmem:[%s11 + $0x78] sm:$0xff] %vm6935, %v6918
  %6952 = vst.msk [vmem:[%s11 + $0x80] sm:$0xff] %vm6935, %v6919
  %6953 = vst.msk [vmem:[%s11 + $0x88] sm:$0xff] %vm6935, %v6920
  %6954 = vst.msk [vmem:[%s11 + $0x90] sm:$0xff] %vm6935, %v6921
  %6955 = vst.msk [vmem:[%s11 + $0x98] sm:$0xff] %vm6935, %v6922
  %6956 = vst.msk [vmem:[%s11 + $0xa0] sm:$0xff] %vm6935, %v6923
  %6957 = vst.msk [vmem:[%s11 + $0xa8] sm:$0xff] %vm6935, %v6924
  %6958 = vst.msk [vmem:[%s11 + $0xb0] sm:$0xff] %vm6935, %v6925
  %6959 = vst.msk [vmem:[%s11 + $0xb8] sm:$0xff] %vm6935, %v6926
  %6960 = vst.msk [vmem:[%s11 + $0xc0] sm:$0xff] %vm6935, %v6927
  %6961 = vst.msk [vmem:[%s11 + $0xc8] sm:$0xff] %vm6935, %v6928
  %6962 = vst.msk [vmem:[%s11 + $0xd0] sm:$0xff] %vm6935, %v6929
  %6963 = vst.msk [vmem:[%s11 + $0xd8] sm:$0xff] %vm6935, %v6930
  %6964 = vst.msk [vmem:[%s11 + $0xe0] sm:$0xff] %vm6935, %v6931
  %6965 = vst.msk [vmem:[%s11 + $0xe8] sm:$0xff] %vm6935, %v6932
  %6966 = vst.msk [vmem:[%s11 + $0xf0] sm:$0xff] %vm6935, %v6933
  %6967 = vst.msk [vmem:[%s11 + $0xf8] sm:$0xff] %vm6935, %v6934
  // Predicated region
  $region46: #{nerf_forward.1} parent=0 // pred_check
    _
  $region47: #{nerf_forward.1} parent=0 // pred_check_branch
    %6969 = sbr.rel (0) target = $region49
  $region48: #{nerf_forward.1} parent=0 // pred_region
    _
  $region49: #{nerf_forward.1} parent=0 // pred_fallthru
    _
  // Predicated region
  $region50: #{nerf_forward.1} parent=0 // pred_check
    _
  $region51: #{nerf_forward.1} parent=0 // pred_check_branch
    %6971 = sbr.rel (0) target = $region53
  $region52: #{nerf_forward.1} parent=0 // pred_region
    _
  $region53: #{nerf_forward.1} parent=0 // pred_fallthru
    _

</llo_original>
